<compile_context>
chip_gen: v7x
topology: tpu7x:2x2x1
jax: 0.10.0
libtpu: 0.0.40
codegen_flags: <defaults>
</compile_context>

<pallas_src>
import functools

import jax
import jax.numpy as jnp
from jax import lax
from jax.experimental import pallas as pl
from jax.experimental.pallas import tpu as pltpu


C1 = 16    # conv1 output channels
C2 = 32    # conv2 output channels
FCH = 128  # fc1 hidden width


# ---------------------------------------------------------------------------
# Fused Pallas kernel: conv1 -> conv2 -> flatten -> fc1 -> fc2
# ---------------------------------------------------------------------------
def _fused_forward_kernel(
    x81_ref,    # (9, 9*N*HW)   bf16  pre-shifted input: [u, t*N*HW + n*HW + p]
    mask_ref,   # (1, 9*N*HW)   f32   conv2-tap validity mask (0/1)
    w1c_ref,    # (C1, 9)       bf16  conv1 weights, col = ky*3 + kx
    b1c_ref,    # (C1, 1)       f32
    w2c_ref,    # (C2, 9*C1)    bf16  conv2 weights, col = tap*C1 + ci
    b2c_ref,    # (C2, 1)       f32
    w1f_ref,    # (cb*HW, FCH)  bf16  fc1 weight row-chunk (flatten order c*HW+p)
    b1f_ref,    # (1, FCH)      f32
    w2f_ref,    # (FCH, HW)     bf16  fc2 weights, (in, out)
    b2f_ref,    # (1, HW)       f32
    o_ref,      # (N, HW)       f32   network output (lane-dense)
    feat_ref,   # scratch (N, C2*HW) f32 : conv2 output in NCHW-flatten order
    acc_ref,    # scratch (N, FCH)   f32 : fc1 accumulator
    *,
    hw: int,
    batch: int,
    cb: int,
):
    k = pl.program_id(0)
    nhw = batch * hw

    # ---- grid step 0: both convolutions, batched over samples --------------
    @pl.when(k == 0)
    def _conv_stage():
        # conv1 evaluated at all 9 conv2-tap offsets for all samples: one dot.
        h1 = jnp.dot(w1c_ref[...], x81_ref[...],
                     preferred_element_type=jnp.float32)          # (C1, 9*N*HW)
        h1 = jnp.maximum(h1 + b1c_ref[...], 0.0) * mask_ref[...]

        # In-kernel im2col for conv2: the 9 shifted copies of conv1's output
        # are 128-aligned lane slices of h1, stacked along sublanes.
        pcat = jnp.concatenate(
            [h1[:, t * nhw:(t + 1) * nhw] for t in range(9)], axis=0)
        h2 = jnp.dot(w2c_ref[...], pcat.astype(jnp.bfloat16),
                     preferred_element_type=jnp.float32)          # (C2, N*HW)
        h2 = jnp.maximum(h2 + b2c_ref[...], 0.0)

        # NCHW flatten: feat[n, c*HW + p] = h2[c, n*HW + p].  Static, lane-
        # aligned (1, HW) row stores; this keeps fc1 as a single long-K dot.
        for c in range(C2):
            for nn in range(batch):
                feat_ref[nn:nn + 1, c * hw:(c + 1) * hw] = (
                    h2[c:c + 1, nn * hw:(nn + 1) * hw])

        acc_ref[...] = jnp.zeros_like(acc_ref)

    # ---- every grid step: one long-K fc1 chunk (bf16 MXU, f32 accumulate) --
    c0 = pl.multiple_of(k * (cb * hw), 128)
    a = feat_ref[:, pl.ds(c0, cb * hw)]                           # (N, cb*HW)
    acc_ref[...] += jnp.dot(a.astype(jnp.bfloat16), w1f_ref[...],
                            preferred_element_type=jnp.float32)

    # ---- last grid step: fc1 bias + relu, then fc2 (lane-dense output) -----
    @pl.when(k == pl.num_programs(0) - 1)
    def _fc_finalize():
        h = jnp.maximum(acc_ref[...] + b1f_ref[...], 0.0)         # (N, FCH)
        out = jnp.dot(h.astype(jnp.bfloat16), w2f_ref[...],
                      preferred_element_type=jnp.float32)
        o_ref[...] = (out + b2f_ref[...]).astype(o_ref.dtype)


# ---------------------------------------------------------------------------
# XLA glue: pre-shifted input + conv2-tap border mask (bf16 input copies)
# ---------------------------------------------------------------------------
def _build_kernel_inputs(x_nchw):
    """x81[u, t*N*HW + n*HW + p] = x[n, 0, y+dy_t+ay_u, x+dx_t+ax_u] (0 OOB),
    with p = y*W + x, t the conv2 tap, u the conv1 tap.  This lets the kernel
    evaluate conv1 at every conv2 tap offset with plain matmuls and aligned
    lane slices.  mask zeroes conv1 values at tap positions outside the image
    (conv2's zero padding of conv1's output)."""
    n, _, h, w = x_nchw.shape
    hw = h * w
    xp = jnp.pad(x_nchw[:, 0, :, :], ((0, 0), (2, 2), (2, 2)))

    def shifted(sy, sx):                                 # (N*HW,)
        return xp[:, 2 + sy:2 + sy + h, 2 + sx:2 + sx + w].reshape(n * hw)

    rows = []
    for u in range(9):
        ay, ax = u // 3 - 1, u % 3 - 1
        rows.append(jnp.concatenate(
            [shifted(t // 3 - 1 + ay, t % 3 - 1 + ax) for t in range(9)],
            axis=0))
    x81 = jnp.stack(rows, axis=0).astype(jnp.bfloat16)   # (9, 9*N*HW)

    yv = jnp.arange(hw, dtype=jnp.int32) // w
    xv = jnp.arange(hw, dtype=jnp.int32) % w
    parts = []
    for t in range(9):
        dy, dx = t // 3 - 1, t % 3 - 1
        ok = (yv + dy >= 0) & (yv + dy < h) & (xv + dx >= 0) & (xv + dx < w)
        parts.append(jnp.tile(ok.astype(jnp.float32), n))
    mask = jnp.concatenate(parts, axis=0)[None, :]       # (1, 9*N*HW)
    return x81, mask


# ---------------------------------------------------------------------------
# Forward pass (single pallas_call)
# ---------------------------------------------------------------------------
def placement_net_forward(x_nchw, params, *, channels_per_step=C2):
    """Forward pass matching the PyTorch PlacementNet.  x_nchw: (N, 1, H, W)."""
    n, cin, h, w = x_nchw.shape
    assert cin == 1
    hw = h * w
    cb = channels_per_step
    assert C2 % cb == 0
    kc = C2 // cb                                        # fc1 weight chunks (default 1)

    x81, mask = _build_kernel_inputs(x_nchw)

    operands = (
        x81, mask,
        params["w1c"], params["b1c"], params["w2c"], params["b2c"],
        params["w1f"], params["b1f"], params["w2f"], params["b2f"],
    )

    # conv1 is intentionally evaluated at all 9 conv2-tap offsets (9x FLOPs).
    flops = (2 * C1 * 9 * (9 * n * hw)
             + 2 * C2 * (9 * C1) * (n * hw)
             + 2 * n * (C2 * hw) * FCH
             + 2 * n * FCH * hw)
    bytes_accessed = (sum(int(a.size) * a.dtype.itemsize for a in operands)
                      + n * hw * 4)

    kernel = functools.partial(_fused_forward_kernel, hw=hw, batch=n, cb=cb)

    # Note (v7x): if batch/HW ever grow enough to be compute-bound, add a
    # leading "parallel" grid axis over batch tiles; at this size the kernel
    # is overhead/DMA-bound so a single-step "arbitrary" grid is best.
    return pl.pallas_call(
        kernel,
        out_shape=jax.ShapeDtypeStruct((n, hw), jnp.float32),
        grid_spec=pltpu.PrefetchScalarGridSpec(
            num_scalar_prefetch=0,
            grid=(kc,),
            in_specs=[
                pl.BlockSpec((9, 9 * n * hw), lambda k: (0, 0)),      # x81 (bf16)
                pl.BlockSpec((1, 9 * n * hw), lambda k: (0, 0)),      # tap mask
                pl.BlockSpec((C1, 9), lambda k: (0, 0)),              # conv1 w
                pl.BlockSpec((C1, 1), lambda k: (0, 0)),              # conv1 b
                pl.BlockSpec((C2, 9 * C1), lambda k: (0, 0)),         # conv2 w
                pl.BlockSpec((C2, 1), lambda k: (0, 0)),              # conv2 b
                pl.BlockSpec((cb * hw, FCH), lambda k: (k, 0)),       # fc1 w chunk (bf16)
                pl.BlockSpec((1, FCH), lambda k: (0, 0)),             # fc1 b
                pl.BlockSpec((FCH, hw), lambda k: (0, 0)),            # fc2 w (bf16)
                pl.BlockSpec((1, hw), lambda k: (0, 0)),              # fc2 b
            ],
            out_specs=pl.BlockSpec((n, hw), lambda k: (0, 0)),
            scratch_shapes=[
                pltpu.VMEM((n, C2 * hw), jnp.float32),                # flattened conv2 feats
                pltpu.VMEM((n, FCH), jnp.float32),                    # fc1 accumulator
            ],
        ),
        compiler_params=pltpu.CompilerParams(
            dimension_semantics=("arbitrary",),
        ),
        cost_estimate=pl.CostEstimate(
            flops=int(flops), transcendentals=0,
            bytes_accessed=int(bytes_accessed)),
    )(*operands)


# ---------------------------------------------------------------------------
# Deterministic parameter init (PyTorch-shaped, then re-laid-out)
# ---------------------------------------------------------------------------
def init_params(height, width, key):
    hw = height * width
    flat = C2 * hw
    ks = jax.random.split(key, 8)
    conv1_w = jax.random.normal(ks[0], (C1, 1, 3, 3), jnp.float32) * 0.10   # OIHW
    conv1_b = jax.random.normal(ks[1], (C1,), jnp.float32) * 0.10
    conv2_w = jax.random.normal(ks[2], (C2, C1, 3, 3), jnp.float32) * 0.05  # OIHW
    conv2_b = jax.random.normal(ks[3], (C2,), jnp.float32) * 0.05
    fc1_w = jax.random.normal(ks[4], (FCH, flat), jnp.float32) * 0.01       # (out, in)
    fc1_b = jax.random.normal(ks[5], (FCH,), jnp.float32) * 0.01
    fc2_w = jax.random.normal(ks[6], (hw, FCH), jnp.float32) * 0.05
    fc2_b = jax.random.normal(ks[7], (hw,), jnp.float32) * 0.05

    return {
        # kernel-friendly (bf16, channel-major) layouts
        "w1c": conv1_w.reshape(C1, 9).astype(jnp.bfloat16),                  # col = ky*3+kx
        "b1c": conv1_b.reshape(C1, 1),
        "w2c": jnp.transpose(conv2_w, (0, 2, 3, 1)).reshape(C2, 9 * C1)
                  .astype(jnp.bfloat16),                                     # col = tap*C1+ci
        "b2c": conv2_b.reshape(C2, 1),
        "w1f": jnp.transpose(fc1_w, (1, 0)).astype(jnp.bfloat16),            # (C2*HW, FCH)
        "b1f": fc1_b.reshape(1, FCH),
        "w2f": jnp.transpose(fc2_w, (1, 0)).astype(jnp.bfloat16),            # (FCH, HW)
        "b2f": fc2_b.reshape(1, hw),
        # PyTorch-shaped f32 copies, used only by the XLA reference check
        "conv1_w": conv1_w, "conv1_b": conv1_b,
        "conv2_w": conv2_w, "conv2_b": conv2_b,
        "fc1_w": fc1_w, "fc1_b": fc1_b,
        "fc2_w": fc2_w, "fc2_b": fc2_b,
    }


def reference_forward(x_nchw, params):
    """Pure-JAX / XLA reference reproducing the PyTorch forward exactly."""
    hp = dict(window_strides=(1, 1), padding="SAME",
              dimension_numbers=("NCHW", "OIHW", "NCHW"),
              precision=lax.Precision.HIGHEST)
    y = lax.conv_general_dilated(x_nchw, params["conv1_w"], **hp)
    y = jnp.maximum(y + params["conv1_b"][None, :, None, None], 0.0)
    y = lax.conv_general_dilated(y, params["conv2_w"], **hp)
    y = jnp.maximum(y + params["conv2_b"][None, :, None, None], 0.0)
    y = y.reshape(y.shape[0], -1)
    y = jnp.maximum(y @ params["fc1_w"].T + params["fc1_b"], 0.0)
    return y @ params["fc2_w"].T + params["fc2_b"]


# ---------------------------------------------------------------------------
if __name__ == "__main__":
    HEIGHT, WIDTH, BATCH = 16, 16, 2
    key = jax.random.PRNGKey(0)
    k_param, k_x = jax.random.split(key)
    params = init_params(HEIGHT, WIDTH, k_param)
    x = jax.random.normal(k_x, (BATCH, 1, HEIGHT, WIDTH), jnp.float32)

    fwd = jax.jit(placement_net_forward)
    out = jax.block_until_ready(fwd(x, params))
    assert out.shape == (BATCH, HEIGHT * WIDTH), out.shape

    ref = jax.block_until_ready(reference_forward(x, params))
    max_err = float(jnp.max(jnp.abs(out - ref)))
    assert max_err < 1e-2, f"max abs error {max_err}"

    print("KERNEL_OK")
</pallas_src>

<mosaic_0001>
module attributes {stable_mosaic.version = 11 : i64} {
  func.func @_fused_forward_kernel(%arg0: i32, %arg1: memref<9x4608xbf16, #tpu.memory_space<vmem>>, %arg2: memref<1x4608xf32, #tpu.memory_space<vmem>>, %arg3: memref<16x9xbf16, #tpu.memory_space<vmem>>, %arg4: memref<16x1xf32, #tpu.memory_space<vmem>>, %arg5: memref<32x144xbf16, #tpu.memory_space<vmem>>, %arg6: memref<32x1xf32, #tpu.memory_space<vmem>>, %arg7: memref<8192x128xbf16, #tpu.memory_space<vmem>>, %arg8: memref<1x128xf32, #tpu.memory_space<vmem>>, %arg9: memref<128x256xbf16, #tpu.memory_space<vmem>>, %arg10: memref<1x256xf32, #tpu.memory_space<vmem>>, %arg11: memref<2x256xf32, #tpu.memory_space<vmem>>, %arg12: memref<2x8192xf32, #tpu.memory_space<vmem>>, %arg13: memref<2x128xf32, #tpu.memory_space<vmem>>) attributes {dimension_semantics = [#tpu.dimension_semantics<arbitrary>], iteration_bounds = array<i64: 1>, scalar_prefetch = 0 : i64, scratch_operands = 2 : i64, tpu.core_type = #tpu.core_type<tc>, window_params = [{pipeline_mode = #tpu.pipeline_mode<synchronous>, transform_indices = @transform_0, window_bounds = array<i64: 9, 4608>}, {pipeline_mode = #tpu.pipeline_mode<synchronous>, transform_indices = @transform_1, window_bounds = array<i64: 1, 4608>}, {pipeline_mode = #tpu.pipeline_mode<synchronous>, transform_indices = @transform_2, window_bounds = array<i64: 16, 9>}, {pipeline_mode = #tpu.pipeline_mode<synchronous>, transform_indices = @transform_3, window_bounds = array<i64: 16, 1>}, {pipeline_mode = #tpu.pipeline_mode<synchronous>, transform_indices = @transform_4, window_bounds = array<i64: 32, 144>}, {pipeline_mode = #tpu.pipeline_mode<synchronous>, transform_indices = @transform_5, window_bounds = array<i64: 32, 1>}, {transform_indices = @transform_6, window_bounds = array<i64: 8192, 128>}, {pipeline_mode = #tpu.pipeline_mode<synchronous>, transform_indices = @transform_7, window_bounds = array<i64: 1, 128>}, {pipeline_mode = #tpu.pipeline_mode<synchronous>, transform_indices = @transform_8, window_bounds = array<i64: 128, 256>}, {pipeline_mode = #tpu.pipeline_mode<synchronous>, transform_indices = @transform_9, window_bounds = array<i64: 1, 256>}, {pipeline_mode = #tpu.pipeline_mode<synchronous>, transform_indices = @transform_10, window_bounds = array<i64: 2, 256>}]} {
    %c0_i32 = arith.constant 0 : i32
    %0 = arith.cmpi eq, %arg0, %c0_i32 : i32
    %1 = arith.extui %0 : i1 to i32
    %c0_i32_0 = arith.constant 0 : i32
    %2 = arith.cmpi ne, %1, %c0_i32_0 : i32
    scf.if %2 {
      %c0_9 = arith.constant 0 : index
      %c0_10 = arith.constant 0 : index
      %16 = vector.load %arg3[%c0_9, %c0_10] : memref<16x9xbf16, #tpu.memory_space<vmem>>, vector<16x9xbf16>
      %c0_11 = arith.constant 0 : index
      %c0_12 = arith.constant 0 : index
      %17 = vector.load %arg1[%c0_11, %c0_12] : memref<9x4608xbf16, #tpu.memory_space<vmem>>, vector<9x4608xbf16>
      %cst_13 = arith.constant dense<0.000000e+00> : vector<16x4608xf32>
      %18 = tpu.matmul %16, %17, %cst_13 {dimension_numbers = #tpu.dot_dimension_numbers<[1], [0], [0], [1], [0, 0, 1, 1], [], []>} : vector<16x9xbf16>, vector<9x4608xbf16>, vector<16x4608xf32> -> vector<16x4608xf32>
      %c0_14 = arith.constant 0 : index
      %c0_15 = arith.constant 0 : index
      %19 = vector.load %arg4[%c0_14, %c0_15] : memref<16x1xf32, #tpu.memory_space<vmem>>, vector<16x1xf32>
      %20 = vector.broadcast %19 : vector<16x1xf32> to vector<16x4608xf32>
      %21 = arith.addf %18, %20 : vector<16x4608xf32>
      %cst_16 = arith.constant 0.000000e+00 : f32
      %22 = vector.broadcast %cst_16 : f32 to vector<16x4608xf32>
      %23 = arith.maximumf %21, %22 : vector<16x4608xf32>
      %c0_17 = arith.constant 0 : index
      %c0_18 = arith.constant 0 : index
      %24 = vector.load %arg2[%c0_17, %c0_18] : memref<1x4608xf32, #tpu.memory_space<vmem>>, vector<1x4608xf32>
      %25 = vector.broadcast %24 : vector<1x4608xf32> to vector<16x4608xf32>
      %26 = arith.mulf %23, %25 : vector<16x4608xf32>
      %27 = vector.extract_strided_slice %26 {offsets = [0, 0], sizes = [16, 512], strides = [1, 1]} : vector<16x4608xf32> to vector<16x512xf32>
      %28 = vector.extract_strided_slice %26 {offsets = [0, 512], sizes = [16, 512], strides = [1, 1]} : vector<16x4608xf32> to vector<16x512xf32>
      %29 = vector.extract_strided_slice %26 {offsets = [0, 1024], sizes = [16, 512], strides = [1, 1]} : vector<16x4608xf32> to vector<16x512xf32>
      %30 = vector.extract_strided_slice %26 {offsets = [0, 1536], sizes = [16, 512], strides = [1, 1]} : vector<16x4608xf32> to vector<16x512xf32>
      %31 = vector.extract_strided_slice %26 {offsets = [0, 2048], sizes = [16, 512], strides = [1, 1]} : vector<16x4608xf32> to vector<16x512xf32>
      %32 = vector.extract_strided_slice %26 {offsets = [0, 2560], sizes = [16, 512], strides = [1, 1]} : vector<16x4608xf32> to vector<16x512xf32>
      %33 = vector.extract_strided_slice %26 {offsets = [0, 3072], sizes = [16, 512], strides = [1, 1]} : vector<16x4608xf32> to vector<16x512xf32>
      %34 = vector.extract_strided_slice %26 {offsets = [0, 3584], sizes = [16, 512], strides = [1, 1]} : vector<16x4608xf32> to vector<16x512xf32>
      %35 = vector.extract_strided_slice %26 {offsets = [0, 4096], sizes = [16, 512], strides = [1, 1]} : vector<16x4608xf32> to vector<16x512xf32>
      %36 = tpu.concatenate %27, %28, %29, %30, %31, %32, %33, %34, %35 in 0 : vector<16x512xf32>, vector<16x512xf32>, vector<16x512xf32>, vector<16x512xf32>, vector<16x512xf32>, vector<16x512xf32>, vector<16x512xf32>, vector<16x512xf32>, vector<16x512xf32> -> vector<144x512xf32>
      %c0_19 = arith.constant 0 : index
      %c0_20 = arith.constant 0 : index
      %37 = vector.load %arg5[%c0_19, %c0_20] : memref<32x144xbf16, #tpu.memory_space<vmem>>, vector<32x144xbf16>
      %38 = arith.truncf %36 : vector<144x512xf32> to vector<144x512xbf16>
      %cst_21 = arith.constant dense<0.000000e+00> : vector<32x512xf32>
      %39 = tpu.matmul %37, %38, %cst_21 {dimension_numbers = #tpu.dot_dimension_numbers<[1], [0], [0], [1], [0, 0, 1, 1], [], []>} : vector<32x144xbf16>, vector<144x512xbf16>, vector<32x512xf32> -> vector<32x512xf32>
      %c0_22 = arith.constant 0 : index
      %c0_23 = arith.constant 0 : index
      %40 = vector.load %arg6[%c0_22, %c0_23] : memref<32x1xf32, #tpu.memory_space<vmem>>, vector<32x1xf32>
      %41 = vector.broadcast %40 : vector<32x1xf32> to vector<32x512xf32>
      %42 = arith.addf %39, %41 : vector<32x512xf32>
      %cst_24 = arith.constant 0.000000e+00 : f32
      %43 = vector.broadcast %cst_24 : f32 to vector<32x512xf32>
      %44 = arith.maximumf %42, %43 : vector<32x512xf32>
      %45 = vector.extract_strided_slice %44 {offsets = [0, 0], sizes = [1, 256], strides = [1, 1]} : vector<32x512xf32> to vector<1x256xf32>
      %c0_25 = arith.constant 0 : index
      %c0_26 = arith.constant 0 : index
      %46 = vector.load %arg12[%c0_25, %c0_26] : memref<2x8192xf32, #tpu.memory_space<vmem>>, vector<1x256xf32>
      tpu.vector_store %arg12[%c0_25, %c0_26], %45 {strides = array<i32>} : memref<2x8192xf32, #tpu.memory_space<vmem>>, vector<1x256xf32>,
      %47 = vector.extract_strided_slice %44 {offsets = [0, 256], sizes = [1, 256], strides = [1, 1]} : vector<32x512xf32> to vector<1x256xf32>
      %c1 = arith.constant 1 : index
      %c0_27 = arith.constant 0 : index
      %48 = vector.load %arg12[%c1, %c0_27] : memref<2x8192xf32, #tpu.memory_space<vmem>>, vector<1x256xf32>
      tpu.vector_store %arg12[%c1, %c0_27], %47 {strides = array<i32>} : memref<2x8192xf32, #tpu.memory_space<vmem>>, vector<1x256xf32>,
      %49 = vector.extract_strided_slice %44 {offsets = [1, 0], sizes = [1, 256], strides = [1, 1]} : vector<32x512xf32> to vector<1x256xf32>
      %c0_28 = arith.constant 0 : index
      %c256 = arith.constant 256 : index
      %50 = vector.load %arg12[%c0_28, %c256] : memref<2x8192xf32, #tpu.memory_space<vmem>>, vector<1x256xf32>
      tpu.vector_store %arg12[%c0_28, %c256], %49 {strides = array<i32>} : memref<2x8192xf32, #tpu.memory_space<vmem>>, vector<1x256xf32>,
      %51 = vector.extract_strided_slice %44 {offsets = [1, 256], sizes = [1, 256], strides = [1, 1]} : vector<32x512xf32> to vector<1x256xf32>
      %c1_29 = arith.constant 1 : index
      %c256_30 = arith.constant 256 : index
      %52 = vector.load %arg12[%c1_29, %c256_30] : memref<2x8192xf32, #tpu.memory_space<vmem>>, vector<1x256xf32>
      tpu.vector_store %arg12[%c1_29, %c256_30], %51 {strides = array<i32>} : memref<2x8192xf32, #tpu.memory_space<vmem>>, vector<1x256xf32>,
      %53 = vector.extract_strided_slice %44 {offsets = [2, 0], sizes = [1, 256], strides = [1, 1]} : vector<32x512xf32> to vector<1x256xf32>
      %c0_31 = arith.constant 0 : index
      %c512 = arith.constant 512 : index
      %54 = vector.load %arg12[%c0_31, %c512] : memref<2x8192xf32, #tpu.memory_space<vmem>>, vector<1x256xf32>
      tpu.vector_store %arg12[%c0_31, %c512], %53 {strides = array<i32>} : memref<2x8192xf32, #tpu.memory_space<vmem>>, vector<1x256xf32>,
      %55 = vector.extract_strided_slice %44 {offsets = [2, 256], sizes = [1, 256], strides = [1, 1]} : vector<32x512xf32> to vector<1x256xf32>
      %c1_32 = arith.constant 1 : index
      %c512_33 = arith.constant 512 : index
      %56 = vector.load %arg12[%c1_32, %c512_33] : memref<2x8192xf32, #tpu.memory_space<vmem>>, vector<1x256xf32>
      tpu.vector_store %arg12[%c1_32, %c512_33], %55 {strides = array<i32>} : memref<2x8192xf32, #tpu.memory_space<vmem>>, vector<1x256xf32>,
      %57 = vector.extract_strided_slice %44 {offsets = [3, 0], sizes = [1, 256], strides = [1, 1]} : vector<32x512xf32> to vector<1x256xf32>
      %c0_34 = arith.constant 0 : index
      %c768 = arith.constant 768 : index
      %58 = vector.load %arg12[%c0_34, %c768] : memref<2x8192xf32, #tpu.memory_space<vmem>>, vector<1x256xf32>
      tpu.vector_store %arg12[%c0_34, %c768], %57 {strides = array<i32>} : memref<2x8192xf32, #tpu.memory_space<vmem>>, vector<1x256xf32>,
      %59 = vector.extract_strided_slice %44 {offsets = [3, 256], sizes = [1, 256], strides = [1, 1]} : vector<32x512xf32> to vector<1x256xf32>
      %c1_35 = arith.constant 1 : index
      %c768_36 = arith.constant 768 : index
      %60 = vector.load %arg12[%c1_35, %c768_36] : memref<2x8192xf32, #tpu.memory_space<vmem>>, vector<1x256xf32>
      tpu.vector_store %arg12[%c1_35, %c768_36], %59 {strides = array<i32>} : memref<2x8192xf32, #tpu.memory_space<vmem>>, vector<1x256xf32>,
      %61 = vector.extract_strided_slice %44 {offsets = [4, 0], sizes = [1, 256], strides = [1, 1]} : vector<32x512xf32> to vector<1x256xf32>
      %c0_37 = arith.constant 0 : index
      %c1024 = arith.constant 1024 : index
      %62 = vector.load %arg12[%c0_37, %c1024] : memref<2x8192xf32, #tpu.memory_space<vmem>>, vector<1x256xf32>
      tpu.vector_store %arg12[%c0_37, %c1024], %61 {strides = array<i32>} : memref<2x8192xf32, #tpu.memory_space<vmem>>, vector<1x256xf32>,
      %63 = vector.extract_strided_slice %44 {offsets = [4, 256], sizes = [1, 256], strides = [1, 1]} : vector<32x512xf32> to vector<1x256xf32>
      %c1_38 = arith.constant 1 : index
      %c1024_39 = arith.constant 1024 : index
      %64 = vector.load %arg12[%c1_38, %c1024_39] : memref<2x8192xf32, #tpu.memory_space<vmem>>, vector<1x256xf32>
      tpu.vector_store %arg12[%c1_38, %c1024_39], %63 {strides = array<i32>} : memref<2x8192xf32, #tpu.memory_space<vmem>>, vector<1x256xf32>,
      %65 = vector.extract_strided_slice %44 {offsets = [5, 0], sizes = [1, 256], strides = [1, 1]} : vector<32x512xf32> to vector<1x256xf32>
      %c0_40 = arith.constant 0 : index
      %c1280 = arith.constant 1280 : index
      %66 = vector.load %arg12[%c0_40, %c1280] : memref<2x8192xf32, #tpu.memory_space<vmem>>, vector<1x256xf32>
      tpu.vector_store %arg12[%c0_40, %c1280], %65 {strides = array<i32>} : memref<2x8192xf32, #tpu.memory_space<vmem>>, vector<1x256xf32>,
      %67 = vector.extract_strided_slice %44 {offsets = [5, 256], sizes = [1, 256], strides = [1, 1]} : vector<32x512xf32> to vector<1x256xf32>
      %c1_41 = arith.constant 1 : index
      %c1280_42 = arith.constant 1280 : index
      %68 = vector.load %arg12[%c1_41, %c1280_42] : memref<2x8192xf32, #tpu.memory_space<vmem>>, vector<1x256xf32>
      tpu.vector_store %arg12[%c1_41, %c1280_42], %67 {strides = array<i32>} : memref<2x8192xf32, #tpu.memory_space<vmem>>, vector<1x256xf32>,
      %69 = vector.extract_strided_slice %44 {offsets = [6, 0], sizes = [1, 256], strides = [1, 1]} : vector<32x512xf32> to vector<1x256xf32>
      %c0_43 = arith.constant 0 : index
      %c1536 = arith.constant 1536 : index
      %70 = vector.load %arg12[%c0_43, %c1536] : memref<2x8192xf32, #tpu.memory_space<vmem>>, vector<1x256xf32>
      tpu.vector_store %arg12[%c0_43, %c1536], %69 {strides = array<i32>} : memref<2x8192xf32, #tpu.memory_space<vmem>>, vector<1x256xf32>,
      %71 = vector.extract_strided_slice %44 {offsets = [6, 256], sizes = [1, 256], strides = [1, 1]} : vector<32x512xf32> to vector<1x256xf32>
      %c1_44 = arith.constant 1 : index
      %c1536_45 = arith.constant 1536 : index
      %72 = vector.load %arg12[%c1_44, %c1536_45] : memref<2x8192xf32, #tpu.memory_space<vmem>>, vector<1x256xf32>
      tpu.vector_store %arg12[%c1_44, %c1536_45], %71 {strides = array<i32>} : memref<2x8192xf32, #tpu.memory_space<vmem>>, vector<1x256xf32>,
      %73 = vector.extract_strided_slice %44 {offsets = [7, 0], sizes = [1, 256], strides = [1, 1]} : vector<32x512xf32> to vector<1x256xf32>
      %c0_46 = arith.constant 0 : index
      %c1792 = arith.constant 1792 : index
      %74 = vector.load %arg12[%c0_46, %c1792] : memref<2x8192xf32, #tpu.memory_space<vmem>>, vector<1x256xf32>
      tpu.vector_store %arg12[%c0_46, %c1792], %73 {strides = array<i32>} : memref<2x8192xf32, #tpu.memory_space<vmem>>, vector<1x256xf32>,
      %75 = vector.extract_strided_slice %44 {offsets = [7, 256], sizes = [1, 256], strides = [1, 1]} : vector<32x512xf32> to vector<1x256xf32>
      %c1_47 = arith.constant 1 : index
      %c1792_48 = arith.constant 1792 : index
      %76 = vector.load %arg12[%c1_47, %c1792_48] : memref<2x8192xf32, #tpu.memory_space<vmem>>, vector<1x256xf32>
      tpu.vector_store %arg12[%c1_47, %c1792_48], %75 {strides = array<i32>} : memref<2x8192xf32, #tpu.memory_space<vmem>>, vector<1x256xf32>,
      %77 = vector.extract_strided_slice %44 {offsets = [8, 0], sizes = [1, 256], strides = [1, 1]} : vector<32x512xf32> to vector<1x256xf32>
      %c0_49 = arith.constant 0 : index
      %c2048 = arith.constant 2048 : index
      %78 = vector.load %arg12[%c0_49, %c2048] : memref<2x8192xf32, #tpu.memory_space<vmem>>, vector<1x256xf32>
      tpu.vector_store %arg12[%c0_49, %c2048], %77 {strides = array<i32>} : memref<2x8192xf32, #tpu.memory_space<vmem>>, vector<1x256xf32>,
      %79 = vector.extract_strided_slice %44 {offsets = [8, 256], sizes = [1, 256], strides = [1, 1]} : vector<32x512xf32> to vector<1x256xf32>
      %c1_50 = arith.constant 1 : index
      %c2048_51 = arith.constant 2048 : index
      %80 = vector.load %arg12[%c1_50, %c2048_51] : memref<2x8192xf32, #tpu.memory_space<vmem>>, vector<1x256xf32>
      tpu.vector_store %arg12[%c1_50, %c2048_51], %79 {strides = array<i32>} : memref<2x8192xf32, #tpu.memory_space<vmem>>, vector<1x256xf32>,
      %81 = vector.extract_strided_slice %44 {offsets = [9, 0], sizes = [1, 256], strides = [1, 1]} : vector<32x512xf32> to vector<1x256xf32>
      %c0_52 = arith.constant 0 : index
      %c2304 = arith.constant 2304 : index
      %82 = vector.load %arg12[%c0_52, %c2304] : memref<2x8192xf32, #tpu.memory_space<vmem>>, vector<1x256xf32>
      tpu.vector_store %arg12[%c0_52, %c2304], %81 {strides = array<i32>} : memref<2x8192xf32, #tpu.memory_space<vmem>>, vector<1x256xf32>,
      %83 = vector.extract_strided_slice %44 {offsets = [9, 256], sizes = [1, 256], strides = [1, 1]} : vector<32x512xf32> to vector<1x256xf32>
      %c1_53 = arith.constant 1 : index
      %c2304_54 = arith.constant 2304 : index
      %84 = vector.load %arg12[%c1_53, %c2304_54] : memref<2x8192xf32, #tpu.memory_space<vmem>>, vector<1x256xf32>
      tpu.vector_store %arg12[%c1_53, %c2304_54], %83 {strides = array<i32>} : memref<2x8192xf32, #tpu.memory_space<vmem>>, vector<1x256xf32>,
      %85 = vector.extract_strided_slice %44 {offsets = [10, 0], sizes = [1, 256], strides = [1, 1]} : vector<32x512xf32> to vector<1x256xf32>
      %c0_55 = arith.constant 0 : index
      %c2560 = arith.constant 2560 : index
      %86 = vector.load %arg12[%c0_55, %c2560] : memref<2x8192xf32, #tpu.memory_space<vmem>>, vector<1x256xf32>
      tpu.vector_store %arg12[%c0_55, %c2560], %85 {strides = array<i32>} : memref<2x8192xf32, #tpu.memory_space<vmem>>, vector<1x256xf32>,
      %87 = vector.extract_strided_slice %44 {offsets = [10, 256], sizes = [1, 256], strides = [1, 1]} : vector<32x512xf32> to vector<1x256xf32>
      %c1_56 = arith.constant 1 : index
      %c2560_57 = arith.constant 2560 : index
      %88 = vector.load %arg12[%c1_56, %c2560_57] : memref<2x8192xf32, #tpu.memory_space<vmem>>, vector<1x256xf32>
      tpu.vector_store %arg12[%c1_56, %c2560_57], %87 {strides = array<i32>} : memref<2x8192xf32, #tpu.memory_space<vmem>>, vector<1x256xf32>,
      %89 = vector.extract_strided_slice %44 {offsets = [11, 0], sizes = [1, 256], strides = [1, 1]} : vector<32x512xf32> to vector<1x256xf32>
      %c0_58 = arith.constant 0 : index
      %c2816 = arith.constant 2816 : index
      %90 = vector.load %arg12[%c0_58, %c2816] : memref<2x8192xf32, #tpu.memory_space<vmem>>, vector<1x256xf32>
      tpu.vector_store %arg12[%c0_58, %c2816], %89 {strides = array<i32>} : memref<2x8192xf32, #tpu.memory_space<vmem>>, vector<1x256xf32>,
      %91 = vector.extract_strided_slice %44 {offsets = [11, 256], sizes = [1, 256], strides = [1, 1]} : vector<32x512xf32> to vector<1x256xf32>
      %c1_59 = arith.constant 1 : index
      %c2816_60 = arith.constant 2816 : index
      %92 = vector.load %arg12[%c1_59, %c2816_60] : memref<2x8192xf32, #tpu.memory_space<vmem>>, vector<1x256xf32>
      tpu.vector_store %arg12[%c1_59, %c2816_60], %91 {strides = array<i32>} : memref<2x8192xf32, #tpu.memory_space<vmem>>, vector<1x256xf32>,
      %93 = vector.extract_strided_slice %44 {offsets = [12, 0], sizes = [1, 256], strides = [1, 1]} : vector<32x512xf32> to vector<1x256xf32>
      %c0_61 = arith.constant 0 : index
      %c3072 = arith.constant 3072 : index
      %94 = vector.load %arg12[%c0_61, %c3072] : memref<2x8192xf32, #tpu.memory_space<vmem>>, vector<1x256xf32>
      tpu.vector_store %arg12[%c0_61, %c3072], %93 {strides = array<i32>} : memref<2x8192xf32, #tpu.memory_space<vmem>>, vector<1x256xf32>,
      %95 = vector.extract_strided_slice %44 {offsets = [12, 256], sizes = [1, 256], strides = [1, 1]} : vector<32x512xf32> to vector<1x256xf32>
      %c1_62 = arith.constant 1 : index
      %c3072_63 = arith.constant 3072 : index
      %96 = vector.load %arg12[%c1_62, %c3072_63] : memref<2x8192xf32, #tpu.memory_space<vmem>>, vector<1x256xf32>
      tpu.vector_store %arg12[%c1_62, %c3072_63], %95 {strides = array<i32>} : memref<2x8192xf32, #tpu.memory_space<vmem>>, vector<1x256xf32>,
      %97 = vector.extract_strided_slice %44 {offsets = [13, 0], sizes = [1, 256], strides = [1, 1]} : vector<32x512xf32> to vector<1x256xf32>
      %c0_64 = arith.constant 0 : index
      %c3328 = arith.constant 3328 : index
      %98 = vector.load %arg12[%c0_64, %c3328] : memref<2x8192xf32, #tpu.memory_space<vmem>>, vector<1x256xf32>
      tpu.vector_store %arg12[%c0_64, %c3328], %97 {strides = array<i32>} : memref<2x8192xf32, #tpu.memory_space<vmem>>, vector<1x256xf32>,
      %99 = vector.extract_strided_slice %44 {offsets = [13, 256], sizes = [1, 256], strides = [1, 1]} : vector<32x512xf32> to vector<1x256xf32>
      %c1_65 = arith.constant 1 : index
      %c3328_66 = arith.constant 3328 : index
      %100 = vector.load %arg12[%c1_65, %c3328_66] : memref<2x8192xf32, #tpu.memory_space<vmem>>, vector<1x256xf32>
      tpu.vector_store %arg12[%c1_65, %c3328_66], %99 {strides = array<i32>} : memref<2x8192xf32, #tpu.memory_space<vmem>>, vector<1x256xf32>,
      %101 = vector.extract_strided_slice %44 {offsets = [14, 0], sizes = [1, 256], strides = [1, 1]} : vector<32x512xf32> to vector<1x256xf32>
      %c0_67 = arith.constant 0 : index
      %c3584 = arith.constant 3584 : index
      %102 = vector.load %arg12[%c0_67, %c3584] : memref<2x8192xf32, #tpu.memory_space<vmem>>, vector<1x256xf32>
      tpu.vector_store %arg12[%c0_67, %c3584], %101 {strides = array<i32>} : memref<2x8192xf32, #tpu.memory_space<vmem>>, vector<1x256xf32>,
      %103 = vector.extract_strided_slice %44 {offsets = [14, 256], sizes = [1, 256], strides = [1, 1]} : vector<32x512xf32> to vector<1x256xf32>
      %c1_68 = arith.constant 1 : index
      %c3584_69 = arith.constant 3584 : index
      %104 = vector.load %arg12[%c1_68, %c3584_69] : memref<2x8192xf32, #tpu.memory_space<vmem>>, vector<1x256xf32>
      tpu.vector_store %arg12[%c1_68, %c3584_69], %103 {strides = array<i32>} : memref<2x8192xf32, #tpu.memory_space<vmem>>, vector<1x256xf32>,
      %105 = vector.extract_strided_slice %44 {offsets = [15, 0], sizes = [1, 256], strides = [1, 1]} : vector<32x512xf32> to vector<1x256xf32>
      %c0_70 = arith.constant 0 : index
      %c3840 = arith.constant 3840 : index
      %106 = vector.load %arg12[%c0_70, %c3840] : memref<2x8192xf32, #tpu.memory_space<vmem>>, vector<1x256xf32>
      tpu.vector_store %arg12[%c0_70, %c3840], %105 {strides = array<i32>} : memref<2x8192xf32, #tpu.memory_space<vmem>>, vector<1x256xf32>,
      %107 = vector.extract_strided_slice %44 {offsets = [15, 256], sizes = [1, 256], strides = [1, 1]} : vector<32x512xf32> to vector<1x256xf32>
      %c1_71 = arith.constant 1 : index
      %c3840_72 = arith.constant 3840 : index
      %108 = vector.load %arg12[%c1_71, %c3840_72] : memref<2x8192xf32, #tpu.memory_space<vmem>>, vector<1x256xf32>
      tpu.vector_store %arg12[%c1_71, %c3840_72], %107 {strides = array<i32>} : memref<2x8192xf32, #tpu.memory_space<vmem>>, vector<1x256xf32>,
      %109 = vector.extract_strided_slice %44 {offsets = [16, 0], sizes = [1, 256], strides = [1, 1]} : vector<32x512xf32> to vector<1x256xf32>
      %c0_73 = arith.constant 0 : index
      %c4096 = arith.constant 4096 : index
      %110 = vector.load %arg12[%c0_73, %c4096] : memref<2x8192xf32, #tpu.memory_space<vmem>>, vector<1x256xf32>
      tpu.vector_store %arg12[%c0_73, %c4096], %109 {strides = array<i32>} : memref<2x8192xf32, #tpu.memory_space<vmem>>, vector<1x256xf32>,
      %111 = vector.extract_strided_slice %44 {offsets = [16, 256], sizes = [1, 256], strides = [1, 1]} : vector<32x512xf32> to vector<1x256xf32>
      %c1_74 = arith.constant 1 : index
      %c4096_75 = arith.constant 4096 : index
      %112 = vector.load %arg12[%c1_74, %c4096_75] : memref<2x8192xf32, #tpu.memory_space<vmem>>, vector<1x256xf32>
      tpu.vector_store %arg12[%c1_74, %c4096_75], %111 {strides = array<i32>} : memref<2x8192xf32, #tpu.memory_space<vmem>>, vector<1x256xf32>,
      %113 = vector.extract_strided_slice %44 {offsets = [17, 0], sizes = [1, 256], strides = [1, 1]} : vector<32x512xf32> to vector<1x256xf32>
      %c0_76 = arith.constant 0 : index
      %c4352 = arith.constant 4352 : index
      %114 = vector.load %arg12[%c0_76, %c4352] : memref<2x8192xf32, #tpu.memory_space<vmem>>, vector<1x256xf32>
      tpu.vector_store %arg12[%c0_76, %c4352], %113 {strides = array<i32>} : memref<2x8192xf32, #tpu.memory_space<vmem>>, vector<1x256xf32>,
      %115 = vector.extract_strided_slice %44 {offsets = [17, 256], sizes = [1, 256], strides = [1, 1]} : vector<32x512xf32> to vector<1x256xf32>
      %c1_77 = arith.constant 1 : index
      %c4352_78 = arith.constant 4352 : index
      %116 = vector.load %arg12[%c1_77, %c4352_78] : memref<2x8192xf32, #tpu.memory_space<vmem>>, vector<1x256xf32>
      tpu.vector_store %arg12[%c1_77, %c4352_78], %115 {strides = array<i32>} : memref<2x8192xf32, #tpu.memory_space<vmem>>, vector<1x256xf32>,
      %117 = vector.extract_strided_slice %44 {offsets = [18, 0], sizes = [1, 256], strides = [1, 1]} : vector<32x512xf32> to vector<1x256xf32>
      %c0_79 = arith.constant 0 : index
      %c4608 = arith.constant 4608 : index
      %118 = vector.load %arg12[%c0_79, %c4608] : memref<2x8192xf32, #tpu.memory_space<vmem>>, vector<1x256xf32>
      tpu.vector_store %arg12[%c0_79, %c4608], %117 {strides = array<i32>} : memref<2x8192xf32, #tpu.memory_space<vmem>>, vector<1x256xf32>,
      %119 = vector.extract_strided_slice %44 {offsets = [18, 256], sizes = [1, 256], strides = [1, 1]} : vector<32x512xf32> to vector<1x256xf32>
      %c1_80 = arith.constant 1 : index
      %c4608_81 = arith.constant 4608 : index
      %120 = vector.load %arg12[%c1_80, %c4608_81] : memref<2x8192xf32, #tpu.memory_space<vmem>>, vector<1x256xf32>
      tpu.vector_store %arg12[%c1_80, %c4608_81], %119 {strides = array<i32>} : memref<2x8192xf32, #tpu.memory_space<vmem>>, vector<1x256xf32>,
      %121 = vector.extract_strided_slice %44 {offsets = [19, 0], sizes = [1, 256], strides = [1, 1]} : vector<32x512xf32> to vector<1x256xf32>
      %c0_82 = arith.constant 0 : index
      %c4864 = arith.constant 4864 : index
      %122 = vector.load %arg12[%c0_82, %c4864] : memref<2x8192xf32, #tpu.memory_space<vmem>>, vector<1x256xf32>
      tpu.vector_store %arg12[%c0_82, %c4864], %121 {strides = array<i32>} : memref<2x8192xf32, #tpu.memory_space<vmem>>, vector<1x256xf32>,
      %123 = vector.extract_strided_slice %44 {offsets = [19, 256], sizes = [1, 256], strides = [1, 1]} : vector<32x512xf32> to vector<1x256xf32>
      %c1_83 = arith.constant 1 : index
      %c4864_84 = arith.constant 4864 : index
      %124 = vector.load %arg12[%c1_83, %c4864_84] : memref<2x8192xf32, #tpu.memory_space<vmem>>, vector<1x256xf32>
      tpu.vector_store %arg12[%c1_83, %c4864_84], %123 {strides = array<i32>} : memref<2x8192xf32, #tpu.memory_space<vmem>>, vector<1x256xf32>,
      %125 = vector.extract_strided_slice %44 {offsets = [20, 0], sizes = [1, 256], strides = [1, 1]} : vector<32x512xf32> to vector<1x256xf32>
      %c0_85 = arith.constant 0 : index
      %c5120 = arith.constant 5120 : index
      %126 = vector.load %arg12[%c0_85, %c5120] : memref<2x8192xf32, #tpu.memory_space<vmem>>, vector<1x256xf32>
      tpu.vector_store %arg12[%c0_85, %c5120], %125 {strides = array<i32>} : memref<2x8192xf32, #tpu.memory_space<vmem>>, vector<1x256xf32>,
      %127 = vector.extract_strided_slice %44 {offsets = [20, 256], sizes = [1, 256], strides = [1, 1]} : vector<32x512xf32> to vector<1x256xf32>
      %c1_86 = arith.constant 1 : index
      %c5120_87 = arith.constant 5120 : index
      %128 = vector.load %arg12[%c1_86, %c5120_87] : memref<2x8192xf32, #tpu.memory_space<vmem>>, vector<1x256xf32>
      tpu.vector_store %arg12[%c1_86, %c5120_87], %127 {strides = array<i32>} : memref<2x8192xf32, #tpu.memory_space<vmem>>, vector<1x256xf32>,
      %129 = vector.extract_strided_slice %44 {offsets = [21, 0], sizes = [1, 256], strides = [1, 1]} : vector<32x512xf32> to vector<1x256xf32>
      %c0_88 = arith.constant 0 : index
      %c5376 = arith.constant 5376 : index
      %130 = vector.load %arg12[%c0_88, %c5376] : memref<2x8192xf32, #tpu.memory_space<vmem>>, vector<1x256xf32>
      tpu.vector_store %arg12[%c0_88, %c5376], %129 {strides = array<i32>} : memref<2x8192xf32, #tpu.memory_space<vmem>>, vector<1x256xf32>,
      %131 = vector.extract_strided_slice %44 {offsets = [21, 256], sizes = [1, 256], strides = [1, 1]} : vector<32x512xf32> to vector<1x256xf32>
      %c1_89 = arith.constant 1 : index
      %c5376_90 = arith.constant 5376 : index
      %132 = vector.load %arg12[%c1_89, %c5376_90] : memref<2x8192xf32, #tpu.memory_space<vmem>>, vector<1x256xf32>
      tpu.vector_store %arg12[%c1_89, %c5376_90], %131 {strides = array<i32>} : memref<2x8192xf32, #tpu.memory_space<vmem>>, vector<1x256xf32>,
      %133 = vector.extract_strided_slice %44 {offsets = [22, 0], sizes = [1, 256], strides = [1, 1]} : vector<32x512xf32> to vector<1x256xf32>
      %c0_91 = arith.constant 0 : index
      %c5632 = arith.constant 5632 : index
      %134 = vector.load %arg12[%c0_91, %c5632] : memref<2x8192xf32, #tpu.memory_space<vmem>>, vector<1x256xf32>
      tpu.vector_store %arg12[%c0_91, %c5632], %133 {strides = array<i32>} : memref<2x8192xf32, #tpu.memory_space<vmem>>, vector<1x256xf32>,
      %135 = vector.extract_strided_slice %44 {offsets = [22, 256], sizes = [1, 256], strides = [1, 1]} : vector<32x512xf32> to vector<1x256xf32>
      %c1_92 = arith.constant 1 : index
      %c5632_93 = arith.constant 5632 : index
      %136 = vector.load %arg12[%c1_92, %c5632_93] : memref<2x8192xf32, #tpu.memory_space<vmem>>, vector<1x256xf32>
      tpu.vector_store %arg12[%c1_92, %c5632_93], %135 {strides = array<i32>} : memref<2x8192xf32, #tpu.memory_space<vmem>>, vector<1x256xf32>,
      %137 = vector.extract_strided_slice %44 {offsets = [23, 0], sizes = [1, 256], strides = [1, 1]} : vector<32x512xf32> to vector<1x256xf32>
      %c0_94 = arith.constant 0 : index
      %c5888 = arith.constant 5888 : index
      %138 = vector.load %arg12[%c0_94, %c5888] : memref<2x8192xf32, #tpu.memory_space<vmem>>, vector<1x256xf32>
      tpu.vector_store %arg12[%c0_94, %c5888], %137 {strides = array<i32>} : memref<2x8192xf32, #tpu.memory_space<vmem>>, vector<1x256xf32>,
      %139 = vector.extract_strided_slice %44 {offsets = [23, 256], sizes = [1, 256], strides = [1, 1]} : vector<32x512xf32> to vector<1x256xf32>
      %c1_95 = arith.constant 1 : index
      %c5888_96 = arith.constant 5888 : index
      %140 = vector.load %arg12[%c1_95, %c5888_96] : memref<2x8192xf32, #tpu.memory_space<vmem>>, vector<1x256xf32>
      tpu.vector_store %arg12[%c1_95, %c5888_96], %139 {strides = array<i32>} : memref<2x8192xf32, #tpu.memory_space<vmem>>, vector<1x256xf32>,
      %141 = vector.extract_strided_slice %44 {offsets = [24, 0], sizes = [1, 256], strides = [1, 1]} : vector<32x512xf32> to vector<1x256xf32>
      %c0_97 = arith.constant 0 : index
      %c6144 = arith.constant 6144 : index
      %142 = vector.load %arg12[%c0_97, %c6144] : memref<2x8192xf32, #tpu.memory_space<vmem>>, vector<1x256xf32>
      tpu.vector_store %arg12[%c0_97, %c6144], %141 {strides = array<i32>} : memref<2x8192xf32, #tpu.memory_space<vmem>>, vector<1x256xf32>,
      %143 = vector.extract_strided_slice %44 {offsets = [24, 256], sizes = [1, 256], strides = [1, 1]} : vector<32x512xf32> to vector<1x256xf32>
      %c1_98 = arith.constant 1 : index
      %c6144_99 = arith.constant 6144 : index
      %144 = vector.load %arg12[%c1_98, %c6144_99] : memref<2x8192xf32, #tpu.memory_space<vmem>>, vector<1x256xf32>
      tpu.vector_store %arg12[%c1_98, %c6144_99], %143 {strides = array<i32>} : memref<2x8192xf32, #tpu.memory_space<vmem>>, vector<1x256xf32>,
      %145 = vector.extract_strided_slice %44 {offsets = [25, 0], sizes = [1, 256], strides = [1, 1]} : vector<32x512xf32> to vector<1x256xf32>
      %c0_100 = arith.constant 0 : index
      %c6400 = arith.constant 6400 : index
      %146 = vector.load %arg12[%c0_100, %c6400] : memref<2x8192xf32, #tpu.memory_space<vmem>>, vector<1x256xf32>
      tpu.vector_store %arg12[%c0_100, %c6400], %145 {strides = array<i32>} : memref<2x8192xf32, #tpu.memory_space<vmem>>, vector<1x256xf32>,
      %147 = vector.extract_strided_slice %44 {offsets = [25, 256], sizes = [1, 256], strides = [1, 1]} : vector<32x512xf32> to vector<1x256xf32>
      %c1_101 = arith.constant 1 : index
      %c6400_102 = arith.constant 6400 : index
      %148 = vector.load %arg12[%c1_101, %c6400_102] : memref<2x8192xf32, #tpu.memory_space<vmem>>, vector<1x256xf32>
      tpu.vector_store %arg12[%c1_101, %c6400_102], %147 {strides = array<i32>} : memref<2x8192xf32, #tpu.memory_space<vmem>>, vector<1x256xf32>,
      %149 = vector.extract_strided_slice %44 {offsets = [26, 0], sizes = [1, 256], strides = [1, 1]} : vector<32x512xf32> to vector<1x256xf32>
      %c0_103 = arith.constant 0 : index
      %c6656 = arith.constant 6656 : index
      %150 = vector.load %arg12[%c0_103, %c6656] : memref<2x8192xf32, #tpu.memory_space<vmem>>, vector<1x256xf32>
      tpu.vector_store %arg12[%c0_103, %c6656], %149 {strides = array<i32>} : memref<2x8192xf32, #tpu.memory_space<vmem>>, vector<1x256xf32>,
      %151 = vector.extract_strided_slice %44 {offsets = [26, 256], sizes = [1, 256], strides = [1, 1]} : vector<32x512xf32> to vector<1x256xf32>
      %c1_104 = arith.constant 1 : index
      %c6656_105 = arith.constant 6656 : index
      %152 = vector.load %arg12[%c1_104, %c6656_105] : memref<2x8192xf32, #tpu.memory_space<vmem>>, vector<1x256xf32>
      tpu.vector_store %arg12[%c1_104, %c6656_105], %151 {strides = array<i32>} : memref<2x8192xf32, #tpu.memory_space<vmem>>, vector<1x256xf32>,
      %153 = vector.extract_strided_slice %44 {offsets = [27, 0], sizes = [1, 256], strides = [1, 1]} : vector<32x512xf32> to vector<1x256xf32>
      %c0_106 = arith.constant 0 : index
      %c6912 = arith.constant 6912 : index
      %154 = vector.load %arg12[%c0_106, %c6912] : memref<2x8192xf32, #tpu.memory_space<vmem>>, vector<1x256xf32>
      tpu.vector_store %arg12[%c0_106, %c6912], %153 {strides = array<i32>} : memref<2x8192xf32, #tpu.memory_space<vmem>>, vector<1x256xf32>,
      %155 = vector.extract_strided_slice %44 {offsets = [27, 256], sizes = [1, 256], strides = [1, 1]} : vector<32x512xf32> to vector<1x256xf32>
      %c1_107 = arith.constant 1 : index
      %c6912_108 = arith.constant 6912 : index
      %156 = vector.load %arg12[%c1_107, %c6912_108] : memref<2x8192xf32, #tpu.memory_space<vmem>>, vector<1x256xf32>
      tpu.vector_store %arg12[%c1_107, %c6912_108], %155 {strides = array<i32>} : memref<2x8192xf32, #tpu.memory_space<vmem>>, vector<1x256xf32>,
      %157 = vector.extract_strided_slice %44 {offsets = [28, 0], sizes = [1, 256], strides = [1, 1]} : vector<32x512xf32> to vector<1x256xf32>
      %c0_109 = arith.constant 0 : index
      %c7168 = arith.constant 7168 : index
      %158 = vector.load %arg12[%c0_109, %c7168] : memref<2x8192xf32, #tpu.memory_space<vmem>>, vector<1x256xf32>
      tpu.vector_store %arg12[%c0_109, %c7168], %157 {strides = array<i32>} : memref<2x8192xf32, #tpu.memory_space<vmem>>, vector<1x256xf32>,
      %159 = vector.extract_strided_slice %44 {offsets = [28, 256], sizes = [1, 256], strides = [1, 1]} : vector<32x512xf32> to vector<1x256xf32>
      %c1_110 = arith.constant 1 : index
      %c7168_111 = arith.constant 7168 : index
      %160 = vector.load %arg12[%c1_110, %c7168_111] : memref<2x8192xf32, #tpu.memory_space<vmem>>, vector<1x256xf32>
      tpu.vector_store %arg12[%c1_110, %c7168_111], %159 {strides = array<i32>} : memref<2x8192xf32, #tpu.memory_space<vmem>>, vector<1x256xf32>,
      %161 = vector.extract_strided_slice %44 {offsets = [29, 0], sizes = [1, 256], strides = [1, 1]} : vector<32x512xf32> to vector<1x256xf32>
      %c0_112 = arith.constant 0 : index
      %c7424 = arith.constant 7424 : index
      %162 = vector.load %arg12[%c0_112, %c7424] : memref<2x8192xf32, #tpu.memory_space<vmem>>, vector<1x256xf32>
      tpu.vector_store %arg12[%c0_112, %c7424], %161 {strides = array<i32>} : memref<2x8192xf32, #tpu.memory_space<vmem>>, vector<1x256xf32>,
      %163 = vector.extract_strided_slice %44 {offsets = [29, 256], sizes = [1, 256], strides = [1, 1]} : vector<32x512xf32> to vector<1x256xf32>
      %c1_113 = arith.constant 1 : index
      %c7424_114 = arith.constant 7424 : index
      %164 = vector.load %arg12[%c1_113, %c7424_114] : memref<2x8192xf32, #tpu.memory_space<vmem>>, vector<1x256xf32>
      tpu.vector_store %arg12[%c1_113, %c7424_114], %163 {strides = array<i32>} : memref<2x8192xf32, #tpu.memory_space<vmem>>, vector<1x256xf32>,
      %165 = vector.extract_strided_slice %44 {offsets = [30, 0], sizes = [1, 256], strides = [1, 1]} : vector<32x512xf32> to vector<1x256xf32>
      %c0_115 = arith.constant 0 : index
      %c7680 = arith.constant 7680 : index
      %166 = vector.load %arg12[%c0_115, %c7680] : memref<2x8192xf32, #tpu.memory_space<vmem>>, vector<1x256xf32>
      tpu.vector_store %arg12[%c0_115, %c7680], %165 {strides = array<i32>} : memref<2x8192xf32, #tpu.memory_space<vmem>>, vector<1x256xf32>,
      %167 = vector.extract_strided_slice %44 {offsets = [30, 256], sizes = [1, 256], strides = [1, 1]} : vector<32x512xf32> to vector<1x256xf32>
      %c1_116 = arith.constant 1 : index
      %c7680_117 = arith.constant 7680 : index
      %168 = vector.load %arg12[%c1_116, %c7680_117] : memref<2x8192xf32, #tpu.memory_space<vmem>>, vector<1x256xf32>
      tpu.vector_store %arg12[%c1_116, %c7680_117], %167 {strides = array<i32>} : memref<2x8192xf32, #tpu.memory_space<vmem>>, vector<1x256xf32>,
      %169 = vector.extract_strided_slice %44 {offsets = [31, 0], sizes = [1, 256], strides = [1, 1]} : vector<32x512xf32> to vector<1x256xf32>
      %c0_118 = arith.constant 0 : index
      %c7936 = arith.constant 7936 : index
      %170 = vector.load %arg12[%c0_118, %c7936] : memref<2x8192xf32, #tpu.memory_space<vmem>>, vector<1x256xf32>
      tpu.vector_store %arg12[%c0_118, %c7936], %169 {strides = array<i32>} : memref<2x8192xf32, #tpu.memory_space<vmem>>, vector<1x256xf32>,
      %171 = vector.extract_strided_slice %44 {offsets = [31, 256], sizes = [1, 256], strides = [1, 1]} : vector<32x512xf32> to vector<1x256xf32>
      %c1_119 = arith.constant 1 : index
      %c7936_120 = arith.constant 7936 : index
      %172 = vector.load %arg12[%c1_119, %c7936_120] : memref<2x8192xf32, #tpu.memory_space<vmem>>, vector<1x256xf32>
      tpu.vector_store %arg12[%c1_119, %c7936_120], %171 {strides = array<i32>} : memref<2x8192xf32, #tpu.memory_space<vmem>>, vector<1x256xf32>,
      %cst_121 = arith.constant 0.000000e+00 : f32
      %173 = vector.broadcast %cst_121 : f32 to vector<2x128xf32>
      %c0_122 = arith.constant 0 : index
      %c0_123 = arith.constant 0 : index
      %174 = vector.load %arg13[%c0_122, %c0_123] : memref<2x128xf32, #tpu.memory_space<vmem>>, vector<2x128xf32>
      tpu.vector_store %arg13[%c0_122, %c0_123], %173 {strides = array<i32>} : memref<2x128xf32, #tpu.memory_space<vmem>>, vector<2x128xf32>,
    } else {
    }
    %c8192_i32 = arith.constant 8192 : i32
    %3 = arith.muli %arg0, %c8192_i32 : i32
    %4 = tpu.assume_multiple %3, 128 : i32
    %c0 = arith.constant 0 : index
    %5 = arith.index_cast %4 : i32 to index
    %6 = vector.load %arg12[%c0, %5] : memref<2x8192xf32, #tpu.memory_space<vmem>>, vector<2x8192xf32>
    %c0_1 = arith.constant 0 : index
    %c0_2 = arith.constant 0 : index
    %7 = vector.load %arg13[%c0_1, %c0_2] : memref<2x128xf32, #tpu.memory_space<vmem>>, vector<2x128xf32>
    %8 = arith.truncf %6 : vector<2x8192xf32> to vector<2x8192xbf16>
    %c0_3 = arith.constant 0 : index
    %c0_4 = arith.constant 0 : index
    %9 = vector.load %arg7[%c0_3, %c0_4] : memref<8192x128xbf16, #tpu.memory_space<vmem>>, vector<8192x128xbf16>
    %cst = arith.constant dense<0.000000e+00> : vector<2x128xf32>
    %10 = tpu.matmul %8, %9, %cst {dimension_numbers = #tpu.dot_dimension_numbers<[1], [0], [0], [1], [0, 0, 1, 1], [], []>} : vector<2x8192xbf16>, vector<8192x128xbf16>, vector<2x128xf32> -> vector<2x128xf32>
    %11 = arith.addf %7, %10 : vector<2x128xf32>
    %c0_5 = arith.constant 0 : index
    %c0_6 = arith.constant 0 : index
    %12 = vector.load %arg13[%c0_5, %c0_6] : memref<2x128xf32, #tpu.memory_space<vmem>>, vector<2x128xf32>
    tpu.vector_store %arg13[%c0_5, %c0_6], %11 {strides = array<i32>} : memref<2x128xf32, #tpu.memory_space<vmem>>, vector<2x128xf32>,
    %c0_i32_7 = arith.constant 0 : i32
    %13 = arith.cmpi eq, %arg0, %c0_i32_7 : i32
    %14 = arith.extui %13 : i1 to i32
    %c0_i32_8 = arith.constant 0 : i32
    %15 = arith.cmpi ne, %14, %c0_i32_8 : i32
    scf.if %15 {
      %c0_9 = arith.constant 0 : index
      %c0_10 = arith.constant 0 : index
      %16 = vector.load %arg13[%c0_9, %c0_10] : memref<2x128xf32, #tpu.memory_space<vmem>>, vector<2x128xf32>
      %c0_11 = arith.constant 0 : index
      %c0_12 = arith.constant 0 : index
      %17 = vector.load %arg8[%c0_11, %c0_12] : memref<1x128xf32, #tpu.memory_space<vmem>>, vector<1x128xf32>
      %18 = vector.broadcast %17 : vector<1x128xf32> to vector<2x128xf32>
      %19 = arith.addf %16, %18 : vector<2x128xf32>
      %cst_13 = arith.constant 0.000000e+00 : f32
      %20 = vector.broadcast %cst_13 : f32 to vector<2x128xf32>
      %21 = arith.maximumf %19, %20 : vector<2x128xf32>
      %22 = arith.truncf %21 : vector<2x128xf32> to vector<2x128xbf16>
      %c0_14 = arith.constant 0 : index
      %c0_15 = arith.constant 0 : index
      %23 = vector.load %arg9[%c0_14, %c0_15] : memref<128x256xbf16, #tpu.memory_space<vmem>>, vector<128x256xbf16>
      %cst_16 = arith.constant dense<0.000000e+00> : vector<2x256xf32>
      %24 = tpu.matmul %22, %23, %cst_16 {dimension_numbers = #tpu.dot_dimension_numbers<[1], [0], [0], [1], [0, 0, 1, 1], [], []>} : vector<2x128xbf16>, vector<128x256xbf16>, vector<2x256xf32> -> vector<2x256xf32>
      %c0_17 = arith.constant 0 : index
      %c0_18 = arith.constant 0 : index
      %25 = vector.load %arg10[%c0_17, %c0_18] : memref<1x256xf32, #tpu.memory_space<vmem>>, vector<1x256xf32>
      %26 = vector.broadcast %25 : vector<1x256xf32> to vector<2x256xf32>
      %27 = arith.addf %24, %26 : vector<2x256xf32>
      %c0_19 = arith.constant 0 : index
      %c0_20 = arith.constant 0 : index
      %28 = vector.load %arg11[%c0_19, %c0_20] : memref<2x256xf32, #tpu.memory_space<vmem>>, vector<2x256xf32>
      tpu.vector_store %arg11[%c0_19, %c0_20], %27 {strides = array<i32>} : memref<2x256xf32, #tpu.memory_space<vmem>>, vector<2x256xf32>,
    } else {
    }
    return
  }
  func.func @transform_0(%arg0: i32) -> (i32, i32) {
    %c0_i32 = arith.constant 0 : i32
    %c0_i32_0 = arith.constant 0 : i32
    %c0_i32_1 = arith.constant 0 : i32
    return %c0_i32, %c0_i32_0 : i32, i32
  }
  func.func @transform_1(%arg0: i32) -> (i32, i32) {
    %c0_i32 = arith.constant 0 : i32
    %c0_i32_0 = arith.constant 0 : i32
    %c0_i32_1 = arith.constant 0 : i32
    return %c0_i32, %c0_i32_0 : i32, i32
  }
  func.func @transform_2(%arg0: i32) -> (i32, i32) {
    %c0_i32 = arith.constant 0 : i32
    %c0_i32_0 = arith.constant 0 : i32
    %c0_i32_1 = arith.constant 0 : i32
    return %c0_i32, %c0_i32_0 : i32, i32
  }
  func.func @transform_3(%arg0: i32) -> (i32, i32) {
    %c0_i32 = arith.constant 0 : i32
    %c0_i32_0 = arith.constant 0 : i32
    %c0_i32_1 = arith.constant 0 : i32
    return %c0_i32, %c0_i32_0 : i32, i32
  }
  func.func @transform_4(%arg0: i32) -> (i32, i32) {
    %c0_i32 = arith.constant 0 : i32
    %c0_i32_0 = arith.constant 0 : i32
    %c0_i32_1 = arith.constant 0 : i32
    return %c0_i32, %c0_i32_0 : i32, i32
  }
  func.func @transform_5(%arg0: i32) -> (i32, i32) {
    %c0_i32 = arith.constant 0 : i32
    %c0_i32_0 = arith.constant 0 : i32
    %c0_i32_1 = arith.constant 0 : i32
    return %c0_i32, %c0_i32_0 : i32, i32
  }
  func.func @transform_6(%arg0: i32) -> (i32, i32) {
    %c0_i32 = arith.constant 0 : i32
    %c0_i32_0 = arith.constant 0 : i32
    return %arg0, %c0_i32 : i32, i32
  }
  func.func @transform_7(%arg0: i32) -> (i32, i32) {
    %c0_i32 = arith.constant 0 : i32
    %c0_i32_0 = arith.constant 0 : i32
    %c0_i32_1 = arith.constant 0 : i32
    return %c0_i32, %c0_i32_0 : i32, i32
  }
  func.func @transform_8(%arg0: i32) -> (i32, i32) {
    %c0_i32 = arith.constant 0 : i32
    %c0_i32_0 = arith.constant 0 : i32
    %c0_i32_1 = arith.constant 0 : i32
    return %c0_i32, %c0_i32_0 : i32, i32
  }
  func.func @transform_9(%arg0: i32) -> (i32, i32) {
    %c0_i32 = arith.constant 0 : i32
    %c0_i32_0 = arith.constant 0 : i32
    %c0_i32_1 = arith.constant 0 : i32
    return %c0_i32, %c0_i32_0 : i32, i32
  }
  func.func @transform_10(%arg0: i32) -> (i32, i32) {
    %c0_i32 = arith.constant 0 : i32
    %c0_i32_0 = arith.constant 0 : i32
    %c0_i32_1 = arith.constant 0 : i32
    return %c0_i32, %c0_i32_0 : i32, i32
  }
}

</mosaic_0001>

<llo_original>
// kernel: custom-call.5
$region0: #{custom-call.5}
  %s0 = inlined_call_operand.vmem [shape: bf16[4608], index: 0, kind: output, shape index: {}]

// kernel: custom-call
$region0: #{custom-call}
  %s0 = inlined_call_operand.vmem [shape: f32[4608], index: 0, kind: output, shape index: {}]

// kernel: placement_net_forward.1
$region0: #{placement_net_forward.1}
  #allocation0 [shape = 'u32[]', space=smem, size = 0x4, offset = 0x4, fixed_abs, tag = 'smem constant byte address 0x4 - core index']
  #allocation1 [shape = 'u32[144,128]{1,0:T(1,128)}', space=vmem, size = 0x12000, scoped, tag = 'internal scratch']
  #allocation2 [shape = 'f32[2,8192]{1,0:T(2,128)}', space=vmem, size = 0x10000, scoped, tag = 'scratch operand']
  #allocation3 [shape = 'f32[2,128]{1,0:T(2,128)}', space=vmem, size = 0x400, scoped, tag = 'scratch operand']
  %s0 = inlined_call_operand.vmem [shape: bf16[9,4608], index: 0, kind: input, shape index: {}]
  %s1 = inlined_call_operand.vmem [shape: f32[1,4608], index: 1, kind: input, shape index: {}]
  %s2 = inlined_call_operand.hbm [shape: bf16[16,9], index: 2, kind: input, shape index: {}]
  %s3 = inlined_call_operand.vmem [shape: f32[16,1], index: 3, kind: input, shape index: {}]
  %s4 = inlined_call_operand.hbm [shape: bf16[32,144], index: 4, kind: input, shape index: {}]
  %s5 = inlined_call_operand.vmem [shape: f32[32,1], index: 5, kind: input, shape index: {}]
  %s6 = inlined_call_operand.hbm [shape: bf16[8192,128], index: 6, kind: input, shape index: {}]
  %s7 = inlined_call_operand.hbm [shape: f32[1,128], index: 7, kind: input, shape index: {}]
  %s8 = inlined_call_operand.hbm [shape: bf16[128,256], index: 8, kind: input, shape index: {}]
  %s9 = inlined_call_operand.hbm [shape: f32[1,256], index: 9, kind: input, shape index: {}]
  %s10 = inlined_call_operand.hbm [shape: f32[2,256], index: 10, kind: output, shape index: {}]
  %s11 = sld [smem:[#allocation0]]
  $region82: #{placement_net_forward.1} parent=0
    _
  %s13 = ssub.s32 1, %s11
  %s14 = scalar_select 0, %s13, %s11
  $region1: #{placement_net_forward.1} parent=0
    #allocation4 [shape = 'u8[4096]{0}', space=vmem, size = 0x1000, scoped, tag = 'input window, operand 2, single buffered']
    #allocation5 [shape = 's32[1]{0}', space=sflag, size = 0x4, scoped, tag = 'scoped memory for placement_net_forward.1']
    #allocation6 [shape = 's32[1]{0}', space=sflag, size = 0x4, scoped, tag = 'scoped memory for placement_net_forward.1']
    #allocation7 [shape = 'u8[16384]{0}', space=vmem, size = 0x4000, scoped, tag = 'input window, operand 4, single buffered']
    #allocation8 [shape = 's32[1]{0}', space=sflag, size = 0x4, scoped, tag = 'scoped memory for placement_net_forward.1']
    #allocation9 [shape = 'u8[2097152]{0}', space=vmem, size = 0x200000, scoped, tag = 'input window, operand 6, single buffered']
    #allocation10 [shape = 'u8[512]{0}', space=vmem, size = 0x400, scoped, tag = 'input window, operand 7, single buffered']
    #allocation11 [shape = 's32[1]{0}', space=sflag, size = 0x4, scoped, tag = 'scoped memory for placement_net_forward.1']
    #allocation12 [shape = 'u8[65536]{0}', space=vmem, size = 0x10000, scoped, tag = 'input window, operand 8, single buffered']
    #allocation13 [shape = 'u8[1024]{0}', space=vmem, size = 0x400, scoped, tag = 'input window, operand 9, single buffered']
    #allocation14 [shape = 's32[1]{0}', space=sflag, size = 0x4, scoped, tag = 'scoped memory for placement_net_forward.1']
    #allocation15 [shape = 'u8[2048]{0}', space=vmem, size = 0x800, scoped, tag = 'output window, operand 0, single buffered']
    %15 = vsyncpa [#allocation5], 0
    %16 = vsyncpa [#allocation8], 0
    %17 = vsyncpa [#allocation11], 0
    %18 = vsyncpa [#allocation14], 0
    %19 = vsyncpa [#allocation6], 0
    // Predicated region
    $region2: #{placement_net_forward.1} parent=1 // pred_check
      _
    $region3: #{placement_net_forward.1} parent=1 // pred_check_branch
      %21 = sbr.rel (0) target = $region5
    $region4: #{placement_net_forward.1} parent=1 // pred_region
      _
    $region5: #{placement_net_forward.1} parent=1 // pred_fallthru
      _
    // Predicated region
    $region6: #{placement_net_forward.1} parent=1 // pred_check
      _
    $region7: #{placement_net_forward.1} parent=1 // pred_check_branch
      %23 = sbr.rel (0) target = $region9
    $region8: #{placement_net_forward.1} parent=1 // pred_region
      _
    $region9: #{placement_net_forward.1} parent=1 // pred_fallthru
      _
    // Predicated region
    $region10: #{placement_net_forward.1} parent=1 // pred_check
      _
    $region11: #{placement_net_forward.1} parent=1 // pred_check_branch
      %25 = sbr.rel (0) target = $region13
    $region12: #{placement_net_forward.1} parent=1 // pred_region
      %s27 = ssub.s32 128, 128
      %28 = vsyncadd [#allocation5], %s27
      %s29 = sshll.u32 [#allocation4], 4
      %s30 = int_to_ptr.vmem [resolvable:$true] %s29
      %35 = dma.hbm_to_vmem [thread:$0]  %s2, 128, %s30, [#allocation5], 64, 64, 4
    $region13: #{placement_net_forward.1} parent=1 // pred_fallthru
      _
    // Predicated region
    $region14: #{placement_net_forward.1} parent=1 // pred_check
      _
    $region15: #{placement_net_forward.1} parent=1 // pred_check_branch
      %37 = sbr.rel (0) target = $region17
    $region16: #{placement_net_forward.1} parent=1 // pred_region
      _
    $region17: #{placement_net_forward.1} parent=1 // pred_fallthru
      _
    // Predicated region
    $region18: #{placement_net_forward.1} parent=1 // pred_check
      _
    $region19: #{placement_net_forward.1} parent=1 // pred_check_branch
      %39 = sbr.rel (0) target = $region21
    $region20: #{placement_net_forward.1} parent=1 // pred_region
      %s41 = ssub.s32 512, 512
      %42 = vsyncadd [#allocation8], %s41
      %s43 = sshll.u32 [#allocation7], 4
      %s44 = int_to_ptr.vmem [resolvable:$true] %s43
      %49 = dma.hbm_to_vmem [thread:$0]  %s4, 512, %s44, [#allocation8], 128, 128, 8
    $region21: #{placement_net_forward.1} parent=1 // pred_fallthru
      _
    // Predicated region
    $region22: #{placement_net_forward.1} parent=1 // pred_check
      _
    $region23: #{placement_net_forward.1} parent=1 // pred_check_branch
      %51 = sbr.rel (0) target = $region25
    $region24: #{placement_net_forward.1} parent=1 // pred_region
      _
    $region25: #{placement_net_forward.1} parent=1 // pred_fallthru
      _
    // Predicated region
    $region26: #{placement_net_forward.1} parent=1 // pred_check
      _
    $region27: #{placement_net_forward.1} parent=1 // pred_check_branch
      %53 = sbr.rel (0) target = $region29
    $region28: #{placement_net_forward.1} parent=1 // pred_region
      %s55 = ssub.s32 65536, 65536
      %56 = vsyncadd [#allocation8], %s55
      %s57 = sshll.u32 [#allocation9], 4
      %s58 = int_to_ptr.vmem [resolvable:$true] %s57
      %63 = dma.hbm_to_vmem [thread:$0]  %s6, 65536, %s58, [#allocation8], 64, 64, 4
    $region29: #{placement_net_forward.1} parent=1 // pred_fallthru
      _
    // Predicated region
    $region30: #{placement_net_forward.1} parent=1 // pred_check
      _
    $region31: #{placement_net_forward.1} parent=1 // pred_check_branch
      %65 = sbr.rel (0) target = $region33
    $region32: #{placement_net_forward.1} parent=1 // pred_region
      %s67 = ssub.s32 16, 16
      %68 = vsyncadd [#allocation11], %s67
      %s70 = sshll.u32 [#allocation10], 4
      %s71 = int_to_ptr.vmem [resolvable:$true] %s70
      %73 = dma.hbm_to_vmem [thread:$0]  %s7, 16, %s71, [#allocation11]
    $region33: #{placement_net_forward.1} parent=1 // pred_fallthru
      _
    // Predicated region
    $region34: #{placement_net_forward.1} parent=1 // pred_check
      _
    $region35: #{placement_net_forward.1} parent=1 // pred_check_branch
      %75 = sbr.rel (0) target = $region37
    $region36: #{placement_net_forward.1} parent=1 // pred_region
      %s77 = ssub.s32 2048, 2048
      %78 = vsyncadd [#allocation11], %s77
      %s79 = sshll.u32 [#allocation12], 4
      %s80 = int_to_ptr.vmem [resolvable:$true] %s79
      %85 = dma.hbm_to_vmem [thread:$0]  %s8, 2048, %s80, [#allocation11], 128, 128, 8
    $region37: #{placement_net_forward.1} parent=1 // pred_fallthru
      _
    // Predicated region
    $region38: #{placement_net_forward.1} parent=1 // pred_check
      _
    $region39: #{placement_net_forward.1} parent=1 // pred_check_branch
      %87 = sbr.rel (0) target = $region41
    $region40: #{placement_net_forward.1} parent=1 // pred_region
      %s89 = ssub.s32 32, 32
      %90 = vsyncadd [#allocation14], %s89
      %s92 = sshll.u32 [#allocation13], 4
      %s93 = int_to_ptr.vmem [resolvable:$true] %s92
      %95 = dma.hbm_to_vmem [thread:$0]  %s9, 32, %s93, [#allocation14]
    $region41: #{placement_net_forward.1} parent=1 // pred_fallthru
      _
    // Predicated region
    $region42: #{placement_net_forward.1} parent=1 // pred_check
      _
    $region43: #{placement_net_forward.1} parent=1 // pred_check_branch
      %97 = sbr.rel (0) target = $region45
    $region44: #{placement_net_forward.1} parent=1 // pred_region
      %98 = dma.done [#allocation5], 128
    $region45: #{placement_net_forward.1} parent=1 // pred_fallthru
      _
    // Predicated region
    $region46: #{placement_net_forward.1} parent=1 // pred_check
      _
    $region47: #{placement_net_forward.1} parent=1 // pred_check_branch
      %100 = sbr.rel (0) target = $region49
    $region48: #{placement_net_forward.1} parent=1 // pred_region
      %101 = dma.done [#allocation8], 512
    $region49: #{placement_net_forward.1} parent=1 // pred_fallthru
      _
    // Predicated region
    $region50: #{placement_net_forward.1} parent=1 // pred_check
      _
    $region51: #{placement_net_forward.1} parent=1 // pred_check_branch
      %103 = sbr.rel (0) target = $region53
    $region52: #{placement_net_forward.1} parent=1 // pred_region
      %104 = dma.done [#allocation8], 65536
    $region53: #{placement_net_forward.1} parent=1 // pred_fallthru
      _
    // Predicated region
    $region54: #{placement_net_forward.1} parent=1 // pred_check
      _
    $region55: #{placement_net_forward.1} parent=1 // pred_check_branch
      %106 = sbr.rel (0) target = $region57
    $region56: #{placement_net_forward.1} parent=1 // pred_region
      %107 = dma.done [#allocation11], 16
    $region57: #{placement_net_forward.1} parent=1 // pred_fallthru
      _
    // Predicated region
    $region58: #{placement_net_forward.1} parent=1 // pred_check
      _
    $region59: #{placement_net_forward.1} parent=1 // pred_check_branch
      %109 = sbr.rel (0) target = $region61
    $region60: #{placement_net_forward.1} parent=1 // pred_region
      %110 = dma.done [#allocation11], 2048
    $region61: #{placement_net_forward.1} parent=1 // pred_fallthru
      _
    // Predicated region
    $region62: #{placement_net_forward.1} parent=1 // pred_check
      _
    $region63: #{placement_net_forward.1} parent=1 // pred_check_branch
      %112 = sbr.rel (0) target = $region65
    $region64: #{placement_net_forward.1} parent=1 // pred_region
      %113 = dma.done [#allocation14], 32
    $region65: #{placement_net_forward.1} parent=1 // pred_fallthru
      _
    %p115 = scmp.eq.s32.totalorder 0, 0
    // Predicated region
    $region66: #{placement_net_forward.1} parent=1 // pred_check
      %p116 = pneg %p115
    $region67: #{placement_net_forward.1} parent=1 // pred_check_branch
      %118 = sbr.rel (%p116) target = $region69
    $region68: #{placement_net_forward.1} parent=1 // pred_region
      %v119 = vld [vmem:[#allocation4] sm:$0xf]
      %v120 = vld [vmem:[#allocation4 + $0x4] sm:$0xf]
      %v121 = vld [vmem:[%s0] sm:$0xff]
      %v122 = vld [vmem:[%s0 + $0x8] sm:$0xff]
      %v123 = vld [vmem:[%s0 + $0x10] sm:$0xff]
      %v124 = vld [vmem:[%s0 + $0x18] sm:$0xff]
      %v125 = vld [vmem:[%s0 + $0x20] sm:$0xff]
      %v126 = vld [vmem:[%s0 + $0x28] sm:$0xff]
      %v127 = vld [vmem:[%s0 + $0x30] sm:$0xff]
      %v128 = vld [vmem:[%s0 + $0x38] sm:$0xff]
      %v129 = vld [vmem:[%s0 + $0x40] sm:$0xff]
      %v130 = vld [vmem:[%s0 + $0x48] sm:$0xff]
      %v131 = vld [vmem:[%s0 + $0x50] sm:$0xff]
      %v132 = vld [vmem:[%s0 + $0x58] sm:$0xff]
      %v133 = vld [vmem:[%s0 + $0x60] sm:$0xff]
      %v134 = vld [vmem:[%s0 + $0x68] sm:$0xff]
      %v135 = vld [vmem:[%s0 + $0x70] sm:$0xff]
      %v136 = vld [vmem:[%s0 + $0x78] sm:$0xff]
      %v137 = vld [vmem:[%s0 + $0x80] sm:$0xff]
      %v138 = vld [vmem:[%s0 + $0x88] sm:$0xff]
      %v139 = vld [vmem:[%s0 + $0x90] sm:$0x11]
      %v140 = vld [vmem:[%s0 + $0x98] sm:$0x11]
      %v141 = vld [vmem:[%s0 + $0xa0] sm:$0x11]
      %v142 = vld [vmem:[%s0 + $0xa8] sm:$0x11]
      %v143 = vld [vmem:[%s0 + $0xb0] sm:$0x11]
      %v144 = vld [vmem:[%s0 + $0xb8] sm:$0x11]
      %v145 = vld [vmem:[%s0 + $0xc0] sm:$0x11]
      %v146 = vld [vmem:[%s0 + $0xc8] sm:$0x11]
      %v147 = vld [vmem:[%s0 + $0xd0] sm:$0x11]
      %v148 = vld [vmem:[%s0 + $0xd8] sm:$0x11]
      %v149 = vld [vmem:[%s0 + $0xe0] sm:$0x11]
      %v150 = vld [vmem:[%s0 + $0xe8] sm:$0x11]
      %v151 = vld [vmem:[%s0 + $0xf0] sm:$0x11]
      %v152 = vld [vmem:[%s0 + $0xf8] sm:$0x11]
      %v153 = vld [vmem:[%s0 + $0x100] sm:$0x11]
      %v154 = vld [vmem:[%s0 + $0x108] sm:$0x11]
      %v155 = vld [vmem:[%s0 + $0x110] sm:$0x11]
      %v156 = vld [vmem:[%s0 + $0x118] sm:$0x11]
      %v157 = vld [vmem:[%s3] sm:$0xff]
      %v158 = vld [vmem:[%s3 + $0x8] sm:$0xff]
      %160 = vset.pattern.permute.xlu0 0
      %161 = vperm.xlu0 %160, %v157
      %v162 = vpop.permute.xlu0 %161
      %165 = vset.pattern.permute.xlu0 0
      %166 = vperm.xlu0 %165, %v158
      %v167 = vpop.permute.xlu0 %166
      %v171 = vunpack.c.l.b16 %v119
      %v172 = vunpack.c.l.b16 %v120
      %v173 = vpack.c.b16 %v172, %v171
      %v210 = vunpack.c.l.b16 %v121
      %v211 = vunpack.c.h.b16 %v121
      %v212 = vunpack.c.l.b16 %v122
      %v213 = vunpack.c.h.b16 %v122
      %v214 = vunpack.c.l.b16 %v123
      %v215 = vunpack.c.h.b16 %v123
      %v216 = vunpack.c.l.b16 %v124
      %v217 = vunpack.c.h.b16 %v124
      %v218 = vunpack.c.l.b16 %v125
      %v219 = vunpack.c.h.b16 %v125
      %v220 = vunpack.c.l.b16 %v126
      %v221 = vunpack.c.h.b16 %v126
      %v222 = vunpack.c.l.b16 %v127
      %v223 = vunpack.c.h.b16 %v127
      %v224 = vunpack.c.l.b16 %v128
      %v225 = vunpack.c.h.b16 %v128
      %v226 = vunpack.c.l.b16 %v129
      %v227 = vunpack.c.h.b16 %v129
      %v228 = vunpack.c.l.b16 %v130
      %v229 = vunpack.c.h.b16 %v130
      %v230 = vunpack.c.l.b16 %v131
      %v231 = vunpack.c.h.b16 %v131
      %v232 = vunpack.c.l.b16 %v132
      %v233 = vunpack.c.h.b16 %v132
      %v234 = vunpack.c.l.b16 %v133
      %v235 = vunpack.c.h.b16 %v133
      %v236 = vunpack.c.l.b16 %v134
      %v237 = vunpack.c.h.b16 %v134
      %v238 = vunpack.c.l.b16 %v135
      %v239 = vunpack.c.h.b16 %v135
      %v240 = vunpack.c.l.b16 %v136
      %v241 = vunpack.c.h.b16 %v136
      %v242 = vunpack.c.l.b16 %v137
      %v243 = vunpack.c.h.b16 %v137
      %v244 = vunpack.c.l.b16 %v138
      %v245 = vunpack.c.h.b16 %v138
      %v246 = vunpack.c.l.b16 %v139
      %v247 = vunpack.c.h.b16 %v139
      %v248 = vunpack.c.l.b16 %v140
      %v249 = vunpack.c.h.b16 %v140
      %v250 = vunpack.c.l.b16 %v141
      %v251 = vunpack.c.h.b16 %v141
      %v252 = vunpack.c.l.b16 %v142
      %v253 = vunpack.c.h.b16 %v142
      %v254 = vunpack.c.l.b16 %v143
      %v255 = vunpack.c.h.b16 %v143
      %v256 = vunpack.c.l.b16 %v144
      %v257 = vunpack.c.h.b16 %v144
      %v258 = vunpack.c.l.b16 %v145
      %v259 = vunpack.c.h.b16 %v145
      %v260 = vunpack.c.l.b16 %v146
      %v261 = vunpack.c.h.b16 %v146
      %v262 = vunpack.c.l.b16 %v147
      %v263 = vunpack.c.h.b16 %v147
      %v264 = vunpack.c.l.b16 %v148
      %v265 = vunpack.c.h.b16 %v148
      %v266 = vunpack.c.l.b16 %v149
      %v267 = vunpack.c.h.b16 %v149
      %v268 = vunpack.c.l.b16 %v150
      %v269 = vunpack.c.h.b16 %v150
      %v270 = vunpack.c.l.b16 %v151
      %v271 = vunpack.c.h.b16 %v151
      %v272 = vunpack.c.l.b16 %v152
      %v273 = vunpack.c.h.b16 %v152
      %v274 = vunpack.c.l.b16 %v153
      %v275 = vunpack.c.h.b16 %v153
      %v276 = vunpack.c.l.b16 %v154
      %v277 = vunpack.c.h.b16 %v154
      %v278 = vunpack.c.l.b16 %v155
      %v279 = vunpack.c.h.b16 %v155
      %v280 = vunpack.c.l.b16 %v156
      %v281 = vunpack.c.h.b16 %v156
      %v282 = vpack.c.b16 %v246, %v210
      %v283 = vpack.c.b16 %v247, %v211
      %v284 = vpack.c.b16 %v248, %v212
      %v285 = vpack.c.b16 %v249, %v213
      %v286 = vpack.c.b16 %v250, %v214
      %v287 = vpack.c.b16 %v251, %v215
      %v288 = vpack.c.b16 %v252, %v216
      %v289 = vpack.c.b16 %v253, %v217
      %v290 = vpack.c.b16 %v254, %v218
      %v291 = vpack.c.b16 %v255, %v219
      %v292 = vpack.c.b16 %v256, %v220
      %v293 = vpack.c.b16 %v257, %v221
      %v294 = vpack.c.b16 %v258, %v222
      %v295 = vpack.c.b16 %v259, %v223
      %v296 = vpack.c.b16 %v260, %v224
      %v297 = vpack.c.b16 %v261, %v225
      %v298 = vpack.c.b16 %v262, %v226
      %v299 = vpack.c.b16 %v263, %v227
      %v300 = vpack.c.b16 %v264, %v228
      %v301 = vpack.c.b16 %v265, %v229
      %v302 = vpack.c.b16 %v266, %v230
      %v303 = vpack.c.b16 %v267, %v231
      %v304 = vpack.c.b16 %v268, %v232
      %v305 = vpack.c.b16 %v269, %v233
      %v306 = vpack.c.b16 %v270, %v234
      %v307 = vpack.c.b16 %v271, %v235
      %v308 = vpack.c.b16 %v272, %v236
      %v309 = vpack.c.b16 %v273, %v237
      %v310 = vpack.c.b16 %v274, %v238
      %v311 = vpack.c.b16 %v275, %v239
      %v312 = vpack.c.b16 %v276, %v240
      %v313 = vpack.c.b16 %v277, %v241
      %v314 = vpack.c.b16 %v278, %v242
      %v315 = vpack.c.b16 %v279, %v243
      %v316 = vpack.c.b16 %v280, %v244
      %v317 = vpack.c.b16 %v281, %v245
      %vm318 = vcmask 72704
      %v320 = vsel %vm318, %v173, 0
      %vm322 = vcmask 1043456
      %vm323 = vcmask 1044480
      %v324 = vsel %vm322, 4294967295, 65535
      %v325 = vsel %vm323, %v324, 0
      %v327 = vand.u32 %v282, %v325
      %v330 = vand.u32 %v283, %v325
      %v333 = vand.u32 %v284, %v325
      %v336 = vand.u32 %v285, %v325
      %v339 = vand.u32 %v286, %v325
      %v342 = vand.u32 %v287, %v325
      %v345 = vand.u32 %v288, %v325
      %v348 = vand.u32 %v289, %v325
      %v351 = vand.u32 %v290, %v325
      %v354 = vand.u32 %v291, %v325
      %v357 = vand.u32 %v292, %v325
      %v360 = vand.u32 %v293, %v325
      %v363 = vand.u32 %v294, %v325
      %v366 = vand.u32 %v295, %v325
      %v369 = vand.u32 %v296, %v325
      %v372 = vand.u32 %v297, %v325
      %v375 = vand.u32 %v298, %v325
      %v378 = vand.u32 %v299, %v325
      %v381 = vand.u32 %v300, %v325
      %v384 = vand.u32 %v301, %v325
      %v387 = vand.u32 %v302, %v325
      %v390 = vand.u32 %v303, %v325
      %v393 = vand.u32 %v304, %v325
      %v396 = vand.u32 %v305, %v325
      %v399 = vand.u32 %v306, %v325
      %v402 = vand.u32 %v307, %v325
      %v405 = vand.u32 %v308, %v325
      %v408 = vand.u32 %v309, %v325
      %v411 = vand.u32 %v310, %v325
      %v414 = vand.u32 %v311, %v325
      %v417 = vand.u32 %v312, %v325
      %v420 = vand.u32 %v313, %v325
      %v423 = vand.u32 %v314, %v325
      %v426 = vand.u32 %v315, %v325
      %v429 = vand.u32 %v316, %v325
      %v432 = vand.u32 %v317, %v325
      %434 = vmatprep.subr.bf16.mxu0 %v330
      %435 = vmatpush1.bf16.msra.mxu0 %v327
      %436 = vmatprep.subr.bf16.mxu0 0
      %437 = vmatpush1.bf16.msra.mxu0 0
      %438 = vmatprep.subr.bf16.mxu0 0
      %439 = vmatpush1.bf16.msra.mxu0 0
      %440 = vmatprep.subr.bf16.mxu0 0
      %441 = vmatpush1.bf16.msra.mxu0 0
      %442 = vmatprep.subr.bf16.mxu0 0
      %443 = vmatpush1.bf16.msra.mxu0 0
      %444 = vmatprep.subr.bf16.mxu0 0
      %445 = vmatpush1.bf16.msra.mxu0 0
      %446 = vmatprep.subr.bf16.mxu0 0
      %447 = vmatpush1.bf16.msra.mxu0 0
      %448 = vmatprep.subr.bf16.mxu0 0
      %449 = vmatpush1.bf16.msra.mxu0 0
      %450 = vmatprep.subr.bf16.mxu0 0
      %451 = vmatpush1.bf16.msra.mxu0 0
      %452 = vmatprep.subr.bf16.mxu0 0
      %453 = vmatpush1.bf16.msra.mxu0 0
      %454 = vmatprep.subr.bf16.mxu0 0
      %455 = vmatpush1.bf16.msra.mxu0 0
      %456 = vmatprep.subr.bf16.mxu0 0
      %457 = vmatpush1.bf16.msra.mxu0 0
      %458 = vmatprep.subr.bf16.mxu0 0
      %459 = vmatpush1.bf16.msra.mxu0 0
      %460 = vmatprep.subr.bf16.mxu0 0
      %461 = vmatpush1.bf16.msra.mxu0 0
      %462 = vmatprep.subr.bf16.mxu0 0
      %463 = vmatpush1.bf16.msra.mxu0 0
      %464 = vmatprep.subr.bf16.mxu0 0
      %465 = vmatpush1.bf16.msra.mxu0 0
      %466 = vmatprep.mubr.bf16.mxu0 0
      %467 = vmatmul.mubr.bf16.gmra.mrb[0].mxu0 %v320
      %v468 = vpop.f32.mrb[0].mxu0
      %v469 = vadd.f32 %v162, %v468
      %v470 = vpop.f32.mrb[0].mxu0
      %v471 = vadd.f32 %v162, %v470
      %v472 = vpop.f32.mrb[0].mxu0
      %v473 = vadd.f32 %v167, %v472
      %v474 = vpop.f32.mrb[0].mxu0
      %v475 = vadd.f32 %v167, %v474
      %476 = vdwg.mxu0
      %477 = vmatprep.subr.bf16.mxu0 %v336
      %478 = vmatpush1.bf16.msra.mxu0 %v333
      %479 = vmatprep.subr.bf16.mxu0 0
      %480 = vmatpush1.bf16.msra.mxu0 0
      %481 = vmatprep.subr.bf16.mxu0 0
      %482 = vmatpush1.bf16.msra.mxu0 0
      %483 = vmatprep.subr.bf16.mxu0 0
      %484 = vmatpush1.bf16.msra.mxu0 0
      %485 = vmatprep.subr.bf16.mxu0 0
      %486 = vmatpush1.bf16.msra.mxu0 0
      %487 = vmatprep.subr.bf16.mxu0 0
      %488 = vmatpush1.bf16.msra.mxu0 0
      %489 = vmatprep.subr.bf16.mxu0 0
      %490 = vmatpush1.bf16.msra.mxu0 0
      %491 = vmatprep.subr.bf16.mxu0 0
      %492 = vmatpush1.bf16.msra.mxu0 0
      %493 = vmatprep.subr.bf16.mxu0 0
      %494 = vmatpush1.bf16.msra.mxu0 0
      %495 = vmatprep.subr.bf16.mxu0 0
      %496 = vmatpush1.bf16.msra.mxu0 0
      %497 = vmatprep.subr.bf16.mxu0 0
      %498 = vmatpush1.bf16.msra.mxu0 0
      %499 = vmatprep.subr.bf16.mxu0 0
      %500 = vmatpush1.bf16.msra.mxu0 0
      %501 = vmatprep.subr.bf16.mxu0 0
      %502 = vmatpush1.bf16.msra.mxu0 0
      %503 = vmatprep.subr.bf16.mxu0 0
      %504 = vmatpush1.bf16.msra.mxu0 0
      %505 = vmatprep.subr.bf16.mxu0 0
      %506 = vmatpush1.bf16.msra.mxu0 0
      %507 = vmatprep.subr.bf16.mxu0 0
      %508 = vmatpush1.bf16.msra.mxu0 0
      %509 = vmatprep.mubr.bf16.mxu0 0
      %510 = vmatmul.mubr.bf16.gmra.mrb[0].mxu0 %v320
      %v511 = vpop.f32.mrb[0].mxu0
      %v512 = vadd.f32 %v162, %v511
      %v513 = vpop.f32.mrb[0].mxu0
      %v514 = vadd.f32 %v162, %v513
      %v515 = vpop.f32.mrb[0].mxu0
      %v516 = vadd.f32 %v167, %v515
      %v517 = vpop.f32.mrb[0].mxu0
      %v518 = vadd.f32 %v167, %v517
      %519 = vdwg.mxu0
      %520 = vmatprep.subr.bf16.mxu0 %v342
      %521 = vmatpush1.bf16.msra.mxu0 %v339
      %522 = vmatprep.subr.bf16.mxu0 0
      %523 = vmatpush1.bf16.msra.mxu0 0
      %524 = vmatprep.subr.bf16.mxu0 0
      %525 = vmatpush1.bf16.msra.mxu0 0
      %526 = vmatprep.subr.bf16.mxu0 0
      %527 = vmatpush1.bf16.msra.mxu0 0
      %528 = vmatprep.subr.bf16.mxu0 0
      %529 = vmatpush1.bf16.msra.mxu0 0
      %530 = vmatprep.subr.bf16.mxu0 0
      %531 = vmatpush1.bf16.msra.mxu0 0
      %532 = vmatprep.subr.bf16.mxu0 0
      %533 = vmatpush1.bf16.msra.mxu0 0
      %534 = vmatprep.subr.bf16.mxu0 0
      %535 = vmatpush1.bf16.msra.mxu0 0
      %536 = vmatprep.subr.bf16.mxu0 0
      %537 = vmatpush1.bf16.msra.mxu0 0
      %538 = vmatprep.subr.bf16.mxu0 0
      %539 = vmatpush1.bf16.msra.mxu0 0
      %540 = vmatprep.subr.bf16.mxu0 0
      %541 = vmatpush1.bf16.msra.mxu0 0
      %542 = vmatprep.subr.bf16.mxu0 0
      %543 = vmatpush1.bf16.msra.mxu0 0
      %544 = vmatprep.subr.bf16.mxu0 0
      %545 = vmatpush1.bf16.msra.mxu0 0
      %546 = vmatprep.subr.bf16.mxu0 0
      %547 = vmatpush1.bf16.msra.mxu0 0
      %548 = vmatprep.subr.bf16.mxu0 0
      %549 = vmatpush1.bf16.msra.mxu0 0
      %550 = vmatprep.subr.bf16.mxu0 0
      %551 = vmatpush1.bf16.msra.mxu0 0
      %552 = vmatprep.mubr.bf16.mxu0 0
      %553 = vmatmul.mubr.bf16.gmra.mrb[0].mxu0 %v320
      %v554 = vpop.f32.mrb[0].mxu0
      %v555 = vadd.f32 %v162, %v554
      %v556 = vpop.f32.mrb[0].mxu0
      %v557 = vadd.f32 %v162, %v556
      %v558 = vpop.f32.mrb[0].mxu0
      %v559 = vadd.f32 %v167, %v558
      %v560 = vpop.f32.mrb[0].mxu0
      %v561 = vadd.f32 %v167, %v560
      %562 = vdwg.mxu0
      %563 = vmatprep.subr.bf16.mxu0 %v348
      %564 = vmatpush1.bf16.msra.mxu0 %v345
      %565 = vmatprep.subr.bf16.mxu0 0
      %566 = vmatpush1.bf16.msra.mxu0 0
      %567 = vmatprep.subr.bf16.mxu0 0
      %568 = vmatpush1.bf16.msra.mxu0 0
      %569 = vmatprep.subr.bf16.mxu0 0
      %570 = vmatpush1.bf16.msra.mxu0 0
      %571 = vmatprep.subr.bf16.mxu0 0
      %572 = vmatpush1.bf16.msra.mxu0 0
      %573 = vmatprep.subr.bf16.mxu0 0
      %574 = vmatpush1.bf16.msra.mxu0 0
      %575 = vmatprep.subr.bf16.mxu0 0
      %576 = vmatpush1.bf16.msra.mxu0 0
      %577 = vmatprep.subr.bf16.mxu0 0
      %578 = vmatpush1.bf16.msra.mxu0 0
      %579 = vmatprep.subr.bf16.mxu0 0
      %580 = vmatpush1.bf16.msra.mxu0 0
      %581 = vmatprep.subr.bf16.mxu0 0
      %582 = vmatpush1.bf16.msra.mxu0 0
      %583 = vmatprep.subr.bf16.mxu0 0
      %584 = vmatpush1.bf16.msra.mxu0 0
      %585 = vmatprep.subr.bf16.mxu0 0
      %586 = vmatpush1.bf16.msra.mxu0 0
      %587 = vmatprep.subr.bf16.mxu0 0
      %588 = vmatpush1.bf16.msra.mxu0 0
      %589 = vmatprep.subr.bf16.mxu0 0
      %590 = vmatpush1.bf16.msra.mxu0 0
      %591 = vmatprep.subr.bf16.mxu0 0
      %592 = vmatpush1.bf16.msra.mxu0 0
      %593 = vmatprep.subr.bf16.mxu0 0
      %594 = vmatpush1.bf16.msra.mxu0 0
      %595 = vmatprep.mubr.bf16.mxu0 0
      %596 = vmatmul.mubr.bf16.gmra.mrb[0].mxu0 %v320
      %v597 = vpop.f32.mrb[0].mxu0
      %v598 = vadd.f32 %v162, %v597
      %v599 = vpop.f32.mrb[0].mxu0
      %v600 = vadd.f32 %v162, %v599
      %v601 = vpop.f32.mrb[0].mxu0
      %v602 = vadd.f32 %v167, %v601
      %v603 = vpop.f32.mrb[0].mxu0
      %v604 = vadd.f32 %v167, %v603
      %605 = vdwg.mxu0
      %606 = vmatprep.subr.bf16.mxu0 %v354
      %607 = vmatpush1.bf16.msra.mxu0 %v351
      %608 = vmatprep.subr.bf16.mxu0 0
      %609 = vmatpush1.bf16.msra.mxu0 0
      %610 = vmatprep.subr.bf16.mxu0 0
      %611 = vmatpush1.bf16.msra.mxu0 0
      %612 = vmatprep.subr.bf16.mxu0 0
      %613 = vmatpush1.bf16.msra.mxu0 0
      %614 = vmatprep.subr.bf16.mxu0 0
      %615 = vmatpush1.bf16.msra.mxu0 0
      %616 = vmatprep.subr.bf16.mxu0 0
      %617 = vmatpush1.bf16.msra.mxu0 0
      %618 = vmatprep.subr.bf16.mxu0 0
      %619 = vmatpush1.bf16.msra.mxu0 0
      %620 = vmatprep.subr.bf16.mxu0 0
      %621 = vmatpush1.bf16.msra.mxu0 0
      %622 = vmatprep.subr.bf16.mxu0 0
      %623 = vmatpush1.bf16.msra.mxu0 0
      %624 = vmatprep.subr.bf16.mxu0 0
      %625 = vmatpush1.bf16.msra.mxu0 0
      %626 = vmatprep.subr.bf16.mxu0 0
      %627 = vmatpush1.bf16.msra.mxu0 0
      %628 = vmatprep.subr.bf16.mxu0 0
      %629 = vmatpush1.bf16.msra.mxu0 0
      %630 = vmatprep.subr.bf16.mxu0 0
      %631 = vmatpush1.bf16.msra.mxu0 0
      %632 = vmatprep.subr.bf16.mxu0 0
      %633 = vmatpush1.bf16.msra.mxu0 0
      %634 = vmatprep.subr.bf16.mxu0 0
      %635 = vmatpush1.bf16.msra.mxu0 0
      %636 = vmatprep.subr.bf16.mxu0 0
      %637 = vmatpush1.bf16.msra.mxu0 0
      %638 = vmatprep.mubr.bf16.mxu0 0
      %639 = vmatmul.mubr.bf16.gmra.mrb[0].mxu0 %v320
      %v640 = vpop.f32.mrb[0].mxu0
      %v641 = vadd.f32 %v162, %v640
      %v642 = vpop.f32.mrb[0].mxu0
      %v643 = vadd.f32 %v162, %v642
      %v644 = vpop.f32.mrb[0].mxu0
      %v645 = vadd.f32 %v167, %v644
      %v646 = vpop.f32.mrb[0].mxu0
      %v647 = vadd.f32 %v167, %v646
      %648 = vdwg.mxu0
      %649 = vmatprep.subr.bf16.mxu0 %v360
      %650 = vmatpush1.bf16.msra.mxu0 %v357
      %651 = vmatprep.subr.bf16.mxu0 0
      %652 = vmatpush1.bf16.msra.mxu0 0
      %653 = vmatprep.subr.bf16.mxu0 0
      %654 = vmatpush1.bf16.msra.mxu0 0
      %655 = vmatprep.subr.bf16.mxu0 0
      %656 = vmatpush1.bf16.msra.mxu0 0
      %657 = vmatprep.subr.bf16.mxu0 0
      %658 = vmatpush1.bf16.msra.mxu0 0
      %659 = vmatprep.subr.bf16.mxu0 0
      %660 = vmatpush1.bf16.msra.mxu0 0
      %661 = vmatprep.subr.bf16.mxu0 0
      %662 = vmatpush1.bf16.msra.mxu0 0
      %663 = vmatprep.subr.bf16.mxu0 0
      %664 = vmatpush1.bf16.msra.mxu0 0
      %665 = vmatprep.subr.bf16.mxu0 0
      %666 = vmatpush1.bf16.msra.mxu0 0
      %667 = vmatprep.subr.bf16.mxu0 0
      %668 = vmatpush1.bf16.msra.mxu0 0
      %669 = vmatprep.subr.bf16.mxu0 0
      %670 = vmatpush1.bf16.msra.mxu0 0
      %671 = vmatprep.subr.bf16.mxu0 0
      %672 = vmatpush1.bf16.msra.mxu0 0
      %673 = vmatprep.subr.bf16.mxu0 0
      %674 = vmatpush1.bf16.msra.mxu0 0
      %675 = vmatprep.subr.bf16.mxu0 0
      %676 = vmatpush1.bf16.msra.mxu0 0
      %677 = vmatprep.subr.bf16.mxu0 0
      %678 = vmatpush1.bf16.msra.mxu0 0
      %679 = vmatprep.subr.bf16.mxu0 0
      %680 = vmatpush1.bf16.msra.mxu0 0
      %681 = vmatprep.mubr.bf16.mxu0 0
      %682 = vmatmul.mubr.bf16.gmra.mrb[0].mxu0 %v320
      %v683 = vpop.f32.mrb[0].mxu0
      %v684 = vadd.f32 %v162, %v683
      %v685 = vpop.f32.mrb[0].mxu0
      %v686 = vadd.f32 %v162, %v685
      %v687 = vpop.f32.mrb[0].mxu0
      %v688 = vadd.f32 %v167, %v687
      %v689 = vpop.f32.mrb[0].mxu0
      %v690 = vadd.f32 %v167, %v689
      %691 = vdwg.mxu0
      %692 = vmatprep.subr.bf16.mxu0 %v366
      %693 = vmatpush1.bf16.msra.mxu0 %v363
      %694 = vmatprep.subr.bf16.mxu0 0
      %695 = vmatpush1.bf16.msra.mxu0 0
      %696 = vmatprep.subr.bf16.mxu0 0
      %697 = vmatpush1.bf16.msra.mxu0 0
      %698 = vmatprep.subr.bf16.mxu0 0
      %699 = vmatpush1.bf16.msra.mxu0 0
      %700 = vmatprep.subr.bf16.mxu0 0
      %701 = vmatpush1.bf16.msra.mxu0 0
      %702 = vmatprep.subr.bf16.mxu0 0
      %703 = vmatpush1.bf16.msra.mxu0 0
      %704 = vmatprep.subr.bf16.mxu0 0
      %705 = vmatpush1.bf16.msra.mxu0 0
      %706 = vmatprep.subr.bf16.mxu0 0
      %707 = vmatpush1.bf16.msra.mxu0 0
      %708 = vmatprep.subr.bf16.mxu0 0
      %709 = vmatpush1.bf16.msra.mxu0 0
      %710 = vmatprep.subr.bf16.mxu0 0
      %711 = vmatpush1.bf16.msra.mxu0 0
      %712 = vmatprep.subr.bf16.mxu0 0
      %713 = vmatpush1.bf16.msra.mxu0 0
      %714 = vmatprep.subr.bf16.mxu0 0
      %715 = vmatpush1.bf16.msra.mxu0 0
      %716 = vmatprep.subr.bf16.mxu0 0
      %717 = vmatpush1.bf16.msra.mxu0 0
      %718 = vmatprep.subr.bf16.mxu0 0
      %719 = vmatpush1.bf16.msra.mxu0 0
      %720 = vmatprep.subr.bf16.mxu0 0
      %721 = vmatpush1.bf16.msra.mxu0 0
      %722 = vmatprep.subr.bf16.mxu0 0
      %723 = vmatpush1.bf16.msra.mxu0 0
      %724 = vmatprep.mubr.bf16.mxu0 0
      %725 = vmatmul.mubr.bf16.gmra.mrb[0].mxu0 %v320
      %v726 = vpop.f32.mrb[0].mxu0
      %v727 = vadd.f32 %v162, %v726
      %v728 = vpop.f32.mrb[0].mxu0
      %v729 = vadd.f32 %v162, %v728
      %v730 = vpop.f32.mrb[0].mxu0
      %v731 = vadd.f32 %v167, %v730
      %v732 = vpop.f32.mrb[0].mxu0
      %v733 = vadd.f32 %v167, %v732
      %734 = vdwg.mxu0
      %735 = vmatprep.subr.bf16.mxu0 %v372
      %736 = vmatpush1.bf16.msra.mxu0 %v369
      %737 = vmatprep.subr.bf16.mxu0 0
      %738 = vmatpush1.bf16.msra.mxu0 0
      %739 = vmatprep.subr.bf16.mxu0 0
      %740 = vmatpush1.bf16.msra.mxu0 0
      %741 = vmatprep.subr.bf16.mxu0 0
      %742 = vmatpush1.bf16.msra.mxu0 0
      %743 = vmatprep.subr.bf16.mxu0 0
      %744 = vmatpush1.bf16.msra.mxu0 0
      %745 = vmatprep.subr.bf16.mxu0 0
      %746 = vmatpush1.bf16.msra.mxu0 0
      %747 = vmatprep.subr.bf16.mxu0 0
      %748 = vmatpush1.bf16.msra.mxu0 0
      %749 = vmatprep.subr.bf16.mxu0 0
      %750 = vmatpush1.bf16.msra.mxu0 0
      %751 = vmatprep.subr.bf16.mxu0 0
      %752 = vmatpush1.bf16.msra.mxu0 0
      %753 = vmatprep.subr.bf16.mxu0 0
      %754 = vmatpush1.bf16.msra.mxu0 0
      %755 = vmatprep.subr.bf16.mxu0 0
      %756 = vmatpush1.bf16.msra.mxu0 0
      %757 = vmatprep.subr.bf16.mxu0 0
      %758 = vmatpush1.bf16.msra.mxu0 0
      %759 = vmatprep.subr.bf16.mxu0 0
      %760 = vmatpush1.bf16.msra.mxu0 0
      %761 = vmatprep.subr.bf16.mxu0 0
      %762 = vmatpush1.bf16.msra.mxu0 0
      %763 = vmatprep.subr.bf16.mxu0 0
      %764 = vmatpush1.bf16.msra.mxu0 0
      %765 = vmatprep.subr.bf16.mxu0 0
      %766 = vmatpush1.bf16.msra.mxu0 0
      %767 = vmatprep.mubr.bf16.mxu0 0
      %768 = vmatmul.mubr.bf16.gmra.mrb[0].mxu0 %v320
      %v769 = vpop.f32.mrb[0].mxu0
      %v770 = vadd.f32 %v162, %v769
      %v771 = vpop.f32.mrb[0].mxu0
      %v772 = vadd.f32 %v162, %v771
      %v773 = vpop.f32.mrb[0].mxu0
      %v774 = vadd.f32 %v167, %v773
      %v775 = vpop.f32.mrb[0].mxu0
      %v776 = vadd.f32 %v167, %v775
      %777 = vdwg.mxu0
      %778 = vmatprep.subr.bf16.mxu0 %v378
      %779 = vmatpush1.bf16.msra.mxu0 %v375
      %780 = vmatprep.subr.bf16.mxu0 0
      %781 = vmatpush1.bf16.msra.mxu0 0
      %782 = vmatprep.subr.bf16.mxu0 0
      %783 = vmatpush1.bf16.msra.mxu0 0
      %784 = vmatprep.subr.bf16.mxu0 0
      %785 = vmatpush1.bf16.msra.mxu0 0
      %786 = vmatprep.subr.bf16.mxu0 0
      %787 = vmatpush1.bf16.msra.mxu0 0
      %788 = vmatprep.subr.bf16.mxu0 0
      %789 = vmatpush1.bf16.msra.mxu0 0
      %790 = vmatprep.subr.bf16.mxu0 0
      %791 = vmatpush1.bf16.msra.mxu0 0
      %792 = vmatprep.subr.bf16.mxu0 0
      %793 = vmatpush1.bf16.msra.mxu0 0
      %794 = vmatprep.subr.bf16.mxu0 0
      %795 = vmatpush1.bf16.msra.mxu0 0
      %796 = vmatprep.subr.bf16.mxu0 0
      %797 = vmatpush1.bf16.msra.mxu0 0
      %798 = vmatprep.subr.bf16.mxu0 0
      %799 = vmatpush1.bf16.msra.mxu0 0
      %800 = vmatprep.subr.bf16.mxu0 0
      %801 = vmatpush1.bf16.msra.mxu0 0
      %802 = vmatprep.subr.bf16.mxu0 0
      %803 = vmatpush1.bf16.msra.mxu0 0
      %804 = vmatprep.subr.bf16.mxu0 0
      %805 = vmatpush1.bf16.msra.mxu0 0
      %806 = vmatprep.subr.bf16.mxu0 0
      %807 = vmatpush1.bf16.msra.mxu0 0
      %808 = vmatprep.subr.bf16.mxu0 0
      %809 = vmatpush1.bf16.msra.mxu0 0
      %810 = vmatprep.mubr.bf16.mxu0 0
      %811 = vmatmul.mubr.bf16.gmra.mrb[0].mxu0 %v320
      %v812 = vpop.f32.mrb[0].mxu0
      %v813 = vadd.f32 %v162, %v812
      %v814 = vpop.f32.mrb[0].mxu0
      %v815 = vadd.f32 %v162, %v814
      %v816 = vpop.f32.mrb[0].mxu0
      %v817 = vadd.f32 %v167, %v816
      %v818 = vpop.f32.mrb[0].mxu0
      %v819 = vadd.f32 %v167, %v818
      %820 = vdwg.mxu0
      %821 = vmatprep.subr.bf16.mxu0 %v384
      %822 = vmatpush1.bf16.msra.mxu0 %v381
      %823 = vmatprep.subr.bf16.mxu0 0
      %824 = vmatpush1.bf16.msra.mxu0 0
      %825 = vmatprep.subr.bf16.mxu0 0
      %826 = vmatpush1.bf16.msra.mxu0 0
      %827 = vmatprep.subr.bf16.mxu0 0
      %828 = vmatpush1.bf16.msra.mxu0 0
      %829 = vmatprep.subr.bf16.mxu0 0
      %830 = vmatpush1.bf16.msra.mxu0 0
      %831 = vmatprep.subr.bf16.mxu0 0
      %832 = vmatpush1.bf16.msra.mxu0 0
      %833 = vmatprep.subr.bf16.mxu0 0
      %834 = vmatpush1.bf16.msra.mxu0 0
      %835 = vmatprep.subr.bf16.mxu0 0
      %836 = vmatpush1.bf16.msra.mxu0 0
      %837 = vmatprep.subr.bf16.mxu0 0
      %838 = vmatpush1.bf16.msra.mxu0 0
      %839 = vmatprep.subr.bf16.mxu0 0
      %840 = vmatpush1.bf16.msra.mxu0 0
      %841 = vmatprep.subr.bf16.mxu0 0
      %842 = vmatpush1.bf16.msra.mxu0 0
      %843 = vmatprep.subr.bf16.mxu0 0
      %844 = vmatpush1.bf16.msra.mxu0 0
      %845 = vmatprep.subr.bf16.mxu0 0
      %846 = vmatpush1.bf16.msra.mxu0 0
      %847 = vmatprep.subr.bf16.mxu0 0
      %848 = vmatpush1.bf16.msra.mxu0 0
      %849 = vmatprep.subr.bf16.mxu0 0
      %850 = vmatpush1.bf16.msra.mxu0 0
      %851 = vmatprep.subr.bf16.mxu0 0
      %852 = vmatpush1.bf16.msra.mxu0 0
      %853 = vmatprep.mubr.bf16.mxu0 0
      %854 = vmatmul.mubr.bf16.gmra.mrb[0].mxu0 %v320
      %v855 = vpop.f32.mrb[0].mxu0
      %v856 = vadd.f32 %v162, %v855
      %v857 = vpop.f32.mrb[0].mxu0
      %v858 = vadd.f32 %v162, %v857
      %v859 = vpop.f32.mrb[0].mxu0
      %v860 = vadd.f32 %v167, %v859
      %v861 = vpop.f32.mrb[0].mxu0
      %v862 = vadd.f32 %v167, %v861
      %863 = vdwg.mxu0
      %864 = vmatprep.subr.bf16.mxu0 %v390
      %865 = vmatpush1.bf16.msra.mxu0 %v387
      %866 = vmatprep.subr.bf16.mxu0 0
      %867 = vmatpush1.bf16.msra.mxu0 0
      %868 = vmatprep.subr.bf16.mxu0 0
      %869 = vmatpush1.bf16.msra.mxu0 0
      %870 = vmatprep.subr.bf16.mxu0 0
      %871 = vmatpush1.bf16.msra.mxu0 0
      %872 = vmatprep.subr.bf16.mxu0 0
      %873 = vmatpush1.bf16.msra.mxu0 0
      %874 = vmatprep.subr.bf16.mxu0 0
      %875 = vmatpush1.bf16.msra.mxu0 0
      %876 = vmatprep.subr.bf16.mxu0 0
      %877 = vmatpush1.bf16.msra.mxu0 0
      %878 = vmatprep.subr.bf16.mxu0 0
      %879 = vmatpush1.bf16.msra.mxu0 0
      %880 = vmatprep.subr.bf16.mxu0 0
      %881 = vmatpush1.bf16.msra.mxu0 0
      %882 = vmatprep.subr.bf16.mxu0 0
      %883 = vmatpush1.bf16.msra.mxu0 0
      %884 = vmatprep.subr.bf16.mxu0 0
      %885 = vmatpush1.bf16.msra.mxu0 0
      %886 = vmatprep.subr.bf16.mxu0 0
      %887 = vmatpush1.bf16.msra.mxu0 0
      %888 = vmatprep.subr.bf16.mxu0 0
      %889 = vmatpush1.bf16.msra.mxu0 0
      %890 = vmatprep.subr.bf16.mxu0 0
      %891 = vmatpush1.bf16.msra.mxu0 0
      %892 = vmatprep.subr.bf16.mxu0 0
      %893 = vmatpush1.bf16.msra.mxu0 0
      %894 = vmatprep.subr.bf16.mxu0 0
      %895 = vmatpush1.bf16.msra.mxu0 0
      %896 = vmatprep.mubr.bf16.mxu0 0
      %897 = vmatmul.mubr.bf16.gmra.mrb[0].mxu0 %v320
      %v898 = vpop.f32.mrb[0].mxu0
      %v899 = vadd.f32 %v162, %v898
      %v900 = vpop.f32.mrb[0].mxu0
      %v901 = vadd.f32 %v162, %v900
      %v902 = vpop.f32.mrb[0].mxu0
      %v903 = vadd.f32 %v167, %v902
      %v904 = vpop.f32.mrb[0].mxu0
      %v905 = vadd.f32 %v167, %v904
      %906 = vdwg.mxu0
      %907 = vmatprep.subr.bf16.mxu0 %v396
      %908 = vmatpush1.bf16.msra.mxu0 %v393
      %909 = vmatprep.subr.bf16.mxu0 0
      %910 = vmatpush1.bf16.msra.mxu0 0
      %911 = vmatprep.subr.bf16.mxu0 0
      %912 = vmatpush1.bf16.msra.mxu0 0
      %913 = vmatprep.subr.bf16.mxu0 0
      %914 = vmatpush1.bf16.msra.mxu0 0
      %915 = vmatprep.subr.bf16.mxu0 0
      %916 = vmatpush1.bf16.msra.mxu0 0
      %917 = vmatprep.subr.bf16.mxu0 0
      %918 = vmatpush1.bf16.msra.mxu0 0
      %919 = vmatprep.subr.bf16.mxu0 0
      %920 = vmatpush1.bf16.msra.mxu0 0
      %921 = vmatprep.subr.bf16.mxu0 0
      %922 = vmatpush1.bf16.msra.mxu0 0
      %923 = vmatprep.subr.bf16.mxu0 0
      %924 = vmatpush1.bf16.msra.mxu0 0
      %925 = vmatprep.subr.bf16.mxu0 0
      %926 = vmatpush1.bf16.msra.mxu0 0
      %927 = vmatprep.subr.bf16.mxu0 0
      %928 = vmatpush1.bf16.msra.mxu0 0
      %929 = vmatprep.subr.bf16.mxu0 0
      %930 = vmatpush1.bf16.msra.mxu0 0
      %931 = vmatprep.subr.bf16.mxu0 0
      %932 = vmatpush1.bf16.msra.mxu0 0
      %933 = vmatprep.subr.bf16.mxu0 0
      %934 = vmatpush1.bf16.msra.mxu0 0
      %935 = vmatprep.subr.bf16.mxu0 0
      %936 = vmatpush1.bf16.msra.mxu0 0
      %937 = vmatprep.subr.bf16.mxu0 0
      %938 = vmatpush1.bf16.msra.mxu0 0
      %939 = vmatprep.mubr.bf16.mxu0 0
      %940 = vmatmul.mubr.bf16.gmra.mrb[0].mxu0 %v320
      %v941 = vpop.f32.mrb[0].mxu0
      %v942 = vadd.f32 %v162, %v941
      %v943 = vpop.f32.mrb[0].mxu0
      %v944 = vadd.f32 %v162, %v943
      %v945 = vpop.f32.mrb[0].mxu0
      %v946 = vadd.f32 %v167, %v945
      %v947 = vpop.f32.mrb[0].mxu0
      %v948 = vadd.f32 %v167, %v947
      %949 = vdwg.mxu0
      %950 = vmatprep.subr.bf16.mxu0 %v402
      %951 = vmatpush1.bf16.msra.mxu0 %v399
      %952 = vmatprep.subr.bf16.mxu0 0
      %953 = vmatpush1.bf16.msra.mxu0 0
      %954 = vmatprep.subr.bf16.mxu0 0
      %955 = vmatpush1.bf16.msra.mxu0 0
      %956 = vmatprep.subr.bf16.mxu0 0
      %957 = vmatpush1.bf16.msra.mxu0 0
      %958 = vmatprep.subr.bf16.mxu0 0
      %959 = vmatpush1.bf16.msra.mxu0 0
      %960 = vmatprep.subr.bf16.mxu0 0
      %961 = vmatpush1.bf16.msra.mxu0 0
      %962 = vmatprep.subr.bf16.mxu0 0
      %963 = vmatpush1.bf16.msra.mxu0 0
      %964 = vmatprep.subr.bf16.mxu0 0
      %965 = vmatpush1.bf16.msra.mxu0 0
      %966 = vmatprep.subr.bf16.mxu0 0
      %967 = vmatpush1.bf16.msra.mxu0 0
      %968 = vmatprep.subr.bf16.mxu0 0
      %969 = vmatpush1.bf16.msra.mxu0 0
      %970 = vmatprep.subr.bf16.mxu0 0
      %971 = vmatpush1.bf16.msra.mxu0 0
      %972 = vmatprep.subr.bf16.mxu0 0
      %973 = vmatpush1.bf16.msra.mxu0 0
      %974 = vmatprep.subr.bf16.mxu0 0
      %975 = vmatpush1.bf16.msra.mxu0 0
      %976 = vmatprep.subr.bf16.mxu0 0
      %977 = vmatpush1.bf16.msra.mxu0 0
      %978 = vmatprep.subr.bf16.mxu0 0
      %979 = vmatpush1.bf16.msra.mxu0 0
      %980 = vmatprep.subr.bf16.mxu0 0
      %981 = vmatpush1.bf16.msra.mxu0 0
      %982 = vmatprep.mubr.bf16.mxu0 0
      %983 = vmatmul.mubr.bf16.gmra.mrb[0].mxu0 %v320
      %v984 = vpop.f32.mrb[0].mxu0
      %v985 = vadd.f32 %v162, %v984
      %v986 = vpop.f32.mrb[0].mxu0
      %v987 = vadd.f32 %v162, %v986
      %v988 = vpop.f32.mrb[0].mxu0
      %v989 = vadd.f32 %v167, %v988
      %v990 = vpop.f32.mrb[0].mxu0
      %v991 = vadd.f32 %v167, %v990
      %992 = vdwg.mxu0
      %993 = vmatprep.subr.bf16.mxu0 %v408
      %994 = vmatpush1.bf16.msra.mxu0 %v405
      %995 = vmatprep.subr.bf16.mxu0 0
      %996 = vmatpush1.bf16.msra.mxu0 0
      %997 = vmatprep.subr.bf16.mxu0 0
      %998 = vmatpush1.bf16.msra.mxu0 0
      %999 = vmatprep.subr.bf16.mxu0 0
      %1000 = vmatpush1.bf16.msra.mxu0 0
      %1001 = vmatprep.subr.bf16.mxu0 0
      %1002 = vmatpush1.bf16.msra.mxu0 0
      %1003 = vmatprep.subr.bf16.mxu0 0
      %1004 = vmatpush1.bf16.msra.mxu0 0
      %1005 = vmatprep.subr.bf16.mxu0 0
      %1006 = vmatpush1.bf16.msra.mxu0 0
      %1007 = vmatprep.subr.bf16.mxu0 0
      %1008 = vmatpush1.bf16.msra.mxu0 0
      %1009 = vmatprep.subr.bf16.mxu0 0
      %1010 = vmatpush1.bf16.msra.mxu0 0
      %1011 = vmatprep.subr.bf16.mxu0 0
      %1012 = vmatpush1.bf16.msra.mxu0 0
      %1013 = vmatprep.subr.bf16.mxu0 0
      %1014 = vmatpush1.bf16.msra.mxu0 0
      %1015 = vmatprep.subr.bf16.mxu0 0
      %1016 = vmatpush1.bf16.msra.mxu0 0
      %1017 = vmatprep.subr.bf16.mxu0 0
      %1018 = vmatpush1.bf16.msra.mxu0 0
      %1019 = vmatprep.subr.bf16.mxu0 0
      %1020 = vmatpush1.bf16.msra.mxu0 0
      %1021 = vmatprep.subr.bf16.mxu0 0
      %1022 = vmatpush1.bf16.msra.mxu0 0
      %1023 = vmatprep.subr.bf16.mxu0 0
      %1024 = vmatpush1.bf16.msra.mxu0 0
      %1025 = vmatprep.mubr.bf16.mxu0 0
      %1026 = vmatmul.mubr.bf16.gmra.mrb[0].mxu0 %v320
      %v1027 = vpop.f32.mrb[0].mxu0
      %v1028 = vadd.f32 %v162, %v1027
      %v1029 = vpop.f32.mrb[0].mxu0
      %v1030 = vadd.f32 %v162, %v1029
      %v1031 = vpop.f32.mrb[0].mxu0
      %v1032 = vadd.f32 %v167, %v1031
      %v1033 = vpop.f32.mrb[0].mxu0
      %v1034 = vadd.f32 %v167, %v1033
      %1035 = vdwg.mxu0
      %1036 = vmatprep.subr.bf16.mxu0 %v414
      %1037 = vmatpush1.bf16.msra.mxu0 %v411
      %1038 = vmatprep.subr.bf16.mxu0 0
      %1039 = vmatpush1.bf16.msra.mxu0 0
      %1040 = vmatprep.subr.bf16.mxu0 0
      %1041 = vmatpush1.bf16.msra.mxu0 0
      %1042 = vmatprep.subr.bf16.mxu0 0
      %1043 = vmatpush1.bf16.msra.mxu0 0
      %1044 = vmatprep.subr.bf16.mxu0 0
      %1045 = vmatpush1.bf16.msra.mxu0 0
      %1046 = vmatprep.subr.bf16.mxu0 0
      %1047 = vmatpush1.bf16.msra.mxu0 0
      %1048 = vmatprep.subr.bf16.mxu0 0
      %1049 = vmatpush1.bf16.msra.mxu0 0
      %1050 = vmatprep.subr.bf16.mxu0 0
      %1051 = vmatpush1.bf16.msra.mxu0 0
      %1052 = vmatprep.subr.bf16.mxu0 0
      %1053 = vmatpush1.bf16.msra.mxu0 0
      %1054 = vmatprep.subr.bf16.mxu0 0
      %1055 = vmatpush1.bf16.msra.mxu0 0
      %1056 = vmatprep.subr.bf16.mxu0 0
      %1057 = vmatpush1.bf16.msra.mxu0 0
      %1058 = vmatprep.subr.bf16.mxu0 0
      %1059 = vmatpush1.bf16.msra.mxu0 0
      %1060 = vmatprep.subr.bf16.mxu0 0
      %1061 = vmatpush1.bf16.msra.mxu0 0
      %1062 = vmatprep.subr.bf16.mxu0 0
      %1063 = vmatpush1.bf16.msra.mxu0 0
      %1064 = vmatprep.subr.bf16.mxu0 0
      %1065 = vmatpush1.bf16.msra.mxu0 0
      %1066 = vmatprep.subr.bf16.mxu0 0
      %1067 = vmatpush1.bf16.msra.mxu0 0
      %1068 = vmatprep.mubr.bf16.mxu0 0
      %1069 = vmatmul.mubr.bf16.gmra.mrb[0].mxu0 %v320
      %v1070 = vpop.f32.mrb[0].mxu0
      %v1071 = vadd.f32 %v162, %v1070
      %v1072 = vpop.f32.mrb[0].mxu0
      %v1073 = vadd.f32 %v162, %v1072
      %v1074 = vpop.f32.mrb[0].mxu0
      %v1075 = vadd.f32 %v167, %v1074
      %v1076 = vpop.f32.mrb[0].mxu0
      %v1077 = vadd.f32 %v167, %v1076
      %1078 = vdwg.mxu0
      %1079 = vmatprep.subr.bf16.mxu0 %v420
      %1080 = vmatpush1.bf16.msra.mxu0 %v417
      %1081 = vmatprep.subr.bf16.mxu0 0
      %1082 = vmatpush1.bf16.msra.mxu0 0
      %1083 = vmatprep.subr.bf16.mxu0 0
      %1084 = vmatpush1.bf16.msra.mxu0 0
      %1085 = vmatprep.subr.bf16.mxu0 0
      %1086 = vmatpush1.bf16.msra.mxu0 0
      %1087 = vmatprep.subr.bf16.mxu0 0
      %1088 = vmatpush1.bf16.msra.mxu0 0
      %1089 = vmatprep.subr.bf16.mxu0 0
      %1090 = vmatpush1.bf16.msra.mxu0 0
      %1091 = vmatprep.subr.bf16.mxu0 0
      %1092 = vmatpush1.bf16.msra.mxu0 0
      %1093 = vmatprep.subr.bf16.mxu0 0
      %1094 = vmatpush1.bf16.msra.mxu0 0
      %1095 = vmatprep.subr.bf16.mxu0 0
      %1096 = vmatpush1.bf16.msra.mxu0 0
      %1097 = vmatprep.subr.bf16.mxu0 0
      %1098 = vmatpush1.bf16.msra.mxu0 0
      %1099 = vmatprep.subr.bf16.mxu0 0
      %1100 = vmatpush1.bf16.msra.mxu0 0
      %1101 = vmatprep.subr.bf16.mxu0 0
      %1102 = vmatpush1.bf16.msra.mxu0 0
      %1103 = vmatprep.subr.bf16.mxu0 0
      %1104 = vmatpush1.bf16.msra.mxu0 0
      %1105 = vmatprep.subr.bf16.mxu0 0
      %1106 = vmatpush1.bf16.msra.mxu0 0
      %1107 = vmatprep.subr.bf16.mxu0 0
      %1108 = vmatpush1.bf16.msra.mxu0 0
      %1109 = vmatprep.subr.bf16.mxu0 0
      %1110 = vmatpush1.bf16.msra.mxu0 0
      %1111 = vmatprep.mubr.bf16.mxu0 0
      %1112 = vmatmul.mubr.bf16.gmra.mrb[0].mxu0 %v320
      %v1113 = vpop.f32.mrb[0].mxu0
      %v1114 = vadd.f32 %v162, %v1113
      %v1115 = vpop.f32.mrb[0].mxu0
      %v1116 = vadd.f32 %v162, %v1115
      %v1117 = vpop.f32.mrb[0].mxu0
      %v1118 = vadd.f32 %v167, %v1117
      %v1119 = vpop.f32.mrb[0].mxu0
      %v1120 = vadd.f32 %v167, %v1119
      %1121 = vdwg.mxu0
      %1122 = vmatprep.subr.bf16.mxu0 %v426
      %1123 = vmatpush1.bf16.msra.mxu0 %v423
      %1124 = vmatprep.subr.bf16.mxu0 0
      %1125 = vmatpush1.bf16.msra.mxu0 0
      %1126 = vmatprep.subr.bf16.mxu0 0
      %1127 = vmatpush1.bf16.msra.mxu0 0
      %1128 = vmatprep.subr.bf16.mxu0 0
      %1129 = vmatpush1.bf16.msra.mxu0 0
      %1130 = vmatprep.subr.bf16.mxu0 0
      %1131 = vmatpush1.bf16.msra.mxu0 0
      %1132 = vmatprep.subr.bf16.mxu0 0
      %1133 = vmatpush1.bf16.msra.mxu0 0
      %1134 = vmatprep.subr.bf16.mxu0 0
      %1135 = vmatpush1.bf16.msra.mxu0 0
      %1136 = vmatprep.subr.bf16.mxu0 0
      %1137 = vmatpush1.bf16.msra.mxu0 0
      %1138 = vmatprep.subr.bf16.mxu0 0
      %1139 = vmatpush1.bf16.msra.mxu0 0
      %1140 = vmatprep.subr.bf16.mxu0 0
      %1141 = vmatpush1.bf16.msra.mxu0 0
      %1142 = vmatprep.subr.bf16.mxu0 0
      %1143 = vmatpush1.bf16.msra.mxu0 0
      %1144 = vmatprep.subr.bf16.mxu0 0
      %1145 = vmatpush1.bf16.msra.mxu0 0
      %1146 = vmatprep.subr.bf16.mxu0 0
      %1147 = vmatpush1.bf16.msra.mxu0 0
      %1148 = vmatprep.subr.bf16.mxu0 0
      %1149 = vmatpush1.bf16.msra.mxu0 0
      %1150 = vmatprep.subr.bf16.mxu0 0
      %1151 = vmatpush1.bf16.msra.mxu0 0
      %1152 = vmatprep.subr.bf16.mxu0 0
      %1153 = vmatpush1.bf16.msra.mxu0 0
      %1154 = vmatprep.mubr.bf16.mxu0 0
      %1155 = vmatmul.mubr.bf16.gmra.mrb[0].mxu0 %v320
      %v1156 = vpop.f32.mrb[0].mxu0
      %v1157 = vadd.f32 %v162, %v1156
      %v1158 = vpop.f32.mrb[0].mxu0
      %v1159 = vadd.f32 %v162, %v1158
      %v1160 = vpop.f32.mrb[0].mxu0
      %v1161 = vadd.f32 %v167, %v1160
      %v1162 = vpop.f32.mrb[0].mxu0
      %v1163 = vadd.f32 %v167, %v1162
      %1164 = vdwg.mxu0
      %1165 = vmatprep.subr.bf16.mxu0 %v432
      %1166 = vmatpush1.bf16.msra.mxu0 %v429
      %1167 = vmatprep.subr.bf16.mxu0 0
      %1168 = vmatpush1.bf16.msra.mxu0 0
      %1169 = vmatprep.subr.bf16.mxu0 0
      %1170 = vmatpush1.bf16.msra.mxu0 0
      %1171 = vmatprep.subr.bf16.mxu0 0
      %1172 = vmatpush1.bf16.msra.mxu0 0
      %1173 = vmatprep.subr.bf16.mxu0 0
      %1174 = vmatpush1.bf16.msra.mxu0 0
      %1175 = vmatprep.subr.bf16.mxu0 0
      %1176 = vmatpush1.bf16.msra.mxu0 0
      %1177 = vmatprep.subr.bf16.mxu0 0
      %1178 = vmatpush1.bf16.msra.mxu0 0
      %1179 = vmatprep.subr.bf16.mxu0 0
      %1180 = vmatpush1.bf16.msra.mxu0 0
      %1181 = vmatprep.subr.bf16.mxu0 0
      %1182 = vmatpush1.bf16.msra.mxu0 0
      %1183 = vmatprep.subr.bf16.mxu0 0
      %1184 = vmatpush1.bf16.msra.mxu0 0
      %1185 = vmatprep.subr.bf16.mxu0 0
      %1186 = vmatpush1.bf16.msra.mxu0 0
      %1187 = vmatprep.subr.bf16.mxu0 0
      %1188 = vmatpush1.bf16.msra.mxu0 0
      %1189 = vmatprep.subr.bf16.mxu0 0
      %1190 = vmatpush1.bf16.msra.mxu0 0
      %1191 = vmatprep.subr.bf16.mxu0 0
      %1192 = vmatpush1.bf16.msra.mxu0 0
      %1193 = vmatprep.subr.bf16.mxu0 0
      %1194 = vmatpush1.bf16.msra.mxu0 0
      %1195 = vmatprep.subr.bf16.mxu0 0
      %1196 = vmatpush1.bf16.msra.mxu0 0
      %1197 = vmatprep.mubr.bf16.mxu0 0
      %1198 = vmatmul.mubr.bf16.gmra.mrb[0].mxu0 %v320
      %v1199 = vpop.f32.mrb[0].mxu0
      %v1200 = vadd.f32 %v162, %v1199
      %v1201 = vpop.f32.mrb[0].mxu0
      %v1202 = vadd.f32 %v162, %v1201
      %v1203 = vpop.f32.mrb[0].mxu0
      %v1204 = vadd.f32 %v167, %v1203
      %v1205 = vpop.f32.mrb[0].mxu0
      %v1206 = vadd.f32 %v167, %v1205
      %1207 = vdwg.mxu0
      %v1208 = vmax.f32 %v469, 0.0
      %v1209 = vmax.f32 %v471, 0.0
      %v1210 = vmax.f32 %v512, 0.0
      %v1211 = vmax.f32 %v514, 0.0
      %v1212 = vmax.f32 %v555, 0.0
      %v1213 = vmax.f32 %v557, 0.0
      %v1214 = vmax.f32 %v598, 0.0
      %v1215 = vmax.f32 %v600, 0.0
      %v1216 = vmax.f32 %v641, 0.0
      %v1217 = vmax.f32 %v643, 0.0
      %v1218 = vmax.f32 %v684, 0.0
      %v1219 = vmax.f32 %v686, 0.0
      %v1220 = vmax.f32 %v727, 0.0
      %v1221 = vmax.f32 %v729, 0.0
      %v1222 = vmax.f32 %v770, 0.0
      %v1223 = vmax.f32 %v772, 0.0
      %v1224 = vmax.f32 %v813, 0.0
      %v1225 = vmax.f32 %v815, 0.0
      %v1226 = vmax.f32 %v856, 0.0
      %v1227 = vmax.f32 %v858, 0.0
      %v1228 = vmax.f32 %v899, 0.0
      %v1229 = vmax.f32 %v901, 0.0
      %v1230 = vmax.f32 %v942, 0.0
      %v1231 = vmax.f32 %v944, 0.0
      %v1232 = vmax.f32 %v985, 0.0
      %v1233 = vmax.f32 %v987, 0.0
      %v1234 = vmax.f32 %v1028, 0.0
      %v1235 = vmax.f32 %v1030, 0.0
      %v1236 = vmax.f32 %v1071, 0.0
      %v1237 = vmax.f32 %v1073, 0.0
      %v1238 = vmax.f32 %v1114, 0.0
      %v1239 = vmax.f32 %v1116, 0.0
      %v1240 = vmax.f32 %v1157, 0.0
      %v1241 = vmax.f32 %v1159, 0.0
      %v1242 = vmax.f32 %v1200, 0.0
      %v1243 = vmax.f32 %v1202, 0.0
      %v1244 = vmax.f32 %v473, 0.0
      %v1245 = vmax.f32 %v475, 0.0
      %v1246 = vmax.f32 %v516, 0.0
      %v1247 = vmax.f32 %v518, 0.0
      %v1248 = vmax.f32 %v559, 0.0
      %v1249 = vmax.f32 %v561, 0.0
      %v1250 = vmax.f32 %v602, 0.0
      %v1251 = vmax.f32 %v604, 0.0
      %v1252 = vmax.f32 %v645, 0.0
      %v1253 = vmax.f32 %v647, 0.0
      %v1254 = vmax.f32 %v688, 0.0
      %v1255 = vmax.f32 %v690, 0.0
      %v1256 = vmax.f32 %v731, 0.0
      %v1257 = vmax.f32 %v733, 0.0
      %v1258 = vmax.f32 %v774, 0.0
      %v1259 = vmax.f32 %v776, 0.0
      %v1260 = vmax.f32 %v817, 0.0
      %v1261 = vmax.f32 %v819, 0.0
      %v1262 = vmax.f32 %v860, 0.0
      %v1263 = vmax.f32 %v862, 0.0
      %v1264 = vmax.f32 %v903, 0.0
      %v1265 = vmax.f32 %v905, 0.0
      %v1266 = vmax.f32 %v946, 0.0
      %v1267 = vmax.f32 %v948, 0.0
      %v1268 = vmax.f32 %v989, 0.0
      %v1269 = vmax.f32 %v991, 0.0
      %v1270 = vmax.f32 %v1032, 0.0
      %v1271 = vmax.f32 %v1034, 0.0
      %v1272 = vmax.f32 %v1075, 0.0
      %v1273 = vmax.f32 %v1077, 0.0
      %v1274 = vmax.f32 %v1118, 0.0
      %v1275 = vmax.f32 %v1120, 0.0
      %v1276 = vmax.f32 %v1161, 0.0
      %v1277 = vmax.f32 %v1163, 0.0
      %v1278 = vmax.f32 %v1204, 0.0
      %v1279 = vmax.f32 %v1206, 0.0
      %v1280 = vld [vmem:[%s1] sm:$0xff]
      %v1281 = vld [vmem:[%s1 + $0x8] sm:$0xff]
      %v1282 = vld [vmem:[%s1 + $0x10] sm:$0xff]
      %v1283 = vld [vmem:[%s1 + $0x18] sm:$0xff]
      %v1284 = vld [vmem:[%s1 + $0x20] sm:$0xf]
      %v1290 = vlaneseq
      %v1291 = vshrl.u32 %v1290, 7
      %v1292 = vsub.s32 0, %v1291
      %v1293 = vrot.slane %v1280, %v1292
      %v1294 = vlaneseq
      %v1295 = vshrl.u32 %v1294, 7
      %v1296 = vsub.s32 1, %v1295
      %v1297 = vrot.slane %v1280, %v1296
      %v1298 = vlaneseq
      %v1299 = vshrl.u32 %v1298, 7
      %v1300 = vsub.s32 2, %v1299
      %v1301 = vrot.slane %v1280, %v1300
      %v1302 = vlaneseq
      %v1303 = vshrl.u32 %v1302, 7
      %v1304 = vsub.s32 3, %v1303
      %v1305 = vrot.slane %v1280, %v1304
      %v1306 = vlaneseq
      %v1307 = vshrl.u32 %v1306, 7
      %v1308 = vsub.s32 4, %v1307
      %v1309 = vrot.slane %v1280, %v1308
      %v1310 = vlaneseq
      %v1311 = vshrl.u32 %v1310, 7
      %v1312 = vsub.s32 5, %v1311
      %v1313 = vrot.slane %v1280, %v1312
      %v1314 = vlaneseq
      %v1315 = vshrl.u32 %v1314, 7
      %v1316 = vsub.s32 6, %v1315
      %v1317 = vrot.slane %v1280, %v1316
      %v1318 = vlaneseq
      %v1319 = vshrl.u32 %v1318, 7
      %v1320 = vsub.s32 7, %v1319
      %v1321 = vrot.slane %v1280, %v1320
      %v1322 = vlaneseq
      %v1323 = vshrl.u32 %v1322, 7
      %v1324 = vsub.s32 0, %v1323
      %v1325 = vrot.slane %v1281, %v1324
      %v1326 = vlaneseq
      %v1327 = vshrl.u32 %v1326, 7
      %v1328 = vsub.s32 1, %v1327
      %v1329 = vrot.slane %v1281, %v1328
      %v1330 = vlaneseq
      %v1331 = vshrl.u32 %v1330, 7
      %v1332 = vsub.s32 2, %v1331
      %v1333 = vrot.slane %v1281, %v1332
      %v1334 = vlaneseq
      %v1335 = vshrl.u32 %v1334, 7
      %v1336 = vsub.s32 3, %v1335
      %v1337 = vrot.slane %v1281, %v1336
      %v1338 = vlaneseq
      %v1339 = vshrl.u32 %v1338, 7
      %v1340 = vsub.s32 4, %v1339
      %v1341 = vrot.slane %v1281, %v1340
      %v1342 = vlaneseq
      %v1343 = vshrl.u32 %v1342, 7
      %v1344 = vsub.s32 5, %v1343
      %v1345 = vrot.slane %v1281, %v1344
      %v1346 = vlaneseq
      %v1347 = vshrl.u32 %v1346, 7
      %v1348 = vsub.s32 6, %v1347
      %v1349 = vrot.slane %v1281, %v1348
      %v1350 = vlaneseq
      %v1351 = vshrl.u32 %v1350, 7
      %v1352 = vsub.s32 7, %v1351
      %v1353 = vrot.slane %v1281, %v1352
      %v1354 = vlaneseq
      %v1355 = vshrl.u32 %v1354, 7
      %v1356 = vsub.s32 0, %v1355
      %v1357 = vrot.slane %v1282, %v1356
      %v1358 = vlaneseq
      %v1359 = vshrl.u32 %v1358, 7
      %v1360 = vsub.s32 1, %v1359
      %v1361 = vrot.slane %v1282, %v1360
      %v1362 = vlaneseq
      %v1363 = vshrl.u32 %v1362, 7
      %v1364 = vsub.s32 2, %v1363
      %v1365 = vrot.slane %v1282, %v1364
      %v1366 = vlaneseq
      %v1367 = vshrl.u32 %v1366, 7
      %v1368 = vsub.s32 3, %v1367
      %v1369 = vrot.slane %v1282, %v1368
      %v1370 = vlaneseq
      %v1371 = vshrl.u32 %v1370, 7
      %v1372 = vsub.s32 4, %v1371
      %v1373 = vrot.slane %v1282, %v1372
      %v1374 = vlaneseq
      %v1375 = vshrl.u32 %v1374, 7
      %v1376 = vsub.s32 5, %v1375
      %v1377 = vrot.slane %v1282, %v1376
      %v1378 = vlaneseq
      %v1379 = vshrl.u32 %v1378, 7
      %v1380 = vsub.s32 6, %v1379
      %v1381 = vrot.slane %v1282, %v1380
      %v1382 = vlaneseq
      %v1383 = vshrl.u32 %v1382, 7
      %v1384 = vsub.s32 7, %v1383
      %v1385 = vrot.slane %v1282, %v1384
      %v1386 = vlaneseq
      %v1387 = vshrl.u32 %v1386, 7
      %v1388 = vsub.s32 0, %v1387
      %v1389 = vrot.slane %v1283, %v1388
      %v1390 = vlaneseq
      %v1391 = vshrl.u32 %v1390, 7
      %v1392 = vsub.s32 1, %v1391
      %v1393 = vrot.slane %v1283, %v1392
      %v1394 = vlaneseq
      %v1395 = vshrl.u32 %v1394, 7
      %v1396 = vsub.s32 2, %v1395
      %v1397 = vrot.slane %v1283, %v1396
      %v1398 = vlaneseq
      %v1399 = vshrl.u32 %v1398, 7
      %v1400 = vsub.s32 3, %v1399
      %v1401 = vrot.slane %v1283, %v1400
      %v1402 = vlaneseq
      %v1403 = vshrl.u32 %v1402, 7
      %v1404 = vsub.s32 4, %v1403
      %v1405 = vrot.slane %v1283, %v1404
      %v1406 = vlaneseq
      %v1407 = vshrl.u32 %v1406, 7
      %v1408 = vsub.s32 5, %v1407
      %v1409 = vrot.slane %v1283, %v1408
      %v1410 = vlaneseq
      %v1411 = vshrl.u32 %v1410, 7
      %v1412 = vsub.s32 6, %v1411
      %v1413 = vrot.slane %v1283, %v1412
      %v1414 = vlaneseq
      %v1415 = vshrl.u32 %v1414, 7
      %v1416 = vsub.s32 7, %v1415
      %v1417 = vrot.slane %v1283, %v1416
      %v1418 = vlaneseq
      %v1419 = vshrl.u32 %v1418, 7
      %v1420 = vsub.s32 0, %v1419
      %v1421 = vrot.slane %v1284, %v1420
      %v1422 = vlaneseq
      %v1423 = vshrl.u32 %v1422, 7
      %v1424 = vsub.s32 1, %v1423
      %v1425 = vrot.slane %v1284, %v1424
      %v1426 = vlaneseq
      %v1427 = vshrl.u32 %v1426, 7
      %v1428 = vsub.s32 2, %v1427
      %v1429 = vrot.slane %v1284, %v1428
      %v1430 = vlaneseq
      %v1431 = vshrl.u32 %v1430, 7
      %v1432 = vsub.s32 3, %v1431
      %v1433 = vrot.slane %v1284, %v1432
      %v1470 = vmul.f32 %v1208, %v1293
      %v1471 = vmul.f32 %v1209, %v1297
      %v1472 = vmul.f32 %v1210, %v1301
      %v1473 = vmul.f32 %v1211, %v1305
      %v1474 = vmul.f32 %v1212, %v1309
      %v1475 = vmul.f32 %v1213, %v1313
      %v1476 = vmul.f32 %v1214, %v1317
      %v1477 = vmul.f32 %v1215, %v1321
      %v1478 = vmul.f32 %v1216, %v1325
      %v1479 = vmul.f32 %v1217, %v1329
      %v1480 = vmul.f32 %v1218, %v1333
      %v1481 = vmul.f32 %v1219, %v1337
      %v1482 = vmul.f32 %v1220, %v1341
      %v1483 = vmul.f32 %v1221, %v1345
      %v1484 = vmul.f32 %v1222, %v1349
      %v1485 = vmul.f32 %v1223, %v1353
      %v1486 = vmul.f32 %v1224, %v1357
      %v1487 = vmul.f32 %v1225, %v1361
      %v1488 = vmul.f32 %v1226, %v1365
      %v1489 = vmul.f32 %v1227, %v1369
      %v1490 = vmul.f32 %v1228, %v1373
      %v1491 = vmul.f32 %v1229, %v1377
      %v1492 = vmul.f32 %v1230, %v1381
      %v1493 = vmul.f32 %v1231, %v1385
      %v1494 = vmul.f32 %v1232, %v1389
      %v1495 = vmul.f32 %v1233, %v1393
      %v1496 = vmul.f32 %v1234, %v1397
      %v1497 = vmul.f32 %v1235, %v1401
      %v1498 = vmul.f32 %v1236, %v1405
      %v1499 = vmul.f32 %v1237, %v1409
      %v1500 = vmul.f32 %v1238, %v1413
      %v1501 = vmul.f32 %v1239, %v1417
      %v1502 = vmul.f32 %v1240, %v1421
      %v1503 = vmul.f32 %v1241, %v1425
      %v1504 = vmul.f32 %v1242, %v1429
      %v1505 = vmul.f32 %v1243, %v1433
      %v1506 = vmul.f32 %v1244, %v1293
      %v1507 = vmul.f32 %v1245, %v1297
      %v1508 = vmul.f32 %v1246, %v1301
      %v1509 = vmul.f32 %v1247, %v1305
      %v1510 = vmul.f32 %v1248, %v1309
      %v1511 = vmul.f32 %v1249, %v1313
      %v1512 = vmul.f32 %v1250, %v1317
      %v1513 = vmul.f32 %v1251, %v1321
      %v1514 = vmul.f32 %v1252, %v1325
      %v1515 = vmul.f32 %v1253, %v1329
      %v1516 = vmul.f32 %v1254, %v1333
      %v1517 = vmul.f32 %v1255, %v1337
      %v1518 = vmul.f32 %v1256, %v1341
      %v1519 = vmul.f32 %v1257, %v1345
      %v1520 = vmul.f32 %v1258, %v1349
      %v1521 = vmul.f32 %v1259, %v1353
      %v1522 = vmul.f32 %v1260, %v1357
      %v1523 = vmul.f32 %v1261, %v1361
      %v1524 = vmul.f32 %v1262, %v1365
      %v1525 = vmul.f32 %v1263, %v1369
      %v1526 = vmul.f32 %v1264, %v1373
      %v1527 = vmul.f32 %v1265, %v1377
      %v1528 = vmul.f32 %v1266, %v1381
      %v1529 = vmul.f32 %v1267, %v1385
      %v1530 = vmul.f32 %v1268, %v1389
      %v1531 = vmul.f32 %v1269, %v1393
      %v1532 = vmul.f32 %v1270, %v1397
      %v1533 = vmul.f32 %v1271, %v1401
      %v1534 = vmul.f32 %v1272, %v1405
      %v1535 = vmul.f32 %v1273, %v1409
      %v1536 = vmul.f32 %v1274, %v1413
      %v1537 = vmul.f32 %v1275, %v1417
      %v1538 = vmul.f32 %v1276, %v1421
      %v1539 = vmul.f32 %v1277, %v1425
      %v1540 = vmul.f32 %v1278, %v1429
      %v1541 = vmul.f32 %v1279, %v1433
      %v1542 = vld [vmem:[#allocation7] sm:$0xff]
      %v1543 = vld [vmem:[#allocation7 + $0x8] sm:$0xff]
      %v1544 = vld [vmem:[#allocation7 + $0x10] sm:$0xff]
      %v1545 = vld [vmem:[#allocation7 + $0x18] sm:$0xff]
      %v1546 = vpack.c.bf16 %v1506, %v1470
      %v1547 = vpack.c.bf16 %v1507, %v1471
      %v1548 = vpack.c.bf16 %v1508, %v1472
      %v1549 = vpack.c.bf16 %v1509, %v1473
      %v1550 = vpack.c.bf16 %v1510, %v1474
      %v1551 = vpack.c.bf16 %v1511, %v1475
      %v1552 = vpack.c.bf16 %v1512, %v1476
      %v1553 = vpack.c.bf16 %v1513, %v1477
      %v1554 = vpack.c.bf16 %v1514, %v1478
      %v1555 = vpack.c.bf16 %v1515, %v1479
      %v1556 = vpack.c.bf16 %v1516, %v1480
      %v1557 = vpack.c.bf16 %v1517, %v1481
      %v1558 = vpack.c.bf16 %v1518, %v1482
      %v1559 = vpack.c.bf16 %v1519, %v1483
      %v1560 = vpack.c.bf16 %v1520, %v1484
      %v1561 = vpack.c.bf16 %v1521, %v1485
      %v1562 = vpack.c.bf16 %v1522, %v1486
      %v1563 = vpack.c.bf16 %v1523, %v1487
      %v1564 = vpack.c.bf16 %v1524, %v1488
      %v1565 = vpack.c.bf16 %v1525, %v1489
      %v1566 = vpack.c.bf16 %v1526, %v1490
      %v1567 = vpack.c.bf16 %v1527, %v1491
      %v1568 = vpack.c.bf16 %v1528, %v1492
      %v1569 = vpack.c.bf16 %v1529, %v1493
      %v1570 = vpack.c.bf16 %v1530, %v1494
      %v1571 = vpack.c.bf16 %v1531, %v1495
      %v1572 = vpack.c.bf16 %v1532, %v1496
      %v1573 = vpack.c.bf16 %v1533, %v1497
      %v1574 = vpack.c.bf16 %v1534, %v1498
      %v1575 = vpack.c.bf16 %v1535, %v1499
      %v1576 = vpack.c.bf16 %v1536, %v1500
      %v1577 = vpack.c.bf16 %v1537, %v1501
      %v1578 = vpack.c.bf16 %v1538, %v1502
      %v1579 = vpack.c.bf16 %v1539, %v1503
      %v1580 = vpack.c.bf16 %v1540, %v1504
      %v1581 = vpack.c.bf16 %v1541, %v1505
      %v1582 = vld [vmem:[%s5] sm:$0xff]
      %v1583 = vld [vmem:[%s5 + $0x8] sm:$0xff]
      %v1584 = vld [vmem:[%s5 + $0x10] sm:$0xff]
      %v1585 = vld [vmem:[%s5 + $0x18] sm:$0xff]
      %1587 = vset.pattern.permute.xlu0 0
      %1588 = vperm.xlu0 %1587, %v1582
      %v1589 = vpop.permute.xlu0 %1588
      %1592 = vset.pattern.permute.xlu0 0
      %1593 = vperm.xlu0 %1592, %v1583
      %v1594 = vpop.permute.xlu0 %1593
      %1597 = vset.pattern.permute.xlu0 0
      %1598 = vperm.xlu0 %1597, %v1584
      %v1599 = vpop.permute.xlu0 %1598
      %1602 = vset.pattern.permute.xlu0 0
      %1603 = vperm.xlu0 %1602, %v1585
      %v1604 = vpop.permute.xlu0 %1603
      %v1610 = vunpack.c.l.b16 %v1542
      %v1611 = vunpack.c.h.b16 %v1542
      %v1612 = vunpack.c.l.b16 %v1543
      %v1613 = vunpack.c.h.b16 %v1543
      %v1614 = vunpack.c.l.b16 %v1544
      %v1615 = vunpack.c.h.b16 %v1544
      %v1616 = vunpack.c.l.b16 %v1545
      %v1617 = vunpack.c.h.b16 %v1545
      %v1618 = vpack.c.b16 %v1612, %v1610
      %v1619 = vpack.c.b16 %v1613, %v1611
      %v1620 = vpack.c.b16 %v1616, %v1614
      %v1621 = vpack.c.b16 %v1617, %v1615
      %vm1624 = vcmask 130048
      %v1626 = vsel %vm1624, %v1619, 0
      %v1629 = vsel %vm1624, %v1621, 0
      %1631 = vmatprep.subr.bf16.mxu0 %v1547
      %1632 = vmatpush1.bf16.msra.mxu0 %v1546
      %1633 = vmatprep.subr.bf16.mxu0 %v1551
      %1634 = vmatpush1.bf16.msra.mxu0 %v1550
      %1635 = vmatprep.subr.bf16.mxu0 %v1555
      %1636 = vmatpush1.bf16.msra.mxu0 %v1554
      %1637 = vmatprep.subr.bf16.mxu0 %v1559
      %1638 = vmatpush1.bf16.msra.mxu0 %v1558
      %1639 = vmatprep.subr.bf16.mxu0 %v1563
      %1640 = vmatpush1.bf16.msra.mxu0 %v1562
      %1641 = vmatprep.subr.bf16.mxu0 %v1567
      %1642 = vmatpush1.bf16.msra.mxu0 %v1566
      %1643 = vmatprep.subr.bf16.mxu0 %v1571
      %1644 = vmatpush1.bf16.msra.mxu0 %v1570
      %1645 = vmatprep.subr.bf16.mxu0 %v1575
      %1646 = vmatpush1.bf16.msra.mxu0 %v1574
      %1647 = vmatprep.subr.bf16.mxu0 %v1579
      %1648 = vmatpush1.bf16.msra.mxu0 %v1578
      %1649 = vmatprep.subr.bf16.mxu0 0
      %1650 = vmatpush1.bf16.msra.mxu0 0
      %1651 = vmatprep.subr.bf16.mxu0 0
      %1652 = vmatpush1.bf16.msra.mxu0 0
      %1653 = vmatprep.subr.bf16.mxu0 0
      %1654 = vmatpush1.bf16.msra.mxu0 0
      %1655 = vmatprep.subr.bf16.mxu0 0
      %1656 = vmatpush1.bf16.msra.mxu0 0
      %1657 = vmatprep.subr.bf16.mxu0 0
      %1658 = vmatpush1.bf16.msra.mxu0 0
      %1659 = vmatprep.subr.bf16.mxu0 0
      %1660 = vmatpush1.bf16.msra.mxu0 0
      %1661 = vmatprep.subr.bf16.mxu0 0
      %1662 = vmatpush1.bf16.msra.mxu0 0
      %1663 = vmatprep.mubr.bf16.mxu0 %v1626
      %1664 = vmatmul.mubr.bf16.gmra.mrb[0].mxu0 %v1618
      %v1665 = vpop.f32.mrb[0].mxu0
      %v1666 = vadd.f32 %v1589, %v1665
      %v1667 = vpop.f32.mrb[0].mxu0
      %v1668 = vadd.f32 %v1589, %v1667
      %v1669 = vpop.f32.mrb[0].mxu0
      %v1670 = vadd.f32 %v1594, %v1669
      %v1671 = vpop.f32.mrb[0].mxu0
      %v1672 = vadd.f32 %v1594, %v1671
      %1673 = vmatprep.mubr.bf16.mxu0 %v1629
      %1674 = vmatmul.mubr.bf16.gmra.mrb[0].mxu0 %v1620
      %v1675 = vpop.f32.mrb[0].mxu0
      %v1676 = vadd.f32 %v1599, %v1675
      %v1677 = vpop.f32.mrb[0].mxu0
      %v1678 = vadd.f32 %v1599, %v1677
      %v1679 = vpop.f32.mrb[0].mxu0
      %v1680 = vadd.f32 %v1604, %v1679
      %v1681 = vpop.f32.mrb[0].mxu0
      %v1682 = vadd.f32 %v1604, %v1681
      %1683 = vdwg.mxu0
      %1684 = vmatprep.subr.bf16.mxu0 %v1549
      %1685 = vmatpush1.bf16.msra.mxu0 %v1548
      %1686 = vmatprep.subr.bf16.mxu0 %v1553
      %1687 = vmatpush1.bf16.msra.mxu0 %v1552
      %1688 = vmatprep.subr.bf16.mxu0 %v1557
      %1689 = vmatpush1.bf16.msra.mxu0 %v1556
      %1690 = vmatprep.subr.bf16.mxu0 %v1561
      %1691 = vmatpush1.bf16.msra.mxu0 %v1560
      %1692 = vmatprep.subr.bf16.mxu0 %v1565
      %1693 = vmatpush1.bf16.msra.mxu0 %v1564
      %1694 = vmatprep.subr.bf16.mxu0 %v1569
      %1695 = vmatpush1.bf16.msra.mxu0 %v1568
      %1696 = vmatprep.subr.bf16.mxu0 %v1573
      %1697 = vmatpush1.bf16.msra.mxu0 %v1572
      %1698 = vmatprep.subr.bf16.mxu0 %v1577
      %1699 = vmatpush1.bf16.msra.mxu0 %v1576
      %1700 = vmatprep.subr.bf16.mxu0 %v1581
      %1701 = vmatpush1.bf16.msra.mxu0 %v1580
      %1702 = vmatprep.subr.bf16.mxu0 0
      %1703 = vmatpush1.bf16.msra.mxu0 0
      %1704 = vmatprep.subr.bf16.mxu0 0
      %1705 = vmatpush1.bf16.msra.mxu0 0
      %1706 = vmatprep.subr.bf16.mxu0 0
      %1707 = vmatpush1.bf16.msra.mxu0 0
      %1708 = vmatprep.subr.bf16.mxu0 0
      %1709 = vmatpush1.bf16.msra.mxu0 0
      %1710 = vmatprep.subr.bf16.mxu0 0
      %1711 = vmatpush1.bf16.msra.mxu0 0
      %1712 = vmatprep.subr.bf16.mxu0 0
      %1713 = vmatpush1.bf16.msra.mxu0 0
      %1714 = vmatprep.subr.bf16.mxu0 0
      %1715 = vmatpush1.bf16.msra.mxu0 0
      %1716 = vmatprep.mubr.bf16.mxu0 %v1626
      %1717 = vmatmul.mubr.bf16.gmra.mrb[0].mxu0 %v1618
      %v1718 = vpop.f32.mrb[0].mxu0
      %v1719 = vadd.f32 %v1589, %v1718
      %v1720 = vpop.f32.mrb[0].mxu0
      %v1721 = vadd.f32 %v1589, %v1720
      %v1722 = vpop.f32.mrb[0].mxu0
      %v1723 = vadd.f32 %v1594, %v1722
      %v1724 = vpop.f32.mrb[0].mxu0
      %v1725 = vadd.f32 %v1594, %v1724
      %1726 = vmatprep.mubr.bf16.mxu0 %v1629
      %1727 = vmatmul.mubr.bf16.gmra.mrb[0].mxu0 %v1620
      %v1728 = vpop.f32.mrb[0].mxu0
      %v1729 = vadd.f32 %v1599, %v1728
      %v1730 = vpop.f32.mrb[0].mxu0
      %v1731 = vadd.f32 %v1599, %v1730
      %v1732 = vpop.f32.mrb[0].mxu0
      %v1733 = vadd.f32 %v1604, %v1732
      %v1734 = vpop.f32.mrb[0].mxu0
      %v1735 = vadd.f32 %v1604, %v1734
      %1736 = vdwg.mxu0
      %v1737 = vmax.f32 %v1666, 0.0
      %v1738 = vmax.f32 %v1668, 0.0
      %v1739 = vmax.f32 %v1719, 0.0
      %v1740 = vmax.f32 %v1721, 0.0
      %v1741 = vmax.f32 %v1670, 0.0
      %v1742 = vmax.f32 %v1672, 0.0
      %v1743 = vmax.f32 %v1723, 0.0
      %v1744 = vmax.f32 %v1725, 0.0
      %v1745 = vmax.f32 %v1676, 0.0
      %v1746 = vmax.f32 %v1678, 0.0
      %v1747 = vmax.f32 %v1729, 0.0
      %v1748 = vmax.f32 %v1731, 0.0
      %v1749 = vmax.f32 %v1680, 0.0
      %v1750 = vmax.f32 %v1682, 0.0
      %v1751 = vmax.f32 %v1733, 0.0
      %v1752 = vmax.f32 %v1735, 0.0
      %v1755 = vcombine.low %v1737, %v1738
      %v1757 = vunpack.c.l.s4 1966171168
      %v1758 = vunpack.c.0.s8 %v1757
      %v1759 = vlaneseq
      %v1760 = vshrl.u32 %v1759, 7
      %v1761 = vsub.s32 %v1758, %v1760
      %v1762 = vrot.slane %v1755, %v1761
      %v1764 = vunpack.c.l.s4 1966171168
      %v1765 = vunpack.c.0.s8 %v1764
      %v1766 = vlaneseq
      %v1767 = vshrl.u32 %v1766, 7
      %v1768 = vsub.s32 %v1765, %v1767
      %v1769 = vrot.slane %v1762, %v1768
      %v1771 = vlaneseq
      %vm1772 = vcmp.ge.s32.totalorder %v1771, 0
      %vm1773 = vcmp.lt.s32.totalorder %v1771, 256
      %vm1774 = vmand %vm1772, %vm1773
      %1775 = vst.msk [vmem:[#allocation2] ss:$2 sm:$0x3] %vm1774, %v1769
      %v1778 = vcombine.low %v1739, %v1740
      %v1780 = vunpack.c.l.s4 1966171168
      %v1781 = vunpack.c.0.s8 %v1780
      %v1782 = vlaneseq
      %v1783 = vshrl.u32 %v1782, 7
      %v1784 = vsub.s32 %v1781, %v1783
      %v1785 = vrot.slane %v1778, %v1784
      %v1787 = vunpack.c.l.s4 1966171168
      %v1788 = vunpack.c.0.s8 %v1787
      %v1789 = vlaneseq
      %v1790 = vshrl.u32 %v1789, 7
      %v1791 = vsub.s32 %v1788, %v1790
      %v1792 = vrot.slane %v1785, %v1791
      %s1794 = scalar_lea.vmem [#allocation2], 1
      %1795 = vst.msk [vmem:[%s1794] ss:$2 sm:$0x3] %vm1774, %v1792
      %v1796 = vcombine.high %v1762, %v1762
      %v1798 = vunpack.c.l.s4 1966171168
      %v1799 = vunpack.c.0.s8 %v1798
      %v1800 = vlaneseq
      %v1801 = vshrl.u32 %v1800, 7
      %v1802 = vsub.s32 %v1799, %v1801
      %v1803 = vrot.slane %v1796, %v1802
      %s1805 = scalar_lea.vmem [#allocation2], 4
      %1806 = vst.msk [vmem:[%s1805] ss:$2 sm:$0x3] %vm1774, %v1803
      %v1807 = vcombine.high %v1785, %v1785
      %v1809 = vunpack.c.l.s4 1966171168
      %v1810 = vunpack.c.0.s8 %v1809
      %v1811 = vlaneseq
      %v1812 = vshrl.u32 %v1811, 7
      %v1813 = vsub.s32 %v1810, %v1812
      %v1814 = vrot.slane %v1807, %v1813
      %s1816 = scalar_lea.vmem [#allocation2], 5
      %1817 = vst.msk [vmem:[%s1816] ss:$2 sm:$0x3] %vm1774, %v1814
      %v1818 = vcombine.high %v1769, %v1769
      %s1820 = scalar_lea.vmem [#allocation2], 8
      %1821 = vst.msk [vmem:[%s1820] ss:$2 sm:$0x3] %vm1774, %v1818
      %v1822 = vcombine.high %v1792, %v1792
      %s1824 = scalar_lea.vmem [#allocation2], 9
      %1825 = vst.msk [vmem:[%s1824] ss:$2 sm:$0x3] %vm1774, %v1822
      %v1826 = vcombine.high %v1803, %v1803
      %s1828 = scalar_lea.vmem [#allocation2], 12
      %1829 = vst.msk [vmem:[%s1828] ss:$2 sm:$0x3] %vm1774, %v1826
      %v1830 = vcombine.high %v1814, %v1814
      %s1832 = scalar_lea.vmem [#allocation2], 13
      %1833 = vst.msk [vmem:[%s1832] ss:$2 sm:$0x3] %vm1774, %v1830
      %v1834 = vcombine.high %v1737, %v1738
      %v1836 = vunpack.c.l.s4 1966171168
      %v1837 = vunpack.c.0.s8 %v1836
      %v1838 = vlaneseq
      %v1839 = vshrl.u32 %v1838, 7
      %v1840 = vsub.s32 %v1837, %v1839
      %v1841 = vrot.slane %v1834, %v1840
      %v1843 = vunpack.c.l.s4 1966171168
      %v1844 = vunpack.c.0.s8 %v1843
      %v1845 = vlaneseq
      %v1846 = vshrl.u32 %v1845, 7
      %v1847 = vsub.s32 %v1844, %v1846
      %v1848 = vrot.slane %v1841, %v1847
      %s1850 = scalar_lea.vmem [#allocation2], 16
      %1851 = vst.msk [vmem:[%s1850] ss:$2 sm:$0x3] %vm1774, %v1848
      %v1852 = vcombine.high %v1739, %v1740
      %v1854 = vunpack.c.l.s4 1966171168
      %v1855 = vunpack.c.0.s8 %v1854
      %v1856 = vlaneseq
      %v1857 = vshrl.u32 %v1856, 7
      %v1858 = vsub.s32 %v1855, %v1857
      %v1859 = vrot.slane %v1852, %v1858
      %v1861 = vunpack.c.l.s4 1966171168
      %v1862 = vunpack.c.0.s8 %v1861
      %v1863 = vlaneseq
      %v1864 = vshrl.u32 %v1863, 7
      %v1865 = vsub.s32 %v1862, %v1864
      %v1866 = vrot.slane %v1859, %v1865
      %s1868 = scalar_lea.vmem [#allocation2], 17
      %1869 = vst.msk [vmem:[%s1868] ss:$2 sm:$0x3] %vm1774, %v1866
      %v1870 = vcombine.high %v1841, %v1841
      %v1872 = vunpack.c.l.s4 1966171168
      %v1873 = vunpack.c.0.s8 %v1872
      %v1874 = vlaneseq
      %v1875 = vshrl.u32 %v1874, 7
      %v1876 = vsub.s32 %v1873, %v1875
      %v1877 = vrot.slane %v1870, %v1876
      %s1879 = scalar_lea.vmem [#allocation2], 20
      %1880 = vst.msk [vmem:[%s1879] ss:$2 sm:$0x3] %vm1774, %v1877
      %v1881 = vcombine.high %v1859, %v1859
      %v1883 = vunpack.c.l.s4 1966171168
      %v1884 = vunpack.c.0.s8 %v1883
      %v1885 = vlaneseq
      %v1886 = vshrl.u32 %v1885, 7
      %v1887 = vsub.s32 %v1884, %v1886
      %v1888 = vrot.slane %v1881, %v1887
      %s1890 = scalar_lea.vmem [#allocation2], 21
      %1891 = vst.msk [vmem:[%s1890] ss:$2 sm:$0x3] %vm1774, %v1888
      %v1892 = vcombine.high %v1848, %v1848
      %s1894 = scalar_lea.vmem [#allocation2], 24
      %1895 = vst.msk [vmem:[%s1894] ss:$2 sm:$0x3] %vm1774, %v1892
      %v1896 = vcombine.high %v1866, %v1866
      %s1898 = scalar_lea.vmem [#allocation2], 25
      %1899 = vst.msk [vmem:[%s1898] ss:$2 sm:$0x3] %vm1774, %v1896
      %v1900 = vcombine.high %v1877, %v1877
      %s1902 = scalar_lea.vmem [#allocation2], 28
      %1903 = vst.msk [vmem:[%s1902] ss:$2 sm:$0x3] %vm1774, %v1900
      %v1904 = vcombine.high %v1888, %v1888
      %s1906 = scalar_lea.vmem [#allocation2], 29
      %1907 = vst.msk [vmem:[%s1906] ss:$2 sm:$0x3] %vm1774, %v1904
      %v1910 = vcombine.low %v1741, %v1742
      %v1912 = vunpack.c.l.s4 1966171168
      %v1913 = vunpack.c.0.s8 %v1912
      %v1914 = vlaneseq
      %v1915 = vshrl.u32 %v1914, 7
      %v1916 = vsub.s32 %v1913, %v1915
      %v1917 = vrot.slane %v1910, %v1916
      %v1919 = vunpack.c.l.s4 1966171168
      %v1920 = vunpack.c.0.s8 %v1919
      %v1921 = vlaneseq
      %v1922 = vshrl.u32 %v1921, 7
      %v1923 = vsub.s32 %v1920, %v1922
      %v1924 = vrot.slane %v1917, %v1923
      %s1926 = scalar_lea.vmem [#allocation2], 32
      %1927 = vst.msk [vmem:[%s1926] ss:$2 sm:$0x3] %vm1774, %v1924
      %v1930 = vcombine.low %v1743, %v1744
      %v1932 = vunpack.c.l.s4 1966171168
      %v1933 = vunpack.c.0.s8 %v1932
      %v1934 = vlaneseq
      %v1935 = vshrl.u32 %v1934, 7
      %v1936 = vsub.s32 %v1933, %v1935
      %v1937 = vrot.slane %v1930, %v1936
      %v1939 = vunpack.c.l.s4 1966171168
      %v1940 = vunpack.c.0.s8 %v1939
      %v1941 = vlaneseq
      %v1942 = vshrl.u32 %v1941, 7
      %v1943 = vsub.s32 %v1940, %v1942
      %v1944 = vrot.slane %v1937, %v1943
      %s1946 = scalar_lea.vmem [#allocation2], 33
      %1947 = vst.msk [vmem:[%s1946] ss:$2 sm:$0x3] %vm1774, %v1944
      %v1948 = vcombine.high %v1917, %v1917
      %v1950 = vunpack.c.l.s4 1966171168
      %v1951 = vunpack.c.0.s8 %v1950
      %v1952 = vlaneseq
      %v1953 = vshrl.u32 %v1952, 7
      %v1954 = vsub.s32 %v1951, %v1953
      %v1955 = vrot.slane %v1948, %v1954
      %s1957 = scalar_lea.vmem [#allocation2], 36
      %1958 = vst.msk [vmem:[%s1957] ss:$2 sm:$0x3] %vm1774, %v1955
      %v1959 = vcombine.high %v1937, %v1937
      %v1961 = vunpack.c.l.s4 1966171168
      %v1962 = vunpack.c.0.s8 %v1961
      %v1963 = vlaneseq
      %v1964 = vshrl.u32 %v1963, 7
      %v1965 = vsub.s32 %v1962, %v1964
      %v1966 = vrot.slane %v1959, %v1965
      %s1968 = scalar_lea.vmem [#allocation2], 37
      %1969 = vst.msk [vmem:[%s1968] ss:$2 sm:$0x3] %vm1774, %v1966
      %v1970 = vcombine.high %v1924, %v1924
      %s1972 = scalar_lea.vmem [#allocation2], 40
      %1973 = vst.msk [vmem:[%s1972] ss:$2 sm:$0x3] %vm1774, %v1970
      %v1974 = vcombine.high %v1944, %v1944
      %s1976 = scalar_lea.vmem [#allocation2], 41
      %1977 = vst.msk [vmem:[%s1976] ss:$2 sm:$0x3] %vm1774, %v1974
      %v1978 = vcombine.high %v1955, %v1955
      %s1980 = scalar_lea.vmem [#allocation2], 44
      %1981 = vst.msk [vmem:[%s1980] ss:$2 sm:$0x3] %vm1774, %v1978
      %v1982 = vcombine.high %v1966, %v1966
      %s1984 = scalar_lea.vmem [#allocation2], 45
      %1985 = vst.msk [vmem:[%s1984] ss:$2 sm:$0x3] %vm1774, %v1982
      %v1986 = vcombine.high %v1741, %v1742
      %v1988 = vunpack.c.l.s4 1966171168
      %v1989 = vunpack.c.0.s8 %v1988
      %v1990 = vlaneseq
      %v1991 = vshrl.u32 %v1990, 7
      %v1992 = vsub.s32 %v1989, %v1991
      %v1993 = vrot.slane %v1986, %v1992
      %v1995 = vunpack.c.l.s4 1966171168
      %v1996 = vunpack.c.0.s8 %v1995
      %v1997 = vlaneseq
      %v1998 = vshrl.u32 %v1997, 7
      %v1999 = vsub.s32 %v1996, %v1998
      %v2000 = vrot.slane %v1993, %v1999
      %s2002 = scalar_lea.vmem [#allocation2], 48
      %2003 = vst.msk [vmem:[%s2002] ss:$2 sm:$0x3] %vm1774, %v2000
      %v2004 = vcombine.high %v1743, %v1744
      %v2006 = vunpack.c.l.s4 1966171168
      %v2007 = vunpack.c.0.s8 %v2006
      %v2008 = vlaneseq
      %v2009 = vshrl.u32 %v2008, 7
      %v2010 = vsub.s32 %v2007, %v2009
      %v2011 = vrot.slane %v2004, %v2010
      %v2013 = vunpack.c.l.s4 1966171168
      %v2014 = vunpack.c.0.s8 %v2013
      %v2015 = vlaneseq
      %v2016 = vshrl.u32 %v2015, 7
      %v2017 = vsub.s32 %v2014, %v2016
      %v2018 = vrot.slane %v2011, %v2017
      %s2020 = scalar_lea.vmem [#allocation2], 49
      %2021 = vst.msk [vmem:[%s2020] ss:$2 sm:$0x3] %vm1774, %v2018
      %v2022 = vcombine.high %v1993, %v1993
      %v2024 = vunpack.c.l.s4 1966171168
      %v2025 = vunpack.c.0.s8 %v2024
      %v2026 = vlaneseq
      %v2027 = vshrl.u32 %v2026, 7
      %v2028 = vsub.s32 %v2025, %v2027
      %v2029 = vrot.slane %v2022, %v2028
      %s2031 = scalar_lea.vmem [#allocation2], 52
      %2032 = vst.msk [vmem:[%s2031] ss:$2 sm:$0x3] %vm1774, %v2029
      %v2033 = vcombine.high %v2011, %v2011
      %v2035 = vunpack.c.l.s4 1966171168
      %v2036 = vunpack.c.0.s8 %v2035
      %v2037 = vlaneseq
      %v2038 = vshrl.u32 %v2037, 7
      %v2039 = vsub.s32 %v2036, %v2038
      %v2040 = vrot.slane %v2033, %v2039
      %s2042 = scalar_lea.vmem [#allocation2], 53
      %2043 = vst.msk [vmem:[%s2042] ss:$2 sm:$0x3] %vm1774, %v2040
      %v2044 = vcombine.high %v2000, %v2000
      %s2046 = scalar_lea.vmem [#allocation2], 56
      %2047 = vst.msk [vmem:[%s2046] ss:$2 sm:$0x3] %vm1774, %v2044
      %v2048 = vcombine.high %v2018, %v2018
      %s2050 = scalar_lea.vmem [#allocation2], 57
      %2051 = vst.msk [vmem:[%s2050] ss:$2 sm:$0x3] %vm1774, %v2048
      %v2052 = vcombine.high %v2029, %v2029
      %s2054 = scalar_lea.vmem [#allocation2], 60
      %2055 = vst.msk [vmem:[%s2054] ss:$2 sm:$0x3] %vm1774, %v2052
      %v2056 = vcombine.high %v2040, %v2040
      %s2058 = scalar_lea.vmem [#allocation2], 61
      %2059 = vst.msk [vmem:[%s2058] ss:$2 sm:$0x3] %vm1774, %v2056
      %v2062 = vcombine.low %v1745, %v1746
      %v2064 = vunpack.c.l.s4 1966171168
      %v2065 = vunpack.c.0.s8 %v2064
      %v2066 = vlaneseq
      %v2067 = vshrl.u32 %v2066, 7
      %v2068 = vsub.s32 %v2065, %v2067
      %v2069 = vrot.slane %v2062, %v2068
      %v2071 = vunpack.c.l.s4 1966171168
      %v2072 = vunpack.c.0.s8 %v2071
      %v2073 = vlaneseq
      %v2074 = vshrl.u32 %v2073, 7
      %v2075 = vsub.s32 %v2072, %v2074
      %v2076 = vrot.slane %v2069, %v2075
      %s2078 = scalar_lea.vmem [#allocation2], 64
      %2079 = vst.msk [vmem:[%s2078] ss:$2 sm:$0x3] %vm1774, %v2076
      %v2082 = vcombine.low %v1747, %v1748
      %v2084 = vunpack.c.l.s4 1966171168
      %v2085 = vunpack.c.0.s8 %v2084
      %v2086 = vlaneseq
      %v2087 = vshrl.u32 %v2086, 7
      %v2088 = vsub.s32 %v2085, %v2087
      %v2089 = vrot.slane %v2082, %v2088
      %v2091 = vunpack.c.l.s4 1966171168
      %v2092 = vunpack.c.0.s8 %v2091
      %v2093 = vlaneseq
      %v2094 = vshrl.u32 %v2093, 7
      %v2095 = vsub.s32 %v2092, %v2094
      %v2096 = vrot.slane %v2089, %v2095
      %s2098 = scalar_lea.vmem [#allocation2], 65
      %2099 = vst.msk [vmem:[%s2098] ss:$2 sm:$0x3] %vm1774, %v2096
      %v2100 = vcombine.high %v2069, %v2069
      %v2102 = vunpack.c.l.s4 1966171168
      %v2103 = vunpack.c.0.s8 %v2102
      %v2104 = vlaneseq
      %v2105 = vshrl.u32 %v2104, 7
      %v2106 = vsub.s32 %v2103, %v2105
      %v2107 = vrot.slane %v2100, %v2106
      %s2109 = scalar_lea.vmem [#allocation2], 68
      %2110 = vst.msk [vmem:[%s2109] ss:$2 sm:$0x3] %vm1774, %v2107
      %v2111 = vcombine.high %v2089, %v2089
      %v2113 = vunpack.c.l.s4 1966171168
      %v2114 = vunpack.c.0.s8 %v2113
      %v2115 = vlaneseq
      %v2116 = vshrl.u32 %v2115, 7
      %v2117 = vsub.s32 %v2114, %v2116
      %v2118 = vrot.slane %v2111, %v2117
      %s2120 = scalar_lea.vmem [#allocation2], 69
      %2121 = vst.msk [vmem:[%s2120] ss:$2 sm:$0x3] %vm1774, %v2118
      %v2122 = vcombine.high %v2076, %v2076
      %s2124 = scalar_lea.vmem [#allocation2], 72
      %2125 = vst.msk [vmem:[%s2124] ss:$2 sm:$0x3] %vm1774, %v2122
      %v2126 = vcombine.high %v2096, %v2096
      %s2128 = scalar_lea.vmem [#allocation2], 73
      %2129 = vst.msk [vmem:[%s2128] ss:$2 sm:$0x3] %vm1774, %v2126
      %v2130 = vcombine.high %v2107, %v2107
      %s2132 = scalar_lea.vmem [#allocation2], 76
      %2133 = vst.msk [vmem:[%s2132] ss:$2 sm:$0x3] %vm1774, %v2130
      %v2134 = vcombine.high %v2118, %v2118
      %s2136 = scalar_lea.vmem [#allocation2], 77
      %2137 = vst.msk [vmem:[%s2136] ss:$2 sm:$0x3] %vm1774, %v2134
      %v2138 = vcombine.high %v1745, %v1746
      %v2140 = vunpack.c.l.s4 1966171168
      %v2141 = vunpack.c.0.s8 %v2140
      %v2142 = vlaneseq
      %v2143 = vshrl.u32 %v2142, 7
      %v2144 = vsub.s32 %v2141, %v2143
      %v2145 = vrot.slane %v2138, %v2144
      %v2147 = vunpack.c.l.s4 1966171168
      %v2148 = vunpack.c.0.s8 %v2147
      %v2149 = vlaneseq
      %v2150 = vshrl.u32 %v2149, 7
      %v2151 = vsub.s32 %v2148, %v2150
      %v2152 = vrot.slane %v2145, %v2151
      %s2154 = scalar_lea.vmem [#allocation2], 80
      %2155 = vst.msk [vmem:[%s2154] ss:$2 sm:$0x3] %vm1774, %v2152
      %v2156 = vcombine.high %v1747, %v1748
      %v2158 = vunpack.c.l.s4 1966171168
      %v2159 = vunpack.c.0.s8 %v2158
      %v2160 = vlaneseq
      %v2161 = vshrl.u32 %v2160, 7
      %v2162 = vsub.s32 %v2159, %v2161
      %v2163 = vrot.slane %v2156, %v2162
      %v2165 = vunpack.c.l.s4 1966171168
      %v2166 = vunpack.c.0.s8 %v2165
      %v2167 = vlaneseq
      %v2168 = vshrl.u32 %v2167, 7
      %v2169 = vsub.s32 %v2166, %v2168
      %v2170 = vrot.slane %v2163, %v2169
      %s2172 = scalar_lea.vmem [#allocation2], 81
      %2173 = vst.msk [vmem:[%s2172] ss:$2 sm:$0x3] %vm1774, %v2170
      %v2174 = vcombine.high %v2145, %v2145
      %v2176 = vunpack.c.l.s4 1966171168
      %v2177 = vunpack.c.0.s8 %v2176
      %v2178 = vlaneseq
      %v2179 = vshrl.u32 %v2178, 7
      %v2180 = vsub.s32 %v2177, %v2179
      %v2181 = vrot.slane %v2174, %v2180
      %s2183 = scalar_lea.vmem [#allocation2], 84
      %2184 = vst.msk [vmem:[%s2183] ss:$2 sm:$0x3] %vm1774, %v2181
      %v2185 = vcombine.high %v2163, %v2163
      %v2187 = vunpack.c.l.s4 1966171168
      %v2188 = vunpack.c.0.s8 %v2187
      %v2189 = vlaneseq
      %v2190 = vshrl.u32 %v2189, 7
      %v2191 = vsub.s32 %v2188, %v2190
      %v2192 = vrot.slane %v2185, %v2191
      %s2194 = scalar_lea.vmem [#allocation2], 85
      %2195 = vst.msk [vmem:[%s2194] ss:$2 sm:$0x3] %vm1774, %v2192
      %v2196 = vcombine.high %v2152, %v2152
      %s2198 = scalar_lea.vmem [#allocation2], 88
      %2199 = vst.msk [vmem:[%s2198] ss:$2 sm:$0x3] %vm1774, %v2196
      %v2200 = vcombine.high %v2170, %v2170
      %s2202 = scalar_lea.vmem [#allocation2], 89
      %2203 = vst.msk [vmem:[%s2202] ss:$2 sm:$0x3] %vm1774, %v2200
      %v2204 = vcombine.high %v2181, %v2181
      %s2206 = scalar_lea.vmem [#allocation2], 92
      %2207 = vst.msk [vmem:[%s2206] ss:$2 sm:$0x3] %vm1774, %v2204
      %v2208 = vcombine.high %v2192, %v2192
      %s2210 = scalar_lea.vmem [#allocation2], 93
      %2211 = vst.msk [vmem:[%s2210] ss:$2 sm:$0x3] %vm1774, %v2208
      %v2214 = vcombine.low %v1749, %v1750
      %v2216 = vunpack.c.l.s4 1966171168
      %v2217 = vunpack.c.0.s8 %v2216
      %v2218 = vlaneseq
      %v2219 = vshrl.u32 %v2218, 7
      %v2220 = vsub.s32 %v2217, %v2219
      %v2221 = vrot.slane %v2214, %v2220
      %v2223 = vunpack.c.l.s4 1966171168
      %v2224 = vunpack.c.0.s8 %v2223
      %v2225 = vlaneseq
      %v2226 = vshrl.u32 %v2225, 7
      %v2227 = vsub.s32 %v2224, %v2226
      %v2228 = vrot.slane %v2221, %v2227
      %s2230 = scalar_lea.vmem [#allocation2], 96
      %2231 = vst.msk [vmem:[%s2230] ss:$2 sm:$0x3] %vm1774, %v2228
      %v2234 = vcombine.low %v1751, %v1752
      %v2236 = vunpack.c.l.s4 1966171168
      %v2237 = vunpack.c.0.s8 %v2236
      %v2238 = vlaneseq
      %v2239 = vshrl.u32 %v2238, 7
      %v2240 = vsub.s32 %v2237, %v2239
      %v2241 = vrot.slane %v2234, %v2240
      %v2243 = vunpack.c.l.s4 1966171168
      %v2244 = vunpack.c.0.s8 %v2243
      %v2245 = vlaneseq
      %v2246 = vshrl.u32 %v2245, 7
      %v2247 = vsub.s32 %v2244, %v2246
      %v2248 = vrot.slane %v2241, %v2247
      %s2250 = scalar_lea.vmem [#allocation2], 97
      %2251 = vst.msk [vmem:[%s2250] ss:$2 sm:$0x3] %vm1774, %v2248
      %v2252 = vcombine.high %v2221, %v2221
      %v2254 = vunpack.c.l.s4 1966171168
      %v2255 = vunpack.c.0.s8 %v2254
      %v2256 = vlaneseq
      %v2257 = vshrl.u32 %v2256, 7
      %v2258 = vsub.s32 %v2255, %v2257
      %v2259 = vrot.slane %v2252, %v2258
      %s2261 = scalar_lea.vmem [#allocation2], 100
      %2262 = vst.msk [vmem:[%s2261] ss:$2 sm:$0x3] %vm1774, %v2259
      %v2263 = vcombine.high %v2241, %v2241
      %v2265 = vunpack.c.l.s4 1966171168
      %v2266 = vunpack.c.0.s8 %v2265
      %v2267 = vlaneseq
      %v2268 = vshrl.u32 %v2267, 7
      %v2269 = vsub.s32 %v2266, %v2268
      %v2270 = vrot.slane %v2263, %v2269
      %s2272 = scalar_lea.vmem [#allocation2], 101
      %2273 = vst.msk [vmem:[%s2272] ss:$2 sm:$0x3] %vm1774, %v2270
      %v2274 = vcombine.high %v2228, %v2228
      %s2276 = scalar_lea.vmem [#allocation2], 104
      %2277 = vst.msk [vmem:[%s2276] ss:$2 sm:$0x3] %vm1774, %v2274
      %v2278 = vcombine.high %v2248, %v2248
      %s2280 = scalar_lea.vmem [#allocation2], 105
      %2281 = vst.msk [vmem:[%s2280] ss:$2 sm:$0x3] %vm1774, %v2278
      %v2282 = vcombine.high %v2259, %v2259
      %s2284 = scalar_lea.vmem [#allocation2], 108
      %2285 = vst.msk [vmem:[%s2284] ss:$2 sm:$0x3] %vm1774, %v2282
      %v2286 = vcombine.high %v2270, %v2270
      %s2288 = scalar_lea.vmem [#allocation2], 109
      %2289 = vst.msk [vmem:[%s2288] ss:$2 sm:$0x3] %vm1774, %v2286
      %v2290 = vcombine.high %v1749, %v1750
      %v2292 = vunpack.c.l.s4 1966171168
      %v2293 = vunpack.c.0.s8 %v2292
      %v2294 = vlaneseq
      %v2295 = vshrl.u32 %v2294, 7
      %v2296 = vsub.s32 %v2293, %v2295
      %v2297 = vrot.slane %v2290, %v2296
      %v2299 = vunpack.c.l.s4 1966171168
      %v2300 = vunpack.c.0.s8 %v2299
      %v2301 = vlaneseq
      %v2302 = vshrl.u32 %v2301, 7
      %v2303 = vsub.s32 %v2300, %v2302
      %v2304 = vrot.slane %v2297, %v2303
      %s2306 = scalar_lea.vmem [#allocation2], 112
      %2307 = vst.msk [vmem:[%s2306] ss:$2 sm:$0x3] %vm1774, %v2304
      %v2308 = vcombine.high %v1751, %v1752
      %v2310 = vunpack.c.l.s4 1966171168
      %v2311 = vunpack.c.0.s8 %v2310
      %v2312 = vlaneseq
      %v2313 = vshrl.u32 %v2312, 7
      %v2314 = vsub.s32 %v2311, %v2313
      %v2315 = vrot.slane %v2308, %v2314
      %v2317 = vunpack.c.l.s4 1966171168
      %v2318 = vunpack.c.0.s8 %v2317
      %v2319 = vlaneseq
      %v2320 = vshrl.u32 %v2319, 7
      %v2321 = vsub.s32 %v2318, %v2320
      %v2322 = vrot.slane %v2315, %v2321
      %s2324 = scalar_lea.vmem [#allocation2], 113
      %2325 = vst.msk [vmem:[%s2324] ss:$2 sm:$0x3] %vm1774, %v2322
      %v2326 = vcombine.high %v2297, %v2297
      %v2328 = vunpack.c.l.s4 1966171168
      %v2329 = vunpack.c.0.s8 %v2328
      %v2330 = vlaneseq
      %v2331 = vshrl.u32 %v2330, 7
      %v2332 = vsub.s32 %v2329, %v2331
      %v2333 = vrot.slane %v2326, %v2332
      %s2335 = scalar_lea.vmem [#allocation2], 116
      %2336 = vst.msk [vmem:[%s2335] ss:$2 sm:$0x3] %vm1774, %v2333
      %v2337 = vcombine.high %v2315, %v2315
      %v2339 = vunpack.c.l.s4 1966171168
      %v2340 = vunpack.c.0.s8 %v2339
      %v2341 = vlaneseq
      %v2342 = vshrl.u32 %v2341, 7
      %v2343 = vsub.s32 %v2340, %v2342
      %v2344 = vrot.slane %v2337, %v2343
      %s2346 = scalar_lea.vmem [#allocation2], 117
      %2347 = vst.msk [vmem:[%s2346] ss:$2 sm:$0x3] %vm1774, %v2344
      %v2348 = vcombine.high %v2304, %v2304
      %s2350 = scalar_lea.vmem [#allocation2], 120
      %2351 = vst.msk [vmem:[%s2350] ss:$2 sm:$0x3] %vm1774, %v2348
      %v2352 = vcombine.high %v2322, %v2322
      %s2354 = scalar_lea.vmem [#allocation2], 121
      %2355 = vst.msk [vmem:[%s2354] ss:$2 sm:$0x3] %vm1774, %v2352
      %v2356 = vcombine.high %v2333, %v2333
      %s2358 = scalar_lea.vmem [#allocation2], 124
      %2359 = vst.msk [vmem:[%s2358] ss:$2 sm:$0x3] %vm1774, %v2356
      %v2360 = vcombine.high %v2344, %v2344
      %s2362 = scalar_lea.vmem [#allocation2], 125
      %2363 = vst.msk [vmem:[%s2362] ss:$2 sm:$0x3] %vm1774, %v2360
      %2364 = vst [vmem:[#allocation3] sm:$0x3] 0.0
    $region69: #{placement_net_forward.1} parent=1 // pred_fallthru
      _
    %s2365 = smul.u32 0, 8192
    %s2366 = sshra.s32 %s2365, 7
    %s2367 = sand.u32 %s2365, 127
    %s2368 = smul.addr %s2366, 2
    %s2369 = scalar_lea.vmem [#allocation2], %s2368
    %v2370 = vld [vmem:[%s2369] sm:$0xff]
    %v2371 = vld [vmem:[%s2369 + $0x8] sm:$0xff]
    %v2372 = vld [vmem:[%s2369 + $0x10] sm:$0xff]
    %v2373 = vld [vmem:[%s2369 + $0x18] sm:$0xff]
    %v2374 = vld [vmem:[%s2369 + $0x20] sm:$0xff]
    %v2375 = vld [vmem:[%s2369 + $0x28] sm:$0xff]
    %v2376 = vld [vmem:[%s2369 + $0x30] sm:$0xff]
    %v2377 = vld [vmem:[%s2369 + $0x38] sm:$0xff]
    %v2378 = vld [vmem:[%s2369 + $0x40] sm:$0xff]
    %v2379 = vld [vmem:[%s2369 + $0x48] sm:$0xff]
    %v2380 = vld [vmem:[%s2369 + $0x50] sm:$0xff]
    %v2381 = vld [vmem:[%s2369 + $0x58] sm:$0xff]
    %v2382 = vld [vmem:[%s2369 + $0x60] sm:$0xff]
    %v2383 = vld [vmem:[%s2369 + $0x68] sm:$0xff]
    %v2384 = vld [vmem:[%s2369 + $0x70] sm:$0xff]
    %v2385 = vld [vmem:[%s2369 + $0x78] sm:$0xff]
    %v2386 = vld [vmem:[#allocation3] sm:$0x3]
    %v2403 = vcombine.high %v2370, %v2370
    %v2405 = vunpack.c.l.s4 1983009808
    %v2406 = vunpack.c.0.s8 %v2405
    %v2407 = vlaneseq
    %v2408 = vshrl.u32 %v2407, 7
    %v2409 = vsub.s32 %v2406, %v2408
    %v2410 = vrot.slane %v2370, %v2409
    %v2412 = vunpack.c.l.s4 1983009808
    %v2413 = vunpack.c.0.s8 %v2412
    %v2414 = vlaneseq
    %v2415 = vshrl.u32 %v2414, 7
    %v2416 = vsub.s32 %v2413, %v2415
    %v2417 = vrot.slane %v2403, %v2416
    %v2418 = vcombine.high %v2410, %v2410
    %v2419 = vcombine.high %v2417, %v2417
    %v2420 = vcombine.high %v2371, %v2371
    %v2422 = vunpack.c.l.s4 1983009808
    %v2423 = vunpack.c.0.s8 %v2422
    %v2424 = vlaneseq
    %v2425 = vshrl.u32 %v2424, 7
    %v2426 = vsub.s32 %v2423, %v2425
    %v2427 = vrot.slane %v2371, %v2426
    %v2429 = vunpack.c.l.s4 1983009808
    %v2430 = vunpack.c.0.s8 %v2429
    %v2431 = vlaneseq
    %v2432 = vshrl.u32 %v2431, 7
    %v2433 = vsub.s32 %v2430, %v2432
    %v2434 = vrot.slane %v2420, %v2433
    %v2435 = vcombine.high %v2427, %v2427
    %v2436 = vcombine.high %v2434, %v2434
    %v2437 = vcombine.high %v2372, %v2372
    %v2439 = vunpack.c.l.s4 1983009808
    %v2440 = vunpack.c.0.s8 %v2439
    %v2441 = vlaneseq
    %v2442 = vshrl.u32 %v2441, 7
    %v2443 = vsub.s32 %v2440, %v2442
    %v2444 = vrot.slane %v2372, %v2443
    %v2446 = vunpack.c.l.s4 1983009808
    %v2447 = vunpack.c.0.s8 %v2446
    %v2448 = vlaneseq
    %v2449 = vshrl.u32 %v2448, 7
    %v2450 = vsub.s32 %v2447, %v2449
    %v2451 = vrot.slane %v2437, %v2450
    %v2452 = vcombine.high %v2444, %v2444
    %v2453 = vcombine.high %v2451, %v2451
    %v2454 = vcombine.high %v2373, %v2373
    %v2456 = vunpack.c.l.s4 1983009808
    %v2457 = vunpack.c.0.s8 %v2456
    %v2458 = vlaneseq
    %v2459 = vshrl.u32 %v2458, 7
    %v2460 = vsub.s32 %v2457, %v2459
    %v2461 = vrot.slane %v2373, %v2460
    %v2463 = vunpack.c.l.s4 1983009808
    %v2464 = vunpack.c.0.s8 %v2463
    %v2465 = vlaneseq
    %v2466 = vshrl.u32 %v2465, 7
    %v2467 = vsub.s32 %v2464, %v2466
    %v2468 = vrot.slane %v2454, %v2467
    %v2469 = vcombine.high %v2461, %v2461
    %v2470 = vcombine.high %v2468, %v2468
    %v2471 = vcombine.high %v2374, %v2374
    %v2473 = vunpack.c.l.s4 1983009808
    %v2474 = vunpack.c.0.s8 %v2473
    %v2475 = vlaneseq
    %v2476 = vshrl.u32 %v2475, 7
    %v2477 = vsub.s32 %v2474, %v2476
    %v2478 = vrot.slane %v2374, %v2477
    %v2480 = vunpack.c.l.s4 1983009808
    %v2481 = vunpack.c.0.s8 %v2480
    %v2482 = vlaneseq
    %v2483 = vshrl.u32 %v2482, 7
    %v2484 = vsub.s32 %v2481, %v2483
    %v2485 = vrot.slane %v2471, %v2484
    %v2486 = vcombine.high %v2478, %v2478
    %v2487 = vcombine.high %v2485, %v2485
    %v2488 = vcombine.high %v2375, %v2375
    %v2490 = vunpack.c.l.s4 1983009808
    %v2491 = vunpack.c.0.s8 %v2490
    %v2492 = vlaneseq
    %v2493 = vshrl.u32 %v2492, 7
    %v2494 = vsub.s32 %v2491, %v2493
    %v2495 = vrot.slane %v2375, %v2494
    %v2497 = vunpack.c.l.s4 1983009808
    %v2498 = vunpack.c.0.s8 %v2497
    %v2499 = vlaneseq
    %v2500 = vshrl.u32 %v2499, 7
    %v2501 = vsub.s32 %v2498, %v2500
    %v2502 = vrot.slane %v2488, %v2501
    %v2503 = vcombine.high %v2495, %v2495
    %v2504 = vcombine.high %v2502, %v2502
    %v2505 = vcombine.high %v2376, %v2376
    %v2507 = vunpack.c.l.s4 1983009808
    %v2508 = vunpack.c.0.s8 %v2507
    %v2509 = vlaneseq
    %v2510 = vshrl.u32 %v2509, 7
    %v2511 = vsub.s32 %v2508, %v2510
    %v2512 = vrot.slane %v2376, %v2511
    %v2514 = vunpack.c.l.s4 1983009808
    %v2515 = vunpack.c.0.s8 %v2514
    %v2516 = vlaneseq
    %v2517 = vshrl.u32 %v2516, 7
    %v2518 = vsub.s32 %v2515, %v2517
    %v2519 = vrot.slane %v2505, %v2518
    %v2520 = vcombine.high %v2512, %v2512
    %v2521 = vcombine.high %v2519, %v2519
    %v2522 = vcombine.high %v2377, %v2377
    %v2524 = vunpack.c.l.s4 1983009808
    %v2525 = vunpack.c.0.s8 %v2524
    %v2526 = vlaneseq
    %v2527 = vshrl.u32 %v2526, 7
    %v2528 = vsub.s32 %v2525, %v2527
    %v2529 = vrot.slane %v2377, %v2528
    %v2531 = vunpack.c.l.s4 1983009808
    %v2532 = vunpack.c.0.s8 %v2531
    %v2533 = vlaneseq
    %v2534 = vshrl.u32 %v2533, 7
    %v2535 = vsub.s32 %v2532, %v2534
    %v2536 = vrot.slane %v2522, %v2535
    %v2537 = vcombine.high %v2529, %v2529
    %v2538 = vcombine.high %v2536, %v2536
    %v2539 = vcombine.high %v2378, %v2378
    %v2541 = vunpack.c.l.s4 1983009808
    %v2542 = vunpack.c.0.s8 %v2541
    %v2543 = vlaneseq
    %v2544 = vshrl.u32 %v2543, 7
    %v2545 = vsub.s32 %v2542, %v2544
    %v2546 = vrot.slane %v2378, %v2545
    %v2548 = vunpack.c.l.s4 1983009808
    %v2549 = vunpack.c.0.s8 %v2548
    %v2550 = vlaneseq
    %v2551 = vshrl.u32 %v2550, 7
    %v2552 = vsub.s32 %v2549, %v2551
    %v2553 = vrot.slane %v2539, %v2552
    %v2554 = vcombine.high %v2546, %v2546
    %v2555 = vcombine.high %v2553, %v2553
    %v2556 = vcombine.high %v2379, %v2379
    %v2558 = vunpack.c.l.s4 1983009808
    %v2559 = vunpack.c.0.s8 %v2558
    %v2560 = vlaneseq
    %v2561 = vshrl.u32 %v2560, 7
    %v2562 = vsub.s32 %v2559, %v2561
    %v2563 = vrot.slane %v2379, %v2562
    %v2565 = vunpack.c.l.s4 1983009808
    %v2566 = vunpack.c.0.s8 %v2565
    %v2567 = vlaneseq
    %v2568 = vshrl.u32 %v2567, 7
    %v2569 = vsub.s32 %v2566, %v2568
    %v2570 = vrot.slane %v2556, %v2569
    %v2571 = vcombine.high %v2563, %v2563
    %v2572 = vcombine.high %v2570, %v2570
    %v2573 = vcombine.high %v2380, %v2380
    %v2575 = vunpack.c.l.s4 1983009808
    %v2576 = vunpack.c.0.s8 %v2575
    %v2577 = vlaneseq
    %v2578 = vshrl.u32 %v2577, 7
    %v2579 = vsub.s32 %v2576, %v2578
    %v2580 = vrot.slane %v2380, %v2579
    %v2582 = vunpack.c.l.s4 1983009808
    %v2583 = vunpack.c.0.s8 %v2582
    %v2584 = vlaneseq
    %v2585 = vshrl.u32 %v2584, 7
    %v2586 = vsub.s32 %v2583, %v2585
    %v2587 = vrot.slane %v2573, %v2586
    %v2588 = vcombine.high %v2580, %v2580
    %v2589 = vcombine.high %v2587, %v2587
    %v2590 = vcombine.high %v2381, %v2381
    %v2592 = vunpack.c.l.s4 1983009808
    %v2593 = vunpack.c.0.s8 %v2592
    %v2594 = vlaneseq
    %v2595 = vshrl.u32 %v2594, 7
    %v2596 = vsub.s32 %v2593, %v2595
    %v2597 = vrot.slane %v2381, %v2596
    %v2599 = vunpack.c.l.s4 1983009808
    %v2600 = vunpack.c.0.s8 %v2599
    %v2601 = vlaneseq
    %v2602 = vshrl.u32 %v2601, 7
    %v2603 = vsub.s32 %v2600, %v2602
    %v2604 = vrot.slane %v2590, %v2603
    %v2605 = vcombine.high %v2597, %v2597
    %v2606 = vcombine.high %v2604, %v2604
    %v2607 = vcombine.high %v2382, %v2382
    %v2609 = vunpack.c.l.s4 1983009808
    %v2610 = vunpack.c.0.s8 %v2609
    %v2611 = vlaneseq
    %v2612 = vshrl.u32 %v2611, 7
    %v2613 = vsub.s32 %v2610, %v2612
    %v2614 = vrot.slane %v2382, %v2613
    %v2616 = vunpack.c.l.s4 1983009808
    %v2617 = vunpack.c.0.s8 %v2616
    %v2618 = vlaneseq
    %v2619 = vshrl.u32 %v2618, 7
    %v2620 = vsub.s32 %v2617, %v2619
    %v2621 = vrot.slane %v2607, %v2620
    %v2622 = vcombine.high %v2614, %v2614
    %v2623 = vcombine.high %v2621, %v2621
    %v2624 = vcombine.high %v2383, %v2383
    %v2626 = vunpack.c.l.s4 1983009808
    %v2627 = vunpack.c.0.s8 %v2626
    %v2628 = vlaneseq
    %v2629 = vshrl.u32 %v2628, 7
    %v2630 = vsub.s32 %v2627, %v2629
    %v2631 = vrot.slane %v2383, %v2630
    %v2633 = vunpack.c.l.s4 1983009808
    %v2634 = vunpack.c.0.s8 %v2633
    %v2635 = vlaneseq
    %v2636 = vshrl.u32 %v2635, 7
    %v2637 = vsub.s32 %v2634, %v2636
    %v2638 = vrot.slane %v2624, %v2637
    %v2639 = vcombine.high %v2631, %v2631
    %v2640 = vcombine.high %v2638, %v2638
    %v2641 = vcombine.high %v2384, %v2384
    %v2643 = vunpack.c.l.s4 1983009808
    %v2644 = vunpack.c.0.s8 %v2643
    %v2645 = vlaneseq
    %v2646 = vshrl.u32 %v2645, 7
    %v2647 = vsub.s32 %v2644, %v2646
    %v2648 = vrot.slane %v2384, %v2647
    %v2650 = vunpack.c.l.s4 1983009808
    %v2651 = vunpack.c.0.s8 %v2650
    %v2652 = vlaneseq
    %v2653 = vshrl.u32 %v2652, 7
    %v2654 = vsub.s32 %v2651, %v2653
    %v2655 = vrot.slane %v2641, %v2654
    %v2656 = vcombine.high %v2648, %v2648
    %v2657 = vcombine.high %v2655, %v2655
    %v2658 = vcombine.high %v2385, %v2385
    %v2660 = vunpack.c.l.s4 1983009808
    %v2661 = vunpack.c.0.s8 %v2660
    %v2662 = vlaneseq
    %v2663 = vshrl.u32 %v2662, 7
    %v2664 = vsub.s32 %v2661, %v2663
    %v2665 = vrot.slane %v2385, %v2664
    %v2667 = vunpack.c.l.s4 1983009808
    %v2668 = vunpack.c.0.s8 %v2667
    %v2669 = vlaneseq
    %v2670 = vshrl.u32 %v2669, 7
    %v2671 = vsub.s32 %v2668, %v2670
    %v2672 = vrot.slane %v2658, %v2671
    %v2673 = vcombine.high %v2665, %v2665
    %v2674 = vcombine.high %v2672, %v2672
    %v2739 = vpack.c.bf16 %v2410, %v2410
    %v2740 = vpack.c.bf16 %v2418, %v2418
    %v2741 = vpack.c.bf16 %v2417, %v2417
    %v2742 = vpack.c.bf16 %v2419, %v2419
    %v2743 = vpack.c.bf16 %v2427, %v2427
    %v2744 = vpack.c.bf16 %v2435, %v2435
    %v2745 = vpack.c.bf16 %v2434, %v2434
    %v2746 = vpack.c.bf16 %v2436, %v2436
    %v2747 = vpack.c.bf16 %v2444, %v2444
    %v2748 = vpack.c.bf16 %v2452, %v2452
    %v2749 = vpack.c.bf16 %v2451, %v2451
    %v2750 = vpack.c.bf16 %v2453, %v2453
    %v2751 = vpack.c.bf16 %v2461, %v2461
    %v2752 = vpack.c.bf16 %v2469, %v2469
    %v2753 = vpack.c.bf16 %v2468, %v2468
    %v2754 = vpack.c.bf16 %v2470, %v2470
    %v2755 = vpack.c.bf16 %v2478, %v2478
    %v2756 = vpack.c.bf16 %v2486, %v2486
    %v2757 = vpack.c.bf16 %v2485, %v2485
    %v2758 = vpack.c.bf16 %v2487, %v2487
    %v2759 = vpack.c.bf16 %v2495, %v2495
    %v2760 = vpack.c.bf16 %v2503, %v2503
    %v2761 = vpack.c.bf16 %v2502, %v2502
    %v2762 = vpack.c.bf16 %v2504, %v2504
    %v2763 = vpack.c.bf16 %v2512, %v2512
    %v2764 = vpack.c.bf16 %v2520, %v2520
    %v2765 = vpack.c.bf16 %v2519, %v2519
    %v2766 = vpack.c.bf16 %v2521, %v2521
    %v2767 = vpack.c.bf16 %v2529, %v2529
    %v2768 = vpack.c.bf16 %v2537, %v2537
    %v2769 = vpack.c.bf16 %v2536, %v2536
    %v2770 = vpack.c.bf16 %v2538, %v2538
    %v2771 = vpack.c.bf16 %v2546, %v2546
    %v2772 = vpack.c.bf16 %v2554, %v2554
    %v2773 = vpack.c.bf16 %v2553, %v2553
    %v2774 = vpack.c.bf16 %v2555, %v2555
    %v2775 = vpack.c.bf16 %v2563, %v2563
    %v2776 = vpack.c.bf16 %v2571, %v2571
    %v2777 = vpack.c.bf16 %v2570, %v2570
    %v2778 = vpack.c.bf16 %v2572, %v2572
    %v2779 = vpack.c.bf16 %v2580, %v2580
    %v2780 = vpack.c.bf16 %v2588, %v2588
    %v2781 = vpack.c.bf16 %v2587, %v2587
    %v2782 = vpack.c.bf16 %v2589, %v2589
    %v2783 = vpack.c.bf16 %v2597, %v2597
    %v2784 = vpack.c.bf16 %v2605, %v2605
    %v2785 = vpack.c.bf16 %v2604, %v2604
    %v2786 = vpack.c.bf16 %v2606, %v2606
    %v2787 = vpack.c.bf16 %v2614, %v2614
    %v2788 = vpack.c.bf16 %v2622, %v2622
    %v2789 = vpack.c.bf16 %v2621, %v2621
    %v2790 = vpack.c.bf16 %v2623, %v2623
    %v2791 = vpack.c.bf16 %v2631, %v2631
    %v2792 = vpack.c.bf16 %v2639, %v2639
    %v2793 = vpack.c.bf16 %v2638, %v2638
    %v2794 = vpack.c.bf16 %v2640, %v2640
    %v2795 = vpack.c.bf16 %v2648, %v2648
    %v2796 = vpack.c.bf16 %v2656, %v2656
    %v2797 = vpack.c.bf16 %v2655, %v2655
    %v2798 = vpack.c.bf16 %v2657, %v2657
    %v2799 = vpack.c.bf16 %v2665, %v2665
    %v2800 = vpack.c.bf16 %v2673, %v2673
    %v2801 = vpack.c.bf16 %v2672, %v2672
    %v2802 = vpack.c.bf16 %v2674, %v2674
    %v2803 = vld [vmem:[#allocation9] sm:$0xf]
    %v2804 = vld [vmem:[#allocation9 + $0x4] sm:$0xf]
    %v2805 = vld [vmem:[#allocation9 + $0x8] sm:$0xf]
    %v2806 = vld [vmem:[#allocation9 + $0xc] sm:$0xf]
    %v2807 = vld [vmem:[#allocation9 + $0x10] sm:$0xf]
    %v2808 = vld [vmem:[#allocation9 + $0x14] sm:$0xf]
    %v2809 = vld [vmem:[#allocation9 + $0x18] sm:$0xf]
    %v2810 = vld [vmem:[#allocation9 + $0x1c] sm:$0xf]
    %v2811 = vld [vmem:[#allocation9 + $0x20] sm:$0xf]
    %v2812 = vld [vmem:[#allocation9 + $0x24] sm:$0xf]
    %v2813 = vld [vmem:[#allocation9 + $0x28] sm:$0xf]
    %v2814 = vld [vmem:[#allocation9 + $0x2c] sm:$0xf]
    %v2815 = vld [vmem:[#allocation9 + $0x30] sm:$0xf]
    %v2816 = vld [vmem:[#allocation9 + $0x34] sm:$0xf]
    %v2817 = vld [vmem:[#allocation9 + $0x38] sm:$0xf]
    %v2818 = vld [vmem:[#allocation9 + $0x3c] sm:$0xf]
    %v2819 = vld [vmem:[#allocation9 + $0x40] sm:$0xf]
    %v2820 = vld [vmem:[#allocation9 + $0x44] sm:$0xf]
    %v2821 = vld [vmem:[#allocation9 + $0x48] sm:$0xf]
    %v2822 = vld [vmem:[#allocation9 + $0x4c] sm:$0xf]
    %v2823 = vld [vmem:[#allocation9 + $0x50] sm:$0xf]
    %v2824 = vld [vmem:[#allocation9 + $0x54] sm:$0xf]
    %v2825 = vld [vmem:[#allocation9 + $0x58] sm:$0xf]
    %v2826 = vld [vmem:[#allocation9 + $0x5c] sm:$0xf]
    %v2827 = vld [vmem:[#allocation9 + $0x60] sm:$0xf]
    %v2828 = vld [vmem:[#allocation9 + $0x64] sm:$0xf]
    %v2829 = vld [vmem:[#allocation9 + $0x68] sm:$0xf]
    %v2830 = vld [vmem:[#allocation9 + $0x6c] sm:$0xf]
    %v2831 = vld [vmem:[#allocation9 + $0x70] sm:$0xf]
    %v2832 = vld [vmem:[#allocation9 + $0x74] sm:$0xf]
    %v2833 = vld [vmem:[#allocation9 + $0x78] sm:$0xf]
    %v2834 = vld [vmem:[#allocation9 + $0x7c] sm:$0xf]
    %v2835 = vld [vmem:[#allocation9 + $0x80] sm:$0xf]
    %v2836 = vld [vmem:[#allocation9 + $0x84] sm:$0xf]
    %v2837 = vld [vmem:[#allocation9 + $0x88] sm:$0xf]
    %v2838 = vld [vmem:[#allocation9 + $0x8c] sm:$0xf]
    %v2839 = vld [vmem:[#allocation9 + $0x90] sm:$0xf]
    %v2840 = vld [vmem:[#allocation9 + $0x94] sm:$0xf]
    %v2841 = vld [vmem:[#allocation9 + $0x98] sm:$0xf]
    %v2842 = vld [vmem:[#allocation9 + $0x9c] sm:$0xf]
    %v2843 = vld [vmem:[#allocation9 + $0xa0] sm:$0xf]
    %v2844 = vld [vmem:[#allocation9 + $0xa4] sm:$0xf]
    %v2845 = vld [vmem:[#allocation9 + $0xa8] sm:$0xf]
    %v2846 = vld [vmem:[#allocation9 + $0xac] sm:$0xf]
    %v2847 = vld [vmem:[#allocation9 + $0xb0] sm:$0xf]
    %v2848 = vld [vmem:[#allocation9 + $0xb4] sm:$0xf]
    %v2849 = vld [vmem:[#allocation9 + $0xb8] sm:$0xf]
    %v2850 = vld [vmem:[#allocation9 + $0xbc] sm:$0xf]
    %v2851 = vld [vmem:[#allocation9 + $0xc0] sm:$0xf]
    %v2852 = vld [vmem:[#allocation9 + $0xc4] sm:$0xf]
    %v2853 = vld [vmem:[#allocation9 + $0xc8] sm:$0xf]
    %v2854 = vld [vmem:[#allocation9 + $0xcc] sm:$0xf]
    %v2855 = vld [vmem:[#allocation9 + $0xd0] sm:$0xf]
    %v2856 = vld [vmem:[#allocation9 + $0xd4] sm:$0xf]
    %v2857 = vld [vmem:[#allocation9 + $0xd8] sm:$0xf]
    %v2858 = vld [vmem:[#allocation9 + $0xdc] sm:$0xf]
    %v2859 = vld [vmem:[#allocation9 + $0xe0] sm:$0xf]
    %v2860 = vld [vmem:[#allocation9 + $0xe4] sm:$0xf]
    %v2861 = vld [vmem:[#allocation9 + $0xe8] sm:$0xf]
    %v2862 = vld [vmem:[#allocation9 + $0xec] sm:$0xf]
    %v2863 = vld [vmem:[#allocation9 + $0xf0] sm:$0xf]
    %v2864 = vld [vmem:[#allocation9 + $0xf4] sm:$0xf]
    %v2865 = vld [vmem:[#allocation9 + $0xf8] sm:$0xf]
    %v2866 = vld [vmem:[#allocation9 + $0xfc] sm:$0xf]
    %v2867 = vld [vmem:[#allocation9 + $0x100] sm:$0xf]
    %v2868 = vld [vmem:[#allocation9 + $0x104] sm:$0xf]
    %v2869 = vld [vmem:[#allocation9 + $0x108] sm:$0xf]
    %v2870 = vld [vmem:[#allocation9 + $0x10c] sm:$0xf]
    %v2871 = vld [vmem:[#allocation9 + $0x110] sm:$0xf]
    %v2872 = vld [vmem:[#allocation9 + $0x114] sm:$0xf]
    %v2873 = vld [vmem:[#allocation9 + $0x118] sm:$0xf]
    %v2874 = vld [vmem:[#allocation9 + $0x11c] sm:$0xf]
    %v2875 = vld [vmem:[#allocation9 + $0x120] sm:$0xf]
    %v2876 = vld [vmem:[#allocation9 + $0x124] sm:$0xf]
    %v2877 = vld [vmem:[#allocation9 + $0x128] sm:$0xf]
    %v2878 = vld [vmem:[#allocation9 + $0x12c] sm:$0xf]
    %v2879 = vld [vmem:[#allocation9 + $0x130] sm:$0xf]
    %v2880 = vld [vmem:[#allocation9 + $0x134] sm:$0xf]
    %v2881 = vld [vmem:[#allocation9 + $0x138] sm:$0xf]
    %v2882 = vld [vmem:[#allocation9 + $0x13c] sm:$0xf]
    %v2883 = vld [vmem:[#allocation9 + $0x140] sm:$0xf]
    %v2884 = vld [vmem:[#allocation9 + $0x144] sm:$0xf]
    %v2885 = vld [vmem:[#allocation9 + $0x148] sm:$0xf]
    %v2886 = vld [vmem:[#allocation9 + $0x14c] sm:$0xf]
    %v2887 = vld [vmem:[#allocation9 + $0x150] sm:$0xf]
    %v2888 = vld [vmem:[#allocation9 + $0x154] sm:$0xf]
    %v2889 = vld [vmem:[#allocation9 + $0x158] sm:$0xf]
    %v2890 = vld [vmem:[#allocation9 + $0x15c] sm:$0xf]
    %v2891 = vld [vmem:[#allocation9 + $0x160] sm:$0xf]
    %v2892 = vld [vmem:[#allocation9 + $0x164] sm:$0xf]
    %v2893 = vld [vmem:[#allocation9 + $0x168] sm:$0xf]
    %v2894 = vld [vmem:[#allocation9 + $0x16c] sm:$0xf]
    %v2895 = vld [vmem:[#allocation9 + $0x170] sm:$0xf]
    %v2896 = vld [vmem:[#allocation9 + $0x174] sm:$0xf]
    %v2897 = vld [vmem:[#allocation9 + $0x178] sm:$0xf]
    %v2898 = vld [vmem:[#allocation9 + $0x17c] sm:$0xf]
    %v2899 = vld [vmem:[#allocation9 + $0x180] sm:$0xf]
    %v2900 = vld [vmem:[#allocation9 + $0x184] sm:$0xf]
    %v2901 = vld [vmem:[#allocation9 + $0x188] sm:$0xf]
    %v2902 = vld [vmem:[#allocation9 + $0x18c] sm:$0xf]
    %v2903 = vld [vmem:[#allocation9 + $0x190] sm:$0xf]
    %v2904 = vld [vmem:[#allocation9 + $0x194] sm:$0xf]
    %v2905 = vld [vmem:[#allocation9 + $0x198] sm:$0xf]
    %v2906 = vld [vmem:[#allocation9 + $0x19c] sm:$0xf]
    %v2907 = vld [vmem:[#allocation9 + $0x1a0] sm:$0xf]
    %v2908 = vld [vmem:[#allocation9 + $0x1a4] sm:$0xf]
    %v2909 = vld [vmem:[#allocation9 + $0x1a8] sm:$0xf]
    %v2910 = vld [vmem:[#allocation9 + $0x1ac] sm:$0xf]
    %v2911 = vld [vmem:[#allocation9 + $0x1b0] sm:$0xf]
    %v2912 = vld [vmem:[#allocation9 + $0x1b4] sm:$0xf]
    %v2913 = vld [vmem:[#allocation9 + $0x1b8] sm:$0xf]
    %v2914 = vld [vmem:[#allocation9 + $0x1bc] sm:$0xf]
    %v2915 = vld [vmem:[#allocation9 + $0x1c0] sm:$0xf]
    %v2916 = vld [vmem:[#allocation9 + $0x1c4] sm:$0xf]
    %v2917 = vld [vmem:[#allocation9 + $0x1c8] sm:$0xf]
    %v2918 = vld [vmem:[#allocation9 + $0x1cc] sm:$0xf]
    %v2919 = vld [vmem:[#allocation9 + $0x1d0] sm:$0xf]
    %v2920 = vld [vmem:[#allocation9 + $0x1d4] sm:$0xf]
    %v2921 = vld [vmem:[#allocation9 + $0x1d8] sm:$0xf]
    %v2922 = vld [vmem:[#allocation9 + $0x1dc] sm:$0xf]
    %v2923 = vld [vmem:[#allocation9 + $0x1e0] sm:$0xf]
    %v2924 = vld [vmem:[#allocation9 + $0x1e4] sm:$0xf]
    %v2925 = vld [vmem:[#allocation9 + $0x1e8] sm:$0xf]
    %v2926 = vld [vmem:[#allocation9 + $0x1ec] sm:$0xf]
    %v2927 = vld [vmem:[#allocation9 + $0x1f0] sm:$0xf]
    %v2928 = vld [vmem:[#allocation9 + $0x1f4] sm:$0xf]
    %v2929 = vld [vmem:[#allocation9 + $0x1f8] sm:$0xf]
    %v2930 = vld [vmem:[#allocation9 + $0x1fc] sm:$0xf]
    %v2931 = vld [vmem:[#allocation9 + $0x200] sm:$0xf]
    %v2932 = vld [vmem:[#allocation9 + $0x204] sm:$0xf]
    %v2933 = vld [vmem:[#allocation9 + $0x208] sm:$0xf]
    %v2934 = vld [vmem:[#allocation9 + $0x20c] sm:$0xf]
    %v2935 = vld [vmem:[#allocation9 + $0x210] sm:$0xf]
    %v2936 = vld [vmem:[#allocation9 + $0x214] sm:$0xf]
    %v2937 = vld [vmem:[#allocation9 + $0x218] sm:$0xf]
    %v2938 = vld [vmem:[#allocation9 + $0x21c] sm:$0xf]
    %v2939 = vld [vmem:[#allocation9 + $0x220] sm:$0xf]
    %v2940 = vld [vmem:[#allocation9 + $0x224] sm:$0xf]
    %v2941 = vld [vmem:[#allocation9 + $0x228] sm:$0xf]
    %v2942 = vld [vmem:[#allocation9 + $0x22c] sm:$0xf]
    %v2943 = vld [vmem:[#allocation9 + $0x230] sm:$0xf]
    %v2944 = vld [vmem:[#allocation9 + $0x234] sm:$0xf]
    %v2945 = vld [vmem:[#allocation9 + $0x238] sm:$0xf]
    %v2946 = vld [vmem:[#allocation9 + $0x23c] sm:$0xf]
    %v2947 = vld [vmem:[#allocation9 + $0x240] sm:$0xf]
    %v2948 = vld [vmem:[#allocation9 + $0x244] sm:$0xf]
    %v2949 = vld [vmem:[#allocation9 + $0x248] sm:$0xf]
    %v2950 = vld [vmem:[#allocation9 + $0x24c] sm:$0xf]
    %v2951 = vld [vmem:[#allocation9 + $0x250] sm:$0xf]
    %v2952 = vld [vmem:[#allocation9 + $0x254] sm:$0xf]
    %v2953 = vld [vmem:[#allocation9 + $0x258] sm:$0xf]
    %v2954 = vld [vmem:[#allocation9 + $0x25c] sm:$0xf]
    %v2955 = vld [vmem:[#allocation9 + $0x260] sm:$0xf]
    %v2956 = vld [vmem:[#allocation9 + $0x264] sm:$0xf]
    %v2957 = vld [vmem:[#allocation9 + $0x268] sm:$0xf]
    %v2958 = vld [vmem:[#allocation9 + $0x26c] sm:$0xf]
    %v2959 = vld [vmem:[#allocation9 + $0x270] sm:$0xf]
    %v2960 = vld [vmem:[#allocation9 + $0x274] sm:$0xf]
    %v2961 = vld [vmem:[#allocation9 + $0x278] sm:$0xf]
    %v2962 = vld [vmem:[#allocation9 + $0x27c] sm:$0xf]
    %v2963 = vld [vmem:[#allocation9 + $0x280] sm:$0xf]
    %v2964 = vld [vmem:[#allocation9 + $0x284] sm:$0xf]
    %v2965 = vld [vmem:[#allocation9 + $0x288] sm:$0xf]
    %v2966 = vld [vmem:[#allocation9 + $0x28c] sm:$0xf]
    %v2967 = vld [vmem:[#allocation9 + $0x290] sm:$0xf]
    %v2968 = vld [vmem:[#allocation9 + $0x294] sm:$0xf]
    %v2969 = vld [vmem:[#allocation9 + $0x298] sm:$0xf]
    %v2970 = vld [vmem:[#allocation9 + $0x29c] sm:$0xf]
    %v2971 = vld [vmem:[#allocation9 + $0x2a0] sm:$0xf]
    %v2972 = vld [vmem:[#allocation9 + $0x2a4] sm:$0xf]
    %v2973 = vld [vmem:[#allocation9 + $0x2a8] sm:$0xf]
    %v2974 = vld [vmem:[#allocation9 + $0x2ac] sm:$0xf]
    %v2975 = vld [vmem:[#allocation9 + $0x2b0] sm:$0xf]
    %v2976 = vld [vmem:[#allocation9 + $0x2b4] sm:$0xf]
    %v2977 = vld [vmem:[#allocation9 + $0x2b8] sm:$0xf]
    %v2978 = vld [vmem:[#allocation9 + $0x2bc] sm:$0xf]
    %v2979 = vld [vmem:[#allocation9 + $0x2c0] sm:$0xf]
    %v2980 = vld [vmem:[#allocation9 + $0x2c4] sm:$0xf]
    %v2981 = vld [vmem:[#allocation9 + $0x2c8] sm:$0xf]
    %v2982 = vld [vmem:[#allocation9 + $0x2cc] sm:$0xf]
    %v2983 = vld [vmem:[#allocation9 + $0x2d0] sm:$0xf]
    %v2984 = vld [vmem:[#allocation9 + $0x2d4] sm:$0xf]
    %v2985 = vld [vmem:[#allocation9 + $0x2d8] sm:$0xf]
    %v2986 = vld [vmem:[#allocation9 + $0x2dc] sm:$0xf]
    %v2987 = vld [vmem:[#allocation9 + $0x2e0] sm:$0xf]
    %v2988 = vld [vmem:[#allocation9 + $0x2e4] sm:$0xf]
    %v2989 = vld [vmem:[#allocation9 + $0x2e8] sm:$0xf]
    %v2990 = vld [vmem:[#allocation9 + $0x2ec] sm:$0xf]
    %v2991 = vld [vmem:[#allocation9 + $0x2f0] sm:$0xf]
    %v2992 = vld [vmem:[#allocation9 + $0x2f4] sm:$0xf]
    %v2993 = vld [vmem:[#allocation9 + $0x2f8] sm:$0xf]
    %v2994 = vld [vmem:[#allocation9 + $0x2fc] sm:$0xf]
    %v2995 = vld [vmem:[#allocation9 + $0x300] sm:$0xf]
    %v2996 = vld [vmem:[#allocation9 + $0x304] sm:$0xf]
    %v2997 = vld [vmem:[#allocation9 + $0x308] sm:$0xf]
    %v2998 = vld [vmem:[#allocation9 + $0x30c] sm:$0xf]
    %v2999 = vld [vmem:[#allocation9 + $0x310] sm:$0xf]
    %v3000 = vld [vmem:[#allocation9 + $0x314] sm:$0xf]
    %v3001 = vld [vmem:[#allocation9 + $0x318] sm:$0xf]
    %v3002 = vld [vmem:[#allocation9 + $0x31c] sm:$0xf]
    %v3003 = vld [vmem:[#allocation9 + $0x320] sm:$0xf]
    %v3004 = vld [vmem:[#allocation9 + $0x324] sm:$0xf]
    %v3005 = vld [vmem:[#allocation9 + $0x328] sm:$0xf]
    %v3006 = vld [vmem:[#allocation9 + $0x32c] sm:$0xf]
    %v3007 = vld [vmem:[#allocation9 + $0x330] sm:$0xf]
    %v3008 = vld [vmem:[#allocation9 + $0x334] sm:$0xf]
    %v3009 = vld [vmem:[#allocation9 + $0x338] sm:$0xf]
    %v3010 = vld [vmem:[#allocation9 + $0x33c] sm:$0xf]
    %v3011 = vld [vmem:[#allocation9 + $0x340] sm:$0xf]
    %v3012 = vld [vmem:[#allocation9 + $0x344] sm:$0xf]
    %v3013 = vld [vmem:[#allocation9 + $0x348] sm:$0xf]
    %v3014 = vld [vmem:[#allocation9 + $0x34c] sm:$0xf]
    %v3015 = vld [vmem:[#allocation9 + $0x350] sm:$0xf]
    %v3016 = vld [vmem:[#allocation9 + $0x354] sm:$0xf]
    %v3017 = vld [vmem:[#allocation9 + $0x358] sm:$0xf]
    %v3018 = vld [vmem:[#allocation9 + $0x35c] sm:$0xf]
    %v3019 = vld [vmem:[#allocation9 + $0x360] sm:$0xf]
    %v3020 = vld [vmem:[#allocation9 + $0x364] sm:$0xf]
    %v3021 = vld [vmem:[#allocation9 + $0x368] sm:$0xf]
    %v3022 = vld [vmem:[#allocation9 + $0x36c] sm:$0xf]
    %v3023 = vld [vmem:[#allocation9 + $0x370] sm:$0xf]
    %v3024 = vld [vmem:[#allocation9 + $0x374] sm:$0xf]
    %v3025 = vld [vmem:[#allocation9 + $0x378] sm:$0xf]
    %v3026 = vld [vmem:[#allocation9 + $0x37c] sm:$0xf]
    %v3027 = vld [vmem:[#allocation9 + $0x380] sm:$0xf]
    %v3028 = vld [vmem:[#allocation9 + $0x384] sm:$0xf]
    %v3029 = vld [vmem:[#allocation9 + $0x388] sm:$0xf]
    %v3030 = vld [vmem:[#allocation9 + $0x38c] sm:$0xf]
    %v3031 = vld [vmem:[#allocation9 + $0x390] sm:$0xf]
    %v3032 = vld [vmem:[#allocation9 + $0x394] sm:$0xf]
    %v3033 = vld [vmem:[#allocation9 + $0x398] sm:$0xf]
    %v3034 = vld [vmem:[#allocation9 + $0x39c] sm:$0xf]
    %v3035 = vld [vmem:[#allocation9 + $0x3a0] sm:$0xf]
    %v3036 = vld [vmem:[#allocation9 + $0x3a4] sm:$0xf]
    %v3037 = vld [vmem:[#allocation9 + $0x3a8] sm:$0xf]
    %v3038 = vld [vmem:[#allocation9 + $0x3ac] sm:$0xf]
    %v3039 = vld [vmem:[#allocation9 + $0x3b0] sm:$0xf]
    %v3040 = vld [vmem:[#allocation9 + $0x3b4] sm:$0xf]
    %v3041 = vld [vmem:[#allocation9 + $0x3b8] sm:$0xf]
    %v3042 = vld [vmem:[#allocation9 + $0x3bc] sm:$0xf]
    %v3043 = vld [vmem:[#allocation9 + $0x3c0] sm:$0xf]
    %v3044 = vld [vmem:[#allocation9 + $0x3c4] sm:$0xf]
    %v3045 = vld [vmem:[#allocation9 + $0x3c8] sm:$0xf]
    %v3046 = vld [vmem:[#allocation9 + $0x3cc] sm:$0xf]
    %v3047 = vld [vmem:[#allocation9 + $0x3d0] sm:$0xf]
    %v3048 = vld [vmem:[#allocation9 + $0x3d4] sm:$0xf]
    %v3049 = vld [vmem:[#allocation9 + $0x3d8] sm:$0xf]
    %v3050 = vld [vmem:[#allocation9 + $0x3dc] sm:$0xf]
    %v3051 = vld [vmem:[#allocation9 + $0x3e0] sm:$0xf]
    %v3052 = vld [vmem:[#allocation9 + $0x3e4] sm:$0xf]
    %v3053 = vld [vmem:[#allocation9 + $0x3e8] sm:$0xf]
    %v3054 = vld [vmem:[#allocation9 + $0x3ec] sm:$0xf]
    %v3055 = vld [vmem:[#allocation9 + $0x3f0] sm:$0xf]
    %v3056 = vld [vmem:[#allocation9 + $0x3f4] sm:$0xf]
    %v3057 = vld [vmem:[#allocation9 + $0x3f8] sm:$0xf]
    %v3058 = vld [vmem:[#allocation9 + $0x3fc] sm:$0xf]
    %v3059 = vld [vmem:[#allocation9 + $0x400] sm:$0xf]
    %v3060 = vld [vmem:[#allocation9 + $0x404] sm:$0xf]
    %v3061 = vld [vmem:[#allocation9 + $0x408] sm:$0xf]
    %v3062 = vld [vmem:[#allocation9 + $0x40c] sm:$0xf]
    %v3063 = vld [vmem:[#allocation9 + $0x410] sm:$0xf]
    %v3064 = vld [vmem:[#allocation9 + $0x414] sm:$0xf]
    %v3065 = vld [vmem:[#allocation9 + $0x418] sm:$0xf]
    %v3066 = vld [vmem:[#allocation9 + $0x41c] sm:$0xf]
    %v3067 = vld [vmem:[#allocation9 + $0x420] sm:$0xf]
    %v3068 = vld [vmem:[#allocation9 + $0x424] sm:$0xf]
    %v3069 = vld [vmem:[#allocation9 + $0x428] sm:$0xf]
    %v3070 = vld [vmem:[#allocation9 + $0x42c] sm:$0xf]
    %v3071 = vld [vmem:[#allocation9 + $0x430] sm:$0xf]
    %v3072 = vld [vmem:[#allocation9 + $0x434] sm:$0xf]
    %v3073 = vld [vmem:[#allocation9 + $0x438] sm:$0xf]
    %v3074 = vld [vmem:[#allocation9 + $0x43c] sm:$0xf]
    %v3075 = vld [vmem:[#allocation9 + $0x440] sm:$0xf]
    %v3076 = vld [vmem:[#allocation9 + $0x444] sm:$0xf]
    %v3077 = vld [vmem:[#allocation9 + $0x448] sm:$0xf]
    %v3078 = vld [vmem:[#allocation9 + $0x44c] sm:$0xf]
    %v3079 = vld [vmem:[#allocation9 + $0x450] sm:$0xf]
    %v3080 = vld [vmem:[#allocation9 + $0x454] sm:$0xf]
    %v3081 = vld [vmem:[#allocation9 + $0x458] sm:$0xf]
    %v3082 = vld [vmem:[#allocation9 + $0x45c] sm:$0xf]
    %v3083 = vld [vmem:[#allocation9 + $0x460] sm:$0xf]
    %v3084 = vld [vmem:[#allocation9 + $0x464] sm:$0xf]
    %v3085 = vld [vmem:[#allocation9 + $0x468] sm:$0xf]
    %v3086 = vld [vmem:[#allocation9 + $0x46c] sm:$0xf]
    %v3087 = vld [vmem:[#allocation9 + $0x470] sm:$0xf]
    %v3088 = vld [vmem:[#allocation9 + $0x474] sm:$0xf]
    %v3089 = vld [vmem:[#allocation9 + $0x478] sm:$0xf]
    %v3090 = vld [vmem:[#allocation9 + $0x47c] sm:$0xf]
    %v3091 = vld [vmem:[#allocation9 + $0x480] sm:$0xf]
    %v3092 = vld [vmem:[#allocation9 + $0x484] sm:$0xf]
    %v3093 = vld [vmem:[#allocation9 + $0x488] sm:$0xf]
    %v3094 = vld [vmem:[#allocation9 + $0x48c] sm:$0xf]
    %v3095 = vld [vmem:[#allocation9 + $0x490] sm:$0xf]
    %v3096 = vld [vmem:[#allocation9 + $0x494] sm:$0xf]
    %v3097 = vld [vmem:[#allocation9 + $0x498] sm:$0xf]
    %v3098 = vld [vmem:[#allocation9 + $0x49c] sm:$0xf]
    %v3099 = vld [vmem:[#allocation9 + $0x4a0] sm:$0xf]
    %v3100 = vld [vmem:[#allocation9 + $0x4a4] sm:$0xf]
    %v3101 = vld [vmem:[#allocation9 + $0x4a8] sm:$0xf]
    %v3102 = vld [vmem:[#allocation9 + $0x4ac] sm:$0xf]
    %v3103 = vld [vmem:[#allocation9 + $0x4b0] sm:$0xf]
    %v3104 = vld [vmem:[#allocation9 + $0x4b4] sm:$0xf]
    %v3105 = vld [vmem:[#allocation9 + $0x4b8] sm:$0xf]
    %v3106 = vld [vmem:[#allocation9 + $0x4bc] sm:$0xf]
    %v3107 = vld [vmem:[#allocation9 + $0x4c0] sm:$0xf]
    %v3108 = vld [vmem:[#allocation9 + $0x4c4] sm:$0xf]
    %v3109 = vld [vmem:[#allocation9 + $0x4c8] sm:$0xf]
    %v3110 = vld [vmem:[#allocation9 + $0x4cc] sm:$0xf]
    %v3111 = vld [vmem:[#allocation9 + $0x4d0] sm:$0xf]
    %v3112 = vld [vmem:[#allocation9 + $0x4d4] sm:$0xf]
    %v3113 = vld [vmem:[#allocation9 + $0x4d8] sm:$0xf]
    %v3114 = vld [vmem:[#allocation9 + $0x4dc] sm:$0xf]
    %v3115 = vld [vmem:[#allocation9 + $0x4e0] sm:$0xf]
    %v3116 = vld [vmem:[#allocation9 + $0x4e4] sm:$0xf]
    %v3117 = vld [vmem:[#allocation9 + $0x4e8] sm:$0xf]
    %v3118 = vld [vmem:[#allocation9 + $0x4ec] sm:$0xf]
    %v3119 = vld [vmem:[#allocation9 + $0x4f0] sm:$0xf]
    %v3120 = vld [vmem:[#allocation9 + $0x4f4] sm:$0xf]
    %v3121 = vld [vmem:[#allocation9 + $0x4f8] sm:$0xf]
    %v3122 = vld [vmem:[#allocation9 + $0x4fc] sm:$0xf]
    %v3123 = vld [vmem:[#allocation9 + $0x500] sm:$0xf]
    %v3124 = vld [vmem:[#allocation9 + $0x504] sm:$0xf]
    %v3125 = vld [vmem:[#allocation9 + $0x508] sm:$0xf]
    %v3126 = vld [vmem:[#allocation9 + $0x50c] sm:$0xf]
    %v3127 = vld [vmem:[#allocation9 + $0x510] sm:$0xf]
    %v3128 = vld [vmem:[#allocation9 + $0x514] sm:$0xf]
    %v3129 = vld [vmem:[#allocation9 + $0x518] sm:$0xf]
    %v3130 = vld [vmem:[#allocation9 + $0x51c] sm:$0xf]
    %v3131 = vld [vmem:[#allocation9 + $0x520] sm:$0xf]
    %v3132 = vld [vmem:[#allocation9 + $0x524] sm:$0xf]
    %v3133 = vld [vmem:[#allocation9 + $0x528] sm:$0xf]
    %v3134 = vld [vmem:[#allocation9 + $0x52c] sm:$0xf]
    %v3135 = vld [vmem:[#allocation9 + $0x530] sm:$0xf]
    %v3136 = vld [vmem:[#allocation9 + $0x534] sm:$0xf]
    %v3137 = vld [vmem:[#allocation9 + $0x538] sm:$0xf]
    %v3138 = vld [vmem:[#allocation9 + $0x53c] sm:$0xf]
    %v3139 = vld [vmem:[#allocation9 + $0x540] sm:$0xf]
    %v3140 = vld [vmem:[#allocation9 + $0x544] sm:$0xf]
    %v3141 = vld [vmem:[#allocation9 + $0x548] sm:$0xf]
    %v3142 = vld [vmem:[#allocation9 + $0x54c] sm:$0xf]
    %v3143 = vld [vmem:[#allocation9 + $0x550] sm:$0xf]
    %v3144 = vld [vmem:[#allocation9 + $0x554] sm:$0xf]
    %v3145 = vld [vmem:[#allocation9 + $0x558] sm:$0xf]
    %v3146 = vld [vmem:[#allocation9 + $0x55c] sm:$0xf]
    %v3147 = vld [vmem:[#allocation9 + $0x560] sm:$0xf]
    %v3148 = vld [vmem:[#allocation9 + $0x564] sm:$0xf]
    %v3149 = vld [vmem:[#allocation9 + $0x568] sm:$0xf]
    %v3150 = vld [vmem:[#allocation9 + $0x56c] sm:$0xf]
    %v3151 = vld [vmem:[#allocation9 + $0x570] sm:$0xf]
    %v3152 = vld [vmem:[#allocation9 + $0x574] sm:$0xf]
    %v3153 = vld [vmem:[#allocation9 + $0x578] sm:$0xf]
    %v3154 = vld [vmem:[#allocation9 + $0x57c] sm:$0xf]
    %v3155 = vld [vmem:[#allocation9 + $0x580] sm:$0xf]
    %v3156 = vld [vmem:[#allocation9 + $0x584] sm:$0xf]
    %v3157 = vld [vmem:[#allocation9 + $0x588] sm:$0xf]
    %v3158 = vld [vmem:[#allocation9 + $0x58c] sm:$0xf]
    %v3159 = vld [vmem:[#allocation9 + $0x590] sm:$0xf]
    %v3160 = vld [vmem:[#allocation9 + $0x594] sm:$0xf]
    %v3161 = vld [vmem:[#allocation9 + $0x598] sm:$0xf]
    %v3162 = vld [vmem:[#allocation9 + $0x59c] sm:$0xf]
    %v3163 = vld [vmem:[#allocation9 + $0x5a0] sm:$0xf]
    %v3164 = vld [vmem:[#allocation9 + $0x5a4] sm:$0xf]
    %v3165 = vld [vmem:[#allocation9 + $0x5a8] sm:$0xf]
    %v3166 = vld [vmem:[#allocation9 + $0x5ac] sm:$0xf]
    %v3167 = vld [vmem:[#allocation9 + $0x5b0] sm:$0xf]
    %v3168 = vld [vmem:[#allocation9 + $0x5b4] sm:$0xf]
    %v3169 = vld [vmem:[#allocation9 + $0x5b8] sm:$0xf]
    %v3170 = vld [vmem:[#allocation9 + $0x5bc] sm:$0xf]
    %v3171 = vld [vmem:[#allocation9 + $0x5c0] sm:$0xf]
    %v3172 = vld [vmem:[#allocation9 + $0x5c4] sm:$0xf]
    %v3173 = vld [vmem:[#allocation9 + $0x5c8] sm:$0xf]
    %v3174 = vld [vmem:[#allocation9 + $0x5cc] sm:$0xf]
    %v3175 = vld [vmem:[#allocation9 + $0x5d0] sm:$0xf]
    %v3176 = vld [vmem:[#allocation9 + $0x5d4] sm:$0xf]
    %v3177 = vld [vmem:[#allocation9 + $0x5d8] sm:$0xf]
    %v3178 = vld [vmem:[#allocation9 + $0x5dc] sm:$0xf]
    %v3179 = vld [vmem:[#allocation9 + $0x5e0] sm:$0xf]
    %v3180 = vld [vmem:[#allocation9 + $0x5e4] sm:$0xf]
    %v3181 = vld [vmem:[#allocation9 + $0x5e8] sm:$0xf]
    %v3182 = vld [vmem:[#allocation9 + $0x5ec] sm:$0xf]
    %v3183 = vld [vmem:[#allocation9 + $0x5f0] sm:$0xf]
    %v3184 = vld [vmem:[#allocation9 + $0x5f4] sm:$0xf]
    %v3185 = vld [vmem:[#allocation9 + $0x5f8] sm:$0xf]
    %v3186 = vld [vmem:[#allocation9 + $0x5fc] sm:$0xf]
    %v3187 = vld [vmem:[#allocation9 + $0x600] sm:$0xf]
    %v3188 = vld [vmem:[#allocation9 + $0x604] sm:$0xf]
    %v3189 = vld [vmem:[#allocation9 + $0x608] sm:$0xf]
    %v3190 = vld [vmem:[#allocation9 + $0x60c] sm:$0xf]
    %v3191 = vld [vmem:[#allocation9 + $0x610] sm:$0xf]
    %v3192 = vld [vmem:[#allocation9 + $0x614] sm:$0xf]
    %v3193 = vld [vmem:[#allocation9 + $0x618] sm:$0xf]
    %v3194 = vld [vmem:[#allocation9 + $0x61c] sm:$0xf]
    %v3195 = vld [vmem:[#allocation9 + $0x620] sm:$0xf]
    %v3196 = vld [vmem:[#allocation9 + $0x624] sm:$0xf]
    %v3197 = vld [vmem:[#allocation9 + $0x628] sm:$0xf]
    %v3198 = vld [vmem:[#allocation9 + $0x62c] sm:$0xf]
    %v3199 = vld [vmem:[#allocation9 + $0x630] sm:$0xf]
    %v3200 = vld [vmem:[#allocation9 + $0x634] sm:$0xf]
    %v3201 = vld [vmem:[#allocation9 + $0x638] sm:$0xf]
    %v3202 = vld [vmem:[#allocation9 + $0x63c] sm:$0xf]
    %v3203 = vld [vmem:[#allocation9 + $0x640] sm:$0xf]
    %v3204 = vld [vmem:[#allocation9 + $0x644] sm:$0xf]
    %v3205 = vld [vmem:[#allocation9 + $0x648] sm:$0xf]
    %v3206 = vld [vmem:[#allocation9 + $0x64c] sm:$0xf]
    %v3207 = vld [vmem:[#allocation9 + $0x650] sm:$0xf]
    %v3208 = vld [vmem:[#allocation9 + $0x654] sm:$0xf]
    %v3209 = vld [vmem:[#allocation9 + $0x658] sm:$0xf]
    %v3210 = vld [vmem:[#allocation9 + $0x65c] sm:$0xf]
    %v3211 = vld [vmem:[#allocation9 + $0x660] sm:$0xf]
    %v3212 = vld [vmem:[#allocation9 + $0x664] sm:$0xf]
    %v3213 = vld [vmem:[#allocation9 + $0x668] sm:$0xf]
    %v3214 = vld [vmem:[#allocation9 + $0x66c] sm:$0xf]
    %v3215 = vld [vmem:[#allocation9 + $0x670] sm:$0xf]
    %v3216 = vld [vmem:[#allocation9 + $0x674] sm:$0xf]
    %v3217 = vld [vmem:[#allocation9 + $0x678] sm:$0xf]
    %v3218 = vld [vmem:[#allocation9 + $0x67c] sm:$0xf]
    %v3219 = vld [vmem:[#allocation9 + $0x680] sm:$0xf]
    %v3220 = vld [vmem:[#allocation9 + $0x684] sm:$0xf]
    %v3221 = vld [vmem:[#allocation9 + $0x688] sm:$0xf]
    %v3222 = vld [vmem:[#allocation9 + $0x68c] sm:$0xf]
    %v3223 = vld [vmem:[#allocation9 + $0x690] sm:$0xf]
    %v3224 = vld [vmem:[#allocation9 + $0x694] sm:$0xf]
    %v3225 = vld [vmem:[#allocation9 + $0x698] sm:$0xf]
    %v3226 = vld [vmem:[#allocation9 + $0x69c] sm:$0xf]
    %v3227 = vld [vmem:[#allocation9 + $0x6a0] sm:$0xf]
    %v3228 = vld [vmem:[#allocation9 + $0x6a4] sm:$0xf]
    %v3229 = vld [vmem:[#allocation9 + $0x6a8] sm:$0xf]
    %v3230 = vld [vmem:[#allocation9 + $0x6ac] sm:$0xf]
    %v3231 = vld [vmem:[#allocation9 + $0x6b0] sm:$0xf]
    %v3232 = vld [vmem:[#allocation9 + $0x6b4] sm:$0xf]
    %v3233 = vld [vmem:[#allocation9 + $0x6b8] sm:$0xf]
    %v3234 = vld [vmem:[#allocation9 + $0x6bc] sm:$0xf]
    %v3235 = vld [vmem:[#allocation9 + $0x6c0] sm:$0xf]
    %v3236 = vld [vmem:[#allocation9 + $0x6c4] sm:$0xf]
    %v3237 = vld [vmem:[#allocation9 + $0x6c8] sm:$0xf]
    %v3238 = vld [vmem:[#allocation9 + $0x6cc] sm:$0xf]
    %v3239 = vld [vmem:[#allocation9 + $0x6d0] sm:$0xf]
    %v3240 = vld [vmem:[#allocation9 + $0x6d4] sm:$0xf]
    %v3241 = vld [vmem:[#allocation9 + $0x6d8] sm:$0xf]
    %v3242 = vld [vmem:[#allocation9 + $0x6dc] sm:$0xf]
    %v3243 = vld [vmem:[#allocation9 + $0x6e0] sm:$0xf]
    %v3244 = vld [vmem:[#allocation9 + $0x6e4] sm:$0xf]
    %v3245 = vld [vmem:[#allocation9 + $0x6e8] sm:$0xf]
    %v3246 = vld [vmem:[#allocation9 + $0x6ec] sm:$0xf]
    %v3247 = vld [vmem:[#allocation9 + $0x6f0] sm:$0xf]
    %v3248 = vld [vmem:[#allocation9 + $0x6f4] sm:$0xf]
    %v3249 = vld [vmem:[#allocation9 + $0x6f8] sm:$0xf]
    %v3250 = vld [vmem:[#allocation9 + $0x6fc] sm:$0xf]
    %v3251 = vld [vmem:[#allocation9 + $0x700] sm:$0xf]
    %v3252 = vld [vmem:[#allocation9 + $0x704] sm:$0xf]
    %v3253 = vld [vmem:[#allocation9 + $0x708] sm:$0xf]
    %v3254 = vld [vmem:[#allocation9 + $0x70c] sm:$0xf]
    %v3255 = vld [vmem:[#allocation9 + $0x710] sm:$0xf]
    %v3256 = vld [vmem:[#allocation9 + $0x714] sm:$0xf]
    %v3257 = vld [vmem:[#allocation9 + $0x718] sm:$0xf]
    %v3258 = vld [vmem:[#allocation9 + $0x71c] sm:$0xf]
    %v3259 = vld [vmem:[#allocation9 + $0x720] sm:$0xf]
    %v3260 = vld [vmem:[#allocation9 + $0x724] sm:$0xf]
    %v3261 = vld [vmem:[#allocation9 + $0x728] sm:$0xf]
    %v3262 = vld [vmem:[#allocation9 + $0x72c] sm:$0xf]
    %v3263 = vld [vmem:[#allocation9 + $0x730] sm:$0xf]
    %v3264 = vld [vmem:[#allocation9 + $0x734] sm:$0xf]
    %v3265 = vld [vmem:[#allocation9 + $0x738] sm:$0xf]
    %v3266 = vld [vmem:[#allocation9 + $0x73c] sm:$0xf]
    %v3267 = vld [vmem:[#allocation9 + $0x740] sm:$0xf]
    %v3268 = vld [vmem:[#allocation9 + $0x744] sm:$0xf]
    %v3269 = vld [vmem:[#allocation9 + $0x748] sm:$0xf]
    %v3270 = vld [vmem:[#allocation9 + $0x74c] sm:$0xf]
    %v3271 = vld [vmem:[#allocation9 + $0x750] sm:$0xf]
    %v3272 = vld [vmem:[#allocation9 + $0x754] sm:$0xf]
    %v3273 = vld [vmem:[#allocation9 + $0x758] sm:$0xf]
    %v3274 = vld [vmem:[#allocation9 + $0x75c] sm:$0xf]
    %v3275 = vld [vmem:[#allocation9 + $0x760] sm:$0xf]
    %v3276 = vld [vmem:[#allocation9 + $0x764] sm:$0xf]
    %v3277 = vld [vmem:[#allocation9 + $0x768] sm:$0xf]
    %v3278 = vld [vmem:[#allocation9 + $0x76c] sm:$0xf]
    %v3279 = vld [vmem:[#allocation9 + $0x770] sm:$0xf]
    %v3280 = vld [vmem:[#allocation9 + $0x774] sm:$0xf]
    %v3281 = vld [vmem:[#allocation9 + $0x778] sm:$0xf]
    %v3282 = vld [vmem:[#allocation9 + $0x77c] sm:$0xf]
    %v3283 = vld [vmem:[#allocation9 + $0x780] sm:$0xf]
    %v3284 = vld [vmem:[#allocation9 + $0x784] sm:$0xf]
    %v3285 = vld [vmem:[#allocation9 + $0x788] sm:$0xf]
    %v3286 = vld [vmem:[#allocation9 + $0x78c] sm:$0xf]
    %v3287 = vld [vmem:[#allocation9 + $0x790] sm:$0xf]
    %v3288 = vld [vmem:[#allocation9 + $0x794] sm:$0xf]
    %v3289 = vld [vmem:[#allocation9 + $0x798] sm:$0xf]
    %v3290 = vld [vmem:[#allocation9 + $0x79c] sm:$0xf]
    %v3291 = vld [vmem:[#allocation9 + $0x7a0] sm:$0xf]
    %v3292 = vld [vmem:[#allocation9 + $0x7a4] sm:$0xf]
    %v3293 = vld [vmem:[#allocation9 + $0x7a8] sm:$0xf]
    %v3294 = vld [vmem:[#allocation9 + $0x7ac] sm:$0xf]
    %v3295 = vld [vmem:[#allocation9 + $0x7b0] sm:$0xf]
    %v3296 = vld [vmem:[#allocation9 + $0x7b4] sm:$0xf]
    %v3297 = vld [vmem:[#allocation9 + $0x7b8] sm:$0xf]
    %v3298 = vld [vmem:[#allocation9 + $0x7bc] sm:$0xf]
    %v3299 = vld [vmem:[#allocation9 + $0x7c0] sm:$0xf]
    %v3300 = vld [vmem:[#allocation9 + $0x7c4] sm:$0xf]
    %v3301 = vld [vmem:[#allocation9 + $0x7c8] sm:$0xf]
    %v3302 = vld [vmem:[#allocation9 + $0x7cc] sm:$0xf]
    %v3303 = vld [vmem:[#allocation9 + $0x7d0] sm:$0xf]
    %v3304 = vld [vmem:[#allocation9 + $0x7d4] sm:$0xf]
    %v3305 = vld [vmem:[#allocation9 + $0x7d8] sm:$0xf]
    %v3306 = vld [vmem:[#allocation9 + $0x7dc] sm:$0xf]
    %v3307 = vld [vmem:[#allocation9 + $0x7e0] sm:$0xf]
    %v3308 = vld [vmem:[#allocation9 + $0x7e4] sm:$0xf]
    %v3309 = vld [vmem:[#allocation9 + $0x7e8] sm:$0xf]
    %v3310 = vld [vmem:[#allocation9 + $0x7ec] sm:$0xf]
    %v3311 = vld [vmem:[#allocation9 + $0x7f0] sm:$0xf]
    %v3312 = vld [vmem:[#allocation9 + $0x7f4] sm:$0xf]
    %v3313 = vld [vmem:[#allocation9 + $0x7f8] sm:$0xf]
    %v3314 = vld [vmem:[#allocation9 + $0x7fc] sm:$0xf]
    %v3315 = vld [vmem:[#allocation9 + $0x800] sm:$0xf]
    %v3316 = vld [vmem:[#allocation9 + $0x804] sm:$0xf]
    %v3317 = vld [vmem:[#allocation9 + $0x808] sm:$0xf]
    %v3318 = vld [vmem:[#allocation9 + $0x80c] sm:$0xf]
    %v3319 = vld [vmem:[#allocation9 + $0x810] sm:$0xf]
    %v3320 = vld [vmem:[#allocation9 + $0x814] sm:$0xf]
    %v3321 = vld [vmem:[#allocation9 + $0x818] sm:$0xf]
    %v3322 = vld [vmem:[#allocation9 + $0x81c] sm:$0xf]
    %v3323 = vld [vmem:[#allocation9 + $0x820] sm:$0xf]
    %v3324 = vld [vmem:[#allocation9 + $0x824] sm:$0xf]
    %v3325 = vld [vmem:[#allocation9 + $0x828] sm:$0xf]
    %v3326 = vld [vmem:[#allocation9 + $0x82c] sm:$0xf]
    %v3327 = vld [vmem:[#allocation9 + $0x830] sm:$0xf]
    %v3328 = vld [vmem:[#allocation9 + $0x834] sm:$0xf]
    %v3329 = vld [vmem:[#allocation9 + $0x838] sm:$0xf]
    %v3330 = vld [vmem:[#allocation9 + $0x83c] sm:$0xf]
    %v3331 = vld [vmem:[#allocation9 + $0x840] sm:$0xf]
    %v3332 = vld [vmem:[#allocation9 + $0x844] sm:$0xf]
    %v3333 = vld [vmem:[#allocation9 + $0x848] sm:$0xf]
    %v3334 = vld [vmem:[#allocation9 + $0x84c] sm:$0xf]
    %v3335 = vld [vmem:[#allocation9 + $0x850] sm:$0xf]
    %v3336 = vld [vmem:[#allocation9 + $0x854] sm:$0xf]
    %v3337 = vld [vmem:[#allocation9 + $0x858] sm:$0xf]
    %v3338 = vld [vmem:[#allocation9 + $0x85c] sm:$0xf]
    %v3339 = vld [vmem:[#allocation9 + $0x860] sm:$0xf]
    %v3340 = vld [vmem:[#allocation9 + $0x864] sm:$0xf]
    %v3341 = vld [vmem:[#allocation9 + $0x868] sm:$0xf]
    %v3342 = vld [vmem:[#allocation9 + $0x86c] sm:$0xf]
    %v3343 = vld [vmem:[#allocation9 + $0x870] sm:$0xf]
    %v3344 = vld [vmem:[#allocation9 + $0x874] sm:$0xf]
    %v3345 = vld [vmem:[#allocation9 + $0x878] sm:$0xf]
    %v3346 = vld [vmem:[#allocation9 + $0x87c] sm:$0xf]
    %v3347 = vld [vmem:[#allocation9 + $0x880] sm:$0xf]
    %v3348 = vld [vmem:[#allocation9 + $0x884] sm:$0xf]
    %v3349 = vld [vmem:[#allocation9 + $0x888] sm:$0xf]
    %v3350 = vld [vmem:[#allocation9 + $0x88c] sm:$0xf]
    %v3351 = vld [vmem:[#allocation9 + $0x890] sm:$0xf]
    %v3352 = vld [vmem:[#allocation9 + $0x894] sm:$0xf]
    %v3353 = vld [vmem:[#allocation9 + $0x898] sm:$0xf]
    %v3354 = vld [vmem:[#allocation9 + $0x89c] sm:$0xf]
    %v3355 = vld [vmem:[#allocation9 + $0x8a0] sm:$0xf]
    %v3356 = vld [vmem:[#allocation9 + $0x8a4] sm:$0xf]
    %v3357 = vld [vmem:[#allocation9 + $0x8a8] sm:$0xf]
    %v3358 = vld [vmem:[#allocation9 + $0x8ac] sm:$0xf]
    %v3359 = vld [vmem:[#allocation9 + $0x8b0] sm:$0xf]
    %v3360 = vld [vmem:[#allocation9 + $0x8b4] sm:$0xf]
    %v3361 = vld [vmem:[#allocation9 + $0x8b8] sm:$0xf]
    %v3362 = vld [vmem:[#allocation9 + $0x8bc] sm:$0xf]
    %v3363 = vld [vmem:[#allocation9 + $0x8c0] sm:$0xf]
    %v3364 = vld [vmem:[#allocation9 + $0x8c4] sm:$0xf]
    %v3365 = vld [vmem:[#allocation9 + $0x8c8] sm:$0xf]
    %v3366 = vld [vmem:[#allocation9 + $0x8cc] sm:$0xf]
    %v3367 = vld [vmem:[#allocation9 + $0x8d0] sm:$0xf]
    %v3368 = vld [vmem:[#allocation9 + $0x8d4] sm:$0xf]
    %v3369 = vld [vmem:[#allocation9 + $0x8d8] sm:$0xf]
    %v3370 = vld [vmem:[#allocation9 + $0x8dc] sm:$0xf]
    %v3371 = vld [vmem:[#allocation9 + $0x8e0] sm:$0xf]
    %v3372 = vld [vmem:[#allocation9 + $0x8e4] sm:$0xf]
    %v3373 = vld [vmem:[#allocation9 + $0x8e8] sm:$0xf]
    %v3374 = vld [vmem:[#allocation9 + $0x8ec] sm:$0xf]
    %v3375 = vld [vmem:[#allocation9 + $0x8f0] sm:$0xf]
    %v3376 = vld [vmem:[#allocation9 + $0x8f4] sm:$0xf]
    %v3377 = vld [vmem:[#allocation9 + $0x8f8] sm:$0xf]
    %v3378 = vld [vmem:[#allocation9 + $0x8fc] sm:$0xf]
    %v3379 = vld [vmem:[#allocation9 + $0x900] sm:$0xf]
    %v3380 = vld [vmem:[#allocation9 + $0x904] sm:$0xf]
    %v3381 = vld [vmem:[#allocation9 + $0x908] sm:$0xf]
    %v3382 = vld [vmem:[#allocation9 + $0x90c] sm:$0xf]
    %v3383 = vld [vmem:[#allocation9 + $0x910] sm:$0xf]
    %v3384 = vld [vmem:[#allocation9 + $0x914] sm:$0xf]
    %v3385 = vld [vmem:[#allocation9 + $0x918] sm:$0xf]
    %v3386 = vld [vmem:[#allocation9 + $0x91c] sm:$0xf]
    %v3387 = vld [vmem:[#allocation9 + $0x920] sm:$0xf]
    %v3388 = vld [vmem:[#allocation9 + $0x924] sm:$0xf]
    %v3389 = vld [vmem:[#allocation9 + $0x928] sm:$0xf]
    %v3390 = vld [vmem:[#allocation9 + $0x92c] sm:$0xf]
    %v3391 = vld [vmem:[#allocation9 + $0x930] sm:$0xf]
    %v3392 = vld [vmem:[#allocation9 + $0x934] sm:$0xf]
    %v3393 = vld [vmem:[#allocation9 + $0x938] sm:$0xf]
    %v3394 = vld [vmem:[#allocation9 + $0x93c] sm:$0xf]
    %v3395 = vld [vmem:[#allocation9 + $0x940] sm:$0xf]
    %v3396 = vld [vmem:[#allocation9 + $0x944] sm:$0xf]
    %v3397 = vld [vmem:[#allocation9 + $0x948] sm:$0xf]
    %v3398 = vld [vmem:[#allocation9 + $0x94c] sm:$0xf]
    %v3399 = vld [vmem:[#allocation9 + $0x950] sm:$0xf]
    %v3400 = vld [vmem:[#allocation9 + $0x954] sm:$0xf]
    %v3401 = vld [vmem:[#allocation9 + $0x958] sm:$0xf]
    %v3402 = vld [vmem:[#allocation9 + $0x95c] sm:$0xf]
    %v3403 = vld [vmem:[#allocation9 + $0x960] sm:$0xf]
    %v3404 = vld [vmem:[#allocation9 + $0x964] sm:$0xf]
    %v3405 = vld [vmem:[#allocation9 + $0x968] sm:$0xf]
    %v3406 = vld [vmem:[#allocation9 + $0x96c] sm:$0xf]
    %v3407 = vld [vmem:[#allocation9 + $0x970] sm:$0xf]
    %v3408 = vld [vmem:[#allocation9 + $0x974] sm:$0xf]
    %v3409 = vld [vmem:[#allocation9 + $0x978] sm:$0xf]
    %v3410 = vld [vmem:[#allocation9 + $0x97c] sm:$0xf]
    %v3411 = vld [vmem:[#allocation9 + $0x980] sm:$0xf]
    %v3412 = vld [vmem:[#allocation9 + $0x984] sm:$0xf]
    %v3413 = vld [vmem:[#allocation9 + $0x988] sm:$0xf]
    %v3414 = vld [vmem:[#allocation9 + $0x98c] sm:$0xf]
    %v3415 = vld [vmem:[#allocation9 + $0x990] sm:$0xf]
    %v3416 = vld [vmem:[#allocation9 + $0x994] sm:$0xf]
    %v3417 = vld [vmem:[#allocation9 + $0x998] sm:$0xf]
    %v3418 = vld [vmem:[#allocation9 + $0x99c] sm:$0xf]
    %v3419 = vld [vmem:[#allocation9 + $0x9a0] sm:$0xf]
    %v3420 = vld [vmem:[#allocation9 + $0x9a4] sm:$0xf]
    %v3421 = vld [vmem:[#allocation9 + $0x9a8] sm:$0xf]
    %v3422 = vld [vmem:[#allocation9 + $0x9ac] sm:$0xf]
    %v3423 = vld [vmem:[#allocation9 + $0x9b0] sm:$0xf]
    %v3424 = vld [vmem:[#allocation9 + $0x9b4] sm:$0xf]
    %v3425 = vld [vmem:[#allocation9 + $0x9b8] sm:$0xf]
    %v3426 = vld [vmem:[#allocation9 + $0x9bc] sm:$0xf]
    %v3427 = vld [vmem:[#allocation9 + $0x9c0] sm:$0xf]
    %v3428 = vld [vmem:[#allocation9 + $0x9c4] sm:$0xf]
    %v3429 = vld [vmem:[#allocation9 + $0x9c8] sm:$0xf]
    %v3430 = vld [vmem:[#allocation9 + $0x9cc] sm:$0xf]
    %v3431 = vld [vmem:[#allocation9 + $0x9d0] sm:$0xf]
    %v3432 = vld [vmem:[#allocation9 + $0x9d4] sm:$0xf]
    %v3433 = vld [vmem:[#allocation9 + $0x9d8] sm:$0xf]
    %v3434 = vld [vmem:[#allocation9 + $0x9dc] sm:$0xf]
    %v3435 = vld [vmem:[#allocation9 + $0x9e0] sm:$0xf]
    %v3436 = vld [vmem:[#allocation9 + $0x9e4] sm:$0xf]
    %v3437 = vld [vmem:[#allocation9 + $0x9e8] sm:$0xf]
    %v3438 = vld [vmem:[#allocation9 + $0x9ec] sm:$0xf]
    %v3439 = vld [vmem:[#allocation9 + $0x9f0] sm:$0xf]
    %v3440 = vld [vmem:[#allocation9 + $0x9f4] sm:$0xf]
    %v3441 = vld [vmem:[#allocation9 + $0x9f8] sm:$0xf]
    %v3442 = vld [vmem:[#allocation9 + $0x9fc] sm:$0xf]
    %v3443 = vld [vmem:[#allocation9 + $0xa00] sm:$0xf]
    %v3444 = vld [vmem:[#allocation9 + $0xa04] sm:$0xf]
    %v3445 = vld [vmem:[#allocation9 + $0xa08] sm:$0xf]
    %v3446 = vld [vmem:[#allocation9 + $0xa0c] sm:$0xf]
    %v3447 = vld [vmem:[#allocation9 + $0xa10] sm:$0xf]
    %v3448 = vld [vmem:[#allocation9 + $0xa14] sm:$0xf]
    %v3449 = vld [vmem:[#allocation9 + $0xa18] sm:$0xf]
    %v3450 = vld [vmem:[#allocation9 + $0xa1c] sm:$0xf]
    %v3451 = vld [vmem:[#allocation9 + $0xa20] sm:$0xf]
    %v3452 = vld [vmem:[#allocation9 + $0xa24] sm:$0xf]
    %v3453 = vld [vmem:[#allocation9 + $0xa28] sm:$0xf]
    %v3454 = vld [vmem:[#allocation9 + $0xa2c] sm:$0xf]
    %v3455 = vld [vmem:[#allocation9 + $0xa30] sm:$0xf]
    %v3456 = vld [vmem:[#allocation9 + $0xa34] sm:$0xf]
    %v3457 = vld [vmem:[#allocation9 + $0xa38] sm:$0xf]
    %v3458 = vld [vmem:[#allocation9 + $0xa3c] sm:$0xf]
    %v3459 = vld [vmem:[#allocation9 + $0xa40] sm:$0xf]
    %v3460 = vld [vmem:[#allocation9 + $0xa44] sm:$0xf]
    %v3461 = vld [vmem:[#allocation9 + $0xa48] sm:$0xf]
    %v3462 = vld [vmem:[#allocation9 + $0xa4c] sm:$0xf]
    %v3463 = vld [vmem:[#allocation9 + $0xa50] sm:$0xf]
    %v3464 = vld [vmem:[#allocation9 + $0xa54] sm:$0xf]
    %v3465 = vld [vmem:[#allocation9 + $0xa58] sm:$0xf]
    %v3466 = vld [vmem:[#allocation9 + $0xa5c] sm:$0xf]
    %v3467 = vld [vmem:[#allocation9 + $0xa60] sm:$0xf]
    %v3468 = vld [vmem:[#allocation9 + $0xa64] sm:$0xf]
    %v3469 = vld [vmem:[#allocation9 + $0xa68] sm:$0xf]
    %v3470 = vld [vmem:[#allocation9 + $0xa6c] sm:$0xf]
    %v3471 = vld [vmem:[#allocation9 + $0xa70] sm:$0xf]
    %v3472 = vld [vmem:[#allocation9 + $0xa74] sm:$0xf]
    %v3473 = vld [vmem:[#allocation9 + $0xa78] sm:$0xf]
    %v3474 = vld [vmem:[#allocation9 + $0xa7c] sm:$0xf]
    %v3475 = vld [vmem:[#allocation9 + $0xa80] sm:$0xf]
    %v3476 = vld [vmem:[#allocation9 + $0xa84] sm:$0xf]
    %v3477 = vld [vmem:[#allocation9 + $0xa88] sm:$0xf]
    %v3478 = vld [vmem:[#allocation9 + $0xa8c] sm:$0xf]
    %v3479 = vld [vmem:[#allocation9 + $0xa90] sm:$0xf]
    %v3480 = vld [vmem:[#allocation9 + $0xa94] sm:$0xf]
    %v3481 = vld [vmem:[#allocation9 + $0xa98] sm:$0xf]
    %v3482 = vld [vmem:[#allocation9 + $0xa9c] sm:$0xf]
    %v3483 = vld [vmem:[#allocation9 + $0xaa0] sm:$0xf]
    %v3484 = vld [vmem:[#allocation9 + $0xaa4] sm:$0xf]
    %v3485 = vld [vmem:[#allocation9 + $0xaa8] sm:$0xf]
    %v3486 = vld [vmem:[#allocation9 + $0xaac] sm:$0xf]
    %v3487 = vld [vmem:[#allocation9 + $0xab0] sm:$0xf]
    %v3488 = vld [vmem:[#allocation9 + $0xab4] sm:$0xf]
    %v3489 = vld [vmem:[#allocation9 + $0xab8] sm:$0xf]
    %v3490 = vld [vmem:[#allocation9 + $0xabc] sm:$0xf]
    %v3491 = vld [vmem:[#allocation9 + $0xac0] sm:$0xf]
    %v3492 = vld [vmem:[#allocation9 + $0xac4] sm:$0xf]
    %v3493 = vld [vmem:[#allocation9 + $0xac8] sm:$0xf]
    %v3494 = vld [vmem:[#allocation9 + $0xacc] sm:$0xf]
    %v3495 = vld [vmem:[#allocation9 + $0xad0] sm:$0xf]
    %v3496 = vld [vmem:[#allocation9 + $0xad4] sm:$0xf]
    %v3497 = vld [vmem:[#allocation9 + $0xad8] sm:$0xf]
    %v3498 = vld [vmem:[#allocation9 + $0xadc] sm:$0xf]
    %v3499 = vld [vmem:[#allocation9 + $0xae0] sm:$0xf]
    %v3500 = vld [vmem:[#allocation9 + $0xae4] sm:$0xf]
    %v3501 = vld [vmem:[#allocation9 + $0xae8] sm:$0xf]
    %v3502 = vld [vmem:[#allocation9 + $0xaec] sm:$0xf]
    %v3503 = vld [vmem:[#allocation9 + $0xaf0] sm:$0xf]
    %v3504 = vld [vmem:[#allocation9 + $0xaf4] sm:$0xf]
    %v3505 = vld [vmem:[#allocation9 + $0xaf8] sm:$0xf]
    %v3506 = vld [vmem:[#allocation9 + $0xafc] sm:$0xf]
    %v3507 = vld [vmem:[#allocation9 + $0xb00] sm:$0xf]
    %v3508 = vld [vmem:[#allocation9 + $0xb04] sm:$0xf]
    %v3509 = vld [vmem:[#allocation9 + $0xb08] sm:$0xf]
    %v3510 = vld [vmem:[#allocation9 + $0xb0c] sm:$0xf]
    %v3511 = vld [vmem:[#allocation9 + $0xb10] sm:$0xf]
    %v3512 = vld [vmem:[#allocation9 + $0xb14] sm:$0xf]
    %v3513 = vld [vmem:[#allocation9 + $0xb18] sm:$0xf]
    %v3514 = vld [vmem:[#allocation9 + $0xb1c] sm:$0xf]
    %v3515 = vld [vmem:[#allocation9 + $0xb20] sm:$0xf]
    %v3516 = vld [vmem:[#allocation9 + $0xb24] sm:$0xf]
    %v3517 = vld [vmem:[#allocation9 + $0xb28] sm:$0xf]
    %v3518 = vld [vmem:[#allocation9 + $0xb2c] sm:$0xf]
    %v3519 = vld [vmem:[#allocation9 + $0xb30] sm:$0xf]
    %v3520 = vld [vmem:[#allocation9 + $0xb34] sm:$0xf]
    %v3521 = vld [vmem:[#allocation9 + $0xb38] sm:$0xf]
    %v3522 = vld [vmem:[#allocation9 + $0xb3c] sm:$0xf]
    %v3523 = vld [vmem:[#allocation9 + $0xb40] sm:$0xf]
    %v3524 = vld [vmem:[#allocation9 + $0xb44] sm:$0xf]
    %v3525 = vld [vmem:[#allocation9 + $0xb48] sm:$0xf]
    %v3526 = vld [vmem:[#allocation9 + $0xb4c] sm:$0xf]
    %v3527 = vld [vmem:[#allocation9 + $0xb50] sm:$0xf]
    %v3528 = vld [vmem:[#allocation9 + $0xb54] sm:$0xf]
    %v3529 = vld [vmem:[#allocation9 + $0xb58] sm:$0xf]
    %v3530 = vld [vmem:[#allocation9 + $0xb5c] sm:$0xf]
    %v3531 = vld [vmem:[#allocation9 + $0xb60] sm:$0xf]
    %v3532 = vld [vmem:[#allocation9 + $0xb64] sm:$0xf]
    %v3533 = vld [vmem:[#allocation9 + $0xb68] sm:$0xf]
    %v3534 = vld [vmem:[#allocation9 + $0xb6c] sm:$0xf]
    %v3535 = vld [vmem:[#allocation9 + $0xb70] sm:$0xf]
    %v3536 = vld [vmem:[#allocation9 + $0xb74] sm:$0xf]
    %v3537 = vld [vmem:[#allocation9 + $0xb78] sm:$0xf]
    %v3538 = vld [vmem:[#allocation9 + $0xb7c] sm:$0xf]
    %v3539 = vld [vmem:[#allocation9 + $0xb80] sm:$0xf]
    %v3540 = vld [vmem:[#allocation9 + $0xb84] sm:$0xf]
    %v3541 = vld [vmem:[#allocation9 + $0xb88] sm:$0xf]
    %v3542 = vld [vmem:[#allocation9 + $0xb8c] sm:$0xf]
    %v3543 = vld [vmem:[#allocation9 + $0xb90] sm:$0xf]
    %v3544 = vld [vmem:[#allocation9 + $0xb94] sm:$0xf]
    %v3545 = vld [vmem:[#allocation9 + $0xb98] sm:$0xf]
    %v3546 = vld [vmem:[#allocation9 + $0xb9c] sm:$0xf]
    %v3547 = vld [vmem:[#allocation9 + $0xba0] sm:$0xf]
    %v3548 = vld [vmem:[#allocation9 + $0xba4] sm:$0xf]
    %v3549 = vld [vmem:[#allocation9 + $0xba8] sm:$0xf]
    %v3550 = vld [vmem:[#allocation9 + $0xbac] sm:$0xf]
    %v3551 = vld [vmem:[#allocation9 + $0xbb0] sm:$0xf]
    %v3552 = vld [vmem:[#allocation9 + $0xbb4] sm:$0xf]
    %v3553 = vld [vmem:[#allocation9 + $0xbb8] sm:$0xf]
    %v3554 = vld [vmem:[#allocation9 + $0xbbc] sm:$0xf]
    %v3555 = vld [vmem:[#allocation9 + $0xbc0] sm:$0xf]
    %v3556 = vld [vmem:[#allocation9 + $0xbc4] sm:$0xf]
    %v3557 = vld [vmem:[#allocation9 + $0xbc8] sm:$0xf]
    %v3558 = vld [vmem:[#allocation9 + $0xbcc] sm:$0xf]
    %v3559 = vld [vmem:[#allocation9 + $0xbd0] sm:$0xf]
    %v3560 = vld [vmem:[#allocation9 + $0xbd4] sm:$0xf]
    %v3561 = vld [vmem:[#allocation9 + $0xbd8] sm:$0xf]
    %v3562 = vld [vmem:[#allocation9 + $0xbdc] sm:$0xf]
    %v3563 = vld [vmem:[#allocation9 + $0xbe0] sm:$0xf]
    %v3564 = vld [vmem:[#allocation9 + $0xbe4] sm:$0xf]
    %v3565 = vld [vmem:[#allocation9 + $0xbe8] sm:$0xf]
    %v3566 = vld [vmem:[#allocation9 + $0xbec] sm:$0xf]
    %v3567 = vld [vmem:[#allocation9 + $0xbf0] sm:$0xf]
    %v3568 = vld [vmem:[#allocation9 + $0xbf4] sm:$0xf]
    %v3569 = vld [vmem:[#allocation9 + $0xbf8] sm:$0xf]
    %v3570 = vld [vmem:[#allocation9 + $0xbfc] sm:$0xf]
    %v3571 = vld [vmem:[#allocation9 + $0xc00] sm:$0xf]
    %v3572 = vld [vmem:[#allocation9 + $0xc04] sm:$0xf]
    %v3573 = vld [vmem:[#allocation9 + $0xc08] sm:$0xf]
    %v3574 = vld [vmem:[#allocation9 + $0xc0c] sm:$0xf]
    %v3575 = vld [vmem:[#allocation9 + $0xc10] sm:$0xf]
    %v3576 = vld [vmem:[#allocation9 + $0xc14] sm:$0xf]
    %v3577 = vld [vmem:[#allocation9 + $0xc18] sm:$0xf]
    %v3578 = vld [vmem:[#allocation9 + $0xc1c] sm:$0xf]
    %v3579 = vld [vmem:[#allocation9 + $0xc20] sm:$0xf]
    %v3580 = vld [vmem:[#allocation9 + $0xc24] sm:$0xf]
    %v3581 = vld [vmem:[#allocation9 + $0xc28] sm:$0xf]
    %v3582 = vld [vmem:[#allocation9 + $0xc2c] sm:$0xf]
    %v3583 = vld [vmem:[#allocation9 + $0xc30] sm:$0xf]
    %v3584 = vld [vmem:[#allocation9 + $0xc34] sm:$0xf]
    %v3585 = vld [vmem:[#allocation9 + $0xc38] sm:$0xf]
    %v3586 = vld [vmem:[#allocation9 + $0xc3c] sm:$0xf]
    %v3587 = vld [vmem:[#allocation9 + $0xc40] sm:$0xf]
    %v3588 = vld [vmem:[#allocation9 + $0xc44] sm:$0xf]
    %v3589 = vld [vmem:[#allocation9 + $0xc48] sm:$0xf]
    %v3590 = vld [vmem:[#allocation9 + $0xc4c] sm:$0xf]
    %v3591 = vld [vmem:[#allocation9 + $0xc50] sm:$0xf]
    %v3592 = vld [vmem:[#allocation9 + $0xc54] sm:$0xf]
    %v3593 = vld [vmem:[#allocation9 + $0xc58] sm:$0xf]
    %v3594 = vld [vmem:[#allocation9 + $0xc5c] sm:$0xf]
    %v3595 = vld [vmem:[#allocation9 + $0xc60] sm:$0xf]
    %v3596 = vld [vmem:[#allocation9 + $0xc64] sm:$0xf]
    %v3597 = vld [vmem:[#allocation9 + $0xc68] sm:$0xf]
    %v3598 = vld [vmem:[#allocation9 + $0xc6c] sm:$0xf]
    %v3599 = vld [vmem:[#allocation9 + $0xc70] sm:$0xf]
    %v3600 = vld [vmem:[#allocation9 + $0xc74] sm:$0xf]
    %v3601 = vld [vmem:[#allocation9 + $0xc78] sm:$0xf]
    %v3602 = vld [vmem:[#allocation9 + $0xc7c] sm:$0xf]
    %v3603 = vld [vmem:[#allocation9 + $0xc80] sm:$0xf]
    %v3604 = vld [vmem:[#allocation9 + $0xc84] sm:$0xf]
    %v3605 = vld [vmem:[#allocation9 + $0xc88] sm:$0xf]
    %v3606 = vld [vmem:[#allocation9 + $0xc8c] sm:$0xf]
    %v3607 = vld [vmem:[#allocation9 + $0xc90] sm:$0xf]
    %v3608 = vld [vmem:[#allocation9 + $0xc94] sm:$0xf]
    %v3609 = vld [vmem:[#allocation9 + $0xc98] sm:$0xf]
    %v3610 = vld [vmem:[#allocation9 + $0xc9c] sm:$0xf]
    %v3611 = vld [vmem:[#allocation9 + $0xca0] sm:$0xf]
    %v3612 = vld [vmem:[#allocation9 + $0xca4] sm:$0xf]
    %v3613 = vld [vmem:[#allocation9 + $0xca8] sm:$0xf]
    %v3614 = vld [vmem:[#allocation9 + $0xcac] sm:$0xf]
    %v3615 = vld [vmem:[#allocation9 + $0xcb0] sm:$0xf]
    %v3616 = vld [vmem:[#allocation9 + $0xcb4] sm:$0xf]
    %v3617 = vld [vmem:[#allocation9 + $0xcb8] sm:$0xf]
    %v3618 = vld [vmem:[#allocation9 + $0xcbc] sm:$0xf]
    %v3619 = vld [vmem:[#allocation9 + $0xcc0] sm:$0xf]
    %v3620 = vld [vmem:[#allocation9 + $0xcc4] sm:$0xf]
    %v3621 = vld [vmem:[#allocation9 + $0xcc8] sm:$0xf]
    %v3622 = vld [vmem:[#allocation9 + $0xccc] sm:$0xf]
    %v3623 = vld [vmem:[#allocation9 + $0xcd0] sm:$0xf]
    %v3624 = vld [vmem:[#allocation9 + $0xcd4] sm:$0xf]
    %v3625 = vld [vmem:[#allocation9 + $0xcd8] sm:$0xf]
    %v3626 = vld [vmem:[#allocation9 + $0xcdc] sm:$0xf]
    %v3627 = vld [vmem:[#allocation9 + $0xce0] sm:$0xf]
    %v3628 = vld [vmem:[#allocation9 + $0xce4] sm:$0xf]
    %v3629 = vld [vmem:[#allocation9 + $0xce8] sm:$0xf]
    %v3630 = vld [vmem:[#allocation9 + $0xcec] sm:$0xf]
    %v3631 = vld [vmem:[#allocation9 + $0xcf0] sm:$0xf]
    %v3632 = vld [vmem:[#allocation9 + $0xcf4] sm:$0xf]
    %v3633 = vld [vmem:[#allocation9 + $0xcf8] sm:$0xf]
    %v3634 = vld [vmem:[#allocation9 + $0xcfc] sm:$0xf]
    %v3635 = vld [vmem:[#allocation9 + $0xd00] sm:$0xf]
    %v3636 = vld [vmem:[#allocation9 + $0xd04] sm:$0xf]
    %v3637 = vld [vmem:[#allocation9 + $0xd08] sm:$0xf]
    %v3638 = vld [vmem:[#allocation9 + $0xd0c] sm:$0xf]
    %v3639 = vld [vmem:[#allocation9 + $0xd10] sm:$0xf]
    %v3640 = vld [vmem:[#allocation9 + $0xd14] sm:$0xf]
    %v3641 = vld [vmem:[#allocation9 + $0xd18] sm:$0xf]
    %v3642 = vld [vmem:[#allocation9 + $0xd1c] sm:$0xf]
    %v3643 = vld [vmem:[#allocation9 + $0xd20] sm:$0xf]
    %v3644 = vld [vmem:[#allocation9 + $0xd24] sm:$0xf]
    %v3645 = vld [vmem:[#allocation9 + $0xd28] sm:$0xf]
    %v3646 = vld [vmem:[#allocation9 + $0xd2c] sm:$0xf]
    %v3647 = vld [vmem:[#allocation9 + $0xd30] sm:$0xf]
    %v3648 = vld [vmem:[#allocation9 + $0xd34] sm:$0xf]
    %v3649 = vld [vmem:[#allocation9 + $0xd38] sm:$0xf]
    %v3650 = vld [vmem:[#allocation9 + $0xd3c] sm:$0xf]
    %v3651 = vld [vmem:[#allocation9 + $0xd40] sm:$0xf]
    %v3652 = vld [vmem:[#allocation9 + $0xd44] sm:$0xf]
    %v3653 = vld [vmem:[#allocation9 + $0xd48] sm:$0xf]
    %v3654 = vld [vmem:[#allocation9 + $0xd4c] sm:$0xf]
    %v3655 = vld [vmem:[#allocation9 + $0xd50] sm:$0xf]
    %v3656 = vld [vmem:[#allocation9 + $0xd54] sm:$0xf]
    %v3657 = vld [vmem:[#allocation9 + $0xd58] sm:$0xf]
    %v3658 = vld [vmem:[#allocation9 + $0xd5c] sm:$0xf]
    %v3659 = vld [vmem:[#allocation9 + $0xd60] sm:$0xf]
    %v3660 = vld [vmem:[#allocation9 + $0xd64] sm:$0xf]
    %v3661 = vld [vmem:[#allocation9 + $0xd68] sm:$0xf]
    %v3662 = vld [vmem:[#allocation9 + $0xd6c] sm:$0xf]
    %v3663 = vld [vmem:[#allocation9 + $0xd70] sm:$0xf]
    %v3664 = vld [vmem:[#allocation9 + $0xd74] sm:$0xf]
    %v3665 = vld [vmem:[#allocation9 + $0xd78] sm:$0xf]
    %v3666 = vld [vmem:[#allocation9 + $0xd7c] sm:$0xf]
    %v3667 = vld [vmem:[#allocation9 + $0xd80] sm:$0xf]
    %v3668 = vld [vmem:[#allocation9 + $0xd84] sm:$0xf]
    %v3669 = vld [vmem:[#allocation9 + $0xd88] sm:$0xf]
    %v3670 = vld [vmem:[#allocation9 + $0xd8c] sm:$0xf]
    %v3671 = vld [vmem:[#allocation9 + $0xd90] sm:$0xf]
    %v3672 = vld [vmem:[#allocation9 + $0xd94] sm:$0xf]
    %v3673 = vld [vmem:[#allocation9 + $0xd98] sm:$0xf]
    %v3674 = vld [vmem:[#allocation9 + $0xd9c] sm:$0xf]
    %v3675 = vld [vmem:[#allocation9 + $0xda0] sm:$0xf]
    %v3676 = vld [vmem:[#allocation9 + $0xda4] sm:$0xf]
    %v3677 = vld [vmem:[#allocation9 + $0xda8] sm:$0xf]
    %v3678 = vld [vmem:[#allocation9 + $0xdac] sm:$0xf]
    %v3679 = vld [vmem:[#allocation9 + $0xdb0] sm:$0xf]
    %v3680 = vld [vmem:[#allocation9 + $0xdb4] sm:$0xf]
    %v3681 = vld [vmem:[#allocation9 + $0xdb8] sm:$0xf]
    %v3682 = vld [vmem:[#allocation9 + $0xdbc] sm:$0xf]
    %v3683 = vld [vmem:[#allocation9 + $0xdc0] sm:$0xf]
    %v3684 = vld [vmem:[#allocation9 + $0xdc4] sm:$0xf]
    %v3685 = vld [vmem:[#allocation9 + $0xdc8] sm:$0xf]
    %v3686 = vld [vmem:[#allocation9 + $0xdcc] sm:$0xf]
    %v3687 = vld [vmem:[#allocation9 + $0xdd0] sm:$0xf]
    %v3688 = vld [vmem:[#allocation9 + $0xdd4] sm:$0xf]
    %v3689 = vld [vmem:[#allocation9 + $0xdd8] sm:$0xf]
    %v3690 = vld [vmem:[#allocation9 + $0xddc] sm:$0xf]
    %v3691 = vld [vmem:[#allocation9 + $0xde0] sm:$0xf]
    %v3692 = vld [vmem:[#allocation9 + $0xde4] sm:$0xf]
    %v3693 = vld [vmem:[#allocation9 + $0xde8] sm:$0xf]
    %v3694 = vld [vmem:[#allocation9 + $0xdec] sm:$0xf]
    %v3695 = vld [vmem:[#allocation9 + $0xdf0] sm:$0xf]
    %v3696 = vld [vmem:[#allocation9 + $0xdf4] sm:$0xf]
    %v3697 = vld [vmem:[#allocation9 + $0xdf8] sm:$0xf]
    %v3698 = vld [vmem:[#allocation9 + $0xdfc] sm:$0xf]
    %v3699 = vld [vmem:[#allocation9 + $0xe00] sm:$0xf]
    %v3700 = vld [vmem:[#allocation9 + $0xe04] sm:$0xf]
    %v3701 = vld [vmem:[#allocation9 + $0xe08] sm:$0xf]
    %v3702 = vld [vmem:[#allocation9 + $0xe0c] sm:$0xf]
    %v3703 = vld [vmem:[#allocation9 + $0xe10] sm:$0xf]
    %v3704 = vld [vmem:[#allocation9 + $0xe14] sm:$0xf]
    %v3705 = vld [vmem:[#allocation9 + $0xe18] sm:$0xf]
    %v3706 = vld [vmem:[#allocation9 + $0xe1c] sm:$0xf]
    %v3707 = vld [vmem:[#allocation9 + $0xe20] sm:$0xf]
    %v3708 = vld [vmem:[#allocation9 + $0xe24] sm:$0xf]
    %v3709 = vld [vmem:[#allocation9 + $0xe28] sm:$0xf]
    %v3710 = vld [vmem:[#allocation9 + $0xe2c] sm:$0xf]
    %v3711 = vld [vmem:[#allocation9 + $0xe30] sm:$0xf]
    %v3712 = vld [vmem:[#allocation9 + $0xe34] sm:$0xf]
    %v3713 = vld [vmem:[#allocation9 + $0xe38] sm:$0xf]
    %v3714 = vld [vmem:[#allocation9 + $0xe3c] sm:$0xf]
    %v3715 = vld [vmem:[#allocation9 + $0xe40] sm:$0xf]
    %v3716 = vld [vmem:[#allocation9 + $0xe44] sm:$0xf]
    %v3717 = vld [vmem:[#allocation9 + $0xe48] sm:$0xf]
    %v3718 = vld [vmem:[#allocation9 + $0xe4c] sm:$0xf]
    %v3719 = vld [vmem:[#allocation9 + $0xe50] sm:$0xf]
    %v3720 = vld [vmem:[#allocation9 + $0xe54] sm:$0xf]
    %v3721 = vld [vmem:[#allocation9 + $0xe58] sm:$0xf]
    %v3722 = vld [vmem:[#allocation9 + $0xe5c] sm:$0xf]
    %v3723 = vld [vmem:[#allocation9 + $0xe60] sm:$0xf]
    %v3724 = vld [vmem:[#allocation9 + $0xe64] sm:$0xf]
    %v3725 = vld [vmem:[#allocation9 + $0xe68] sm:$0xf]
    %v3726 = vld [vmem:[#allocation9 + $0xe6c] sm:$0xf]
    %v3727 = vld [vmem:[#allocation9 + $0xe70] sm:$0xf]
    %v3728 = vld [vmem:[#allocation9 + $0xe74] sm:$0xf]
    %v3729 = vld [vmem:[#allocation9 + $0xe78] sm:$0xf]
    %v3730 = vld [vmem:[#allocation9 + $0xe7c] sm:$0xf]
    %v3731 = vld [vmem:[#allocation9 + $0xe80] sm:$0xf]
    %v3732 = vld [vmem:[#allocation9 + $0xe84] sm:$0xf]
    %v3733 = vld [vmem:[#allocation9 + $0xe88] sm:$0xf]
    %v3734 = vld [vmem:[#allocation9 + $0xe8c] sm:$0xf]
    %v3735 = vld [vmem:[#allocation9 + $0xe90] sm:$0xf]
    %v3736 = vld [vmem:[#allocation9 + $0xe94] sm:$0xf]
    %v3737 = vld [vmem:[#allocation9 + $0xe98] sm:$0xf]
    %v3738 = vld [vmem:[#allocation9 + $0xe9c] sm:$0xf]
    %v3739 = vld [vmem:[#allocation9 + $0xea0] sm:$0xf]
    %v3740 = vld [vmem:[#allocation9 + $0xea4] sm:$0xf]
    %v3741 = vld [vmem:[#allocation9 + $0xea8] sm:$0xf]
    %v3742 = vld [vmem:[#allocation9 + $0xeac] sm:$0xf]
    %v3743 = vld [vmem:[#allocation9 + $0xeb0] sm:$0xf]
    %v3744 = vld [vmem:[#allocation9 + $0xeb4] sm:$0xf]
    %v3745 = vld [vmem:[#allocation9 + $0xeb8] sm:$0xf]
    %v3746 = vld [vmem:[#allocation9 + $0xebc] sm:$0xf]
    %v3747 = vld [vmem:[#allocation9 + $0xec0] sm:$0xf]
    %v3748 = vld [vmem:[#allocation9 + $0xec4] sm:$0xf]
    %v3749 = vld [vmem:[#allocation9 + $0xec8] sm:$0xf]
    %v3750 = vld [vmem:[#allocation9 + $0xecc] sm:$0xf]
    %v3751 = vld [vmem:[#allocation9 + $0xed0] sm:$0xf]
    %v3752 = vld [vmem:[#allocation9 + $0xed4] sm:$0xf]
    %v3753 = vld [vmem:[#allocation9 + $0xed8] sm:$0xf]
    %v3754 = vld [vmem:[#allocation9 + $0xedc] sm:$0xf]
    %v3755 = vld [vmem:[#allocation9 + $0xee0] sm:$0xf]
    %v3756 = vld [vmem:[#allocation9 + $0xee4] sm:$0xf]
    %v3757 = vld [vmem:[#allocation9 + $0xee8] sm:$0xf]
    %v3758 = vld [vmem:[#allocation9 + $0xeec] sm:$0xf]
    %v3759 = vld [vmem:[#allocation9 + $0xef0] sm:$0xf]
    %v3760 = vld [vmem:[#allocation9 + $0xef4] sm:$0xf]
    %v3761 = vld [vmem:[#allocation9 + $0xef8] sm:$0xf]
    %v3762 = vld [vmem:[#allocation9 + $0xefc] sm:$0xf]
    %v3763 = vld [vmem:[#allocation9 + $0xf00] sm:$0xf]
    %v3764 = vld [vmem:[#allocation9 + $0xf04] sm:$0xf]
    %v3765 = vld [vmem:[#allocation9 + $0xf08] sm:$0xf]
    %v3766 = vld [vmem:[#allocation9 + $0xf0c] sm:$0xf]
    %v3767 = vld [vmem:[#allocation9 + $0xf10] sm:$0xf]
    %v3768 = vld [vmem:[#allocation9 + $0xf14] sm:$0xf]
    %v3769 = vld [vmem:[#allocation9 + $0xf18] sm:$0xf]
    %v3770 = vld [vmem:[#allocation9 + $0xf1c] sm:$0xf]
    %v3771 = vld [vmem:[#allocation9 + $0xf20] sm:$0xf]
    %v3772 = vld [vmem:[#allocation9 + $0xf24] sm:$0xf]
    %v3773 = vld [vmem:[#allocation9 + $0xf28] sm:$0xf]
    %v3774 = vld [vmem:[#allocation9 + $0xf2c] sm:$0xf]
    %v3775 = vld [vmem:[#allocation9 + $0xf30] sm:$0xf]
    %v3776 = vld [vmem:[#allocation9 + $0xf34] sm:$0xf]
    %v3777 = vld [vmem:[#allocation9 + $0xf38] sm:$0xf]
    %v3778 = vld [vmem:[#allocation9 + $0xf3c] sm:$0xf]
    %v3779 = vld [vmem:[#allocation9 + $0xf40] sm:$0xf]
    %v3780 = vld [vmem:[#allocation9 + $0xf44] sm:$0xf]
    %v3781 = vld [vmem:[#allocation9 + $0xf48] sm:$0xf]
    %v3782 = vld [vmem:[#allocation9 + $0xf4c] sm:$0xf]
    %v3783 = vld [vmem:[#allocation9 + $0xf50] sm:$0xf]
    %v3784 = vld [vmem:[#allocation9 + $0xf54] sm:$0xf]
    %v3785 = vld [vmem:[#allocation9 + $0xf58] sm:$0xf]
    %v3786 = vld [vmem:[#allocation9 + $0xf5c] sm:$0xf]
    %v3787 = vld [vmem:[#allocation9 + $0xf60] sm:$0xf]
    %v3788 = vld [vmem:[#allocation9 + $0xf64] sm:$0xf]
    %v3789 = vld [vmem:[#allocation9 + $0xf68] sm:$0xf]
    %v3790 = vld [vmem:[#allocation9 + $0xf6c] sm:$0xf]
    %v3791 = vld [vmem:[#allocation9 + $0xf70] sm:$0xf]
    %v3792 = vld [vmem:[#allocation9 + $0xf74] sm:$0xf]
    %v3793 = vld [vmem:[#allocation9 + $0xf78] sm:$0xf]
    %v3794 = vld [vmem:[#allocation9 + $0xf7c] sm:$0xf]
    %v3795 = vld [vmem:[#allocation9 + $0xf80] sm:$0xf]
    %v3796 = vld [vmem:[#allocation9 + $0xf84] sm:$0xf]
    %v3797 = vld [vmem:[#allocation9 + $0xf88] sm:$0xf]
    %v3798 = vld [vmem:[#allocation9 + $0xf8c] sm:$0xf]
    %v3799 = vld [vmem:[#allocation9 + $0xf90] sm:$0xf]
    %v3800 = vld [vmem:[#allocation9 + $0xf94] sm:$0xf]
    %v3801 = vld [vmem:[#allocation9 + $0xf98] sm:$0xf]
    %v3802 = vld [vmem:[#allocation9 + $0xf9c] sm:$0xf]
    %v3803 = vld [vmem:[#allocation9 + $0xfa0] sm:$0xf]
    %v3804 = vld [vmem:[#allocation9 + $0xfa4] sm:$0xf]
    %v3805 = vld [vmem:[#allocation9 + $0xfa8] sm:$0xf]
    %v3806 = vld [vmem:[#allocation9 + $0xfac] sm:$0xf]
    %v3807 = vld [vmem:[#allocation9 + $0xfb0] sm:$0xf]
    %v3808 = vld [vmem:[#allocation9 + $0xfb4] sm:$0xf]
    %v3809 = vld [vmem:[#allocation9 + $0xfb8] sm:$0xf]
    %v3810 = vld [vmem:[#allocation9 + $0xfbc] sm:$0xf]
    %v3811 = vld [vmem:[#allocation9 + $0xfc0] sm:$0xf]
    %v3812 = vld [vmem:[#allocation9 + $0xfc4] sm:$0xf]
    %v3813 = vld [vmem:[#allocation9 + $0xfc8] sm:$0xf]
    %v3814 = vld [vmem:[#allocation9 + $0xfcc] sm:$0xf]
    %v3815 = vld [vmem:[#allocation9 + $0xfd0] sm:$0xf]
    %v3816 = vld [vmem:[#allocation9 + $0xfd4] sm:$0xf]
    %v3817 = vld [vmem:[#allocation9 + $0xfd8] sm:$0xf]
    %v3818 = vld [vmem:[#allocation9 + $0xfdc] sm:$0xf]
    %v3819 = vld [vmem:[#allocation9 + $0xfe0] sm:$0xf]
    %v3820 = vld [vmem:[#allocation9 + $0xfe4] sm:$0xf]
    %v3821 = vld [vmem:[#allocation9 + $0xfe8] sm:$0xf]
    %v3822 = vld [vmem:[#allocation9 + $0xfec] sm:$0xf]
    %v3823 = vld [vmem:[#allocation9 + $0xff0] sm:$0xf]
    %v3824 = vld [vmem:[#allocation9 + $0xff4] sm:$0xf]
    %v3825 = vld [vmem:[#allocation9 + $0xff8] sm:$0xf]
    %v3826 = vld [vmem:[#allocation9 + $0xffc] sm:$0xf]
    %v4851 = vunpack.c.l.b16 %v2803
    %v4852 = vunpack.c.l.b16 %v2804
    %v4853 = vunpack.c.l.b16 %v2805
    %v4854 = vunpack.c.l.b16 %v2806
    %v4855 = vunpack.c.l.b16 %v2807
    %v4856 = vunpack.c.l.b16 %v2808
    %v4857 = vunpack.c.l.b16 %v2809
    %v4858 = vunpack.c.l.b16 %v2810
    %v4859 = vunpack.c.l.b16 %v2811
    %v4860 = vunpack.c.l.b16 %v2812
    %v4861 = vunpack.c.l.b16 %v2813
    %v4862 = vunpack.c.l.b16 %v2814
    %v4863 = vunpack.c.l.b16 %v2815
    %v4864 = vunpack.c.l.b16 %v2816
    %v4865 = vunpack.c.l.b16 %v2817
    %v4866 = vunpack.c.l.b16 %v2818
    %v4867 = vunpack.c.l.b16 %v2819
    %v4868 = vunpack.c.l.b16 %v2820
    %v4869 = vunpack.c.l.b16 %v2821
    %v4870 = vunpack.c.l.b16 %v2822
    %v4871 = vunpack.c.l.b16 %v2823
    %v4872 = vunpack.c.l.b16 %v2824
    %v4873 = vunpack.c.l.b16 %v2825
    %v4874 = vunpack.c.l.b16 %v2826
    %v4875 = vunpack.c.l.b16 %v2827
    %v4876 = vunpack.c.l.b16 %v2828
    %v4877 = vunpack.c.l.b16 %v2829
    %v4878 = vunpack.c.l.b16 %v2830
    %v4879 = vunpack.c.l.b16 %v2831
    %v4880 = vunpack.c.l.b16 %v2832
    %v4881 = vunpack.c.l.b16 %v2833
    %v4882 = vunpack.c.l.b16 %v2834
    %v4883 = vunpack.c.l.b16 %v2835
    %v4884 = vunpack.c.l.b16 %v2836
    %v4885 = vunpack.c.l.b16 %v2837
    %v4886 = vunpack.c.l.b16 %v2838
    %v4887 = vunpack.c.l.b16 %v2839
    %v4888 = vunpack.c.l.b16 %v2840
    %v4889 = vunpack.c.l.b16 %v2841
    %v4890 = vunpack.c.l.b16 %v2842
    %v4891 = vunpack.c.l.b16 %v2843
    %v4892 = vunpack.c.l.b16 %v2844
    %v4893 = vunpack.c.l.b16 %v2845
    %v4894 = vunpack.c.l.b16 %v2846
    %v4895 = vunpack.c.l.b16 %v2847
    %v4896 = vunpack.c.l.b16 %v2848
    %v4897 = vunpack.c.l.b16 %v2849
    %v4898 = vunpack.c.l.b16 %v2850
    %v4899 = vunpack.c.l.b16 %v2851
    %v4900 = vunpack.c.l.b16 %v2852
    %v4901 = vunpack.c.l.b16 %v2853
    %v4902 = vunpack.c.l.b16 %v2854
    %v4903 = vunpack.c.l.b16 %v2855
    %v4904 = vunpack.c.l.b16 %v2856
    %v4905 = vunpack.c.l.b16 %v2857
    %v4906 = vunpack.c.l.b16 %v2858
    %v4907 = vunpack.c.l.b16 %v2859
    %v4908 = vunpack.c.l.b16 %v2860
    %v4909 = vunpack.c.l.b16 %v2861
    %v4910 = vunpack.c.l.b16 %v2862
    %v4911 = vunpack.c.l.b16 %v2863
    %v4912 = vunpack.c.l.b16 %v2864
    %v4913 = vunpack.c.l.b16 %v2865
    %v4914 = vunpack.c.l.b16 %v2866
    %v4915 = vunpack.c.l.b16 %v2867
    %v4916 = vunpack.c.l.b16 %v2868
    %v4917 = vunpack.c.l.b16 %v2869
    %v4918 = vunpack.c.l.b16 %v2870
    %v4919 = vunpack.c.l.b16 %v2871
    %v4920 = vunpack.c.l.b16 %v2872
    %v4921 = vunpack.c.l.b16 %v2873
    %v4922 = vunpack.c.l.b16 %v2874
    %v4923 = vunpack.c.l.b16 %v2875
    %v4924 = vunpack.c.l.b16 %v2876
    %v4925 = vunpack.c.l.b16 %v2877
    %v4926 = vunpack.c.l.b16 %v2878
    %v4927 = vunpack.c.l.b16 %v2879
    %v4928 = vunpack.c.l.b16 %v2880
    %v4929 = vunpack.c.l.b16 %v2881
    %v4930 = vunpack.c.l.b16 %v2882
    %v4931 = vunpack.c.l.b16 %v2883
    %v4932 = vunpack.c.l.b16 %v2884
    %v4933 = vunpack.c.l.b16 %v2885
    %v4934 = vunpack.c.l.b16 %v2886
    %v4935 = vunpack.c.l.b16 %v2887
    %v4936 = vunpack.c.l.b16 %v2888
    %v4937 = vunpack.c.l.b16 %v2889
    %v4938 = vunpack.c.l.b16 %v2890
    %v4939 = vunpack.c.l.b16 %v2891
    %v4940 = vunpack.c.l.b16 %v2892
    %v4941 = vunpack.c.l.b16 %v2893
    %v4942 = vunpack.c.l.b16 %v2894
    %v4943 = vunpack.c.l.b16 %v2895
    %v4944 = vunpack.c.l.b16 %v2896
    %v4945 = vunpack.c.l.b16 %v2897
    %v4946 = vunpack.c.l.b16 %v2898
    %v4947 = vunpack.c.l.b16 %v2899
    %v4948 = vunpack.c.l.b16 %v2900
    %v4949 = vunpack.c.l.b16 %v2901
    %v4950 = vunpack.c.l.b16 %v2902
    %v4951 = vunpack.c.l.b16 %v2903
    %v4952 = vunpack.c.l.b16 %v2904
    %v4953 = vunpack.c.l.b16 %v2905
    %v4954 = vunpack.c.l.b16 %v2906
    %v4955 = vunpack.c.l.b16 %v2907
    %v4956 = vunpack.c.l.b16 %v2908
    %v4957 = vunpack.c.l.b16 %v2909
    %v4958 = vunpack.c.l.b16 %v2910
    %v4959 = vunpack.c.l.b16 %v2911
    %v4960 = vunpack.c.l.b16 %v2912
    %v4961 = vunpack.c.l.b16 %v2913
    %v4962 = vunpack.c.l.b16 %v2914
    %v4963 = vunpack.c.l.b16 %v2915
    %v4964 = vunpack.c.l.b16 %v2916
    %v4965 = vunpack.c.l.b16 %v2917
    %v4966 = vunpack.c.l.b16 %v2918
    %v4967 = vunpack.c.l.b16 %v2919
    %v4968 = vunpack.c.l.b16 %v2920
    %v4969 = vunpack.c.l.b16 %v2921
    %v4970 = vunpack.c.l.b16 %v2922
    %v4971 = vunpack.c.l.b16 %v2923
    %v4972 = vunpack.c.l.b16 %v2924
    %v4973 = vunpack.c.l.b16 %v2925
    %v4974 = vunpack.c.l.b16 %v2926
    %v4975 = vunpack.c.l.b16 %v2927
    %v4976 = vunpack.c.l.b16 %v2928
    %v4977 = vunpack.c.l.b16 %v2929
    %v4978 = vunpack.c.l.b16 %v2930
    %v4979 = vunpack.c.l.b16 %v2931
    %v4980 = vunpack.c.l.b16 %v2932
    %v4981 = vunpack.c.l.b16 %v2933
    %v4982 = vunpack.c.l.b16 %v2934
    %v4983 = vunpack.c.l.b16 %v2935
    %v4984 = vunpack.c.l.b16 %v2936
    %v4985 = vunpack.c.l.b16 %v2937
    %v4986 = vunpack.c.l.b16 %v2938
    %v4987 = vunpack.c.l.b16 %v2939
    %v4988 = vunpack.c.l.b16 %v2940
    %v4989 = vunpack.c.l.b16 %v2941
    %v4990 = vunpack.c.l.b16 %v2942
    %v4991 = vunpack.c.l.b16 %v2943
    %v4992 = vunpack.c.l.b16 %v2944
    %v4993 = vunpack.c.l.b16 %v2945
    %v4994 = vunpack.c.l.b16 %v2946
    %v4995 = vunpack.c.l.b16 %v2947
    %v4996 = vunpack.c.l.b16 %v2948
    %v4997 = vunpack.c.l.b16 %v2949
    %v4998 = vunpack.c.l.b16 %v2950
    %v4999 = vunpack.c.l.b16 %v2951
    %v5000 = vunpack.c.l.b16 %v2952
    %v5001 = vunpack.c.l.b16 %v2953
    %v5002 = vunpack.c.l.b16 %v2954
    %v5003 = vunpack.c.l.b16 %v2955
    %v5004 = vunpack.c.l.b16 %v2956
    %v5005 = vunpack.c.l.b16 %v2957
    %v5006 = vunpack.c.l.b16 %v2958
    %v5007 = vunpack.c.l.b16 %v2959
    %v5008 = vunpack.c.l.b16 %v2960
    %v5009 = vunpack.c.l.b16 %v2961
    %v5010 = vunpack.c.l.b16 %v2962
    %v5011 = vunpack.c.l.b16 %v2963
    %v5012 = vunpack.c.l.b16 %v2964
    %v5013 = vunpack.c.l.b16 %v2965
    %v5014 = vunpack.c.l.b16 %v2966
    %v5015 = vunpack.c.l.b16 %v2967
    %v5016 = vunpack.c.l.b16 %v2968
    %v5017 = vunpack.c.l.b16 %v2969
    %v5018 = vunpack.c.l.b16 %v2970
    %v5019 = vunpack.c.l.b16 %v2971
    %v5020 = vunpack.c.l.b16 %v2972
    %v5021 = vunpack.c.l.b16 %v2973
    %v5022 = vunpack.c.l.b16 %v2974
    %v5023 = vunpack.c.l.b16 %v2975
    %v5024 = vunpack.c.l.b16 %v2976
    %v5025 = vunpack.c.l.b16 %v2977
    %v5026 = vunpack.c.l.b16 %v2978
    %v5027 = vunpack.c.l.b16 %v2979
    %v5028 = vunpack.c.l.b16 %v2980
    %v5029 = vunpack.c.l.b16 %v2981
    %v5030 = vunpack.c.l.b16 %v2982
    %v5031 = vunpack.c.l.b16 %v2983
    %v5032 = vunpack.c.l.b16 %v2984
    %v5033 = vunpack.c.l.b16 %v2985
    %v5034 = vunpack.c.l.b16 %v2986
    %v5035 = vunpack.c.l.b16 %v2987
    %v5036 = vunpack.c.l.b16 %v2988
    %v5037 = vunpack.c.l.b16 %v2989
    %v5038 = vunpack.c.l.b16 %v2990
    %v5039 = vunpack.c.l.b16 %v2991
    %v5040 = vunpack.c.l.b16 %v2992
    %v5041 = vunpack.c.l.b16 %v2993
    %v5042 = vunpack.c.l.b16 %v2994
    %v5043 = vunpack.c.l.b16 %v2995
    %v5044 = vunpack.c.l.b16 %v2996
    %v5045 = vunpack.c.l.b16 %v2997
    %v5046 = vunpack.c.l.b16 %v2998
    %v5047 = vunpack.c.l.b16 %v2999
    %v5048 = vunpack.c.l.b16 %v3000
    %v5049 = vunpack.c.l.b16 %v3001
    %v5050 = vunpack.c.l.b16 %v3002
    %v5051 = vunpack.c.l.b16 %v3003
    %v5052 = vunpack.c.l.b16 %v3004
    %v5053 = vunpack.c.l.b16 %v3005
    %v5054 = vunpack.c.l.b16 %v3006
    %v5055 = vunpack.c.l.b16 %v3007
    %v5056 = vunpack.c.l.b16 %v3008
    %v5057 = vunpack.c.l.b16 %v3009
    %v5058 = vunpack.c.l.b16 %v3010
    %v5059 = vunpack.c.l.b16 %v3011
    %v5060 = vunpack.c.l.b16 %v3012
    %v5061 = vunpack.c.l.b16 %v3013
    %v5062 = vunpack.c.l.b16 %v3014
    %v5063 = vunpack.c.l.b16 %v3015
    %v5064 = vunpack.c.l.b16 %v3016
    %v5065 = vunpack.c.l.b16 %v3017
    %v5066 = vunpack.c.l.b16 %v3018
    %v5067 = vunpack.c.l.b16 %v3019
    %v5068 = vunpack.c.l.b16 %v3020
    %v5069 = vunpack.c.l.b16 %v3021
    %v5070 = vunpack.c.l.b16 %v3022
    %v5071 = vunpack.c.l.b16 %v3023
    %v5072 = vunpack.c.l.b16 %v3024
    %v5073 = vunpack.c.l.b16 %v3025
    %v5074 = vunpack.c.l.b16 %v3026
    %v5075 = vunpack.c.l.b16 %v3027
    %v5076 = vunpack.c.l.b16 %v3028
    %v5077 = vunpack.c.l.b16 %v3029
    %v5078 = vunpack.c.l.b16 %v3030
    %v5079 = vunpack.c.l.b16 %v3031
    %v5080 = vunpack.c.l.b16 %v3032
    %v5081 = vunpack.c.l.b16 %v3033
    %v5082 = vunpack.c.l.b16 %v3034
    %v5083 = vunpack.c.l.b16 %v3035
    %v5084 = vunpack.c.l.b16 %v3036
    %v5085 = vunpack.c.l.b16 %v3037
    %v5086 = vunpack.c.l.b16 %v3038
    %v5087 = vunpack.c.l.b16 %v3039
    %v5088 = vunpack.c.l.b16 %v3040
    %v5089 = vunpack.c.l.b16 %v3041
    %v5090 = vunpack.c.l.b16 %v3042
    %v5091 = vunpack.c.l.b16 %v3043
    %v5092 = vunpack.c.l.b16 %v3044
    %v5093 = vunpack.c.l.b16 %v3045
    %v5094 = vunpack.c.l.b16 %v3046
    %v5095 = vunpack.c.l.b16 %v3047
    %v5096 = vunpack.c.l.b16 %v3048
    %v5097 = vunpack.c.l.b16 %v3049
    %v5098 = vunpack.c.l.b16 %v3050
    %v5099 = vunpack.c.l.b16 %v3051
    %v5100 = vunpack.c.l.b16 %v3052
    %v5101 = vunpack.c.l.b16 %v3053
    %v5102 = vunpack.c.l.b16 %v3054
    %v5103 = vunpack.c.l.b16 %v3055
    %v5104 = vunpack.c.l.b16 %v3056
    %v5105 = vunpack.c.l.b16 %v3057
    %v5106 = vunpack.c.l.b16 %v3058
    %v5107 = vunpack.c.l.b16 %v3059
    %v5108 = vunpack.c.l.b16 %v3060
    %v5109 = vunpack.c.l.b16 %v3061
    %v5110 = vunpack.c.l.b16 %v3062
    %v5111 = vunpack.c.l.b16 %v3063
    %v5112 = vunpack.c.l.b16 %v3064
    %v5113 = vunpack.c.l.b16 %v3065
    %v5114 = vunpack.c.l.b16 %v3066
    %v5115 = vunpack.c.l.b16 %v3067
    %v5116 = vunpack.c.l.b16 %v3068
    %v5117 = vunpack.c.l.b16 %v3069
    %v5118 = vunpack.c.l.b16 %v3070
    %v5119 = vunpack.c.l.b16 %v3071
    %v5120 = vunpack.c.l.b16 %v3072
    %v5121 = vunpack.c.l.b16 %v3073
    %v5122 = vunpack.c.l.b16 %v3074
    %v5123 = vunpack.c.l.b16 %v3075
    %v5124 = vunpack.c.l.b16 %v3076
    %v5125 = vunpack.c.l.b16 %v3077
    %v5126 = vunpack.c.l.b16 %v3078
    %v5127 = vunpack.c.l.b16 %v3079
    %v5128 = vunpack.c.l.b16 %v3080
    %v5129 = vunpack.c.l.b16 %v3081
    %v5130 = vunpack.c.l.b16 %v3082
    %v5131 = vunpack.c.l.b16 %v3083
    %v5132 = vunpack.c.l.b16 %v3084
    %v5133 = vunpack.c.l.b16 %v3085
    %v5134 = vunpack.c.l.b16 %v3086
    %v5135 = vunpack.c.l.b16 %v3087
    %v5136 = vunpack.c.l.b16 %v3088
    %v5137 = vunpack.c.l.b16 %v3089
    %v5138 = vunpack.c.l.b16 %v3090
    %v5139 = vunpack.c.l.b16 %v3091
    %v5140 = vunpack.c.l.b16 %v3092
    %v5141 = vunpack.c.l.b16 %v3093
    %v5142 = vunpack.c.l.b16 %v3094
    %v5143 = vunpack.c.l.b16 %v3095
    %v5144 = vunpack.c.l.b16 %v3096
    %v5145 = vunpack.c.l.b16 %v3097
    %v5146 = vunpack.c.l.b16 %v3098
    %v5147 = vunpack.c.l.b16 %v3099
    %v5148 = vunpack.c.l.b16 %v3100
    %v5149 = vunpack.c.l.b16 %v3101
    %v5150 = vunpack.c.l.b16 %v3102
    %v5151 = vunpack.c.l.b16 %v3103
    %v5152 = vunpack.c.l.b16 %v3104
    %v5153 = vunpack.c.l.b16 %v3105
    %v5154 = vunpack.c.l.b16 %v3106
    %v5155 = vunpack.c.l.b16 %v3107
    %v5156 = vunpack.c.l.b16 %v3108
    %v5157 = vunpack.c.l.b16 %v3109
    %v5158 = vunpack.c.l.b16 %v3110
    %v5159 = vunpack.c.l.b16 %v3111
    %v5160 = vunpack.c.l.b16 %v3112
    %v5161 = vunpack.c.l.b16 %v3113
    %v5162 = vunpack.c.l.b16 %v3114
    %v5163 = vunpack.c.l.b16 %v3115
    %v5164 = vunpack.c.l.b16 %v3116
    %v5165 = vunpack.c.l.b16 %v3117
    %v5166 = vunpack.c.l.b16 %v3118
    %v5167 = vunpack.c.l.b16 %v3119
    %v5168 = vunpack.c.l.b16 %v3120
    %v5169 = vunpack.c.l.b16 %v3121
    %v5170 = vunpack.c.l.b16 %v3122
    %v5171 = vunpack.c.l.b16 %v3123
    %v5172 = vunpack.c.l.b16 %v3124
    %v5173 = vunpack.c.l.b16 %v3125
    %v5174 = vunpack.c.l.b16 %v3126
    %v5175 = vunpack.c.l.b16 %v3127
    %v5176 = vunpack.c.l.b16 %v3128
    %v5177 = vunpack.c.l.b16 %v3129
    %v5178 = vunpack.c.l.b16 %v3130
    %v5179 = vunpack.c.l.b16 %v3131
    %v5180 = vunpack.c.l.b16 %v3132
    %v5181 = vunpack.c.l.b16 %v3133
    %v5182 = vunpack.c.l.b16 %v3134
    %v5183 = vunpack.c.l.b16 %v3135
    %v5184 = vunpack.c.l.b16 %v3136
    %v5185 = vunpack.c.l.b16 %v3137
    %v5186 = vunpack.c.l.b16 %v3138
    %v5187 = vunpack.c.l.b16 %v3139
    %v5188 = vunpack.c.l.b16 %v3140
    %v5189 = vunpack.c.l.b16 %v3141
    %v5190 = vunpack.c.l.b16 %v3142
    %v5191 = vunpack.c.l.b16 %v3143
    %v5192 = vunpack.c.l.b16 %v3144
    %v5193 = vunpack.c.l.b16 %v3145
    %v5194 = vunpack.c.l.b16 %v3146
    %v5195 = vunpack.c.l.b16 %v3147
    %v5196 = vunpack.c.l.b16 %v3148
    %v5197 = vunpack.c.l.b16 %v3149
    %v5198 = vunpack.c.l.b16 %v3150
    %v5199 = vunpack.c.l.b16 %v3151
    %v5200 = vunpack.c.l.b16 %v3152
    %v5201 = vunpack.c.l.b16 %v3153
    %v5202 = vunpack.c.l.b16 %v3154
    %v5203 = vunpack.c.l.b16 %v3155
    %v5204 = vunpack.c.l.b16 %v3156
    %v5205 = vunpack.c.l.b16 %v3157
    %v5206 = vunpack.c.l.b16 %v3158
    %v5207 = vunpack.c.l.b16 %v3159
    %v5208 = vunpack.c.l.b16 %v3160
    %v5209 = vunpack.c.l.b16 %v3161
    %v5210 = vunpack.c.l.b16 %v3162
    %v5211 = vunpack.c.l.b16 %v3163
    %v5212 = vunpack.c.l.b16 %v3164
    %v5213 = vunpack.c.l.b16 %v3165
    %v5214 = vunpack.c.l.b16 %v3166
    %v5215 = vunpack.c.l.b16 %v3167
    %v5216 = vunpack.c.l.b16 %v3168
    %v5217 = vunpack.c.l.b16 %v3169
    %v5218 = vunpack.c.l.b16 %v3170
    %v5219 = vunpack.c.l.b16 %v3171
    %v5220 = vunpack.c.l.b16 %v3172
    %v5221 = vunpack.c.l.b16 %v3173
    %v5222 = vunpack.c.l.b16 %v3174
    %v5223 = vunpack.c.l.b16 %v3175
    %v5224 = vunpack.c.l.b16 %v3176
    %v5225 = vunpack.c.l.b16 %v3177
    %v5226 = vunpack.c.l.b16 %v3178
    %v5227 = vunpack.c.l.b16 %v3179
    %v5228 = vunpack.c.l.b16 %v3180
    %v5229 = vunpack.c.l.b16 %v3181
    %v5230 = vunpack.c.l.b16 %v3182
    %v5231 = vunpack.c.l.b16 %v3183
    %v5232 = vunpack.c.l.b16 %v3184
    %v5233 = vunpack.c.l.b16 %v3185
    %v5234 = vunpack.c.l.b16 %v3186
    %v5235 = vunpack.c.l.b16 %v3187
    %v5236 = vunpack.c.l.b16 %v3188
    %v5237 = vunpack.c.l.b16 %v3189
    %v5238 = vunpack.c.l.b16 %v3190
    %v5239 = vunpack.c.l.b16 %v3191
    %v5240 = vunpack.c.l.b16 %v3192
    %v5241 = vunpack.c.l.b16 %v3193
    %v5242 = vunpack.c.l.b16 %v3194
    %v5243 = vunpack.c.l.b16 %v3195
    %v5244 = vunpack.c.l.b16 %v3196
    %v5245 = vunpack.c.l.b16 %v3197
    %v5246 = vunpack.c.l.b16 %v3198
    %v5247 = vunpack.c.l.b16 %v3199
    %v5248 = vunpack.c.l.b16 %v3200
    %v5249 = vunpack.c.l.b16 %v3201
    %v5250 = vunpack.c.l.b16 %v3202
    %v5251 = vunpack.c.l.b16 %v3203
    %v5252 = vunpack.c.l.b16 %v3204
    %v5253 = vunpack.c.l.b16 %v3205
    %v5254 = vunpack.c.l.b16 %v3206
    %v5255 = vunpack.c.l.b16 %v3207
    %v5256 = vunpack.c.l.b16 %v3208
    %v5257 = vunpack.c.l.b16 %v3209
    %v5258 = vunpack.c.l.b16 %v3210
    %v5259 = vunpack.c.l.b16 %v3211
    %v5260 = vunpack.c.l.b16 %v3212
    %v5261 = vunpack.c.l.b16 %v3213
    %v5262 = vunpack.c.l.b16 %v3214
    %v5263 = vunpack.c.l.b16 %v3215
    %v5264 = vunpack.c.l.b16 %v3216
    %v5265 = vunpack.c.l.b16 %v3217
    %v5266 = vunpack.c.l.b16 %v3218
    %v5267 = vunpack.c.l.b16 %v3219
    %v5268 = vunpack.c.l.b16 %v3220
    %v5269 = vunpack.c.l.b16 %v3221
    %v5270 = vunpack.c.l.b16 %v3222
    %v5271 = vunpack.c.l.b16 %v3223
    %v5272 = vunpack.c.l.b16 %v3224
    %v5273 = vunpack.c.l.b16 %v3225
    %v5274 = vunpack.c.l.b16 %v3226
    %v5275 = vunpack.c.l.b16 %v3227
    %v5276 = vunpack.c.l.b16 %v3228
    %v5277 = vunpack.c.l.b16 %v3229
    %v5278 = vunpack.c.l.b16 %v3230
    %v5279 = vunpack.c.l.b16 %v3231
    %v5280 = vunpack.c.l.b16 %v3232
    %v5281 = vunpack.c.l.b16 %v3233
    %v5282 = vunpack.c.l.b16 %v3234
    %v5283 = vunpack.c.l.b16 %v3235
    %v5284 = vunpack.c.l.b16 %v3236
    %v5285 = vunpack.c.l.b16 %v3237
    %v5286 = vunpack.c.l.b16 %v3238
    %v5287 = vunpack.c.l.b16 %v3239
    %v5288 = vunpack.c.l.b16 %v3240
    %v5289 = vunpack.c.l.b16 %v3241
    %v5290 = vunpack.c.l.b16 %v3242
    %v5291 = vunpack.c.l.b16 %v3243
    %v5292 = vunpack.c.l.b16 %v3244
    %v5293 = vunpack.c.l.b16 %v3245
    %v5294 = vunpack.c.l.b16 %v3246
    %v5295 = vunpack.c.l.b16 %v3247
    %v5296 = vunpack.c.l.b16 %v3248
    %v5297 = vunpack.c.l.b16 %v3249
    %v5298 = vunpack.c.l.b16 %v3250
    %v5299 = vunpack.c.l.b16 %v3251
    %v5300 = vunpack.c.l.b16 %v3252
    %v5301 = vunpack.c.l.b16 %v3253
    %v5302 = vunpack.c.l.b16 %v3254
    %v5303 = vunpack.c.l.b16 %v3255
    %v5304 = vunpack.c.l.b16 %v3256
    %v5305 = vunpack.c.l.b16 %v3257
    %v5306 = vunpack.c.l.b16 %v3258
    %v5307 = vunpack.c.l.b16 %v3259
    %v5308 = vunpack.c.l.b16 %v3260
    %v5309 = vunpack.c.l.b16 %v3261
    %v5310 = vunpack.c.l.b16 %v3262
    %v5311 = vunpack.c.l.b16 %v3263
    %v5312 = vunpack.c.l.b16 %v3264
    %v5313 = vunpack.c.l.b16 %v3265
    %v5314 = vunpack.c.l.b16 %v3266
    %v5315 = vunpack.c.l.b16 %v3267
    %v5316 = vunpack.c.l.b16 %v3268
    %v5317 = vunpack.c.l.b16 %v3269
    %v5318 = vunpack.c.l.b16 %v3270
    %v5319 = vunpack.c.l.b16 %v3271
    %v5320 = vunpack.c.l.b16 %v3272
    %v5321 = vunpack.c.l.b16 %v3273
    %v5322 = vunpack.c.l.b16 %v3274
    %v5323 = vunpack.c.l.b16 %v3275
    %v5324 = vunpack.c.l.b16 %v3276
    %v5325 = vunpack.c.l.b16 %v3277
    %v5326 = vunpack.c.l.b16 %v3278
    %v5327 = vunpack.c.l.b16 %v3279
    %v5328 = vunpack.c.l.b16 %v3280
    %v5329 = vunpack.c.l.b16 %v3281
    %v5330 = vunpack.c.l.b16 %v3282
    %v5331 = vunpack.c.l.b16 %v3283
    %v5332 = vunpack.c.l.b16 %v3284
    %v5333 = vunpack.c.l.b16 %v3285
    %v5334 = vunpack.c.l.b16 %v3286
    %v5335 = vunpack.c.l.b16 %v3287
    %v5336 = vunpack.c.l.b16 %v3288
    %v5337 = vunpack.c.l.b16 %v3289
    %v5338 = vunpack.c.l.b16 %v3290
    %v5339 = vunpack.c.l.b16 %v3291
    %v5340 = vunpack.c.l.b16 %v3292
    %v5341 = vunpack.c.l.b16 %v3293
    %v5342 = vunpack.c.l.b16 %v3294
    %v5343 = vunpack.c.l.b16 %v3295
    %v5344 = vunpack.c.l.b16 %v3296
    %v5345 = vunpack.c.l.b16 %v3297
    %v5346 = vunpack.c.l.b16 %v3298
    %v5347 = vunpack.c.l.b16 %v3299
    %v5348 = vunpack.c.l.b16 %v3300
    %v5349 = vunpack.c.l.b16 %v3301
    %v5350 = vunpack.c.l.b16 %v3302
    %v5351 = vunpack.c.l.b16 %v3303
    %v5352 = vunpack.c.l.b16 %v3304
    %v5353 = vunpack.c.l.b16 %v3305
    %v5354 = vunpack.c.l.b16 %v3306
    %v5355 = vunpack.c.l.b16 %v3307
    %v5356 = vunpack.c.l.b16 %v3308
    %v5357 = vunpack.c.l.b16 %v3309
    %v5358 = vunpack.c.l.b16 %v3310
    %v5359 = vunpack.c.l.b16 %v3311
    %v5360 = vunpack.c.l.b16 %v3312
    %v5361 = vunpack.c.l.b16 %v3313
    %v5362 = vunpack.c.l.b16 %v3314
    %v5363 = vunpack.c.l.b16 %v3315
    %v5364 = vunpack.c.l.b16 %v3316
    %v5365 = vunpack.c.l.b16 %v3317
    %v5366 = vunpack.c.l.b16 %v3318
    %v5367 = vunpack.c.l.b16 %v3319
    %v5368 = vunpack.c.l.b16 %v3320
    %v5369 = vunpack.c.l.b16 %v3321
    %v5370 = vunpack.c.l.b16 %v3322
    %v5371 = vunpack.c.l.b16 %v3323
    %v5372 = vunpack.c.l.b16 %v3324
    %v5373 = vunpack.c.l.b16 %v3325
    %v5374 = vunpack.c.l.b16 %v3326
    %v5375 = vunpack.c.l.b16 %v3327
    %v5376 = vunpack.c.l.b16 %v3328
    %v5377 = vunpack.c.l.b16 %v3329
    %v5378 = vunpack.c.l.b16 %v3330
    %v5379 = vunpack.c.l.b16 %v3331
    %v5380 = vunpack.c.l.b16 %v3332
    %v5381 = vunpack.c.l.b16 %v3333
    %v5382 = vunpack.c.l.b16 %v3334
    %v5383 = vunpack.c.l.b16 %v3335
    %v5384 = vunpack.c.l.b16 %v3336
    %v5385 = vunpack.c.l.b16 %v3337
    %v5386 = vunpack.c.l.b16 %v3338
    %v5387 = vunpack.c.l.b16 %v3339
    %v5388 = vunpack.c.l.b16 %v3340
    %v5389 = vunpack.c.l.b16 %v3341
    %v5390 = vunpack.c.l.b16 %v3342
    %v5391 = vunpack.c.l.b16 %v3343
    %v5392 = vunpack.c.l.b16 %v3344
    %v5393 = vunpack.c.l.b16 %v3345
    %v5394 = vunpack.c.l.b16 %v3346
    %v5395 = vunpack.c.l.b16 %v3347
    %v5396 = vunpack.c.l.b16 %v3348
    %v5397 = vunpack.c.l.b16 %v3349
    %v5398 = vunpack.c.l.b16 %v3350
    %v5399 = vunpack.c.l.b16 %v3351
    %v5400 = vunpack.c.l.b16 %v3352
    %v5401 = vunpack.c.l.b16 %v3353
    %v5402 = vunpack.c.l.b16 %v3354
    %v5403 = vunpack.c.l.b16 %v3355
    %v5404 = vunpack.c.l.b16 %v3356
    %v5405 = vunpack.c.l.b16 %v3357
    %v5406 = vunpack.c.l.b16 %v3358
    %v5407 = vunpack.c.l.b16 %v3359
    %v5408 = vunpack.c.l.b16 %v3360
    %v5409 = vunpack.c.l.b16 %v3361
    %v5410 = vunpack.c.l.b16 %v3362
    %v5411 = vunpack.c.l.b16 %v3363
    %v5412 = vunpack.c.l.b16 %v3364
    %v5413 = vunpack.c.l.b16 %v3365
    %v5414 = vunpack.c.l.b16 %v3366
    %v5415 = vunpack.c.l.b16 %v3367
    %v5416 = vunpack.c.l.b16 %v3368
    %v5417 = vunpack.c.l.b16 %v3369
    %v5418 = vunpack.c.l.b16 %v3370
    %v5419 = vunpack.c.l.b16 %v3371
    %v5420 = vunpack.c.l.b16 %v3372
    %v5421 = vunpack.c.l.b16 %v3373
    %v5422 = vunpack.c.l.b16 %v3374
    %v5423 = vunpack.c.l.b16 %v3375
    %v5424 = vunpack.c.l.b16 %v3376
    %v5425 = vunpack.c.l.b16 %v3377
    %v5426 = vunpack.c.l.b16 %v3378
    %v5427 = vunpack.c.l.b16 %v3379
    %v5428 = vunpack.c.l.b16 %v3380
    %v5429 = vunpack.c.l.b16 %v3381
    %v5430 = vunpack.c.l.b16 %v3382
    %v5431 = vunpack.c.l.b16 %v3383
    %v5432 = vunpack.c.l.b16 %v3384
    %v5433 = vunpack.c.l.b16 %v3385
    %v5434 = vunpack.c.l.b16 %v3386
    %v5435 = vunpack.c.l.b16 %v3387
    %v5436 = vunpack.c.l.b16 %v3388
    %v5437 = vunpack.c.l.b16 %v3389
    %v5438 = vunpack.c.l.b16 %v3390
    %v5439 = vunpack.c.l.b16 %v3391
    %v5440 = vunpack.c.l.b16 %v3392
    %v5441 = vunpack.c.l.b16 %v3393
    %v5442 = vunpack.c.l.b16 %v3394
    %v5443 = vunpack.c.l.b16 %v3395
    %v5444 = vunpack.c.l.b16 %v3396
    %v5445 = vunpack.c.l.b16 %v3397
    %v5446 = vunpack.c.l.b16 %v3398
    %v5447 = vunpack.c.l.b16 %v3399
    %v5448 = vunpack.c.l.b16 %v3400
    %v5449 = vunpack.c.l.b16 %v3401
    %v5450 = vunpack.c.l.b16 %v3402
    %v5451 = vunpack.c.l.b16 %v3403
    %v5452 = vunpack.c.l.b16 %v3404
    %v5453 = vunpack.c.l.b16 %v3405
    %v5454 = vunpack.c.l.b16 %v3406
    %v5455 = vunpack.c.l.b16 %v3407
    %v5456 = vunpack.c.l.b16 %v3408
    %v5457 = vunpack.c.l.b16 %v3409
    %v5458 = vunpack.c.l.b16 %v3410
    %v5459 = vunpack.c.l.b16 %v3411
    %v5460 = vunpack.c.l.b16 %v3412
    %v5461 = vunpack.c.l.b16 %v3413
    %v5462 = vunpack.c.l.b16 %v3414
    %v5463 = vunpack.c.l.b16 %v3415
    %v5464 = vunpack.c.l.b16 %v3416
    %v5465 = vunpack.c.l.b16 %v3417
    %v5466 = vunpack.c.l.b16 %v3418
    %v5467 = vunpack.c.l.b16 %v3419
    %v5468 = vunpack.c.l.b16 %v3420
    %v5469 = vunpack.c.l.b16 %v3421
    %v5470 = vunpack.c.l.b16 %v3422
    %v5471 = vunpack.c.l.b16 %v3423
    %v5472 = vunpack.c.l.b16 %v3424
    %v5473 = vunpack.c.l.b16 %v3425
    %v5474 = vunpack.c.l.b16 %v3426
    %v5475 = vunpack.c.l.b16 %v3427
    %v5476 = vunpack.c.l.b16 %v3428
    %v5477 = vunpack.c.l.b16 %v3429
    %v5478 = vunpack.c.l.b16 %v3430
    %v5479 = vunpack.c.l.b16 %v3431
    %v5480 = vunpack.c.l.b16 %v3432
    %v5481 = vunpack.c.l.b16 %v3433
    %v5482 = vunpack.c.l.b16 %v3434
    %v5483 = vunpack.c.l.b16 %v3435
    %v5484 = vunpack.c.l.b16 %v3436
    %v5485 = vunpack.c.l.b16 %v3437
    %v5486 = vunpack.c.l.b16 %v3438
    %v5487 = vunpack.c.l.b16 %v3439
    %v5488 = vunpack.c.l.b16 %v3440
    %v5489 = vunpack.c.l.b16 %v3441
    %v5490 = vunpack.c.l.b16 %v3442
    %v5491 = vunpack.c.l.b16 %v3443
    %v5492 = vunpack.c.l.b16 %v3444
    %v5493 = vunpack.c.l.b16 %v3445
    %v5494 = vunpack.c.l.b16 %v3446
    %v5495 = vunpack.c.l.b16 %v3447
    %v5496 = vunpack.c.l.b16 %v3448
    %v5497 = vunpack.c.l.b16 %v3449
    %v5498 = vunpack.c.l.b16 %v3450
    %v5499 = vunpack.c.l.b16 %v3451
    %v5500 = vunpack.c.l.b16 %v3452
    %v5501 = vunpack.c.l.b16 %v3453
    %v5502 = vunpack.c.l.b16 %v3454
    %v5503 = vunpack.c.l.b16 %v3455
    %v5504 = vunpack.c.l.b16 %v3456
    %v5505 = vunpack.c.l.b16 %v3457
    %v5506 = vunpack.c.l.b16 %v3458
    %v5507 = vunpack.c.l.b16 %v3459
    %v5508 = vunpack.c.l.b16 %v3460
    %v5509 = vunpack.c.l.b16 %v3461
    %v5510 = vunpack.c.l.b16 %v3462
    %v5511 = vunpack.c.l.b16 %v3463
    %v5512 = vunpack.c.l.b16 %v3464
    %v5513 = vunpack.c.l.b16 %v3465
    %v5514 = vunpack.c.l.b16 %v3466
    %v5515 = vunpack.c.l.b16 %v3467
    %v5516 = vunpack.c.l.b16 %v3468
    %v5517 = vunpack.c.l.b16 %v3469
    %v5518 = vunpack.c.l.b16 %v3470
    %v5519 = vunpack.c.l.b16 %v3471
    %v5520 = vunpack.c.l.b16 %v3472
    %v5521 = vunpack.c.l.b16 %v3473
    %v5522 = vunpack.c.l.b16 %v3474
    %v5523 = vunpack.c.l.b16 %v3475
    %v5524 = vunpack.c.l.b16 %v3476
    %v5525 = vunpack.c.l.b16 %v3477
    %v5526 = vunpack.c.l.b16 %v3478
    %v5527 = vunpack.c.l.b16 %v3479
    %v5528 = vunpack.c.l.b16 %v3480
    %v5529 = vunpack.c.l.b16 %v3481
    %v5530 = vunpack.c.l.b16 %v3482
    %v5531 = vunpack.c.l.b16 %v3483
    %v5532 = vunpack.c.l.b16 %v3484
    %v5533 = vunpack.c.l.b16 %v3485
    %v5534 = vunpack.c.l.b16 %v3486
    %v5535 = vunpack.c.l.b16 %v3487
    %v5536 = vunpack.c.l.b16 %v3488
    %v5537 = vunpack.c.l.b16 %v3489
    %v5538 = vunpack.c.l.b16 %v3490
    %v5539 = vunpack.c.l.b16 %v3491
    %v5540 = vunpack.c.l.b16 %v3492
    %v5541 = vunpack.c.l.b16 %v3493
    %v5542 = vunpack.c.l.b16 %v3494
    %v5543 = vunpack.c.l.b16 %v3495
    %v5544 = vunpack.c.l.b16 %v3496
    %v5545 = vunpack.c.l.b16 %v3497
    %v5546 = vunpack.c.l.b16 %v3498
    %v5547 = vunpack.c.l.b16 %v3499
    %v5548 = vunpack.c.l.b16 %v3500
    %v5549 = vunpack.c.l.b16 %v3501
    %v5550 = vunpack.c.l.b16 %v3502
    %v5551 = vunpack.c.l.b16 %v3503
    %v5552 = vunpack.c.l.b16 %v3504
    %v5553 = vunpack.c.l.b16 %v3505
    %v5554 = vunpack.c.l.b16 %v3506
    %v5555 = vunpack.c.l.b16 %v3507
    %v5556 = vunpack.c.l.b16 %v3508
    %v5557 = vunpack.c.l.b16 %v3509
    %v5558 = vunpack.c.l.b16 %v3510
    %v5559 = vunpack.c.l.b16 %v3511
    %v5560 = vunpack.c.l.b16 %v3512
    %v5561 = vunpack.c.l.b16 %v3513
    %v5562 = vunpack.c.l.b16 %v3514
    %v5563 = vunpack.c.l.b16 %v3515
    %v5564 = vunpack.c.l.b16 %v3516
    %v5565 = vunpack.c.l.b16 %v3517
    %v5566 = vunpack.c.l.b16 %v3518
    %v5567 = vunpack.c.l.b16 %v3519
    %v5568 = vunpack.c.l.b16 %v3520
    %v5569 = vunpack.c.l.b16 %v3521
    %v5570 = vunpack.c.l.b16 %v3522
    %v5571 = vunpack.c.l.b16 %v3523
    %v5572 = vunpack.c.l.b16 %v3524
    %v5573 = vunpack.c.l.b16 %v3525
    %v5574 = vunpack.c.l.b16 %v3526
    %v5575 = vunpack.c.l.b16 %v3527
    %v5576 = vunpack.c.l.b16 %v3528
    %v5577 = vunpack.c.l.b16 %v3529
    %v5578 = vunpack.c.l.b16 %v3530
    %v5579 = vunpack.c.l.b16 %v3531
    %v5580 = vunpack.c.l.b16 %v3532
    %v5581 = vunpack.c.l.b16 %v3533
    %v5582 = vunpack.c.l.b16 %v3534
    %v5583 = vunpack.c.l.b16 %v3535
    %v5584 = vunpack.c.l.b16 %v3536
    %v5585 = vunpack.c.l.b16 %v3537
    %v5586 = vunpack.c.l.b16 %v3538
    %v5587 = vunpack.c.l.b16 %v3539
    %v5588 = vunpack.c.l.b16 %v3540
    %v5589 = vunpack.c.l.b16 %v3541
    %v5590 = vunpack.c.l.b16 %v3542
    %v5591 = vunpack.c.l.b16 %v3543
    %v5592 = vunpack.c.l.b16 %v3544
    %v5593 = vunpack.c.l.b16 %v3545
    %v5594 = vunpack.c.l.b16 %v3546
    %v5595 = vunpack.c.l.b16 %v3547
    %v5596 = vunpack.c.l.b16 %v3548
    %v5597 = vunpack.c.l.b16 %v3549
    %v5598 = vunpack.c.l.b16 %v3550
    %v5599 = vunpack.c.l.b16 %v3551
    %v5600 = vunpack.c.l.b16 %v3552
    %v5601 = vunpack.c.l.b16 %v3553
    %v5602 = vunpack.c.l.b16 %v3554
    %v5603 = vunpack.c.l.b16 %v3555
    %v5604 = vunpack.c.l.b16 %v3556
    %v5605 = vunpack.c.l.b16 %v3557
    %v5606 = vunpack.c.l.b16 %v3558
    %v5607 = vunpack.c.l.b16 %v3559
    %v5608 = vunpack.c.l.b16 %v3560
    %v5609 = vunpack.c.l.b16 %v3561
    %v5610 = vunpack.c.l.b16 %v3562
    %v5611 = vunpack.c.l.b16 %v3563
    %v5612 = vunpack.c.l.b16 %v3564
    %v5613 = vunpack.c.l.b16 %v3565
    %v5614 = vunpack.c.l.b16 %v3566
    %v5615 = vunpack.c.l.b16 %v3567
    %v5616 = vunpack.c.l.b16 %v3568
    %v5617 = vunpack.c.l.b16 %v3569
    %v5618 = vunpack.c.l.b16 %v3570
    %v5619 = vunpack.c.l.b16 %v3571
    %v5620 = vunpack.c.l.b16 %v3572
    %v5621 = vunpack.c.l.b16 %v3573
    %v5622 = vunpack.c.l.b16 %v3574
    %v5623 = vunpack.c.l.b16 %v3575
    %v5624 = vunpack.c.l.b16 %v3576
    %v5625 = vunpack.c.l.b16 %v3577
    %v5626 = vunpack.c.l.b16 %v3578
    %v5627 = vunpack.c.l.b16 %v3579
    %v5628 = vunpack.c.l.b16 %v3580
    %v5629 = vunpack.c.l.b16 %v3581
    %v5630 = vunpack.c.l.b16 %v3582
    %v5631 = vunpack.c.l.b16 %v3583
    %v5632 = vunpack.c.l.b16 %v3584
    %v5633 = vunpack.c.l.b16 %v3585
    %v5634 = vunpack.c.l.b16 %v3586
    %v5635 = vunpack.c.l.b16 %v3587
    %v5636 = vunpack.c.l.b16 %v3588
    %v5637 = vunpack.c.l.b16 %v3589
    %v5638 = vunpack.c.l.b16 %v3590
    %v5639 = vunpack.c.l.b16 %v3591
    %v5640 = vunpack.c.l.b16 %v3592
    %v5641 = vunpack.c.l.b16 %v3593
    %v5642 = vunpack.c.l.b16 %v3594
    %v5643 = vunpack.c.l.b16 %v3595
    %v5644 = vunpack.c.l.b16 %v3596
    %v5645 = vunpack.c.l.b16 %v3597
    %v5646 = vunpack.c.l.b16 %v3598
    %v5647 = vunpack.c.l.b16 %v3599
    %v5648 = vunpack.c.l.b16 %v3600
    %v5649 = vunpack.c.l.b16 %v3601
    %v5650 = vunpack.c.l.b16 %v3602
    %v5651 = vunpack.c.l.b16 %v3603
    %v5652 = vunpack.c.l.b16 %v3604
    %v5653 = vunpack.c.l.b16 %v3605
    %v5654 = vunpack.c.l.b16 %v3606
    %v5655 = vunpack.c.l.b16 %v3607
    %v5656 = vunpack.c.l.b16 %v3608
    %v5657 = vunpack.c.l.b16 %v3609
    %v5658 = vunpack.c.l.b16 %v3610
    %v5659 = vunpack.c.l.b16 %v3611
    %v5660 = vunpack.c.l.b16 %v3612
    %v5661 = vunpack.c.l.b16 %v3613
    %v5662 = vunpack.c.l.b16 %v3614
    %v5663 = vunpack.c.l.b16 %v3615
    %v5664 = vunpack.c.l.b16 %v3616
    %v5665 = vunpack.c.l.b16 %v3617
    %v5666 = vunpack.c.l.b16 %v3618
    %v5667 = vunpack.c.l.b16 %v3619
    %v5668 = vunpack.c.l.b16 %v3620
    %v5669 = vunpack.c.l.b16 %v3621
    %v5670 = vunpack.c.l.b16 %v3622
    %v5671 = vunpack.c.l.b16 %v3623
    %v5672 = vunpack.c.l.b16 %v3624
    %v5673 = vunpack.c.l.b16 %v3625
    %v5674 = vunpack.c.l.b16 %v3626
    %v5675 = vunpack.c.l.b16 %v3627
    %v5676 = vunpack.c.l.b16 %v3628
    %v5677 = vunpack.c.l.b16 %v3629
    %v5678 = vunpack.c.l.b16 %v3630
    %v5679 = vunpack.c.l.b16 %v3631
    %v5680 = vunpack.c.l.b16 %v3632
    %v5681 = vunpack.c.l.b16 %v3633
    %v5682 = vunpack.c.l.b16 %v3634
    %v5683 = vunpack.c.l.b16 %v3635
    %v5684 = vunpack.c.l.b16 %v3636
    %v5685 = vunpack.c.l.b16 %v3637
    %v5686 = vunpack.c.l.b16 %v3638
    %v5687 = vunpack.c.l.b16 %v3639
    %v5688 = vunpack.c.l.b16 %v3640
    %v5689 = vunpack.c.l.b16 %v3641
    %v5690 = vunpack.c.l.b16 %v3642
    %v5691 = vunpack.c.l.b16 %v3643
    %v5692 = vunpack.c.l.b16 %v3644
    %v5693 = vunpack.c.l.b16 %v3645
    %v5694 = vunpack.c.l.b16 %v3646
    %v5695 = vunpack.c.l.b16 %v3647
    %v5696 = vunpack.c.l.b16 %v3648
    %v5697 = vunpack.c.l.b16 %v3649
    %v5698 = vunpack.c.l.b16 %v3650
    %v5699 = vunpack.c.l.b16 %v3651
    %v5700 = vunpack.c.l.b16 %v3652
    %v5701 = vunpack.c.l.b16 %v3653
    %v5702 = vunpack.c.l.b16 %v3654
    %v5703 = vunpack.c.l.b16 %v3655
    %v5704 = vunpack.c.l.b16 %v3656
    %v5705 = vunpack.c.l.b16 %v3657
    %v5706 = vunpack.c.l.b16 %v3658
    %v5707 = vunpack.c.l.b16 %v3659
    %v5708 = vunpack.c.l.b16 %v3660
    %v5709 = vunpack.c.l.b16 %v3661
    %v5710 = vunpack.c.l.b16 %v3662
    %v5711 = vunpack.c.l.b16 %v3663
    %v5712 = vunpack.c.l.b16 %v3664
    %v5713 = vunpack.c.l.b16 %v3665
    %v5714 = vunpack.c.l.b16 %v3666
    %v5715 = vunpack.c.l.b16 %v3667
    %v5716 = vunpack.c.l.b16 %v3668
    %v5717 = vunpack.c.l.b16 %v3669
    %v5718 = vunpack.c.l.b16 %v3670
    %v5719 = vunpack.c.l.b16 %v3671
    %v5720 = vunpack.c.l.b16 %v3672
    %v5721 = vunpack.c.l.b16 %v3673
    %v5722 = vunpack.c.l.b16 %v3674
    %v5723 = vunpack.c.l.b16 %v3675
    %v5724 = vunpack.c.l.b16 %v3676
    %v5725 = vunpack.c.l.b16 %v3677
    %v5726 = vunpack.c.l.b16 %v3678
    %v5727 = vunpack.c.l.b16 %v3679
    %v5728 = vunpack.c.l.b16 %v3680
    %v5729 = vunpack.c.l.b16 %v3681
    %v5730 = vunpack.c.l.b16 %v3682
    %v5731 = vunpack.c.l.b16 %v3683
    %v5732 = vunpack.c.l.b16 %v3684
    %v5733 = vunpack.c.l.b16 %v3685
    %v5734 = vunpack.c.l.b16 %v3686
    %v5735 = vunpack.c.l.b16 %v3687
    %v5736 = vunpack.c.l.b16 %v3688
    %v5737 = vunpack.c.l.b16 %v3689
    %v5738 = vunpack.c.l.b16 %v3690
    %v5739 = vunpack.c.l.b16 %v3691
    %v5740 = vunpack.c.l.b16 %v3692
    %v5741 = vunpack.c.l.b16 %v3693
    %v5742 = vunpack.c.l.b16 %v3694
    %v5743 = vunpack.c.l.b16 %v3695
    %v5744 = vunpack.c.l.b16 %v3696
    %v5745 = vunpack.c.l.b16 %v3697
    %v5746 = vunpack.c.l.b16 %v3698
    %v5747 = vunpack.c.l.b16 %v3699
    %v5748 = vunpack.c.l.b16 %v3700
    %v5749 = vunpack.c.l.b16 %v3701
    %v5750 = vunpack.c.l.b16 %v3702
    %v5751 = vunpack.c.l.b16 %v3703
    %v5752 = vunpack.c.l.b16 %v3704
    %v5753 = vunpack.c.l.b16 %v3705
    %v5754 = vunpack.c.l.b16 %v3706
    %v5755 = vunpack.c.l.b16 %v3707
    %v5756 = vunpack.c.l.b16 %v3708
    %v5757 = vunpack.c.l.b16 %v3709
    %v5758 = vunpack.c.l.b16 %v3710
    %v5759 = vunpack.c.l.b16 %v3711
    %v5760 = vunpack.c.l.b16 %v3712
    %v5761 = vunpack.c.l.b16 %v3713
    %v5762 = vunpack.c.l.b16 %v3714
    %v5763 = vunpack.c.l.b16 %v3715
    %v5764 = vunpack.c.l.b16 %v3716
    %v5765 = vunpack.c.l.b16 %v3717
    %v5766 = vunpack.c.l.b16 %v3718
    %v5767 = vunpack.c.l.b16 %v3719
    %v5768 = vunpack.c.l.b16 %v3720
    %v5769 = vunpack.c.l.b16 %v3721
    %v5770 = vunpack.c.l.b16 %v3722
    %v5771 = vunpack.c.l.b16 %v3723
    %v5772 = vunpack.c.l.b16 %v3724
    %v5773 = vunpack.c.l.b16 %v3725
    %v5774 = vunpack.c.l.b16 %v3726
    %v5775 = vunpack.c.l.b16 %v3727
    %v5776 = vunpack.c.l.b16 %v3728
    %v5777 = vunpack.c.l.b16 %v3729
    %v5778 = vunpack.c.l.b16 %v3730
    %v5779 = vunpack.c.l.b16 %v3731
    %v5780 = vunpack.c.l.b16 %v3732
    %v5781 = vunpack.c.l.b16 %v3733
    %v5782 = vunpack.c.l.b16 %v3734
    %v5783 = vunpack.c.l.b16 %v3735
    %v5784 = vunpack.c.l.b16 %v3736
    %v5785 = vunpack.c.l.b16 %v3737
    %v5786 = vunpack.c.l.b16 %v3738
    %v5787 = vunpack.c.l.b16 %v3739
    %v5788 = vunpack.c.l.b16 %v3740
    %v5789 = vunpack.c.l.b16 %v3741
    %v5790 = vunpack.c.l.b16 %v3742
    %v5791 = vunpack.c.l.b16 %v3743
    %v5792 = vunpack.c.l.b16 %v3744
    %v5793 = vunpack.c.l.b16 %v3745
    %v5794 = vunpack.c.l.b16 %v3746
    %v5795 = vunpack.c.l.b16 %v3747
    %v5796 = vunpack.c.l.b16 %v3748
    %v5797 = vunpack.c.l.b16 %v3749
    %v5798 = vunpack.c.l.b16 %v3750
    %v5799 = vunpack.c.l.b16 %v3751
    %v5800 = vunpack.c.l.b16 %v3752
    %v5801 = vunpack.c.l.b16 %v3753
    %v5802 = vunpack.c.l.b16 %v3754
    %v5803 = vunpack.c.l.b16 %v3755
    %v5804 = vunpack.c.l.b16 %v3756
    %v5805 = vunpack.c.l.b16 %v3757
    %v5806 = vunpack.c.l.b16 %v3758
    %v5807 = vunpack.c.l.b16 %v3759
    %v5808 = vunpack.c.l.b16 %v3760
    %v5809 = vunpack.c.l.b16 %v3761
    %v5810 = vunpack.c.l.b16 %v3762
    %v5811 = vunpack.c.l.b16 %v3763
    %v5812 = vunpack.c.l.b16 %v3764
    %v5813 = vunpack.c.l.b16 %v3765
    %v5814 = vunpack.c.l.b16 %v3766
    %v5815 = vunpack.c.l.b16 %v3767
    %v5816 = vunpack.c.l.b16 %v3768
    %v5817 = vunpack.c.l.b16 %v3769
    %v5818 = vunpack.c.l.b16 %v3770
    %v5819 = vunpack.c.l.b16 %v3771
    %v5820 = vunpack.c.l.b16 %v3772
    %v5821 = vunpack.c.l.b16 %v3773
    %v5822 = vunpack.c.l.b16 %v3774
    %v5823 = vunpack.c.l.b16 %v3775
    %v5824 = vunpack.c.l.b16 %v3776
    %v5825 = vunpack.c.l.b16 %v3777
    %v5826 = vunpack.c.l.b16 %v3778
    %v5827 = vunpack.c.l.b16 %v3779
    %v5828 = vunpack.c.l.b16 %v3780
    %v5829 = vunpack.c.l.b16 %v3781
    %v5830 = vunpack.c.l.b16 %v3782
    %v5831 = vunpack.c.l.b16 %v3783
    %v5832 = vunpack.c.l.b16 %v3784
    %v5833 = vunpack.c.l.b16 %v3785
    %v5834 = vunpack.c.l.b16 %v3786
    %v5835 = vunpack.c.l.b16 %v3787
    %v5836 = vunpack.c.l.b16 %v3788
    %v5837 = vunpack.c.l.b16 %v3789
    %v5838 = vunpack.c.l.b16 %v3790
    %v5839 = vunpack.c.l.b16 %v3791
    %v5840 = vunpack.c.l.b16 %v3792
    %v5841 = vunpack.c.l.b16 %v3793
    %v5842 = vunpack.c.l.b16 %v3794
    %v5843 = vunpack.c.l.b16 %v3795
    %v5844 = vunpack.c.l.b16 %v3796
    %v5845 = vunpack.c.l.b16 %v3797
    %v5846 = vunpack.c.l.b16 %v3798
    %v5847 = vunpack.c.l.b16 %v3799
    %v5848 = vunpack.c.l.b16 %v3800
    %v5849 = vunpack.c.l.b16 %v3801
    %v5850 = vunpack.c.l.b16 %v3802
    %v5851 = vunpack.c.l.b16 %v3803
    %v5852 = vunpack.c.l.b16 %v3804
    %v5853 = vunpack.c.l.b16 %v3805
    %v5854 = vunpack.c.l.b16 %v3806
    %v5855 = vunpack.c.l.b16 %v3807
    %v5856 = vunpack.c.l.b16 %v3808
    %v5857 = vunpack.c.l.b16 %v3809
    %v5858 = vunpack.c.l.b16 %v3810
    %v5859 = vunpack.c.l.b16 %v3811
    %v5860 = vunpack.c.l.b16 %v3812
    %v5861 = vunpack.c.l.b16 %v3813
    %v5862 = vunpack.c.l.b16 %v3814
    %v5863 = vunpack.c.l.b16 %v3815
    %v5864 = vunpack.c.l.b16 %v3816
    %v5865 = vunpack.c.l.b16 %v3817
    %v5866 = vunpack.c.l.b16 %v3818
    %v5867 = vunpack.c.l.b16 %v3819
    %v5868 = vunpack.c.l.b16 %v3820
    %v5869 = vunpack.c.l.b16 %v3821
    %v5870 = vunpack.c.l.b16 %v3822
    %v5871 = vunpack.c.l.b16 %v3823
    %v5872 = vunpack.c.l.b16 %v3824
    %v5873 = vunpack.c.l.b16 %v3825
    %v5874 = vunpack.c.l.b16 %v3826
    %v5875 = vpack.c.b16 %v4852, %v4851
    %v5876 = vpack.c.b16 %v4854, %v4853
    %v5877 = vpack.c.b16 %v4856, %v4855
    %v5878 = vpack.c.b16 %v4858, %v4857
    %v5879 = vpack.c.b16 %v4860, %v4859
    %v5880 = vpack.c.b16 %v4862, %v4861
    %v5881 = vpack.c.b16 %v4864, %v4863
    %v5882 = vpack.c.b16 %v4866, %v4865
    %v5883 = vpack.c.b16 %v4868, %v4867
    %v5884 = vpack.c.b16 %v4870, %v4869
    %v5885 = vpack.c.b16 %v4872, %v4871
    %v5886 = vpack.c.b16 %v4874, %v4873
    %v5887 = vpack.c.b16 %v4876, %v4875
    %v5888 = vpack.c.b16 %v4878, %v4877
    %v5889 = vpack.c.b16 %v4880, %v4879
    %v5890 = vpack.c.b16 %v4882, %v4881
    %v5891 = vpack.c.b16 %v4884, %v4883
    %v5892 = vpack.c.b16 %v4886, %v4885
    %v5893 = vpack.c.b16 %v4888, %v4887
    %v5894 = vpack.c.b16 %v4890, %v4889
    %v5895 = vpack.c.b16 %v4892, %v4891
    %v5896 = vpack.c.b16 %v4894, %v4893
    %v5897 = vpack.c.b16 %v4896, %v4895
    %v5898 = vpack.c.b16 %v4898, %v4897
    %v5899 = vpack.c.b16 %v4900, %v4899
    %v5900 = vpack.c.b16 %v4902, %v4901
    %v5901 = vpack.c.b16 %v4904, %v4903
    %v5902 = vpack.c.b16 %v4906, %v4905
    %v5903 = vpack.c.b16 %v4908, %v4907
    %v5904 = vpack.c.b16 %v4910, %v4909
    %v5905 = vpack.c.b16 %v4912, %v4911
    %v5906 = vpack.c.b16 %v4914, %v4913
    %v5907 = vpack.c.b16 %v4916, %v4915
    %v5908 = vpack.c.b16 %v4918, %v4917
    %v5909 = vpack.c.b16 %v4920, %v4919
    %v5910 = vpack.c.b16 %v4922, %v4921
    %v5911 = vpack.c.b16 %v4924, %v4923
    %v5912 = vpack.c.b16 %v4926, %v4925
    %v5913 = vpack.c.b16 %v4928, %v4927
    %v5914 = vpack.c.b16 %v4930, %v4929
    %v5915 = vpack.c.b16 %v4932, %v4931
    %v5916 = vpack.c.b16 %v4934, %v4933
    %v5917 = vpack.c.b16 %v4936, %v4935
    %v5918 = vpack.c.b16 %v4938, %v4937
    %v5919 = vpack.c.b16 %v4940, %v4939
    %v5920 = vpack.c.b16 %v4942, %v4941
    %v5921 = vpack.c.b16 %v4944, %v4943
    %v5922 = vpack.c.b16 %v4946, %v4945
    %v5923 = vpack.c.b16 %v4948, %v4947
    %v5924 = vpack.c.b16 %v4950, %v4949
    %v5925 = vpack.c.b16 %v4952, %v4951
    %v5926 = vpack.c.b16 %v4954, %v4953
    %v5927 = vpack.c.b16 %v4956, %v4955
    %v5928 = vpack.c.b16 %v4958, %v4957
    %v5929 = vpack.c.b16 %v4960, %v4959
    %v5930 = vpack.c.b16 %v4962, %v4961
    %v5931 = vpack.c.b16 %v4964, %v4963
    %v5932 = vpack.c.b16 %v4966, %v4965
    %v5933 = vpack.c.b16 %v4968, %v4967
    %v5934 = vpack.c.b16 %v4970, %v4969
    %v5935 = vpack.c.b16 %v4972, %v4971
    %v5936 = vpack.c.b16 %v4974, %v4973
    %v5937 = vpack.c.b16 %v4976, %v4975
    %v5938 = vpack.c.b16 %v4978, %v4977
    %v5939 = vpack.c.b16 %v4980, %v4979
    %v5940 = vpack.c.b16 %v4982, %v4981
    %v5941 = vpack.c.b16 %v4984, %v4983
    %v5942 = vpack.c.b16 %v4986, %v4985
    %v5943 = vpack.c.b16 %v4988, %v4987
    %v5944 = vpack.c.b16 %v4990, %v4989
    %v5945 = vpack.c.b16 %v4992, %v4991
    %v5946 = vpack.c.b16 %v4994, %v4993
    %v5947 = vpack.c.b16 %v4996, %v4995
    %v5948 = vpack.c.b16 %v4998, %v4997
    %v5949 = vpack.c.b16 %v5000, %v4999
    %v5950 = vpack.c.b16 %v5002, %v5001
    %v5951 = vpack.c.b16 %v5004, %v5003
    %v5952 = vpack.c.b16 %v5006, %v5005
    %v5953 = vpack.c.b16 %v5008, %v5007
    %v5954 = vpack.c.b16 %v5010, %v5009
    %v5955 = vpack.c.b16 %v5012, %v5011
    %v5956 = vpack.c.b16 %v5014, %v5013
    %v5957 = vpack.c.b16 %v5016, %v5015
    %v5958 = vpack.c.b16 %v5018, %v5017
    %v5959 = vpack.c.b16 %v5020, %v5019
    %v5960 = vpack.c.b16 %v5022, %v5021
    %v5961 = vpack.c.b16 %v5024, %v5023
    %v5962 = vpack.c.b16 %v5026, %v5025
    %v5963 = vpack.c.b16 %v5028, %v5027
    %v5964 = vpack.c.b16 %v5030, %v5029
    %v5965 = vpack.c.b16 %v5032, %v5031
    %v5966 = vpack.c.b16 %v5034, %v5033
    %v5967 = vpack.c.b16 %v5036, %v5035
    %v5968 = vpack.c.b16 %v5038, %v5037
    %v5969 = vpack.c.b16 %v5040, %v5039
    %v5970 = vpack.c.b16 %v5042, %v5041
    %v5971 = vpack.c.b16 %v5044, %v5043
    %v5972 = vpack.c.b16 %v5046, %v5045
    %v5973 = vpack.c.b16 %v5048, %v5047
    %v5974 = vpack.c.b16 %v5050, %v5049
    %v5975 = vpack.c.b16 %v5052, %v5051
    %v5976 = vpack.c.b16 %v5054, %v5053
    %v5977 = vpack.c.b16 %v5056, %v5055
    %v5978 = vpack.c.b16 %v5058, %v5057
    %v5979 = vpack.c.b16 %v5060, %v5059
    %v5980 = vpack.c.b16 %v5062, %v5061
    %v5981 = vpack.c.b16 %v5064, %v5063
    %v5982 = vpack.c.b16 %v5066, %v5065
    %v5983 = vpack.c.b16 %v5068, %v5067
    %v5984 = vpack.c.b16 %v5070, %v5069
    %v5985 = vpack.c.b16 %v5072, %v5071
    %v5986 = vpack.c.b16 %v5074, %v5073
    %v5987 = vpack.c.b16 %v5076, %v5075
    %v5988 = vpack.c.b16 %v5078, %v5077
    %v5989 = vpack.c.b16 %v5080, %v5079
    %v5990 = vpack.c.b16 %v5082, %v5081
    %v5991 = vpack.c.b16 %v5084, %v5083
    %v5992 = vpack.c.b16 %v5086, %v5085
    %v5993 = vpack.c.b16 %v5088, %v5087
    %v5994 = vpack.c.b16 %v5090, %v5089
    %v5995 = vpack.c.b16 %v5092, %v5091
    %v5996 = vpack.c.b16 %v5094, %v5093
    %v5997 = vpack.c.b16 %v5096, %v5095
    %v5998 = vpack.c.b16 %v5098, %v5097
    %v5999 = vpack.c.b16 %v5100, %v5099
    %v6000 = vpack.c.b16 %v5102, %v5101
    %v6001 = vpack.c.b16 %v5104, %v5103
    %v6002 = vpack.c.b16 %v5106, %v5105
    %v6003 = vpack.c.b16 %v5108, %v5107
    %v6004 = vpack.c.b16 %v5110, %v5109
    %v6005 = vpack.c.b16 %v5112, %v5111
    %v6006 = vpack.c.b16 %v5114, %v5113
    %v6007 = vpack.c.b16 %v5116, %v5115
    %v6008 = vpack.c.b16 %v5118, %v5117
    %v6009 = vpack.c.b16 %v5120, %v5119
    %v6010 = vpack.c.b16 %v5122, %v5121
    %v6011 = vpack.c.b16 %v5124, %v5123
    %v6012 = vpack.c.b16 %v5126, %v5125
    %v6013 = vpack.c.b16 %v5128, %v5127
    %v6014 = vpack.c.b16 %v5130, %v5129
    %v6015 = vpack.c.b16 %v5132, %v5131
    %v6016 = vpack.c.b16 %v5134, %v5133
    %v6017 = vpack.c.b16 %v5136, %v5135
    %v6018 = vpack.c.b16 %v5138, %v5137
    %v6019 = vpack.c.b16 %v5140, %v5139
    %v6020 = vpack.c.b16 %v5142, %v5141
    %v6021 = vpack.c.b16 %v5144, %v5143
    %v6022 = vpack.c.b16 %v5146, %v5145
    %v6023 = vpack.c.b16 %v5148, %v5147
    %v6024 = vpack.c.b16 %v5150, %v5149
    %v6025 = vpack.c.b16 %v5152, %v5151
    %v6026 = vpack.c.b16 %v5154, %v5153
    %v6027 = vpack.c.b16 %v5156, %v5155
    %v6028 = vpack.c.b16 %v5158, %v5157
    %v6029 = vpack.c.b16 %v5160, %v5159
    %v6030 = vpack.c.b16 %v5162, %v5161
    %v6031 = vpack.c.b16 %v5164, %v5163
    %v6032 = vpack.c.b16 %v5166, %v5165
    %v6033 = vpack.c.b16 %v5168, %v5167
    %v6034 = vpack.c.b16 %v5170, %v5169
    %v6035 = vpack.c.b16 %v5172, %v5171
    %v6036 = vpack.c.b16 %v5174, %v5173
    %v6037 = vpack.c.b16 %v5176, %v5175
    %v6038 = vpack.c.b16 %v5178, %v5177
    %v6039 = vpack.c.b16 %v5180, %v5179
    %v6040 = vpack.c.b16 %v5182, %v5181
    %v6041 = vpack.c.b16 %v5184, %v5183
    %v6042 = vpack.c.b16 %v5186, %v5185
    %v6043 = vpack.c.b16 %v5188, %v5187
    %v6044 = vpack.c.b16 %v5190, %v5189
    %v6045 = vpack.c.b16 %v5192, %v5191
    %v6046 = vpack.c.b16 %v5194, %v5193
    %v6047 = vpack.c.b16 %v5196, %v5195
    %v6048 = vpack.c.b16 %v5198, %v5197
    %v6049 = vpack.c.b16 %v5200, %v5199
    %v6050 = vpack.c.b16 %v5202, %v5201
    %v6051 = vpack.c.b16 %v5204, %v5203
    %v6052 = vpack.c.b16 %v5206, %v5205
    %v6053 = vpack.c.b16 %v5208, %v5207
    %v6054 = vpack.c.b16 %v5210, %v5209
    %v6055 = vpack.c.b16 %v5212, %v5211
    %v6056 = vpack.c.b16 %v5214, %v5213
    %v6057 = vpack.c.b16 %v5216, %v5215
    %v6058 = vpack.c.b16 %v5218, %v5217
    %v6059 = vpack.c.b16 %v5220, %v5219
    %v6060 = vpack.c.b16 %v5222, %v5221
    %v6061 = vpack.c.b16 %v5224, %v5223
    %v6062 = vpack.c.b16 %v5226, %v5225
    %v6063 = vpack.c.b16 %v5228, %v5227
    %v6064 = vpack.c.b16 %v5230, %v5229
    %v6065 = vpack.c.b16 %v5232, %v5231
    %v6066 = vpack.c.b16 %v5234, %v5233
    %v6067 = vpack.c.b16 %v5236, %v5235
    %v6068 = vpack.c.b16 %v5238, %v5237
    %v6069 = vpack.c.b16 %v5240, %v5239
    %v6070 = vpack.c.b16 %v5242, %v5241
    %v6071 = vpack.c.b16 %v5244, %v5243
    %v6072 = vpack.c.b16 %v5246, %v5245
    %v6073 = vpack.c.b16 %v5248, %v5247
    %v6074 = vpack.c.b16 %v5250, %v5249
    %v6075 = vpack.c.b16 %v5252, %v5251
    %v6076 = vpack.c.b16 %v5254, %v5253
    %v6077 = vpack.c.b16 %v5256, %v5255
    %v6078 = vpack.c.b16 %v5258, %v5257
    %v6079 = vpack.c.b16 %v5260, %v5259
    %v6080 = vpack.c.b16 %v5262, %v5261
    %v6081 = vpack.c.b16 %v5264, %v5263
    %v6082 = vpack.c.b16 %v5266, %v5265
    %v6083 = vpack.c.b16 %v5268, %v5267
    %v6084 = vpack.c.b16 %v5270, %v5269
    %v6085 = vpack.c.b16 %v5272, %v5271
    %v6086 = vpack.c.b16 %v5274, %v5273
    %v6087 = vpack.c.b16 %v5276, %v5275
    %v6088 = vpack.c.b16 %v5278, %v5277
    %v6089 = vpack.c.b16 %v5280, %v5279
    %v6090 = vpack.c.b16 %v5282, %v5281
    %v6091 = vpack.c.b16 %v5284, %v5283
    %v6092 = vpack.c.b16 %v5286, %v5285
    %v6093 = vpack.c.b16 %v5288, %v5287
    %v6094 = vpack.c.b16 %v5290, %v5289
    %v6095 = vpack.c.b16 %v5292, %v5291
    %v6096 = vpack.c.b16 %v5294, %v5293
    %v6097 = vpack.c.b16 %v5296, %v5295
    %v6098 = vpack.c.b16 %v5298, %v5297
    %v6099 = vpack.c.b16 %v5300, %v5299
    %v6100 = vpack.c.b16 %v5302, %v5301
    %v6101 = vpack.c.b16 %v5304, %v5303
    %v6102 = vpack.c.b16 %v5306, %v5305
    %v6103 = vpack.c.b16 %v5308, %v5307
    %v6104 = vpack.c.b16 %v5310, %v5309
    %v6105 = vpack.c.b16 %v5312, %v5311
    %v6106 = vpack.c.b16 %v5314, %v5313
    %v6107 = vpack.c.b16 %v5316, %v5315
    %v6108 = vpack.c.b16 %v5318, %v5317
    %v6109 = vpack.c.b16 %v5320, %v5319
    %v6110 = vpack.c.b16 %v5322, %v5321
    %v6111 = vpack.c.b16 %v5324, %v5323
    %v6112 = vpack.c.b16 %v5326, %v5325
    %v6113 = vpack.c.b16 %v5328, %v5327
    %v6114 = vpack.c.b16 %v5330, %v5329
    %v6115 = vpack.c.b16 %v5332, %v5331
    %v6116 = vpack.c.b16 %v5334, %v5333
    %v6117 = vpack.c.b16 %v5336, %v5335
    %v6118 = vpack.c.b16 %v5338, %v5337
    %v6119 = vpack.c.b16 %v5340, %v5339
    %v6120 = vpack.c.b16 %v5342, %v5341
    %v6121 = vpack.c.b16 %v5344, %v5343
    %v6122 = vpack.c.b16 %v5346, %v5345
    %v6123 = vpack.c.b16 %v5348, %v5347
    %v6124 = vpack.c.b16 %v5350, %v5349
    %v6125 = vpack.c.b16 %v5352, %v5351
    %v6126 = vpack.c.b16 %v5354, %v5353
    %v6127 = vpack.c.b16 %v5356, %v5355
    %v6128 = vpack.c.b16 %v5358, %v5357
    %v6129 = vpack.c.b16 %v5360, %v5359
    %v6130 = vpack.c.b16 %v5362, %v5361
    %v6131 = vpack.c.b16 %v5364, %v5363
    %v6132 = vpack.c.b16 %v5366, %v5365
    %v6133 = vpack.c.b16 %v5368, %v5367
    %v6134 = vpack.c.b16 %v5370, %v5369
    %v6135 = vpack.c.b16 %v5372, %v5371
    %v6136 = vpack.c.b16 %v5374, %v5373
    %v6137 = vpack.c.b16 %v5376, %v5375
    %v6138 = vpack.c.b16 %v5378, %v5377
    %v6139 = vpack.c.b16 %v5380, %v5379
    %v6140 = vpack.c.b16 %v5382, %v5381
    %v6141 = vpack.c.b16 %v5384, %v5383
    %v6142 = vpack.c.b16 %v5386, %v5385
    %v6143 = vpack.c.b16 %v5388, %v5387
    %v6144 = vpack.c.b16 %v5390, %v5389
    %v6145 = vpack.c.b16 %v5392, %v5391
    %v6146 = vpack.c.b16 %v5394, %v5393
    %v6147 = vpack.c.b16 %v5396, %v5395
    %v6148 = vpack.c.b16 %v5398, %v5397
    %v6149 = vpack.c.b16 %v5400, %v5399
    %v6150 = vpack.c.b16 %v5402, %v5401
    %v6151 = vpack.c.b16 %v5404, %v5403
    %v6152 = vpack.c.b16 %v5406, %v5405
    %v6153 = vpack.c.b16 %v5408, %v5407
    %v6154 = vpack.c.b16 %v5410, %v5409
    %v6155 = vpack.c.b16 %v5412, %v5411
    %v6156 = vpack.c.b16 %v5414, %v5413
    %v6157 = vpack.c.b16 %v5416, %v5415
    %v6158 = vpack.c.b16 %v5418, %v5417
    %v6159 = vpack.c.b16 %v5420, %v5419
    %v6160 = vpack.c.b16 %v5422, %v5421
    %v6161 = vpack.c.b16 %v5424, %v5423
    %v6162 = vpack.c.b16 %v5426, %v5425
    %v6163 = vpack.c.b16 %v5428, %v5427
    %v6164 = vpack.c.b16 %v5430, %v5429
    %v6165 = vpack.c.b16 %v5432, %v5431
    %v6166 = vpack.c.b16 %v5434, %v5433
    %v6167 = vpack.c.b16 %v5436, %v5435
    %v6168 = vpack.c.b16 %v5438, %v5437
    %v6169 = vpack.c.b16 %v5440, %v5439
    %v6170 = vpack.c.b16 %v5442, %v5441
    %v6171 = vpack.c.b16 %v5444, %v5443
    %v6172 = vpack.c.b16 %v5446, %v5445
    %v6173 = vpack.c.b16 %v5448, %v5447
    %v6174 = vpack.c.b16 %v5450, %v5449
    %v6175 = vpack.c.b16 %v5452, %v5451
    %v6176 = vpack.c.b16 %v5454, %v5453
    %v6177 = vpack.c.b16 %v5456, %v5455
    %v6178 = vpack.c.b16 %v5458, %v5457
    %v6179 = vpack.c.b16 %v5460, %v5459
    %v6180 = vpack.c.b16 %v5462, %v5461
    %v6181 = vpack.c.b16 %v5464, %v5463
    %v6182 = vpack.c.b16 %v5466, %v5465
    %v6183 = vpack.c.b16 %v5468, %v5467
    %v6184 = vpack.c.b16 %v5470, %v5469
    %v6185 = vpack.c.b16 %v5472, %v5471
    %v6186 = vpack.c.b16 %v5474, %v5473
    %v6187 = vpack.c.b16 %v5476, %v5475
    %v6188 = vpack.c.b16 %v5478, %v5477
    %v6189 = vpack.c.b16 %v5480, %v5479
    %v6190 = vpack.c.b16 %v5482, %v5481
    %v6191 = vpack.c.b16 %v5484, %v5483
    %v6192 = vpack.c.b16 %v5486, %v5485
    %v6193 = vpack.c.b16 %v5488, %v5487
    %v6194 = vpack.c.b16 %v5490, %v5489
    %v6195 = vpack.c.b16 %v5492, %v5491
    %v6196 = vpack.c.b16 %v5494, %v5493
    %v6197 = vpack.c.b16 %v5496, %v5495
    %v6198 = vpack.c.b16 %v5498, %v5497
    %v6199 = vpack.c.b16 %v5500, %v5499
    %v6200 = vpack.c.b16 %v5502, %v5501
    %v6201 = vpack.c.b16 %v5504, %v5503
    %v6202 = vpack.c.b16 %v5506, %v5505
    %v6203 = vpack.c.b16 %v5508, %v5507
    %v6204 = vpack.c.b16 %v5510, %v5509
    %v6205 = vpack.c.b16 %v5512, %v5511
    %v6206 = vpack.c.b16 %v5514, %v5513
    %v6207 = vpack.c.b16 %v5516, %v5515
    %v6208 = vpack.c.b16 %v5518, %v5517
    %v6209 = vpack.c.b16 %v5520, %v5519
    %v6210 = vpack.c.b16 %v5522, %v5521
    %v6211 = vpack.c.b16 %v5524, %v5523
    %v6212 = vpack.c.b16 %v5526, %v5525
    %v6213 = vpack.c.b16 %v5528, %v5527
    %v6214 = vpack.c.b16 %v5530, %v5529
    %v6215 = vpack.c.b16 %v5532, %v5531
    %v6216 = vpack.c.b16 %v5534, %v5533
    %v6217 = vpack.c.b16 %v5536, %v5535
    %v6218 = vpack.c.b16 %v5538, %v5537
    %v6219 = vpack.c.b16 %v5540, %v5539
    %v6220 = vpack.c.b16 %v5542, %v5541
    %v6221 = vpack.c.b16 %v5544, %v5543
    %v6222 = vpack.c.b16 %v5546, %v5545
    %v6223 = vpack.c.b16 %v5548, %v5547
    %v6224 = vpack.c.b16 %v5550, %v5549
    %v6225 = vpack.c.b16 %v5552, %v5551
    %v6226 = vpack.c.b16 %v5554, %v5553
    %v6227 = vpack.c.b16 %v5556, %v5555
    %v6228 = vpack.c.b16 %v5558, %v5557
    %v6229 = vpack.c.b16 %v5560, %v5559
    %v6230 = vpack.c.b16 %v5562, %v5561
    %v6231 = vpack.c.b16 %v5564, %v5563
    %v6232 = vpack.c.b16 %v5566, %v5565
    %v6233 = vpack.c.b16 %v5568, %v5567
    %v6234 = vpack.c.b16 %v5570, %v5569
    %v6235 = vpack.c.b16 %v5572, %v5571
    %v6236 = vpack.c.b16 %v5574, %v5573
    %v6237 = vpack.c.b16 %v5576, %v5575
    %v6238 = vpack.c.b16 %v5578, %v5577
    %v6239 = vpack.c.b16 %v5580, %v5579
    %v6240 = vpack.c.b16 %v5582, %v5581
    %v6241 = vpack.c.b16 %v5584, %v5583
    %v6242 = vpack.c.b16 %v5586, %v5585
    %v6243 = vpack.c.b16 %v5588, %v5587
    %v6244 = vpack.c.b16 %v5590, %v5589
    %v6245 = vpack.c.b16 %v5592, %v5591
    %v6246 = vpack.c.b16 %v5594, %v5593
    %v6247 = vpack.c.b16 %v5596, %v5595
    %v6248 = vpack.c.b16 %v5598, %v5597
    %v6249 = vpack.c.b16 %v5600, %v5599
    %v6250 = vpack.c.b16 %v5602, %v5601
    %v6251 = vpack.c.b16 %v5604, %v5603
    %v6252 = vpack.c.b16 %v5606, %v5605
    %v6253 = vpack.c.b16 %v5608, %v5607
    %v6254 = vpack.c.b16 %v5610, %v5609
    %v6255 = vpack.c.b16 %v5612, %v5611
    %v6256 = vpack.c.b16 %v5614, %v5613
    %v6257 = vpack.c.b16 %v5616, %v5615
    %v6258 = vpack.c.b16 %v5618, %v5617
    %v6259 = vpack.c.b16 %v5620, %v5619
    %v6260 = vpack.c.b16 %v5622, %v5621
    %v6261 = vpack.c.b16 %v5624, %v5623
    %v6262 = vpack.c.b16 %v5626, %v5625
    %v6263 = vpack.c.b16 %v5628, %v5627
    %v6264 = vpack.c.b16 %v5630, %v5629
    %v6265 = vpack.c.b16 %v5632, %v5631
    %v6266 = vpack.c.b16 %v5634, %v5633
    %v6267 = vpack.c.b16 %v5636, %v5635
    %v6268 = vpack.c.b16 %v5638, %v5637
    %v6269 = vpack.c.b16 %v5640, %v5639
    %v6270 = vpack.c.b16 %v5642, %v5641
    %v6271 = vpack.c.b16 %v5644, %v5643
    %v6272 = vpack.c.b16 %v5646, %v5645
    %v6273 = vpack.c.b16 %v5648, %v5647
    %v6274 = vpack.c.b16 %v5650, %v5649
    %v6275 = vpack.c.b16 %v5652, %v5651
    %v6276 = vpack.c.b16 %v5654, %v5653
    %v6277 = vpack.c.b16 %v5656, %v5655
    %v6278 = vpack.c.b16 %v5658, %v5657
    %v6279 = vpack.c.b16 %v5660, %v5659
    %v6280 = vpack.c.b16 %v5662, %v5661
    %v6281 = vpack.c.b16 %v5664, %v5663
    %v6282 = vpack.c.b16 %v5666, %v5665
    %v6283 = vpack.c.b16 %v5668, %v5667
    %v6284 = vpack.c.b16 %v5670, %v5669
    %v6285 = vpack.c.b16 %v5672, %v5671
    %v6286 = vpack.c.b16 %v5674, %v5673
    %v6287 = vpack.c.b16 %v5676, %v5675
    %v6288 = vpack.c.b16 %v5678, %v5677
    %v6289 = vpack.c.b16 %v5680, %v5679
    %v6290 = vpack.c.b16 %v5682, %v5681
    %v6291 = vpack.c.b16 %v5684, %v5683
    %v6292 = vpack.c.b16 %v5686, %v5685
    %v6293 = vpack.c.b16 %v5688, %v5687
    %v6294 = vpack.c.b16 %v5690, %v5689
    %v6295 = vpack.c.b16 %v5692, %v5691
    %v6296 = vpack.c.b16 %v5694, %v5693
    %v6297 = vpack.c.b16 %v5696, %v5695
    %v6298 = vpack.c.b16 %v5698, %v5697
    %v6299 = vpack.c.b16 %v5700, %v5699
    %v6300 = vpack.c.b16 %v5702, %v5701
    %v6301 = vpack.c.b16 %v5704, %v5703
    %v6302 = vpack.c.b16 %v5706, %v5705
    %v6303 = vpack.c.b16 %v5708, %v5707
    %v6304 = vpack.c.b16 %v5710, %v5709
    %v6305 = vpack.c.b16 %v5712, %v5711
    %v6306 = vpack.c.b16 %v5714, %v5713
    %v6307 = vpack.c.b16 %v5716, %v5715
    %v6308 = vpack.c.b16 %v5718, %v5717
    %v6309 = vpack.c.b16 %v5720, %v5719
    %v6310 = vpack.c.b16 %v5722, %v5721
    %v6311 = vpack.c.b16 %v5724, %v5723
    %v6312 = vpack.c.b16 %v5726, %v5725
    %v6313 = vpack.c.b16 %v5728, %v5727
    %v6314 = vpack.c.b16 %v5730, %v5729
    %v6315 = vpack.c.b16 %v5732, %v5731
    %v6316 = vpack.c.b16 %v5734, %v5733
    %v6317 = vpack.c.b16 %v5736, %v5735
    %v6318 = vpack.c.b16 %v5738, %v5737
    %v6319 = vpack.c.b16 %v5740, %v5739
    %v6320 = vpack.c.b16 %v5742, %v5741
    %v6321 = vpack.c.b16 %v5744, %v5743
    %v6322 = vpack.c.b16 %v5746, %v5745
    %v6323 = vpack.c.b16 %v5748, %v5747
    %v6324 = vpack.c.b16 %v5750, %v5749
    %v6325 = vpack.c.b16 %v5752, %v5751
    %v6326 = vpack.c.b16 %v5754, %v5753
    %v6327 = vpack.c.b16 %v5756, %v5755
    %v6328 = vpack.c.b16 %v5758, %v5757
    %v6329 = vpack.c.b16 %v5760, %v5759
    %v6330 = vpack.c.b16 %v5762, %v5761
    %v6331 = vpack.c.b16 %v5764, %v5763
    %v6332 = vpack.c.b16 %v5766, %v5765
    %v6333 = vpack.c.b16 %v5768, %v5767
    %v6334 = vpack.c.b16 %v5770, %v5769
    %v6335 = vpack.c.b16 %v5772, %v5771
    %v6336 = vpack.c.b16 %v5774, %v5773
    %v6337 = vpack.c.b16 %v5776, %v5775
    %v6338 = vpack.c.b16 %v5778, %v5777
    %v6339 = vpack.c.b16 %v5780, %v5779
    %v6340 = vpack.c.b16 %v5782, %v5781
    %v6341 = vpack.c.b16 %v5784, %v5783
    %v6342 = vpack.c.b16 %v5786, %v5785
    %v6343 = vpack.c.b16 %v5788, %v5787
    %v6344 = vpack.c.b16 %v5790, %v5789
    %v6345 = vpack.c.b16 %v5792, %v5791
    %v6346 = vpack.c.b16 %v5794, %v5793
    %v6347 = vpack.c.b16 %v5796, %v5795
    %v6348 = vpack.c.b16 %v5798, %v5797
    %v6349 = vpack.c.b16 %v5800, %v5799
    %v6350 = vpack.c.b16 %v5802, %v5801
    %v6351 = vpack.c.b16 %v5804, %v5803
    %v6352 = vpack.c.b16 %v5806, %v5805
    %v6353 = vpack.c.b16 %v5808, %v5807
    %v6354 = vpack.c.b16 %v5810, %v5809
    %v6355 = vpack.c.b16 %v5812, %v5811
    %v6356 = vpack.c.b16 %v5814, %v5813
    %v6357 = vpack.c.b16 %v5816, %v5815
    %v6358 = vpack.c.b16 %v5818, %v5817
    %v6359 = vpack.c.b16 %v5820, %v5819
    %v6360 = vpack.c.b16 %v5822, %v5821
    %v6361 = vpack.c.b16 %v5824, %v5823
    %v6362 = vpack.c.b16 %v5826, %v5825
    %v6363 = vpack.c.b16 %v5828, %v5827
    %v6364 = vpack.c.b16 %v5830, %v5829
    %v6365 = vpack.c.b16 %v5832, %v5831
    %v6366 = vpack.c.b16 %v5834, %v5833
    %v6367 = vpack.c.b16 %v5836, %v5835
    %v6368 = vpack.c.b16 %v5838, %v5837
    %v6369 = vpack.c.b16 %v5840, %v5839
    %v6370 = vpack.c.b16 %v5842, %v5841
    %v6371 = vpack.c.b16 %v5844, %v5843
    %v6372 = vpack.c.b16 %v5846, %v5845
    %v6373 = vpack.c.b16 %v5848, %v5847
    %v6374 = vpack.c.b16 %v5850, %v5849
    %v6375 = vpack.c.b16 %v5852, %v5851
    %v6376 = vpack.c.b16 %v5854, %v5853
    %v6377 = vpack.c.b16 %v5856, %v5855
    %v6378 = vpack.c.b16 %v5858, %v5857
    %v6379 = vpack.c.b16 %v5860, %v5859
    %v6380 = vpack.c.b16 %v5862, %v5861
    %v6381 = vpack.c.b16 %v5864, %v5863
    %v6382 = vpack.c.b16 %v5866, %v5865
    %v6383 = vpack.c.b16 %v5868, %v5867
    %v6384 = vpack.c.b16 %v5870, %v5869
    %v6385 = vpack.c.b16 %v5872, %v5871
    %v6386 = vpack.c.b16 %v5874, %v5873
    %6899 = vmatprep.subr.bf16.mxu0 0
    %6900 = vmatpush1.bf16.msra.mxu0 %v5875
    %6901 = vmatprep.subr.bf16.mxu0 0
    %6902 = vmatpush1.bf16.msra.mxu0 %v5876
    %6903 = vmatprep.subr.bf16.mxu0 0
    %6904 = vmatpush1.bf16.msra.mxu0 %v5877
    %6905 = vmatprep.subr.bf16.mxu0 0
    %6906 = vmatpush1.bf16.msra.mxu0 %v5878
    %6907 = vmatprep.subr.bf16.mxu0 0
    %6908 = vmatpush1.bf16.msra.mxu0 %v5879
    %6909 = vmatprep.subr.bf16.mxu0 0
    %6910 = vmatpush1.bf16.msra.mxu0 %v5880
    %6911 = vmatprep.subr.bf16.mxu0 0
    %6912 = vmatpush1.bf16.msra.mxu0 %v5881
    %6913 = vmatprep.subr.bf16.mxu0 0
    %6914 = vmatpush1.bf16.msra.mxu0 %v5882
    %6915 = vmatprep.subr.bf16.mxu0 0
    %6916 = vmatpush1.bf16.msra.mxu0 %v5883
    %6917 = vmatprep.subr.bf16.mxu0 0
    %6918 = vmatpush1.bf16.msra.mxu0 %v5884
    %6919 = vmatprep.subr.bf16.mxu0 0
    %6920 = vmatpush1.bf16.msra.mxu0 %v5885
    %6921 = vmatprep.subr.bf16.mxu0 0
    %6922 = vmatpush1.bf16.msra.mxu0 %v5886
    %6923 = vmatprep.subr.bf16.mxu0 0
    %6924 = vmatpush1.bf16.msra.mxu0 %v5887
    %6925 = vmatprep.subr.bf16.mxu0 0
    %6926 = vmatpush1.bf16.msra.mxu0 %v5888
    %6927 = vmatprep.subr.bf16.mxu0 0
    %6928 = vmatpush1.bf16.msra.mxu0 %v5889
    %6929 = vmatprep.subr.bf16.mxu0 0
    %6930 = vmatpush1.bf16.msra.mxu0 %v5890
    %6931 = vmatprep.mubr.bf16.mxu0 %v2740
    %6932 = vmatmul.mubr.bf16.gmra.mrb[0].mxu0 %v2739
    %v6933 = vpop.f32.mrb[0].mxu0
    %v6934 = vadd.f32 0.0, %v6933
    %v6935 = vpop.f32.mrb[0].mxu0
    %v6936 = vpop.f32.mrb[0].mxu0
    %v6937 = vpop.f32.mrb[0].mxu0
    %6938 = vdwg.mxu0
    %6939 = vmatprep.subr.bf16.mxu0 0
    %6940 = vmatpush1.bf16.msra.mxu0 %v5891
    %6941 = vmatprep.subr.bf16.mxu0 0
    %6942 = vmatpush1.bf16.msra.mxu0 %v5892
    %6943 = vmatprep.subr.bf16.mxu0 0
    %6944 = vmatpush1.bf16.msra.mxu0 %v5893
    %6945 = vmatprep.subr.bf16.mxu0 0
    %6946 = vmatpush1.bf16.msra.mxu0 %v5894
    %6947 = vmatprep.subr.bf16.mxu0 0
    %6948 = vmatpush1.bf16.msra.mxu0 %v5895
    %6949 = vmatprep.subr.bf16.mxu0 0
    %6950 = vmatpush1.bf16.msra.mxu0 %v5896
    %6951 = vmatprep.subr.bf16.mxu0 0
    %6952 = vmatpush1.bf16.msra.mxu0 %v5897
    %6953 = vmatprep.subr.bf16.mxu0 0
    %6954 = vmatpush1.bf16.msra.mxu0 %v5898
    %6955 = vmatprep.subr.bf16.mxu0 0
    %6956 = vmatpush1.bf16.msra.mxu0 %v5899
    %6957 = vmatprep.subr.bf16.mxu0 0
    %6958 = vmatpush1.bf16.msra.mxu0 %v5900
    %6959 = vmatprep.subr.bf16.mxu0 0
    %6960 = vmatpush1.bf16.msra.mxu0 %v5901
    %6961 = vmatprep.subr.bf16.mxu0 0
    %6962 = vmatpush1.bf16.msra.mxu0 %v5902
    %6963 = vmatprep.subr.bf16.mxu0 0
    %6964 = vmatpush1.bf16.msra.mxu0 %v5903
    %6965 = vmatprep.subr.bf16.mxu0 0
    %6966 = vmatpush1.bf16.msra.mxu0 %v5904
    %6967 = vmatprep.subr.bf16.mxu0 0
    %6968 = vmatpush1.bf16.msra.mxu0 %v5905
    %6969 = vmatprep.subr.bf16.mxu0 0
    %6970 = vmatpush1.bf16.msra.mxu0 %v5906
    %6971 = vmatprep.mubr.bf16.mxu0 %v2742
    %6972 = vmatmul.mubr.bf16.gmra.mrb[0].mxu0 %v2741
    %v6973 = vpop.f32.mrb[0].mxu0
    %v6974 = vadd.f32 %v6934, %v6973
    %v6975 = vpop.f32.mrb[0].mxu0
    %v6976 = vpop.f32.mrb[0].mxu0
    %v6977 = vpop.f32.mrb[0].mxu0
    %6978 = vdwg.mxu0
    %6979 = vmatprep.subr.bf16.mxu0 0
    %6980 = vmatpush1.bf16.msra.mxu0 %v5907
    %6981 = vmatprep.subr.bf16.mxu0 0
    %6982 = vmatpush1.bf16.msra.mxu0 %v5908
    %6983 = vmatprep.subr.bf16.mxu0 0
    %6984 = vmatpush1.bf16.msra.mxu0 %v5909
    %6985 = vmatprep.subr.bf16.mxu0 0
    %6986 = vmatpush1.bf16.msra.mxu0 %v5910
    %6987 = vmatprep.subr.bf16.mxu0 0
    %6988 = vmatpush1.bf16.msra.mxu0 %v5911
    %6989 = vmatprep.subr.bf16.mxu0 0
    %6990 = vmatpush1.bf16.msra.mxu0 %v5912
    %6991 = vmatprep.subr.bf16.mxu0 0
    %6992 = vmatpush1.bf16.msra.mxu0 %v5913
    %6993 = vmatprep.subr.bf16.mxu0 0
    %6994 = vmatpush1.bf16.msra.mxu0 %v5914
    %6995 = vmatprep.subr.bf16.mxu0 0
    %6996 = vmatpush1.bf16.msra.mxu0 %v5915
    %6997 = vmatprep.subr.bf16.mxu0 0
    %6998 = vmatpush1.bf16.msra.mxu0 %v5916
    %6999 = vmatprep.subr.bf16.mxu0 0
    %7000 = vmatpush1.bf16.msra.mxu0 %v5917
    %7001 = vmatprep.subr.bf16.mxu0 0
    %7002 = vmatpush1.bf16.msra.mxu0 %v5918
    %7003 = vmatprep.subr.bf16.mxu0 0
    %7004 = vmatpush1.bf16.msra.mxu0 %v5919
    %7005 = vmatprep.subr.bf16.mxu0 0
    %7006 = vmatpush1.bf16.msra.mxu0 %v5920
    %7007 = vmatprep.subr.bf16.mxu0 0
    %7008 = vmatpush1.bf16.msra.mxu0 %v5921
    %7009 = vmatprep.subr.bf16.mxu0 0
    %7010 = vmatpush1.bf16.msra.mxu0 %v5922
    %7011 = vmatprep.mubr.bf16.mxu0 %v2744
    %7012 = vmatmul.mubr.bf16.gmra.mrb[0].mxu0 %v2743
    %v7013 = vpop.f32.mrb[0].mxu0
    %v7014 = vadd.f32 %v6974, %v7013
    %v7015 = vpop.f32.mrb[0].mxu0
    %v7016 = vpop.f32.mrb[0].mxu0
    %v7017 = vpop.f32.mrb[0].mxu0
    %7018 = vdwg.mxu0
    %7019 = vmatprep.subr.bf16.mxu0 0
    %7020 = vmatpush1.bf16.msra.mxu0 %v5923
    %7021 = vmatprep.subr.bf16.mxu0 0
    %7022 = vmatpush1.bf16.msra.mxu0 %v5924
    %7023 = vmatprep.subr.bf16.mxu0 0
    %7024 = vmatpush1.bf16.msra.mxu0 %v5925
    %7025 = vmatprep.subr.bf16.mxu0 0
    %7026 = vmatpush1.bf16.msra.mxu0 %v5926
    %7027 = vmatprep.subr.bf16.mxu0 0
    %7028 = vmatpush1.bf16.msra.mxu0 %v5927
    %7029 = vmatprep.subr.bf16.mxu0 0
    %7030 = vmatpush1.bf16.msra.mxu0 %v5928
    %7031 = vmatprep.subr.bf16.mxu0 0
    %7032 = vmatpush1.bf16.msra.mxu0 %v5929
    %7033 = vmatprep.subr.bf16.mxu0 0
    %7034 = vmatpush1.bf16.msra.mxu0 %v5930
    %7035 = vmatprep.subr.bf16.mxu0 0
    %7036 = vmatpush1.bf16.msra.mxu0 %v5931
    %7037 = vmatprep.subr.bf16.mxu0 0
    %7038 = vmatpush1.bf16.msra.mxu0 %v5932
    %7039 = vmatprep.subr.bf16.mxu0 0
    %7040 = vmatpush1.bf16.msra.mxu0 %v5933
    %7041 = vmatprep.subr.bf16.mxu0 0
    %7042 = vmatpush1.bf16.msra.mxu0 %v5934
    %7043 = vmatprep.subr.bf16.mxu0 0
    %7044 = vmatpush1.bf16.msra.mxu0 %v5935
    %7045 = vmatprep.subr.bf16.mxu0 0
    %7046 = vmatpush1.bf16.msra.mxu0 %v5936
    %7047 = vmatprep.subr.bf16.mxu0 0
    %7048 = vmatpush1.bf16.msra.mxu0 %v5937
    %7049 = vmatprep.subr.bf16.mxu0 0
    %7050 = vmatpush1.bf16.msra.mxu0 %v5938
    %7051 = vmatprep.mubr.bf16.mxu0 %v2746
    %7052 = vmatmul.mubr.bf16.gmra.mrb[0].mxu0 %v2745
    %v7053 = vpop.f32.mrb[0].mxu0
    %v7054 = vadd.f32 %v7014, %v7053
    %v7055 = vpop.f32.mrb[0].mxu0
    %v7056 = vpop.f32.mrb[0].mxu0
    %v7057 = vpop.f32.mrb[0].mxu0
    %7058 = vdwg.mxu0
    %7059 = vmatprep.subr.bf16.mxu0 0
    %7060 = vmatpush1.bf16.msra.mxu0 %v5939
    %7061 = vmatprep.subr.bf16.mxu0 0
    %7062 = vmatpush1.bf16.msra.mxu0 %v5940
    %7063 = vmatprep.subr.bf16.mxu0 0
    %7064 = vmatpush1.bf16.msra.mxu0 %v5941
    %7065 = vmatprep.subr.bf16.mxu0 0
    %7066 = vmatpush1.bf16.msra.mxu0 %v5942
    %7067 = vmatprep.subr.bf16.mxu0 0
    %7068 = vmatpush1.bf16.msra.mxu0 %v5943
    %7069 = vmatprep.subr.bf16.mxu0 0
    %7070 = vmatpush1.bf16.msra.mxu0 %v5944
    %7071 = vmatprep.subr.bf16.mxu0 0
    %7072 = vmatpush1.bf16.msra.mxu0 %v5945
    %7073 = vmatprep.subr.bf16.mxu0 0
    %7074 = vmatpush1.bf16.msra.mxu0 %v5946
    %7075 = vmatprep.subr.bf16.mxu0 0
    %7076 = vmatpush1.bf16.msra.mxu0 %v5947
    %7077 = vmatprep.subr.bf16.mxu0 0
    %7078 = vmatpush1.bf16.msra.mxu0 %v5948
    %7079 = vmatprep.subr.bf16.mxu0 0
    %7080 = vmatpush1.bf16.msra.mxu0 %v5949
    %7081 = vmatprep.subr.bf16.mxu0 0
    %7082 = vmatpush1.bf16.msra.mxu0 %v5950
    %7083 = vmatprep.subr.bf16.mxu0 0
    %7084 = vmatpush1.bf16.msra.mxu0 %v5951
    %7085 = vmatprep.subr.bf16.mxu0 0
    %7086 = vmatpush1.bf16.msra.mxu0 %v5952
    %7087 = vmatprep.subr.bf16.mxu0 0
    %7088 = vmatpush1.bf16.msra.mxu0 %v5953
    %7089 = vmatprep.subr.bf16.mxu0 0
    %7090 = vmatpush1.bf16.msra.mxu0 %v5954
    %7091 = vmatprep.mubr.bf16.mxu0 %v2748
    %7092 = vmatmul.mubr.bf16.gmra.mrb[0].mxu0 %v2747
    %v7093 = vpop.f32.mrb[0].mxu0
    %v7094 = vadd.f32 %v7054, %v7093
    %v7095 = vpop.f32.mrb[0].mxu0
    %v7096 = vpop.f32.mrb[0].mxu0
    %v7097 = vpop.f32.mrb[0].mxu0
    %7098 = vdwg.mxu0
    %7099 = vmatprep.subr.bf16.mxu0 0
    %7100 = vmatpush1.bf16.msra.mxu0 %v5955
    %7101 = vmatprep.subr.bf16.mxu0 0
    %7102 = vmatpush1.bf16.msra.mxu0 %v5956
    %7103 = vmatprep.subr.bf16.mxu0 0
    %7104 = vmatpush1.bf16.msra.mxu0 %v5957
    %7105 = vmatprep.subr.bf16.mxu0 0
    %7106 = vmatpush1.bf16.msra.mxu0 %v5958
    %7107 = vmatprep.subr.bf16.mxu0 0
    %7108 = vmatpush1.bf16.msra.mxu0 %v5959
    %7109 = vmatprep.subr.bf16.mxu0 0
    %7110 = vmatpush1.bf16.msra.mxu0 %v5960
    %7111 = vmatprep.subr.bf16.mxu0 0
    %7112 = vmatpush1.bf16.msra.mxu0 %v5961
    %7113 = vmatprep.subr.bf16.mxu0 0
    %7114 = vmatpush1.bf16.msra.mxu0 %v5962
    %7115 = vmatprep.subr.bf16.mxu0 0
    %7116 = vmatpush1.bf16.msra.mxu0 %v5963
    %7117 = vmatprep.subr.bf16.mxu0 0
    %7118 = vmatpush1.bf16.msra.mxu0 %v5964
    %7119 = vmatprep.subr.bf16.mxu0 0
    %7120 = vmatpush1.bf16.msra.mxu0 %v5965
    %7121 = vmatprep.subr.bf16.mxu0 0
    %7122 = vmatpush1.bf16.msra.mxu0 %v5966
    %7123 = vmatprep.subr.bf16.mxu0 0
    %7124 = vmatpush1.bf16.msra.mxu0 %v5967
    %7125 = vmatprep.subr.bf16.mxu0 0
    %7126 = vmatpush1.bf16.msra.mxu0 %v5968
    %7127 = vmatprep.subr.bf16.mxu0 0
    %7128 = vmatpush1.bf16.msra.mxu0 %v5969
    %7129 = vmatprep.subr.bf16.mxu0 0
    %7130 = vmatpush1.bf16.msra.mxu0 %v5970
    %7131 = vmatprep.mubr.bf16.mxu0 %v2750
    %7132 = vmatmul.mubr.bf16.gmra.mrb[0].mxu0 %v2749
    %v7133 = vpop.f32.mrb[0].mxu0
    %v7134 = vadd.f32 %v7094, %v7133
    %v7135 = vpop.f32.mrb[0].mxu0
    %v7136 = vpop.f32.mrb[0].mxu0
    %v7137 = vpop.f32.mrb[0].mxu0
    %7138 = vdwg.mxu0
    %7139 = vmatprep.subr.bf16.mxu0 0
    %7140 = vmatpush1.bf16.msra.mxu0 %v5971
    %7141 = vmatprep.subr.bf16.mxu0 0
    %7142 = vmatpush1.bf16.msra.mxu0 %v5972
    %7143 = vmatprep.subr.bf16.mxu0 0
    %7144 = vmatpush1.bf16.msra.mxu0 %v5973
    %7145 = vmatprep.subr.bf16.mxu0 0
    %7146 = vmatpush1.bf16.msra.mxu0 %v5974
    %7147 = vmatprep.subr.bf16.mxu0 0
    %7148 = vmatpush1.bf16.msra.mxu0 %v5975
    %7149 = vmatprep.subr.bf16.mxu0 0
    %7150 = vmatpush1.bf16.msra.mxu0 %v5976
    %7151 = vmatprep.subr.bf16.mxu0 0
    %7152 = vmatpush1.bf16.msra.mxu0 %v5977
    %7153 = vmatprep.subr.bf16.mxu0 0
    %7154 = vmatpush1.bf16.msra.mxu0 %v5978
    %7155 = vmatprep.subr.bf16.mxu0 0
    %7156 = vmatpush1.bf16.msra.mxu0 %v5979
    %7157 = vmatprep.subr.bf16.mxu0 0
    %7158 = vmatpush1.bf16.msra.mxu0 %v5980
    %7159 = vmatprep.subr.bf16.mxu0 0
    %7160 = vmatpush1.bf16.msra.mxu0 %v5981
    %7161 = vmatprep.subr.bf16.mxu0 0
    %7162 = vmatpush1.bf16.msra.mxu0 %v5982
    %7163 = vmatprep.subr.bf16.mxu0 0
    %7164 = vmatpush1.bf16.msra.mxu0 %v5983
    %7165 = vmatprep.subr.bf16.mxu0 0
    %7166 = vmatpush1.bf16.msra.mxu0 %v5984
    %7167 = vmatprep.subr.bf16.mxu0 0
    %7168 = vmatpush1.bf16.msra.mxu0 %v5985
    %7169 = vmatprep.subr.bf16.mxu0 0
    %7170 = vmatpush1.bf16.msra.mxu0 %v5986
    %7171 = vmatprep.mubr.bf16.mxu0 %v2752
    %7172 = vmatmul.mubr.bf16.gmra.mrb[0].mxu0 %v2751
    %v7173 = vpop.f32.mrb[0].mxu0
    %v7174 = vadd.f32 %v7134, %v7173
    %v7175 = vpop.f32.mrb[0].mxu0
    %v7176 = vpop.f32.mrb[0].mxu0
    %v7177 = vpop.f32.mrb[0].mxu0
    %7178 = vdwg.mxu0
    %7179 = vmatprep.subr.bf16.mxu0 0
    %7180 = vmatpush1.bf16.msra.mxu0 %v5987
    %7181 = vmatprep.subr.bf16.mxu0 0
    %7182 = vmatpush1.bf16.msra.mxu0 %v5988
    %7183 = vmatprep.subr.bf16.mxu0 0
    %7184 = vmatpush1.bf16.msra.mxu0 %v5989
    %7185 = vmatprep.subr.bf16.mxu0 0
    %7186 = vmatpush1.bf16.msra.mxu0 %v5990
    %7187 = vmatprep.subr.bf16.mxu0 0
    %7188 = vmatpush1.bf16.msra.mxu0 %v5991
    %7189 = vmatprep.subr.bf16.mxu0 0
    %7190 = vmatpush1.bf16.msra.mxu0 %v5992
    %7191 = vmatprep.subr.bf16.mxu0 0
    %7192 = vmatpush1.bf16.msra.mxu0 %v5993
    %7193 = vmatprep.subr.bf16.mxu0 0
    %7194 = vmatpush1.bf16.msra.mxu0 %v5994
    %7195 = vmatprep.subr.bf16.mxu0 0
    %7196 = vmatpush1.bf16.msra.mxu0 %v5995
    %7197 = vmatprep.subr.bf16.mxu0 0
    %7198 = vmatpush1.bf16.msra.mxu0 %v5996
    %7199 = vmatprep.subr.bf16.mxu0 0
    %7200 = vmatpush1.bf16.msra.mxu0 %v5997
    %7201 = vmatprep.subr.bf16.mxu0 0
    %7202 = vmatpush1.bf16.msra.mxu0 %v5998
    %7203 = vmatprep.subr.bf16.mxu0 0
    %7204 = vmatpush1.bf16.msra.mxu0 %v5999
    %7205 = vmatprep.subr.bf16.mxu0 0
    %7206 = vmatpush1.bf16.msra.mxu0 %v6000
    %7207 = vmatprep.subr.bf16.mxu0 0
    %7208 = vmatpush1.bf16.msra.mxu0 %v6001
    %7209 = vmatprep.subr.bf16.mxu0 0
    %7210 = vmatpush1.bf16.msra.mxu0 %v6002
    %7211 = vmatprep.mubr.bf16.mxu0 %v2754
    %7212 = vmatmul.mubr.bf16.gmra.mrb[0].mxu0 %v2753
    %v7213 = vpop.f32.mrb[0].mxu0
    %v7214 = vadd.f32 %v7174, %v7213
    %v7215 = vpop.f32.mrb[0].mxu0
    %v7216 = vpop.f32.mrb[0].mxu0
    %v7217 = vpop.f32.mrb[0].mxu0
    %7218 = vdwg.mxu0
    %7219 = vmatprep.subr.bf16.mxu0 0
    %7220 = vmatpush1.bf16.msra.mxu0 %v6003
    %7221 = vmatprep.subr.bf16.mxu0 0
    %7222 = vmatpush1.bf16.msra.mxu0 %v6004
    %7223 = vmatprep.subr.bf16.mxu0 0
    %7224 = vmatpush1.bf16.msra.mxu0 %v6005
    %7225 = vmatprep.subr.bf16.mxu0 0
    %7226 = vmatpush1.bf16.msra.mxu0 %v6006
    %7227 = vmatprep.subr.bf16.mxu0 0
    %7228 = vmatpush1.bf16.msra.mxu0 %v6007
    %7229 = vmatprep.subr.bf16.mxu0 0
    %7230 = vmatpush1.bf16.msra.mxu0 %v6008
    %7231 = vmatprep.subr.bf16.mxu0 0
    %7232 = vmatpush1.bf16.msra.mxu0 %v6009
    %7233 = vmatprep.subr.bf16.mxu0 0
    %7234 = vmatpush1.bf16.msra.mxu0 %v6010
    %7235 = vmatprep.subr.bf16.mxu0 0
    %7236 = vmatpush1.bf16.msra.mxu0 %v6011
    %7237 = vmatprep.subr.bf16.mxu0 0
    %7238 = vmatpush1.bf16.msra.mxu0 %v6012
    %7239 = vmatprep.subr.bf16.mxu0 0
    %7240 = vmatpush1.bf16.msra.mxu0 %v6013
    %7241 = vmatprep.subr.bf16.mxu0 0
    %7242 = vmatpush1.bf16.msra.mxu0 %v6014
    %7243 = vmatprep.subr.bf16.mxu0 0
    %7244 = vmatpush1.bf16.msra.mxu0 %v6015
    %7245 = vmatprep.subr.bf16.mxu0 0
    %7246 = vmatpush1.bf16.msra.mxu0 %v6016
    %7247 = vmatprep.subr.bf16.mxu0 0
    %7248 = vmatpush1.bf16.msra.mxu0 %v6017
    %7249 = vmatprep.subr.bf16.mxu0 0
    %7250 = vmatpush1.bf16.msra.mxu0 %v6018
    %7251 = vmatprep.mubr.bf16.mxu0 %v2756
    %7252 = vmatmul.mubr.bf16.gmra.mrb[0].mxu0 %v2755
    %v7253 = vpop.f32.mrb[0].mxu0
    %v7254 = vadd.f32 %v7214, %v7253
    %v7255 = vpop.f32.mrb[0].mxu0
    %v7256 = vpop.f32.mrb[0].mxu0
    %v7257 = vpop.f32.mrb[0].mxu0
    %7258 = vdwg.mxu0
    %7259 = vmatprep.subr.bf16.mxu0 0
    %7260 = vmatpush1.bf16.msra.mxu0 %v6019
    %7261 = vmatprep.subr.bf16.mxu0 0
    %7262 = vmatpush1.bf16.msra.mxu0 %v6020
    %7263 = vmatprep.subr.bf16.mxu0 0
    %7264 = vmatpush1.bf16.msra.mxu0 %v6021
    %7265 = vmatprep.subr.bf16.mxu0 0
    %7266 = vmatpush1.bf16.msra.mxu0 %v6022
    %7267 = vmatprep.subr.bf16.mxu0 0
    %7268 = vmatpush1.bf16.msra.mxu0 %v6023
    %7269 = vmatprep.subr.bf16.mxu0 0
    %7270 = vmatpush1.bf16.msra.mxu0 %v6024
    %7271 = vmatprep.subr.bf16.mxu0 0
    %7272 = vmatpush1.bf16.msra.mxu0 %v6025
    %7273 = vmatprep.subr.bf16.mxu0 0
    %7274 = vmatpush1.bf16.msra.mxu0 %v6026
    %7275 = vmatprep.subr.bf16.mxu0 0
    %7276 = vmatpush1.bf16.msra.mxu0 %v6027
    %7277 = vmatprep.subr.bf16.mxu0 0
    %7278 = vmatpush1.bf16.msra.mxu0 %v6028
    %7279 = vmatprep.subr.bf16.mxu0 0
    %7280 = vmatpush1.bf16.msra.mxu0 %v6029
    %7281 = vmatprep.subr.bf16.mxu0 0
    %7282 = vmatpush1.bf16.msra.mxu0 %v6030
    %7283 = vmatprep.subr.bf16.mxu0 0
    %7284 = vmatpush1.bf16.msra.mxu0 %v6031
    %7285 = vmatprep.subr.bf16.mxu0 0
    %7286 = vmatpush1.bf16.msra.mxu0 %v6032
    %7287 = vmatprep.subr.bf16.mxu0 0
    %7288 = vmatpush1.bf16.msra.mxu0 %v6033
    %7289 = vmatprep.subr.bf16.mxu0 0
    %7290 = vmatpush1.bf16.msra.mxu0 %v6034
    %7291 = vmatprep.mubr.bf16.mxu0 %v2758
    %7292 = vmatmul.mubr.bf16.gmra.mrb[0].mxu0 %v2757
    %v7293 = vpop.f32.mrb[0].mxu0
    %v7294 = vadd.f32 %v7254, %v7293
    %v7295 = vpop.f32.mrb[0].mxu0
    %v7296 = vpop.f32.mrb[0].mxu0
    %v7297 = vpop.f32.mrb[0].mxu0
    %7298 = vdwg.mxu0
    %7299 = vmatprep.subr.bf16.mxu0 0
    %7300 = vmatpush1.bf16.msra.mxu0 %v6035
    %7301 = vmatprep.subr.bf16.mxu0 0
    %7302 = vmatpush1.bf16.msra.mxu0 %v6036
    %7303 = vmatprep.subr.bf16.mxu0 0
    %7304 = vmatpush1.bf16.msra.mxu0 %v6037
    %7305 = vmatprep.subr.bf16.mxu0 0
    %7306 = vmatpush1.bf16.msra.mxu0 %v6038
    %7307 = vmatprep.subr.bf16.mxu0 0
    %7308 = vmatpush1.bf16.msra.mxu0 %v6039
    %7309 = vmatprep.subr.bf16.mxu0 0
    %7310 = vmatpush1.bf16.msra.mxu0 %v6040
    %7311 = vmatprep.subr.bf16.mxu0 0
    %7312 = vmatpush1.bf16.msra.mxu0 %v6041
    %7313 = vmatprep.subr.bf16.mxu0 0
    %7314 = vmatpush1.bf16.msra.mxu0 %v6042
    %7315 = vmatprep.subr.bf16.mxu0 0
    %7316 = vmatpush1.bf16.msra.mxu0 %v6043
    %7317 = vmatprep.subr.bf16.mxu0 0
    %7318 = vmatpush1.bf16.msra.mxu0 %v6044
    %7319 = vmatprep.subr.bf16.mxu0 0
    %7320 = vmatpush1.bf16.msra.mxu0 %v6045
    %7321 = vmatprep.subr.bf16.mxu0 0
    %7322 = vmatpush1.bf16.msra.mxu0 %v6046
    %7323 = vmatprep.subr.bf16.mxu0 0
    %7324 = vmatpush1.bf16.msra.mxu0 %v6047
    %7325 = vmatprep.subr.bf16.mxu0 0
    %7326 = vmatpush1.bf16.msra.mxu0 %v6048
    %7327 = vmatprep.subr.bf16.mxu0 0
    %7328 = vmatpush1.bf16.msra.mxu0 %v6049
    %7329 = vmatprep.subr.bf16.mxu0 0
    %7330 = vmatpush1.bf16.msra.mxu0 %v6050
    %7331 = vmatprep.mubr.bf16.mxu0 %v2760
    %7332 = vmatmul.mubr.bf16.gmra.mrb[0].mxu0 %v2759
    %v7333 = vpop.f32.mrb[0].mxu0
    %v7334 = vadd.f32 %v7294, %v7333
    %v7335 = vpop.f32.mrb[0].mxu0
    %v7336 = vpop.f32.mrb[0].mxu0
    %v7337 = vpop.f32.mrb[0].mxu0
    %7338 = vdwg.mxu0
    %7339 = vmatprep.subr.bf16.mxu0 0
    %7340 = vmatpush1.bf16.msra.mxu0 %v6051
    %7341 = vmatprep.subr.bf16.mxu0 0
    %7342 = vmatpush1.bf16.msra.mxu0 %v6052
    %7343 = vmatprep.subr.bf16.mxu0 0
    %7344 = vmatpush1.bf16.msra.mxu0 %v6053
    %7345 = vmatprep.subr.bf16.mxu0 0
    %7346 = vmatpush1.bf16.msra.mxu0 %v6054
    %7347 = vmatprep.subr.bf16.mxu0 0
    %7348 = vmatpush1.bf16.msra.mxu0 %v6055
    %7349 = vmatprep.subr.bf16.mxu0 0
    %7350 = vmatpush1.bf16.msra.mxu0 %v6056
    %7351 = vmatprep.subr.bf16.mxu0 0
    %7352 = vmatpush1.bf16.msra.mxu0 %v6057
    %7353 = vmatprep.subr.bf16.mxu0 0
    %7354 = vmatpush1.bf16.msra.mxu0 %v6058
    %7355 = vmatprep.subr.bf16.mxu0 0
    %7356 = vmatpush1.bf16.msra.mxu0 %v6059
    %7357 = vmatprep.subr.bf16.mxu0 0
    %7358 = vmatpush1.bf16.msra.mxu0 %v6060
    %7359 = vmatprep.subr.bf16.mxu0 0
    %7360 = vmatpush1.bf16.msra.mxu0 %v6061
    %7361 = vmatprep.subr.bf16.mxu0 0
    %7362 = vmatpush1.bf16.msra.mxu0 %v6062
    %7363 = vmatprep.subr.bf16.mxu0 0
    %7364 = vmatpush1.bf16.msra.mxu0 %v6063
    %7365 = vmatprep.subr.bf16.mxu0 0
    %7366 = vmatpush1.bf16.msra.mxu0 %v6064
    %7367 = vmatprep.subr.bf16.mxu0 0
    %7368 = vmatpush1.bf16.msra.mxu0 %v6065
    %7369 = vmatprep.subr.bf16.mxu0 0
    %7370 = vmatpush1.bf16.msra.mxu0 %v6066
    %7371 = vmatprep.mubr.bf16.mxu0 %v2762
    %7372 = vmatmul.mubr.bf16.gmra.mrb[0].mxu0 %v2761
    %v7373 = vpop.f32.mrb[0].mxu0
    %v7374 = vadd.f32 %v7334, %v7373
    %v7375 = vpop.f32.mrb[0].mxu0
    %v7376 = vpop.f32.mrb[0].mxu0
    %v7377 = vpop.f32.mrb[0].mxu0
    %7378 = vdwg.mxu0
    %7379 = vmatprep.subr.bf16.mxu0 0
    %7380 = vmatpush1.bf16.msra.mxu0 %v6067
    %7381 = vmatprep.subr.bf16.mxu0 0
    %7382 = vmatpush1.bf16.msra.mxu0 %v6068
    %7383 = vmatprep.subr.bf16.mxu0 0
    %7384 = vmatpush1.bf16.msra.mxu0 %v6069
    %7385 = vmatprep.subr.bf16.mxu0 0
    %7386 = vmatpush1.bf16.msra.mxu0 %v6070
    %7387 = vmatprep.subr.bf16.mxu0 0
    %7388 = vmatpush1.bf16.msra.mxu0 %v6071
    %7389 = vmatprep.subr.bf16.mxu0 0
    %7390 = vmatpush1.bf16.msra.mxu0 %v6072
    %7391 = vmatprep.subr.bf16.mxu0 0
    %7392 = vmatpush1.bf16.msra.mxu0 %v6073
    %7393 = vmatprep.subr.bf16.mxu0 0
    %7394 = vmatpush1.bf16.msra.mxu0 %v6074
    %7395 = vmatprep.subr.bf16.mxu0 0
    %7396 = vmatpush1.bf16.msra.mxu0 %v6075
    %7397 = vmatprep.subr.bf16.mxu0 0
    %7398 = vmatpush1.bf16.msra.mxu0 %v6076
    %7399 = vmatprep.subr.bf16.mxu0 0
    %7400 = vmatpush1.bf16.msra.mxu0 %v6077
    %7401 = vmatprep.subr.bf16.mxu0 0
    %7402 = vmatpush1.bf16.msra.mxu0 %v6078
    %7403 = vmatprep.subr.bf16.mxu0 0
    %7404 = vmatpush1.bf16.msra.mxu0 %v6079
    %7405 = vmatprep.subr.bf16.mxu0 0
    %7406 = vmatpush1.bf16.msra.mxu0 %v6080
    %7407 = vmatprep.subr.bf16.mxu0 0
    %7408 = vmatpush1.bf16.msra.mxu0 %v6081
    %7409 = vmatprep.subr.bf16.mxu0 0
    %7410 = vmatpush1.bf16.msra.mxu0 %v6082
    %7411 = vmatprep.mubr.bf16.mxu0 %v2764
    %7412 = vmatmul.mubr.bf16.gmra.mrb[0].mxu0 %v2763
    %v7413 = vpop.f32.mrb[0].mxu0
    %v7414 = vadd.f32 %v7374, %v7413
    %v7415 = vpop.f32.mrb[0].mxu0
    %v7416 = vpop.f32.mrb[0].mxu0
    %v7417 = vpop.f32.mrb[0].mxu0
    %7418 = vdwg.mxu0
    %7419 = vmatprep.subr.bf16.mxu0 0
    %7420 = vmatpush1.bf16.msra.mxu0 %v6083
    %7421 = vmatprep.subr.bf16.mxu0 0
    %7422 = vmatpush1.bf16.msra.mxu0 %v6084
    %7423 = vmatprep.subr.bf16.mxu0 0
    %7424 = vmatpush1.bf16.msra.mxu0 %v6085
    %7425 = vmatprep.subr.bf16.mxu0 0
    %7426 = vmatpush1.bf16.msra.mxu0 %v6086
    %7427 = vmatprep.subr.bf16.mxu0 0
    %7428 = vmatpush1.bf16.msra.mxu0 %v6087
    %7429 = vmatprep.subr.bf16.mxu0 0
    %7430 = vmatpush1.bf16.msra.mxu0 %v6088
    %7431 = vmatprep.subr.bf16.mxu0 0
    %7432 = vmatpush1.bf16.msra.mxu0 %v6089
    %7433 = vmatprep.subr.bf16.mxu0 0
    %7434 = vmatpush1.bf16.msra.mxu0 %v6090
    %7435 = vmatprep.subr.bf16.mxu0 0
    %7436 = vmatpush1.bf16.msra.mxu0 %v6091
    %7437 = vmatprep.subr.bf16.mxu0 0
    %7438 = vmatpush1.bf16.msra.mxu0 %v6092
    %7439 = vmatprep.subr.bf16.mxu0 0
    %7440 = vmatpush1.bf16.msra.mxu0 %v6093
    %7441 = vmatprep.subr.bf16.mxu0 0
    %7442 = vmatpush1.bf16.msra.mxu0 %v6094
    %7443 = vmatprep.subr.bf16.mxu0 0
    %7444 = vmatpush1.bf16.msra.mxu0 %v6095
    %7445 = vmatprep.subr.bf16.mxu0 0
    %7446 = vmatpush1.bf16.msra.mxu0 %v6096
    %7447 = vmatprep.subr.bf16.mxu0 0
    %7448 = vmatpush1.bf16.msra.mxu0 %v6097
    %7449 = vmatprep.subr.bf16.mxu0 0
    %7450 = vmatpush1.bf16.msra.mxu0 %v6098
    %7451 = vmatprep.mubr.bf16.mxu0 %v2766
    %7452 = vmatmul.mubr.bf16.gmra.mrb[0].mxu0 %v2765
    %v7453 = vpop.f32.mrb[0].mxu0
    %v7454 = vadd.f32 %v7414, %v7453
    %v7455 = vpop.f32.mrb[0].mxu0
    %v7456 = vpop.f32.mrb[0].mxu0
    %v7457 = vpop.f32.mrb[0].mxu0
    %7458 = vdwg.mxu0
    %7459 = vmatprep.subr.bf16.mxu0 0
    %7460 = vmatpush1.bf16.msra.mxu0 %v6099
    %7461 = vmatprep.subr.bf16.mxu0 0
    %7462 = vmatpush1.bf16.msra.mxu0 %v6100
    %7463 = vmatprep.subr.bf16.mxu0 0
    %7464 = vmatpush1.bf16.msra.mxu0 %v6101
    %7465 = vmatprep.subr.bf16.mxu0 0
    %7466 = vmatpush1.bf16.msra.mxu0 %v6102
    %7467 = vmatprep.subr.bf16.mxu0 0
    %7468 = vmatpush1.bf16.msra.mxu0 %v6103
    %7469 = vmatprep.subr.bf16.mxu0 0
    %7470 = vmatpush1.bf16.msra.mxu0 %v6104
    %7471 = vmatprep.subr.bf16.mxu0 0
    %7472 = vmatpush1.bf16.msra.mxu0 %v6105
    %7473 = vmatprep.subr.bf16.mxu0 0
    %7474 = vmatpush1.bf16.msra.mxu0 %v6106
    %7475 = vmatprep.subr.bf16.mxu0 0
    %7476 = vmatpush1.bf16.msra.mxu0 %v6107
    %7477 = vmatprep.subr.bf16.mxu0 0
    %7478 = vmatpush1.bf16.msra.mxu0 %v6108
    %7479 = vmatprep.subr.bf16.mxu0 0
    %7480 = vmatpush1.bf16.msra.mxu0 %v6109
    %7481 = vmatprep.subr.bf16.mxu0 0
    %7482 = vmatpush1.bf16.msra.mxu0 %v6110
    %7483 = vmatprep.subr.bf16.mxu0 0
    %7484 = vmatpush1.bf16.msra.mxu0 %v6111
    %7485 = vmatprep.subr.bf16.mxu0 0
    %7486 = vmatpush1.bf16.msra.mxu0 %v6112
    %7487 = vmatprep.subr.bf16.mxu0 0
    %7488 = vmatpush1.bf16.msra.mxu0 %v6113
    %7489 = vmatprep.subr.bf16.mxu0 0
    %7490 = vmatpush1.bf16.msra.mxu0 %v6114
    %7491 = vmatprep.mubr.bf16.mxu0 %v2768
    %7492 = vmatmul.mubr.bf16.gmra.mrb[0].mxu0 %v2767
    %v7493 = vpop.f32.mrb[0].mxu0
    %v7494 = vadd.f32 %v7454, %v7493
    %v7495 = vpop.f32.mrb[0].mxu0
    %v7496 = vpop.f32.mrb[0].mxu0
    %v7497 = vpop.f32.mrb[0].mxu0
    %7498 = vdwg.mxu0
    %7499 = vmatprep.subr.bf16.mxu0 0
    %7500 = vmatpush1.bf16.msra.mxu0 %v6115
    %7501 = vmatprep.subr.bf16.mxu0 0
    %7502 = vmatpush1.bf16.msra.mxu0 %v6116
    %7503 = vmatprep.subr.bf16.mxu0 0
    %7504 = vmatpush1.bf16.msra.mxu0 %v6117
    %7505 = vmatprep.subr.bf16.mxu0 0
    %7506 = vmatpush1.bf16.msra.mxu0 %v6118
    %7507 = vmatprep.subr.bf16.mxu0 0
    %7508 = vmatpush1.bf16.msra.mxu0 %v6119
    %7509 = vmatprep.subr.bf16.mxu0 0
    %7510 = vmatpush1.bf16.msra.mxu0 %v6120
    %7511 = vmatprep.subr.bf16.mxu0 0
    %7512 = vmatpush1.bf16.msra.mxu0 %v6121
    %7513 = vmatprep.subr.bf16.mxu0 0
    %7514 = vmatpush1.bf16.msra.mxu0 %v6122
    %7515 = vmatprep.subr.bf16.mxu0 0
    %7516 = vmatpush1.bf16.msra.mxu0 %v6123
    %7517 = vmatprep.subr.bf16.mxu0 0
    %7518 = vmatpush1.bf16.msra.mxu0 %v6124
    %7519 = vmatprep.subr.bf16.mxu0 0
    %7520 = vmatpush1.bf16.msra.mxu0 %v6125
    %7521 = vmatprep.subr.bf16.mxu0 0
    %7522 = vmatpush1.bf16.msra.mxu0 %v6126
    %7523 = vmatprep.subr.bf16.mxu0 0
    %7524 = vmatpush1.bf16.msra.mxu0 %v6127
    %7525 = vmatprep.subr.bf16.mxu0 0
    %7526 = vmatpush1.bf16.msra.mxu0 %v6128
    %7527 = vmatprep.subr.bf16.mxu0 0
    %7528 = vmatpush1.bf16.msra.mxu0 %v6129
    %7529 = vmatprep.subr.bf16.mxu0 0
    %7530 = vmatpush1.bf16.msra.mxu0 %v6130
    %7531 = vmatprep.mubr.bf16.mxu0 %v2770
    %7532 = vmatmul.mubr.bf16.gmra.mrb[0].mxu0 %v2769
    %v7533 = vpop.f32.mrb[0].mxu0
    %v7534 = vadd.f32 %v7494, %v7533
    %v7535 = vpop.f32.mrb[0].mxu0
    %v7536 = vpop.f32.mrb[0].mxu0
    %v7537 = vpop.f32.mrb[0].mxu0
    %7538 = vdwg.mxu0
    %7539 = vmatprep.subr.bf16.mxu0 0
    %7540 = vmatpush1.bf16.msra.mxu0 %v6131
    %7541 = vmatprep.subr.bf16.mxu0 0
    %7542 = vmatpush1.bf16.msra.mxu0 %v6132
    %7543 = vmatprep.subr.bf16.mxu0 0
    %7544 = vmatpush1.bf16.msra.mxu0 %v6133
    %7545 = vmatprep.subr.bf16.mxu0 0
    %7546 = vmatpush1.bf16.msra.mxu0 %v6134
    %7547 = vmatprep.subr.bf16.mxu0 0
    %7548 = vmatpush1.bf16.msra.mxu0 %v6135
    %7549 = vmatprep.subr.bf16.mxu0 0
    %7550 = vmatpush1.bf16.msra.mxu0 %v6136
    %7551 = vmatprep.subr.bf16.mxu0 0
    %7552 = vmatpush1.bf16.msra.mxu0 %v6137
    %7553 = vmatprep.subr.bf16.mxu0 0
    %7554 = vmatpush1.bf16.msra.mxu0 %v6138
    %7555 = vmatprep.subr.bf16.mxu0 0
    %7556 = vmatpush1.bf16.msra.mxu0 %v6139
    %7557 = vmatprep.subr.bf16.mxu0 0
    %7558 = vmatpush1.bf16.msra.mxu0 %v6140
    %7559 = vmatprep.subr.bf16.mxu0 0
    %7560 = vmatpush1.bf16.msra.mxu0 %v6141
    %7561 = vmatprep.subr.bf16.mxu0 0
    %7562 = vmatpush1.bf16.msra.mxu0 %v6142
    %7563 = vmatprep.subr.bf16.mxu0 0
    %7564 = vmatpush1.bf16.msra.mxu0 %v6143
    %7565 = vmatprep.subr.bf16.mxu0 0
    %7566 = vmatpush1.bf16.msra.mxu0 %v6144
    %7567 = vmatprep.subr.bf16.mxu0 0
    %7568 = vmatpush1.bf16.msra.mxu0 %v6145
    %7569 = vmatprep.subr.bf16.mxu0 0
    %7570 = vmatpush1.bf16.msra.mxu0 %v6146
    %7571 = vmatprep.mubr.bf16.mxu0 %v2772
    %7572 = vmatmul.mubr.bf16.gmra.mrb[0].mxu0 %v2771
    %v7573 = vpop.f32.mrb[0].mxu0
    %v7574 = vadd.f32 %v7534, %v7573
    %v7575 = vpop.f32.mrb[0].mxu0
    %v7576 = vpop.f32.mrb[0].mxu0
    %v7577 = vpop.f32.mrb[0].mxu0
    %7578 = vdwg.mxu0
    %7579 = vmatprep.subr.bf16.mxu0 0
    %7580 = vmatpush1.bf16.msra.mxu0 %v6147
    %7581 = vmatprep.subr.bf16.mxu0 0
    %7582 = vmatpush1.bf16.msra.mxu0 %v6148
    %7583 = vmatprep.subr.bf16.mxu0 0
    %7584 = vmatpush1.bf16.msra.mxu0 %v6149
    %7585 = vmatprep.subr.bf16.mxu0 0
    %7586 = vmatpush1.bf16.msra.mxu0 %v6150
    %7587 = vmatprep.subr.bf16.mxu0 0
    %7588 = vmatpush1.bf16.msra.mxu0 %v6151
    %7589 = vmatprep.subr.bf16.mxu0 0
    %7590 = vmatpush1.bf16.msra.mxu0 %v6152
    %7591 = vmatprep.subr.bf16.mxu0 0
    %7592 = vmatpush1.bf16.msra.mxu0 %v6153
    %7593 = vmatprep.subr.bf16.mxu0 0
    %7594 = vmatpush1.bf16.msra.mxu0 %v6154
    %7595 = vmatprep.subr.bf16.mxu0 0
    %7596 = vmatpush1.bf16.msra.mxu0 %v6155
    %7597 = vmatprep.subr.bf16.mxu0 0
    %7598 = vmatpush1.bf16.msra.mxu0 %v6156
    %7599 = vmatprep.subr.bf16.mxu0 0
    %7600 = vmatpush1.bf16.msra.mxu0 %v6157
    %7601 = vmatprep.subr.bf16.mxu0 0
    %7602 = vmatpush1.bf16.msra.mxu0 %v6158
    %7603 = vmatprep.subr.bf16.mxu0 0
    %7604 = vmatpush1.bf16.msra.mxu0 %v6159
    %7605 = vmatprep.subr.bf16.mxu0 0
    %7606 = vmatpush1.bf16.msra.mxu0 %v6160
    %7607 = vmatprep.subr.bf16.mxu0 0
    %7608 = vmatpush1.bf16.msra.mxu0 %v6161
    %7609 = vmatprep.subr.bf16.mxu0 0
    %7610 = vmatpush1.bf16.msra.mxu0 %v6162
    %7611 = vmatprep.mubr.bf16.mxu0 %v2774
    %7612 = vmatmul.mubr.bf16.gmra.mrb[0].mxu0 %v2773
    %v7613 = vpop.f32.mrb[0].mxu0
    %v7614 = vadd.f32 %v7574, %v7613
    %v7615 = vpop.f32.mrb[0].mxu0
    %v7616 = vpop.f32.mrb[0].mxu0
    %v7617 = vpop.f32.mrb[0].mxu0
    %7618 = vdwg.mxu0
    %7619 = vmatprep.subr.bf16.mxu0 0
    %7620 = vmatpush1.bf16.msra.mxu0 %v6163
    %7621 = vmatprep.subr.bf16.mxu0 0
    %7622 = vmatpush1.bf16.msra.mxu0 %v6164
    %7623 = vmatprep.subr.bf16.mxu0 0
    %7624 = vmatpush1.bf16.msra.mxu0 %v6165
    %7625 = vmatprep.subr.bf16.mxu0 0
    %7626 = vmatpush1.bf16.msra.mxu0 %v6166
    %7627 = vmatprep.subr.bf16.mxu0 0
    %7628 = vmatpush1.bf16.msra.mxu0 %v6167
    %7629 = vmatprep.subr.bf16.mxu0 0
    %7630 = vmatpush1.bf16.msra.mxu0 %v6168
    %7631 = vmatprep.subr.bf16.mxu0 0
    %7632 = vmatpush1.bf16.msra.mxu0 %v6169
    %7633 = vmatprep.subr.bf16.mxu0 0
    %7634 = vmatpush1.bf16.msra.mxu0 %v6170
    %7635 = vmatprep.subr.bf16.mxu0 0
    %7636 = vmatpush1.bf16.msra.mxu0 %v6171
    %7637 = vmatprep.subr.bf16.mxu0 0
    %7638 = vmatpush1.bf16.msra.mxu0 %v6172
    %7639 = vmatprep.subr.bf16.mxu0 0
    %7640 = vmatpush1.bf16.msra.mxu0 %v6173
    %7641 = vmatprep.subr.bf16.mxu0 0
    %7642 = vmatpush1.bf16.msra.mxu0 %v6174
    %7643 = vmatprep.subr.bf16.mxu0 0
    %7644 = vmatpush1.bf16.msra.mxu0 %v6175
    %7645 = vmatprep.subr.bf16.mxu0 0
    %7646 = vmatpush1.bf16.msra.mxu0 %v6176
    %7647 = vmatprep.subr.bf16.mxu0 0
    %7648 = vmatpush1.bf16.msra.mxu0 %v6177
    %7649 = vmatprep.subr.bf16.mxu0 0
    %7650 = vmatpush1.bf16.msra.mxu0 %v6178
    %7651 = vmatprep.mubr.bf16.mxu0 %v2776
    %7652 = vmatmul.mubr.bf16.gmra.mrb[0].mxu0 %v2775
    %v7653 = vpop.f32.mrb[0].mxu0
    %v7654 = vadd.f32 %v7614, %v7653
    %v7655 = vpop.f32.mrb[0].mxu0
    %v7656 = vpop.f32.mrb[0].mxu0
    %v7657 = vpop.f32.mrb[0].mxu0
    %7658 = vdwg.mxu0
    %7659 = vmatprep.subr.bf16.mxu0 0
    %7660 = vmatpush1.bf16.msra.mxu0 %v6179
    %7661 = vmatprep.subr.bf16.mxu0 0
    %7662 = vmatpush1.bf16.msra.mxu0 %v6180
    %7663 = vmatprep.subr.bf16.mxu0 0
    %7664 = vmatpush1.bf16.msra.mxu0 %v6181
    %7665 = vmatprep.subr.bf16.mxu0 0
    %7666 = vmatpush1.bf16.msra.mxu0 %v6182
    %7667 = vmatprep.subr.bf16.mxu0 0
    %7668 = vmatpush1.bf16.msra.mxu0 %v6183
    %7669 = vmatprep.subr.bf16.mxu0 0
    %7670 = vmatpush1.bf16.msra.mxu0 %v6184
    %7671 = vmatprep.subr.bf16.mxu0 0
    %7672 = vmatpush1.bf16.msra.mxu0 %v6185
    %7673 = vmatprep.subr.bf16.mxu0 0
    %7674 = vmatpush1.bf16.msra.mxu0 %v6186
    %7675 = vmatprep.subr.bf16.mxu0 0
    %7676 = vmatpush1.bf16.msra.mxu0 %v6187
    %7677 = vmatprep.subr.bf16.mxu0 0
    %7678 = vmatpush1.bf16.msra.mxu0 %v6188
    %7679 = vmatprep.subr.bf16.mxu0 0
    %7680 = vmatpush1.bf16.msra.mxu0 %v6189
    %7681 = vmatprep.subr.bf16.mxu0 0
    %7682 = vmatpush1.bf16.msra.mxu0 %v6190
    %7683 = vmatprep.subr.bf16.mxu0 0
    %7684 = vmatpush1.bf16.msra.mxu0 %v6191
    %7685 = vmatprep.subr.bf16.mxu0 0
    %7686 = vmatpush1.bf16.msra.mxu0 %v6192
    %7687 = vmatprep.subr.bf16.mxu0 0
    %7688 = vmatpush1.bf16.msra.mxu0 %v6193
    %7689 = vmatprep.subr.bf16.mxu0 0
    %7690 = vmatpush1.bf16.msra.mxu0 %v6194
    %7691 = vmatprep.mubr.bf16.mxu0 %v2778
    %7692 = vmatmul.mubr.bf16.gmra.mrb[0].mxu0 %v2777
    %v7693 = vpop.f32.mrb[0].mxu0
    %v7694 = vadd.f32 %v7654, %v7693
    %v7695 = vpop.f32.mrb[0].mxu0
    %v7696 = vpop.f32.mrb[0].mxu0
    %v7697 = vpop.f32.mrb[0].mxu0
    %7698 = vdwg.mxu0
    %7699 = vmatprep.subr.bf16.mxu0 0
    %7700 = vmatpush1.bf16.msra.mxu0 %v6195
    %7701 = vmatprep.subr.bf16.mxu0 0
    %7702 = vmatpush1.bf16.msra.mxu0 %v6196
    %7703 = vmatprep.subr.bf16.mxu0 0
    %7704 = vmatpush1.bf16.msra.mxu0 %v6197
    %7705 = vmatprep.subr.bf16.mxu0 0
    %7706 = vmatpush1.bf16.msra.mxu0 %v6198
    %7707 = vmatprep.subr.bf16.mxu0 0
    %7708 = vmatpush1.bf16.msra.mxu0 %v6199
    %7709 = vmatprep.subr.bf16.mxu0 0
    %7710 = vmatpush1.bf16.msra.mxu0 %v6200
    %7711 = vmatprep.subr.bf16.mxu0 0
    %7712 = vmatpush1.bf16.msra.mxu0 %v6201
    %7713 = vmatprep.subr.bf16.mxu0 0
    %7714 = vmatpush1.bf16.msra.mxu0 %v6202
    %7715 = vmatprep.subr.bf16.mxu0 0
    %7716 = vmatpush1.bf16.msra.mxu0 %v6203
    %7717 = vmatprep.subr.bf16.mxu0 0
    %7718 = vmatpush1.bf16.msra.mxu0 %v6204
    %7719 = vmatprep.subr.bf16.mxu0 0
    %7720 = vmatpush1.bf16.msra.mxu0 %v6205
    %7721 = vmatprep.subr.bf16.mxu0 0
    %7722 = vmatpush1.bf16.msra.mxu0 %v6206
    %7723 = vmatprep.subr.bf16.mxu0 0
    %7724 = vmatpush1.bf16.msra.mxu0 %v6207
    %7725 = vmatprep.subr.bf16.mxu0 0
    %7726 = vmatpush1.bf16.msra.mxu0 %v6208
    %7727 = vmatprep.subr.bf16.mxu0 0
    %7728 = vmatpush1.bf16.msra.mxu0 %v6209
    %7729 = vmatprep.subr.bf16.mxu0 0
    %7730 = vmatpush1.bf16.msra.mxu0 %v6210
    %7731 = vmatprep.mubr.bf16.mxu0 %v2780
    %7732 = vmatmul.mubr.bf16.gmra.mrb[0].mxu0 %v2779
    %v7733 = vpop.f32.mrb[0].mxu0
    %v7734 = vadd.f32 %v7694, %v7733
    %v7735 = vpop.f32.mrb[0].mxu0
    %v7736 = vpop.f32.mrb[0].mxu0
    %v7737 = vpop.f32.mrb[0].mxu0
    %7738 = vdwg.mxu0
    %7739 = vmatprep.subr.bf16.mxu0 0
    %7740 = vmatpush1.bf16.msra.mxu0 %v6211
    %7741 = vmatprep.subr.bf16.mxu0 0
    %7742 = vmatpush1.bf16.msra.mxu0 %v6212
    %7743 = vmatprep.subr.bf16.mxu0 0
    %7744 = vmatpush1.bf16.msra.mxu0 %v6213
    %7745 = vmatprep.subr.bf16.mxu0 0
    %7746 = vmatpush1.bf16.msra.mxu0 %v6214
    %7747 = vmatprep.subr.bf16.mxu0 0
    %7748 = vmatpush1.bf16.msra.mxu0 %v6215
    %7749 = vmatprep.subr.bf16.mxu0 0
    %7750 = vmatpush1.bf16.msra.mxu0 %v6216
    %7751 = vmatprep.subr.bf16.mxu0 0
    %7752 = vmatpush1.bf16.msra.mxu0 %v6217
    %7753 = vmatprep.subr.bf16.mxu0 0
    %7754 = vmatpush1.bf16.msra.mxu0 %v6218
    %7755 = vmatprep.subr.bf16.mxu0 0
    %7756 = vmatpush1.bf16.msra.mxu0 %v6219
    %7757 = vmatprep.subr.bf16.mxu0 0
    %7758 = vmatpush1.bf16.msra.mxu0 %v6220
    %7759 = vmatprep.subr.bf16.mxu0 0
    %7760 = vmatpush1.bf16.msra.mxu0 %v6221
    %7761 = vmatprep.subr.bf16.mxu0 0
    %7762 = vmatpush1.bf16.msra.mxu0 %v6222
    %7763 = vmatprep.subr.bf16.mxu0 0
    %7764 = vmatpush1.bf16.msra.mxu0 %v6223
    %7765 = vmatprep.subr.bf16.mxu0 0
    %7766 = vmatpush1.bf16.msra.mxu0 %v6224
    %7767 = vmatprep.subr.bf16.mxu0 0
    %7768 = vmatpush1.bf16.msra.mxu0 %v6225
    %7769 = vmatprep.subr.bf16.mxu0 0
    %7770 = vmatpush1.bf16.msra.mxu0 %v6226
    %7771 = vmatprep.mubr.bf16.mxu0 %v2782
    %7772 = vmatmul.mubr.bf16.gmra.mrb[0].mxu0 %v2781
    %v7773 = vpop.f32.mrb[0].mxu0
    %v7774 = vadd.f32 %v7734, %v7773
    %v7775 = vpop.f32.mrb[0].mxu0
    %v7776 = vpop.f32.mrb[0].mxu0
    %v7777 = vpop.f32.mrb[0].mxu0
    %7778 = vdwg.mxu0
    %7779 = vmatprep.subr.bf16.mxu0 0
    %7780 = vmatpush1.bf16.msra.mxu0 %v6227
    %7781 = vmatprep.subr.bf16.mxu0 0
    %7782 = vmatpush1.bf16.msra.mxu0 %v6228
    %7783 = vmatprep.subr.bf16.mxu0 0
    %7784 = vmatpush1.bf16.msra.mxu0 %v6229
    %7785 = vmatprep.subr.bf16.mxu0 0
    %7786 = vmatpush1.bf16.msra.mxu0 %v6230
    %7787 = vmatprep.subr.bf16.mxu0 0
    %7788 = vmatpush1.bf16.msra.mxu0 %v6231
    %7789 = vmatprep.subr.bf16.mxu0 0
    %7790 = vmatpush1.bf16.msra.mxu0 %v6232
    %7791 = vmatprep.subr.bf16.mxu0 0
    %7792 = vmatpush1.bf16.msra.mxu0 %v6233
    %7793 = vmatprep.subr.bf16.mxu0 0
    %7794 = vmatpush1.bf16.msra.mxu0 %v6234
    %7795 = vmatprep.subr.bf16.mxu0 0
    %7796 = vmatpush1.bf16.msra.mxu0 %v6235
    %7797 = vmatprep.subr.bf16.mxu0 0
    %7798 = vmatpush1.bf16.msra.mxu0 %v6236
    %7799 = vmatprep.subr.bf16.mxu0 0
    %7800 = vmatpush1.bf16.msra.mxu0 %v6237
    %7801 = vmatprep.subr.bf16.mxu0 0
    %7802 = vmatpush1.bf16.msra.mxu0 %v6238
    %7803 = vmatprep.subr.bf16.mxu0 0
    %7804 = vmatpush1.bf16.msra.mxu0 %v6239
    %7805 = vmatprep.subr.bf16.mxu0 0
    %7806 = vmatpush1.bf16.msra.mxu0 %v6240
    %7807 = vmatprep.subr.bf16.mxu0 0
    %7808 = vmatpush1.bf16.msra.mxu0 %v6241
    %7809 = vmatprep.subr.bf16.mxu0 0
    %7810 = vmatpush1.bf16.msra.mxu0 %v6242
    %7811 = vmatprep.mubr.bf16.mxu0 %v2784
    %7812 = vmatmul.mubr.bf16.gmra.mrb[0].mxu0 %v2783
    %v7813 = vpop.f32.mrb[0].mxu0
    %v7814 = vadd.f32 %v7774, %v7813
    %v7815 = vpop.f32.mrb[0].mxu0
    %v7816 = vpop.f32.mrb[0].mxu0
    %v7817 = vpop.f32.mrb[0].mxu0
    %7818 = vdwg.mxu0
    %7819 = vmatprep.subr.bf16.mxu0 0
    %7820 = vmatpush1.bf16.msra.mxu0 %v6243
    %7821 = vmatprep.subr.bf16.mxu0 0
    %7822 = vmatpush1.bf16.msra.mxu0 %v6244
    %7823 = vmatprep.subr.bf16.mxu0 0
    %7824 = vmatpush1.bf16.msra.mxu0 %v6245
    %7825 = vmatprep.subr.bf16.mxu0 0
    %7826 = vmatpush1.bf16.msra.mxu0 %v6246
    %7827 = vmatprep.subr.bf16.mxu0 0
    %7828 = vmatpush1.bf16.msra.mxu0 %v6247
    %7829 = vmatprep.subr.bf16.mxu0 0
    %7830 = vmatpush1.bf16.msra.mxu0 %v6248
    %7831 = vmatprep.subr.bf16.mxu0 0
    %7832 = vmatpush1.bf16.msra.mxu0 %v6249
    %7833 = vmatprep.subr.bf16.mxu0 0
    %7834 = vmatpush1.bf16.msra.mxu0 %v6250
    %7835 = vmatprep.subr.bf16.mxu0 0
    %7836 = vmatpush1.bf16.msra.mxu0 %v6251
    %7837 = vmatprep.subr.bf16.mxu0 0
    %7838 = vmatpush1.bf16.msra.mxu0 %v6252
    %7839 = vmatprep.subr.bf16.mxu0 0
    %7840 = vmatpush1.bf16.msra.mxu0 %v6253
    %7841 = vmatprep.subr.bf16.mxu0 0
    %7842 = vmatpush1.bf16.msra.mxu0 %v6254
    %7843 = vmatprep.subr.bf16.mxu0 0
    %7844 = vmatpush1.bf16.msra.mxu0 %v6255
    %7845 = vmatprep.subr.bf16.mxu0 0
    %7846 = vmatpush1.bf16.msra.mxu0 %v6256
    %7847 = vmatprep.subr.bf16.mxu0 0
    %7848 = vmatpush1.bf16.msra.mxu0 %v6257
    %7849 = vmatprep.subr.bf16.mxu0 0
    %7850 = vmatpush1.bf16.msra.mxu0 %v6258
    %7851 = vmatprep.mubr.bf16.mxu0 %v2786
    %7852 = vmatmul.mubr.bf16.gmra.mrb[0].mxu0 %v2785
    %v7853 = vpop.f32.mrb[0].mxu0
    %v7854 = vadd.f32 %v7814, %v7853
    %v7855 = vpop.f32.mrb[0].mxu0
    %v7856 = vpop.f32.mrb[0].mxu0
    %v7857 = vpop.f32.mrb[0].mxu0
    %7858 = vdwg.mxu0
    %7859 = vmatprep.subr.bf16.mxu0 0
    %7860 = vmatpush1.bf16.msra.mxu0 %v6259
    %7861 = vmatprep.subr.bf16.mxu0 0
    %7862 = vmatpush1.bf16.msra.mxu0 %v6260
    %7863 = vmatprep.subr.bf16.mxu0 0
    %7864 = vmatpush1.bf16.msra.mxu0 %v6261
    %7865 = vmatprep.subr.bf16.mxu0 0
    %7866 = vmatpush1.bf16.msra.mxu0 %v6262
    %7867 = vmatprep.subr.bf16.mxu0 0
    %7868 = vmatpush1.bf16.msra.mxu0 %v6263
    %7869 = vmatprep.subr.bf16.mxu0 0
    %7870 = vmatpush1.bf16.msra.mxu0 %v6264
    %7871 = vmatprep.subr.bf16.mxu0 0
    %7872 = vmatpush1.bf16.msra.mxu0 %v6265
    %7873 = vmatprep.subr.bf16.mxu0 0
    %7874 = vmatpush1.bf16.msra.mxu0 %v6266
    %7875 = vmatprep.subr.bf16.mxu0 0
    %7876 = vmatpush1.bf16.msra.mxu0 %v6267
    %7877 = vmatprep.subr.bf16.mxu0 0
    %7878 = vmatpush1.bf16.msra.mxu0 %v6268
    %7879 = vmatprep.subr.bf16.mxu0 0
    %7880 = vmatpush1.bf16.msra.mxu0 %v6269
    %7881 = vmatprep.subr.bf16.mxu0 0
    %7882 = vmatpush1.bf16.msra.mxu0 %v6270
    %7883 = vmatprep.subr.bf16.mxu0 0
    %7884 = vmatpush1.bf16.msra.mxu0 %v6271
    %7885 = vmatprep.subr.bf16.mxu0 0
    %7886 = vmatpush1.bf16.msra.mxu0 %v6272
    %7887 = vmatprep.subr.bf16.mxu0 0
    %7888 = vmatpush1.bf16.msra.mxu0 %v6273
    %7889 = vmatprep.subr.bf16.mxu0 0
    %7890 = vmatpush1.bf16.msra.mxu0 %v6274
    %7891 = vmatprep.mubr.bf16.mxu0 %v2788
    %7892 = vmatmul.mubr.bf16.gmra.mrb[0].mxu0 %v2787
    %v7893 = vpop.f32.mrb[0].mxu0
    %v7894 = vadd.f32 %v7854, %v7893
    %v7895 = vpop.f32.mrb[0].mxu0
    %v7896 = vpop.f32.mrb[0].mxu0
    %v7897 = vpop.f32.mrb[0].mxu0
    %7898 = vdwg.mxu0
    %7899 = vmatprep.subr.bf16.mxu0 0
    %7900 = vmatpush1.bf16.msra.mxu0 %v6275
    %7901 = vmatprep.subr.bf16.mxu0 0
    %7902 = vmatpush1.bf16.msra.mxu0 %v6276
    %7903 = vmatprep.subr.bf16.mxu0 0
    %7904 = vmatpush1.bf16.msra.mxu0 %v6277
    %7905 = vmatprep.subr.bf16.mxu0 0
    %7906 = vmatpush1.bf16.msra.mxu0 %v6278
    %7907 = vmatprep.subr.bf16.mxu0 0
    %7908 = vmatpush1.bf16.msra.mxu0 %v6279
    %7909 = vmatprep.subr.bf16.mxu0 0
    %7910 = vmatpush1.bf16.msra.mxu0 %v6280
    %7911 = vmatprep.subr.bf16.mxu0 0
    %7912 = vmatpush1.bf16.msra.mxu0 %v6281
    %7913 = vmatprep.subr.bf16.mxu0 0
    %7914 = vmatpush1.bf16.msra.mxu0 %v6282
    %7915 = vmatprep.subr.bf16.mxu0 0
    %7916 = vmatpush1.bf16.msra.mxu0 %v6283
    %7917 = vmatprep.subr.bf16.mxu0 0
    %7918 = vmatpush1.bf16.msra.mxu0 %v6284
    %7919 = vmatprep.subr.bf16.mxu0 0
    %7920 = vmatpush1.bf16.msra.mxu0 %v6285
    %7921 = vmatprep.subr.bf16.mxu0 0
    %7922 = vmatpush1.bf16.msra.mxu0 %v6286
    %7923 = vmatprep.subr.bf16.mxu0 0
    %7924 = vmatpush1.bf16.msra.mxu0 %v6287
    %7925 = vmatprep.subr.bf16.mxu0 0
    %7926 = vmatpush1.bf16.msra.mxu0 %v6288
    %7927 = vmatprep.subr.bf16.mxu0 0
    %7928 = vmatpush1.bf16.msra.mxu0 %v6289
    %7929 = vmatprep.subr.bf16.mxu0 0
    %7930 = vmatpush1.bf16.msra.mxu0 %v6290
    %7931 = vmatprep.mubr.bf16.mxu0 %v2790
    %7932 = vmatmul.mubr.bf16.gmra.mrb[0].mxu0 %v2789
    %v7933 = vpop.f32.mrb[0].mxu0
    %v7934 = vadd.f32 %v7894, %v7933
    %v7935 = vpop.f32.mrb[0].mxu0
    %v7936 = vpop.f32.mrb[0].mxu0
    %v7937 = vpop.f32.mrb[0].mxu0
    %7938 = vdwg.mxu0
    %7939 = vmatprep.subr.bf16.mxu0 0
    %7940 = vmatpush1.bf16.msra.mxu0 %v6291
    %7941 = vmatprep.subr.bf16.mxu0 0
    %7942 = vmatpush1.bf16.msra.mxu0 %v6292
    %7943 = vmatprep.subr.bf16.mxu0 0
    %7944 = vmatpush1.bf16.msra.mxu0 %v6293
    %7945 = vmatprep.subr.bf16.mxu0 0
    %7946 = vmatpush1.bf16.msra.mxu0 %v6294
    %7947 = vmatprep.subr.bf16.mxu0 0
    %7948 = vmatpush1.bf16.msra.mxu0 %v6295
    %7949 = vmatprep.subr.bf16.mxu0 0
    %7950 = vmatpush1.bf16.msra.mxu0 %v6296
    %7951 = vmatprep.subr.bf16.mxu0 0
    %7952 = vmatpush1.bf16.msra.mxu0 %v6297
    %7953 = vmatprep.subr.bf16.mxu0 0
    %7954 = vmatpush1.bf16.msra.mxu0 %v6298
    %7955 = vmatprep.subr.bf16.mxu0 0
    %7956 = vmatpush1.bf16.msra.mxu0 %v6299
    %7957 = vmatprep.subr.bf16.mxu0 0
    %7958 = vmatpush1.bf16.msra.mxu0 %v6300
    %7959 = vmatprep.subr.bf16.mxu0 0
    %7960 = vmatpush1.bf16.msra.mxu0 %v6301
    %7961 = vmatprep.subr.bf16.mxu0 0
    %7962 = vmatpush1.bf16.msra.mxu0 %v6302
    %7963 = vmatprep.subr.bf16.mxu0 0
    %7964 = vmatpush1.bf16.msra.mxu0 %v6303
    %7965 = vmatprep.subr.bf16.mxu0 0
    %7966 = vmatpush1.bf16.msra.mxu0 %v6304
    %7967 = vmatprep.subr.bf16.mxu0 0
    %7968 = vmatpush1.bf16.msra.mxu0 %v6305
    %7969 = vmatprep.subr.bf16.mxu0 0
    %7970 = vmatpush1.bf16.msra.mxu0 %v6306
    %7971 = vmatprep.mubr.bf16.mxu0 %v2792
    %7972 = vmatmul.mubr.bf16.gmra.mrb[0].mxu0 %v2791
    %v7973 = vpop.f32.mrb[0].mxu0
    %v7974 = vadd.f32 %v7934, %v7973
    %v7975 = vpop.f32.mrb[0].mxu0
    %v7976 = vpop.f32.mrb[0].mxu0
    %v7977 = vpop.f32.mrb[0].mxu0
    %7978 = vdwg.mxu0
    %7979 = vmatprep.subr.bf16.mxu0 0
    %7980 = vmatpush1.bf16.msra.mxu0 %v6307
    %7981 = vmatprep.subr.bf16.mxu0 0
    %7982 = vmatpush1.bf16.msra.mxu0 %v6308
    %7983 = vmatprep.subr.bf16.mxu0 0
    %7984 = vmatpush1.bf16.msra.mxu0 %v6309
    %7985 = vmatprep.subr.bf16.mxu0 0
    %7986 = vmatpush1.bf16.msra.mxu0 %v6310
    %7987 = vmatprep.subr.bf16.mxu0 0
    %7988 = vmatpush1.bf16.msra.mxu0 %v6311
    %7989 = vmatprep.subr.bf16.mxu0 0
    %7990 = vmatpush1.bf16.msra.mxu0 %v6312
    %7991 = vmatprep.subr.bf16.mxu0 0
    %7992 = vmatpush1.bf16.msra.mxu0 %v6313
    %7993 = vmatprep.subr.bf16.mxu0 0
    %7994 = vmatpush1.bf16.msra.mxu0 %v6314
    %7995 = vmatprep.subr.bf16.mxu0 0
    %7996 = vmatpush1.bf16.msra.mxu0 %v6315
    %7997 = vmatprep.subr.bf16.mxu0 0
    %7998 = vmatpush1.bf16.msra.mxu0 %v6316
    %7999 = vmatprep.subr.bf16.mxu0 0
    %8000 = vmatpush1.bf16.msra.mxu0 %v6317
    %8001 = vmatprep.subr.bf16.mxu0 0
    %8002 = vmatpush1.bf16.msra.mxu0 %v6318
    %8003 = vmatprep.subr.bf16.mxu0 0
    %8004 = vmatpush1.bf16.msra.mxu0 %v6319
    %8005 = vmatprep.subr.bf16.mxu0 0
    %8006 = vmatpush1.bf16.msra.mxu0 %v6320
    %8007 = vmatprep.subr.bf16.mxu0 0
    %8008 = vmatpush1.bf16.msra.mxu0 %v6321
    %8009 = vmatprep.subr.bf16.mxu0 0
    %8010 = vmatpush1.bf16.msra.mxu0 %v6322
    %8011 = vmatprep.mubr.bf16.mxu0 %v2794
    %8012 = vmatmul.mubr.bf16.gmra.mrb[0].mxu0 %v2793
    %v8013 = vpop.f32.mrb[0].mxu0
    %v8014 = vadd.f32 %v7974, %v8013
    %v8015 = vpop.f32.mrb[0].mxu0
    %v8016 = vpop.f32.mrb[0].mxu0
    %v8017 = vpop.f32.mrb[0].mxu0
    %8018 = vdwg.mxu0
    %8019 = vmatprep.subr.bf16.mxu0 0
    %8020 = vmatpush1.bf16.msra.mxu0 %v6323
    %8021 = vmatprep.subr.bf16.mxu0 0
    %8022 = vmatpush1.bf16.msra.mxu0 %v6324
    %8023 = vmatprep.subr.bf16.mxu0 0
    %8024 = vmatpush1.bf16.msra.mxu0 %v6325
    %8025 = vmatprep.subr.bf16.mxu0 0
    %8026 = vmatpush1.bf16.msra.mxu0 %v6326
    %8027 = vmatprep.subr.bf16.mxu0 0
    %8028 = vmatpush1.bf16.msra.mxu0 %v6327
    %8029 = vmatprep.subr.bf16.mxu0 0
    %8030 = vmatpush1.bf16.msra.mxu0 %v6328
    %8031 = vmatprep.subr.bf16.mxu0 0
    %8032 = vmatpush1.bf16.msra.mxu0 %v6329
    %8033 = vmatprep.subr.bf16.mxu0 0
    %8034 = vmatpush1.bf16.msra.mxu0 %v6330
    %8035 = vmatprep.subr.bf16.mxu0 0
    %8036 = vmatpush1.bf16.msra.mxu0 %v6331
    %8037 = vmatprep.subr.bf16.mxu0 0
    %8038 = vmatpush1.bf16.msra.mxu0 %v6332
    %8039 = vmatprep.subr.bf16.mxu0 0
    %8040 = vmatpush1.bf16.msra.mxu0 %v6333
    %8041 = vmatprep.subr.bf16.mxu0 0
    %8042 = vmatpush1.bf16.msra.mxu0 %v6334
    %8043 = vmatprep.subr.bf16.mxu0 0
    %8044 = vmatpush1.bf16.msra.mxu0 %v6335
    %8045 = vmatprep.subr.bf16.mxu0 0
    %8046 = vmatpush1.bf16.msra.mxu0 %v6336
    %8047 = vmatprep.subr.bf16.mxu0 0
    %8048 = vmatpush1.bf16.msra.mxu0 %v6337
    %8049 = vmatprep.subr.bf16.mxu0 0
    %8050 = vmatpush1.bf16.msra.mxu0 %v6338
    %8051 = vmatprep.mubr.bf16.mxu0 %v2796
    %8052 = vmatmul.mubr.bf16.gmra.mrb[0].mxu0 %v2795
    %v8053 = vpop.f32.mrb[0].mxu0
    %v8054 = vadd.f32 %v8014, %v8053
    %v8055 = vpop.f32.mrb[0].mxu0
    %v8056 = vpop.f32.mrb[0].mxu0
    %v8057 = vpop.f32.mrb[0].mxu0
    %8058 = vdwg.mxu0
    %8059 = vmatprep.subr.bf16.mxu0 0
    %8060 = vmatpush1.bf16.msra.mxu0 %v6339
    %8061 = vmatprep.subr.bf16.mxu0 0
    %8062 = vmatpush1.bf16.msra.mxu0 %v6340
    %8063 = vmatprep.subr.bf16.mxu0 0
    %8064 = vmatpush1.bf16.msra.mxu0 %v6341
    %8065 = vmatprep.subr.bf16.mxu0 0
    %8066 = vmatpush1.bf16.msra.mxu0 %v6342
    %8067 = vmatprep.subr.bf16.mxu0 0
    %8068 = vmatpush1.bf16.msra.mxu0 %v6343
    %8069 = vmatprep.subr.bf16.mxu0 0
    %8070 = vmatpush1.bf16.msra.mxu0 %v6344
    %8071 = vmatprep.subr.bf16.mxu0 0
    %8072 = vmatpush1.bf16.msra.mxu0 %v6345
    %8073 = vmatprep.subr.bf16.mxu0 0
    %8074 = vmatpush1.bf16.msra.mxu0 %v6346
    %8075 = vmatprep.subr.bf16.mxu0 0
    %8076 = vmatpush1.bf16.msra.mxu0 %v6347
    %8077 = vmatprep.subr.bf16.mxu0 0
    %8078 = vmatpush1.bf16.msra.mxu0 %v6348
    %8079 = vmatprep.subr.bf16.mxu0 0
    %8080 = vmatpush1.bf16.msra.mxu0 %v6349
    %8081 = vmatprep.subr.bf16.mxu0 0
    %8082 = vmatpush1.bf16.msra.mxu0 %v6350
    %8083 = vmatprep.subr.bf16.mxu0 0
    %8084 = vmatpush1.bf16.msra.mxu0 %v6351
    %8085 = vmatprep.subr.bf16.mxu0 0
    %8086 = vmatpush1.bf16.msra.mxu0 %v6352
    %8087 = vmatprep.subr.bf16.mxu0 0
    %8088 = vmatpush1.bf16.msra.mxu0 %v6353
    %8089 = vmatprep.subr.bf16.mxu0 0
    %8090 = vmatpush1.bf16.msra.mxu0 %v6354
    %8091 = vmatprep.mubr.bf16.mxu0 %v2798
    %8092 = vmatmul.mubr.bf16.gmra.mrb[0].mxu0 %v2797
    %v8093 = vpop.f32.mrb[0].mxu0
    %v8094 = vadd.f32 %v8054, %v8093
    %v8095 = vpop.f32.mrb[0].mxu0
    %v8096 = vpop.f32.mrb[0].mxu0
    %v8097 = vpop.f32.mrb[0].mxu0
    %8098 = vdwg.mxu0
    %8099 = vmatprep.subr.bf16.mxu0 0
    %8100 = vmatpush1.bf16.msra.mxu0 %v6355
    %8101 = vmatprep.subr.bf16.mxu0 0
    %8102 = vmatpush1.bf16.msra.mxu0 %v6356
    %8103 = vmatprep.subr.bf16.mxu0 0
    %8104 = vmatpush1.bf16.msra.mxu0 %v6357
    %8105 = vmatprep.subr.bf16.mxu0 0
    %8106 = vmatpush1.bf16.msra.mxu0 %v6358
    %8107 = vmatprep.subr.bf16.mxu0 0
    %8108 = vmatpush1.bf16.msra.mxu0 %v6359
    %8109 = vmatprep.subr.bf16.mxu0 0
    %8110 = vmatpush1.bf16.msra.mxu0 %v6360
    %8111 = vmatprep.subr.bf16.mxu0 0
    %8112 = vmatpush1.bf16.msra.mxu0 %v6361
    %8113 = vmatprep.subr.bf16.mxu0 0
    %8114 = vmatpush1.bf16.msra.mxu0 %v6362
    %8115 = vmatprep.subr.bf16.mxu0 0
    %8116 = vmatpush1.bf16.msra.mxu0 %v6363
    %8117 = vmatprep.subr.bf16.mxu0 0
    %8118 = vmatpush1.bf16.msra.mxu0 %v6364
    %8119 = vmatprep.subr.bf16.mxu0 0
    %8120 = vmatpush1.bf16.msra.mxu0 %v6365
    %8121 = vmatprep.subr.bf16.mxu0 0
    %8122 = vmatpush1.bf16.msra.mxu0 %v6366
    %8123 = vmatprep.subr.bf16.mxu0 0
    %8124 = vmatpush1.bf16.msra.mxu0 %v6367
    %8125 = vmatprep.subr.bf16.mxu0 0
    %8126 = vmatpush1.bf16.msra.mxu0 %v6368
    %8127 = vmatprep.subr.bf16.mxu0 0
    %8128 = vmatpush1.bf16.msra.mxu0 %v6369
    %8129 = vmatprep.subr.bf16.mxu0 0
    %8130 = vmatpush1.bf16.msra.mxu0 %v6370
    %8131 = vmatprep.mubr.bf16.mxu0 %v2800
    %8132 = vmatmul.mubr.bf16.gmra.mrb[0].mxu0 %v2799
    %v8133 = vpop.f32.mrb[0].mxu0
    %v8134 = vadd.f32 %v8094, %v8133
    %v8135 = vpop.f32.mrb[0].mxu0
    %v8136 = vpop.f32.mrb[0].mxu0
    %v8137 = vpop.f32.mrb[0].mxu0
    %8138 = vdwg.mxu0
    %8139 = vmatprep.subr.bf16.mxu0 0
    %8140 = vmatpush1.bf16.msra.mxu0 %v6371
    %8141 = vmatprep.subr.bf16.mxu0 0
    %8142 = vmatpush1.bf16.msra.mxu0 %v6372
    %8143 = vmatprep.subr.bf16.mxu0 0
    %8144 = vmatpush1.bf16.msra.mxu0 %v6373
    %8145 = vmatprep.subr.bf16.mxu0 0
    %8146 = vmatpush1.bf16.msra.mxu0 %v6374
    %8147 = vmatprep.subr.bf16.mxu0 0
    %8148 = vmatpush1.bf16.msra.mxu0 %v6375
    %8149 = vmatprep.subr.bf16.mxu0 0
    %8150 = vmatpush1.bf16.msra.mxu0 %v6376
    %8151 = vmatprep.subr.bf16.mxu0 0
    %8152 = vmatpush1.bf16.msra.mxu0 %v6377
    %8153 = vmatprep.subr.bf16.mxu0 0
    %8154 = vmatpush1.bf16.msra.mxu0 %v6378
    %8155 = vmatprep.subr.bf16.mxu0 0
    %8156 = vmatpush1.bf16.msra.mxu0 %v6379
    %8157 = vmatprep.subr.bf16.mxu0 0
    %8158 = vmatpush1.bf16.msra.mxu0 %v6380
    %8159 = vmatprep.subr.bf16.mxu0 0
    %8160 = vmatpush1.bf16.msra.mxu0 %v6381
    %8161 = vmatprep.subr.bf16.mxu0 0
    %8162 = vmatpush1.bf16.msra.mxu0 %v6382
    %8163 = vmatprep.subr.bf16.mxu0 0
    %8164 = vmatpush1.bf16.msra.mxu0 %v6383
    %8165 = vmatprep.subr.bf16.mxu0 0
    %8166 = vmatpush1.bf16.msra.mxu0 %v6384
    %8167 = vmatprep.subr.bf16.mxu0 0
    %8168 = vmatpush1.bf16.msra.mxu0 %v6385
    %8169 = vmatprep.subr.bf16.mxu0 0
    %8170 = vmatpush1.bf16.msra.mxu0 %v6386
    %8171 = vmatprep.mubr.bf16.mxu0 %v2802
    %8172 = vmatmul.mubr.bf16.gmra.mrb[0].mxu0 %v2801
    %v8173 = vpop.f32.mrb[0].mxu0
    %v8174 = vadd.f32 %v8134, %v8173
    %v8175 = vpop.f32.mrb[0].mxu0
    %v8176 = vpop.f32.mrb[0].mxu0
    %v8177 = vpop.f32.mrb[0].mxu0
    %8178 = vdwg.mxu0
    %v8179 = vadd.f32 %v2386, %v8174
    %8180 = vst [vmem:[#allocation3] sm:$0x3] %v8179
    // Predicated region
    $region70: #{placement_net_forward.1} parent=1 // pred_check
      %p8181 = pneg %p115
    $region71: #{placement_net_forward.1} parent=1 // pred_check_branch
      %8183 = sbr.rel (%p8181) target = $region73
    $region72: #{placement_net_forward.1} parent=1 // pred_region
      %v8184 = vld [vmem:[#allocation3] sm:$0x3]
      %v8185 = vld [vmem:[#allocation10] sm:$0x1]
      %v8187 = vlaneseq
      %v8188 = vshrl.u32 %v8187, 7
      %v8189 = vsub.s32 0, %v8188
      %v8190 = vrot.slane %v8185, %v8189
      %v8192 = vadd.f32 %v8184, %v8190
      %v8193 = vmax.f32 %v8192, 0.0
      %v8194 = vpack.c.bf16 %v8193, %v8193
      %v8195 = vld [vmem:[#allocation12] sm:$0xff]
      %v8196 = vld [vmem:[#allocation12 + $0x8] sm:$0xff]
      %v8197 = vld [vmem:[#allocation12 + $0x10] sm:$0xff]
      %v8198 = vld [vmem:[#allocation12 + $0x18] sm:$0xff]
      %v8199 = vld [vmem:[#allocation12 + $0x20] sm:$0xff]
      %v8200 = vld [vmem:[#allocation12 + $0x28] sm:$0xff]
      %v8201 = vld [vmem:[#allocation12 + $0x30] sm:$0xff]
      %v8202 = vld [vmem:[#allocation12 + $0x38] sm:$0xff]
      %v8203 = vld [vmem:[#allocation12 + $0x40] sm:$0xff]
      %v8204 = vld [vmem:[#allocation12 + $0x48] sm:$0xff]
      %v8205 = vld [vmem:[#allocation12 + $0x50] sm:$0xff]
      %v8206 = vld [vmem:[#allocation12 + $0x58] sm:$0xff]
      %v8207 = vld [vmem:[#allocation12 + $0x60] sm:$0xff]
      %v8208 = vld [vmem:[#allocation12 + $0x68] sm:$0xff]
      %v8209 = vld [vmem:[#allocation12 + $0x70] sm:$0xff]
      %v8210 = vld [vmem:[#allocation12 + $0x78] sm:$0xff]
      %v8211 = vld [vmem:[#allocation13] sm:$0x3]
      %v8213 = vlaneseq
      %v8214 = vshrl.u32 %v8213, 7
      %v8215 = vsub.s32 0, %v8214
      %v8216 = vrot.slane %v8211, %v8215
      %v8217 = vlaneseq
      %v8218 = vshrl.u32 %v8217, 7
      %v8219 = vsub.s32 1, %v8218
      %v8220 = vrot.slane %v8211, %v8219
      %v8239 = vunpack.c.l.b16 %v8195
      %v8240 = vunpack.c.h.b16 %v8195
      %v8241 = vunpack.c.l.b16 %v8196
      %v8242 = vunpack.c.h.b16 %v8196
      %v8243 = vunpack.c.l.b16 %v8197
      %v8244 = vunpack.c.h.b16 %v8197
      %v8245 = vunpack.c.l.b16 %v8198
      %v8246 = vunpack.c.h.b16 %v8198
      %v8247 = vunpack.c.l.b16 %v8199
      %v8248 = vunpack.c.h.b16 %v8199
      %v8249 = vunpack.c.l.b16 %v8200
      %v8250 = vunpack.c.h.b16 %v8200
      %v8251 = vunpack.c.l.b16 %v8201
      %v8252 = vunpack.c.h.b16 %v8201
      %v8253 = vunpack.c.l.b16 %v8202
      %v8254 = vunpack.c.h.b16 %v8202
      %v8255 = vunpack.c.l.b16 %v8203
      %v8256 = vunpack.c.h.b16 %v8203
      %v8257 = vunpack.c.l.b16 %v8204
      %v8258 = vunpack.c.h.b16 %v8204
      %v8259 = vunpack.c.l.b16 %v8205
      %v8260 = vunpack.c.h.b16 %v8205
      %v8261 = vunpack.c.l.b16 %v8206
      %v8262 = vunpack.c.h.b16 %v8206
      %v8263 = vunpack.c.l.b16 %v8207
      %v8264 = vunpack.c.h.b16 %v8207
      %v8265 = vunpack.c.l.b16 %v8208
      %v8266 = vunpack.c.h.b16 %v8208
      %v8267 = vunpack.c.l.b16 %v8209
      %v8268 = vunpack.c.h.b16 %v8209
      %v8269 = vunpack.c.l.b16 %v8210
      %v8270 = vunpack.c.h.b16 %v8210
      %v8271 = vpack.c.b16 %v8241, %v8239
      %v8272 = vpack.c.b16 %v8242, %v8240
      %v8273 = vpack.c.b16 %v8245, %v8243
      %v8274 = vpack.c.b16 %v8246, %v8244
      %v8275 = vpack.c.b16 %v8249, %v8247
      %v8276 = vpack.c.b16 %v8250, %v8248
      %v8277 = vpack.c.b16 %v8253, %v8251
      %v8278 = vpack.c.b16 %v8254, %v8252
      %v8279 = vpack.c.b16 %v8257, %v8255
      %v8280 = vpack.c.b16 %v8258, %v8256
      %v8281 = vpack.c.b16 %v8261, %v8259
      %v8282 = vpack.c.b16 %v8262, %v8260
      %v8283 = vpack.c.b16 %v8265, %v8263
      %v8284 = vpack.c.b16 %v8266, %v8264
      %v8285 = vpack.c.b16 %v8269, %v8267
      %v8286 = vpack.c.b16 %v8270, %v8268
      %8303 = vmatprep.subr.bf16.mxu0 %v8272
      %8304 = vmatpush1.bf16.msra.mxu0 %v8271
      %8305 = vmatprep.subr.bf16.mxu0 %v8274
      %8306 = vmatpush1.bf16.msra.mxu0 %v8273
      %8307 = vmatprep.subr.bf16.mxu0 %v8276
      %8308 = vmatpush1.bf16.msra.mxu0 %v8275
      %8309 = vmatprep.subr.bf16.mxu0 %v8278
      %8310 = vmatpush1.bf16.msra.mxu0 %v8277
      %8311 = vmatprep.subr.bf16.mxu0 %v8280
      %8312 = vmatpush1.bf16.msra.mxu0 %v8279
      %8313 = vmatprep.subr.bf16.mxu0 %v8282
      %8314 = vmatpush1.bf16.msra.mxu0 %v8281
      %8315 = vmatprep.subr.bf16.mxu0 %v8284
      %8316 = vmatpush1.bf16.msra.mxu0 %v8283
      %8317 = vmatprep.subr.bf16.mxu0 %v8286
      %8318 = vmatpush1.bf16.msra.mxu0 %v8285
      %8319 = vmatprep.subr.bf16.mxu0 0
      %8320 = vmatpush1.bf16.msra.mxu0 0
      %8321 = vmatprep.subr.bf16.mxu0 0
      %8322 = vmatpush1.bf16.msra.mxu0 0
      %8323 = vmatprep.subr.bf16.mxu0 0
      %8324 = vmatpush1.bf16.msra.mxu0 0
      %8325 = vmatprep.subr.bf16.mxu0 0
      %8326 = vmatpush1.bf16.msra.mxu0 0
      %8327 = vmatprep.subr.bf16.mxu0 0
      %8328 = vmatpush1.bf16.msra.mxu0 0
      %8329 = vmatprep.subr.bf16.mxu0 0
      %8330 = vmatpush1.bf16.msra.mxu0 0
      %8331 = vmatprep.subr.bf16.mxu0 0
      %8332 = vmatpush1.bf16.msra.mxu0 0
      %8333 = vmatprep.subr.bf16.mxu0 0
      %8334 = vmatpush1.bf16.msra.mxu0 0
      %8335 = vmatprep.mubr.bf16.mxu0 0
      %8336 = vmatmul.mubr.bf16.gmra.mrb[0].mxu0 %v8194
      %v8337 = vpop.f32.mrb[0].mxu0
      %v8338 = vadd.f32 %v8216, %v8337
      %v8339 = vpop.f32.mrb[0].mxu0
      %v8340 = vadd.f32 %v8220, %v8339
      %v8341 = vpop.f32.mrb[0].mxu0
      %v8342 = vpop.f32.mrb[0].mxu0
      %8343 = vdwg.mxu0
      %v8346 = vcombine.low %v8338, %v8340
      %v8348 = vunpack.c.l.s4 1983009808
      %v8349 = vunpack.c.0.s8 %v8348
      %v8350 = vlaneseq
      %v8351 = vshrl.u32 %v8350, 7
      %v8352 = vsub.s32 %v8349, %v8351
      %v8353 = vrot.slane %v8346, %v8352
      %8355 = vst [vmem:[#allocation15] sm:$0xf] %v8353
    $region73: #{placement_net_forward.1} parent=1 // pred_fallthru
      _
    // Predicated region
    $region74: #{placement_net_forward.1} parent=1 // pred_check
      _
    $region75: #{placement_net_forward.1} parent=1 // pred_check_branch
      %8357 = sbr.rel (0) target = $region77
    $region76: #{placement_net_forward.1} parent=1 // pred_region
      %s8359 = ssub.s32 64, 64
      %8360 = vsyncadd [#allocation6], %s8359
      %s8362 = sshll.u32 [#allocation15], 4
      %s8363 = int_to_ptr.vmem [resolvable:$true] %s8362
      %8365 = dma.vmem_to_hbm [thread:$0]  %s8363, 64, %s10, [#allocation6]
    $region77: #{placement_net_forward.1} parent=1 // pred_fallthru
      _
    // Predicated region
    $region78: #{placement_net_forward.1} parent=1 // pred_check
      _
    $region79: #{placement_net_forward.1} parent=1 // pred_check_branch
      %8367 = sbr.rel (0) target = $region81
    $region80: #{placement_net_forward.1} parent=1 // pred_region
      %8368 = dma.done [#allocation6], 64
    $region81: #{placement_net_forward.1} parent=1 // pred_fallthru
      _
    %8369 = vsyncpa [#allocation5], 1
    %8370 = vsyncpa [#allocation8], 1
    %8371 = vsyncpa [#allocation11], 1
    %8372 = vsyncpa [#allocation14], 1
    %8373 = vsyncpa [#allocation6], 1

</llo_original>
